<compile_context>
chip_gen: v7x
topology: tpu7x:2x2x1
jax: 0.10.0
libtpu: 0.0.40
codegen_flags: <defaults>
</compile_context>

<pallas_src>
import jax
import jax.numpy as jnp
import numpy as np
from jax.experimental import pallas as pl
from jax.experimental.pallas import tpu as pltpu


# ------------------------------ fused kernel -------------------------------

def _cnn_fused_kernel(x_ref, w1_ref, b1_ref, w2_ref, b2_ref, wl_ref, bl_ref,
                      o_ref, pad_ref, p_ref):
    """Whole network for one image.

    x_ref : (1, 1, 28, 28) f32      raw image
    w1_ref: (5, 28, 672)   bf16     conv1 banded matmul weights, one per kh;
                                    output lane = (x%2)*384 + (x//2+2)*16 + c
    b1_ref: (1, 288)       f32      conv1 bias on pooled lanes (0 on pad lanes)
    w2_ref: (2, 3, 288, 1024) bf16  conv2 banded matmul weights per
                                    (input row parity py, row offset gy);
                                    output lane = e*512 + (x%2)*256 + (x//2)*32 + f
    b2_ref: (1, 224)       f32      conv2 bias tiled over the 7 pooled columns
    wl_ref: (7, 224, 128)  bf16     Linear weight, one slab per pooled row,
                                    rows = (pooled col, channel), N padded ->128
    bl_ref: (1, 128)       f32      Linear bias, padded
    o_ref : (1, 1, 128)    f32      logits (lanes 10..127 stay zero)
    pad_ref: (32, 28)  f32 VMEM     row-padded image scratch
    p_ref : (2, 9, 288) f32 VMEM    pool1 activations, row-parity split with a
                                    zero ring: p_ref[p, r, xc*16+c]
                                             = pad(pool1_act)[2r+p, xc, c]
    """
    # ---- stage 1: Conv2d(1,16,5,pad=2) + bias + ReLU + MaxPool2d(2) --------
    pad_ref[...] = jnp.zeros_like(pad_ref)          # row zero-padding
    pad_ref[2:30, :] = x_ref[0, 0]                  # column padding is in w1

    conv = None
    for kh in range(5):                             # 5 banded matmuls
        lhs = pad_ref[kh:kh + 28, :].astype(jnp.bfloat16)            # (28, 28)
        part = jnp.dot(lhs, w1_ref[kh], preferred_element_type=jnp.float32)
        conv = part if conv is None else conv + part                 # (28, 672)

    # max-pool along x: the two column parities sit in 128-aligned lane
    # regions; pooled lane = (j+2)*16 + c (j = pooled column, + zero ring).
    xp = jnp.maximum(conv[:, 0:288], conv[:, 384:672])               # (28, 288)
    act1 = jnp.maximum(xp + b1_ref[...], 0.0)                        # bias+ReLU
    # max-pool along y: pair_max[y] = max(row y, row y+1); keep rows 0,2,..,26.
    pair_max = jnp.maximum(act1[0:27, :], act1[1:28, :])             # (27, 288)

    # stage-2 input: row-parity split + zero padding ring (rows 0 and 8).
    p_ref[...] = jnp.zeros_like(p_ref)
    for p in range(2):
        for r in range(7):
            y0 = 4 * r + 2 * p                       # conv1 row of pool row 2r+p
            p_ref[p, r + 1:r + 2, :] = pair_max[y0:y0 + 1, :]

    # ---- stage 2: Conv2d(16,32,5,pad=2) + bias + ReLU + MaxPool2d(2) -------
    acc2 = None
    for py in range(2):
        for gy in range(3):                          # 6 banded matmuls
            lhs = p_ref[py, gy:gy + 7, :].astype(jnp.bfloat16)       # (7, 288)
            part = jnp.dot(lhs, w2_ref[py, gy],
                           preferred_element_type=jnp.float32)       # (7, 1024)
            acc2 = part if acc2 is None else acc2 + part

    # both pooling directions are aligned lane-slice maxima (row parity e and
    # column parity were baked into the w2 output-lane layout).
    m1 = jnp.maximum(acc2[:, 0:512], acc2[:, 512:1024])              # (7, 512)
    m2 = jnp.maximum(m1[:, 0:224], m1[:, 256:480])                   # (7, 224)
    act2 = jnp.maximum(m2 + b2_ref[...], 0.0).astype(jnp.bfloat16)

    # ---- stage 3: Linear(32*7*7 -> 10), N padded to 128 ---------------------
    out = bl_ref[...]                                                # (1, 128)
    for a in range(7):
        out = out + jnp.dot(act2[a:a + 1, :], wl_ref[a],
                            preferred_element_type=jnp.float32)
    o_ref[0] = out


# ------------------------------- wrapper ------------------------------------

def cnn_pallas_call(x, params):
    B = x.shape[0]
    return pl.pallas_call(
        _cnn_fused_kernel,
        out_shape=jax.ShapeDtypeStruct((B, 1, 128), jnp.float32),
        grid=(B,),
        in_specs=[
            pl.BlockSpec((1, 1, 28, 28), lambda b: (b, 0, 0, 0)),
            pl.BlockSpec((5, 28, 672), lambda b: (0, 0, 0)),
            pl.BlockSpec((1, 288), lambda b: (0, 0)),
            pl.BlockSpec((2, 3, 288, 1024), lambda b: (0, 0, 0, 0)),
            pl.BlockSpec((1, 224), lambda b: (0, 0)),
            pl.BlockSpec((7, 224, 128), lambda b: (0, 0, 0)),
            pl.BlockSpec((1, 128), lambda b: (0, 0)),
        ],
        out_specs=pl.BlockSpec((1, 1, 128), lambda b: (b, 0, 0)),
        scratch_shapes=[
            pltpu.VMEM((32, 28), jnp.float32),       # row-padded image
            pltpu.VMEM((2, 9, 288), jnp.float32),    # padded, parity-split pool1
        ],
        compiler_params=pltpu.CompilerParams(
            dimension_semantics=("parallel",)),      # v7x: both TCs at B=2
    )(x, params["w1m"], params["b1t"], params["w2m"], params["b2t"],
      params["wl"], params["bl"])


@jax.jit
def cnn_forward(x_nchw, params):
    out = cnn_pallas_call(x_nchw, params)
    return out[:, 0, :10]


# --------------------------- parameter handling -----------------------------

def init_raw_params(key):
    """Parameters in the PyTorch Conv2d / Linear layout."""
    k1, k2, k3, k4, k5, k6 = jax.random.split(key, 6)
    return {
        "w1": 0.1 * jax.random.normal(k1, (16, 1, 5, 5), jnp.float32),
        "b1": 0.1 * jax.random.normal(k2, (16,), jnp.float32),
        "w2": 0.05 * jax.random.normal(k3, (32, 16, 5, 5), jnp.float32),
        "b2": 0.1 * jax.random.normal(k4, (32,), jnp.float32),
        "wo": 0.02 * jax.random.normal(k5, (10, 32 * 7 * 7), jnp.float32),
        "bo": 0.1 * jax.random.normal(k6, (10,), jnp.float32),
    }


def prepare_params(raw):
    """One-time re-layout of the PyTorch weights into banded matmul form."""
    w1 = np.asarray(raw["w1"], np.float32)   # (16, 1, 5, 5)  [c, 1, kh, kw]
    b1 = np.asarray(raw["b1"], np.float32)
    w2 = np.asarray(raw["w2"], np.float32)   # (32, 16, 5, 5) [f, c, kh, kw]
    b2 = np.asarray(raw["b2"], np.float32)
    wo = np.asarray(raw["wo"], np.float32)   # (10, 1568)
    bo = np.asarray(raw["bo"], np.float32)

    # conv1: per-kh banded matmul over the 28 image columns;
    # output lane = (x%2)*384 + (x//2 + 2)*16 + c  (x = conv column).
    w1m = np.zeros((5, 28, 672), np.float32)
    for kh in range(5):
        for x in range(28):
            base = (x % 2) * 384 + (x // 2 + 2) * 16
            for kw in range(5):
                xco = x + kw - 2                     # image column (pad = 2)
                if 0 <= xco < 28:
                    w1m[kh, xco, base:base + 16] = w1[:, 0, kh, kw]
    b1t = np.zeros((1, 288), np.float32)
    b1t[0, 32:256] = np.tile(b1, 14)                 # zero on padding lanes

    # conv2: banded matmul per (input row parity py, row offset gy);
    # K = 18 padded pool1 columns x 16 channels = 288,
    # output lane = e*512 + (x%2)*256 + (x//2)*32 + f (e = conv2 row parity).
    w2m = np.zeros((2, 3, 288, 1024), np.float32)
    for py in range(2):
        for gy in range(3):
            for e in range(2):
                kh = 2 * gy + py - e
                if not 0 <= kh <= 4:
                    continue
                for x in range(14):
                    ob = e * 512 + (x % 2) * 256 + (x // 2) * 32
                    for kw in range(5):
                        xc = x + kw                  # padded pool1 column
                        w2m[py, gy, xc * 16:(xc + 1) * 16, ob:ob + 32] = \
                            w2[:, :, kh, kw].T       # (16, 32) = [c, f]
    b2t = np.tile(b2, 7).reshape(1, 224)

    # Linear: one (224, 128) slab per pooled row h, rows ordered (w, c) to
    # match the kernel's act2 lanes, absorbing PyTorch's NCHW .view() flatten
    # order (c*49 + h*7 + w); N padded 10 -> 128 for lane-dense stores.
    wl = np.zeros((7, 224, 128), np.float32)
    wfc = wo.reshape(10, 32, 7, 7)                   # [n, c, h, w]
    for h in range(7):
        wl[h, :, :10] = np.transpose(wfc[:, :, h, :], (2, 1, 0)).reshape(224, 10)
    blp = np.zeros((1, 128), np.float32)
    blp[0, :10] = bo

    return {
        "w1m": jnp.asarray(w1m, jnp.bfloat16),
        "b1t": jnp.asarray(b1t),
        "w2m": jnp.asarray(w2m, jnp.bfloat16),
        "b2t": jnp.asarray(b2t),
        "wl": jnp.asarray(wl, jnp.bfloat16),
        "bl": jnp.asarray(blp),
    }


# ------------------------------ reference -----------------------------------

def cnn_reference(x, raw):
    """Pure-JAX f32 reference matching the PyTorch module."""
    def conv(z, w, b):
        z = jax.lax.conv_general_dilated(
            z, w, (1, 1), ((2, 2), (2, 2)),
            dimension_numbers=("NCHW", "OIHW", "NCHW"))
        return jax.nn.relu(z + b.reshape(1, -1, 1, 1))

    def pool(z):
        return jax.lax.reduce_window(z, -jnp.inf, jax.lax.max,
                                     (1, 1, 2, 2), (1, 1, 2, 2), "VALID")

    z = pool(conv(x, raw["w1"], raw["b1"]))
    z = pool(conv(z, raw["w2"], raw["b2"]))
    flat = z.reshape(x.shape[0], -1)
    return flat @ raw["wo"].T + raw["bo"]


if __name__ == "__main__":
    key = jax.random.PRNGKey(0)
    kx, kp = jax.random.split(key)
    # Linear(32*7*7, 10) implies a 28x28 single-channel input (MNIST); B = 2.
    x = jax.random.normal(kx, (2, 1, 28, 28), jnp.float32)
    raw = init_raw_params(kp)
    params = prepare_params(raw)

    out = jax.block_until_ready(cnn_forward(x, params))
    assert out.shape == (2, 10) and out.dtype == jnp.float32

    # bf16 matmul operands -> loose tolerance vs the f32 reference.
    ref = cnn_reference(x, raw)
    err = float(jnp.max(jnp.abs(out - ref)))
    assert err < 0.1, f"mismatch vs f32 reference: max abs err = {err}"
    print("KERNEL_OK")
</pallas_src>

<mosaic_0001>
module attributes {stable_mosaic.version = 11 : i64} {
  func.func @_cnn_fused_kernel(%arg0: i32, %arg1: memref<1x1x28x28xf32, #tpu.memory_space<vmem>>, %arg2: memref<5x28x672xbf16, #tpu.memory_space<vmem>>, %arg3: memref<1x288xf32, #tpu.memory_space<vmem>>, %arg4: memref<2x3x288x1024xbf16, #tpu.memory_space<vmem>>, %arg5: memref<1x224xf32, #tpu.memory_space<vmem>>, %arg6: memref<7x224x128xbf16, #tpu.memory_space<vmem>>, %arg7: memref<1x128xf32, #tpu.memory_space<vmem>>, %arg8: memref<1x1x128xf32, #tpu.memory_space<vmem>>, %arg9: memref<32x28xf32, #tpu.memory_space<vmem>>, %arg10: memref<2x9x288xf32, #tpu.memory_space<vmem>>) attributes {dimension_semantics = [#tpu.dimension_semantics<parallel>], iteration_bounds = array<i64: 2>, scalar_prefetch = 0 : i64, scratch_operands = 2 : i64, tpu.core_type = #tpu.core_type<tc>, window_params = [{transform_indices = @transform_0, window_bounds = array<i64: 1, 1, 28, 28>}, {pipeline_mode = #tpu.pipeline_mode<synchronous>, transform_indices = @transform_1, window_bounds = array<i64: 5, 28, 672>}, {pipeline_mode = #tpu.pipeline_mode<synchronous>, transform_indices = @transform_2, window_bounds = array<i64: 1, 288>}, {pipeline_mode = #tpu.pipeline_mode<synchronous>, transform_indices = @transform_3, window_bounds = array<i64: 2, 3, 288, 1024>}, {pipeline_mode = #tpu.pipeline_mode<synchronous>, transform_indices = @transform_4, window_bounds = array<i64: 1, 224>}, {pipeline_mode = #tpu.pipeline_mode<synchronous>, transform_indices = @transform_5, window_bounds = array<i64: 7, 224, 128>}, {pipeline_mode = #tpu.pipeline_mode<synchronous>, transform_indices = @transform_6, window_bounds = array<i64: 1, 128>}, {transform_indices = @transform_7, window_bounds = array<i64: 1, 1, 128>}]} {
    %cst = arith.constant 0.000000e+00 : f32
    %0 = vector.broadcast %cst : f32 to vector<32x28xf32>
    %c0 = arith.constant 0 : index
    %c0_0 = arith.constant 0 : index
    %1 = vector.load %arg9[%c0, %c0_0] : memref<32x28xf32, #tpu.memory_space<vmem>>, vector<32x28xf32>
    tpu.vector_store %arg9[%c0, %c0_0], %0 {strides = array<i32>} : memref<32x28xf32, #tpu.memory_space<vmem>>, vector<32x28xf32>,
    %c0_1 = arith.constant 0 : index
    %c0_2 = arith.constant 0 : index
    %c0_3 = arith.constant 0 : index
    %c0_4 = arith.constant 0 : index
    %2 = vector.load %arg1[%c0_1, %c0_2, %c0_3, %c0_4] : memref<1x1x28x28xf32, #tpu.memory_space<vmem>>, vector<1x1x28x28xf32>
    %3 = vector.shape_cast %2 : vector<1x1x28x28xf32> to vector<28x28xf32>
    %c2 = arith.constant 2 : index
    %c0_5 = arith.constant 0 : index
    %4 = vector.load %arg9[%c2, %c0_5] : memref<32x28xf32, #tpu.memory_space<vmem>>, vector<28x28xf32>
    tpu.vector_store %arg9[%c2, %c0_5], %3 {strides = array<i32>} : memref<32x28xf32, #tpu.memory_space<vmem>>, vector<28x28xf32>,
    %c0_6 = arith.constant 0 : index
    %c0_7 = arith.constant 0 : index
    %5 = vector.load %arg9[%c0_6, %c0_7] : memref<32x28xf32, #tpu.memory_space<vmem>>, vector<28x28xf32>
    %6 = arith.truncf %5 : vector<28x28xf32> to vector<28x28xbf16>
    %c0_8 = arith.constant 0 : index
    %c0_9 = arith.constant 0 : index
    %c0_10 = arith.constant 0 : index
    %7 = vector.load %arg2[%c0_8, %c0_9, %c0_10] : memref<5x28x672xbf16, #tpu.memory_space<vmem>>, vector<1x28x672xbf16>
    %8 = vector.shape_cast %7 : vector<1x28x672xbf16> to vector<28x672xbf16>
    %cst_11 = arith.constant dense<0.000000e+00> : vector<28x672xf32>
    %9 = tpu.matmul %6, %8, %cst_11 {dimension_numbers = #tpu.dot_dimension_numbers<[1], [0], [0], [1], [0, 0, 1, 1], [], []>} : vector<28x28xbf16>, vector<28x672xbf16>, vector<28x672xf32> -> vector<28x672xf32>
    %c1 = arith.constant 1 : index
    %c0_12 = arith.constant 0 : index
    %10 = vector.load %arg9[%c1, %c0_12] : memref<32x28xf32, #tpu.memory_space<vmem>>, vector<28x28xf32>
    %11 = arith.truncf %10 : vector<28x28xf32> to vector<28x28xbf16>
    %c1_13 = arith.constant 1 : index
    %c0_14 = arith.constant 0 : index
    %c0_15 = arith.constant 0 : index
    %12 = vector.load %arg2[%c1_13, %c0_14, %c0_15] : memref<5x28x672xbf16, #tpu.memory_space<vmem>>, vector<1x28x672xbf16>
    %13 = vector.shape_cast %12 : vector<1x28x672xbf16> to vector<28x672xbf16>
    %cst_16 = arith.constant dense<0.000000e+00> : vector<28x672xf32>
    %14 = tpu.matmul %11, %13, %cst_16 {dimension_numbers = #tpu.dot_dimension_numbers<[1], [0], [0], [1], [0, 0, 1, 1], [], []>} : vector<28x28xbf16>, vector<28x672xbf16>, vector<28x672xf32> -> vector<28x672xf32>
    %15 = arith.addf %9, %14 : vector<28x672xf32>
    %c2_17 = arith.constant 2 : index
    %c0_18 = arith.constant 0 : index
    %16 = vector.load %arg9[%c2_17, %c0_18] : memref<32x28xf32, #tpu.memory_space<vmem>>, vector<28x28xf32>
    %17 = arith.truncf %16 : vector<28x28xf32> to vector<28x28xbf16>
    %c2_19 = arith.constant 2 : index
    %c0_20 = arith.constant 0 : index
    %c0_21 = arith.constant 0 : index
    %18 = vector.load %arg2[%c2_19, %c0_20, %c0_21] : memref<5x28x672xbf16, #tpu.memory_space<vmem>>, vector<1x28x672xbf16>
    %19 = vector.shape_cast %18 : vector<1x28x672xbf16> to vector<28x672xbf16>
    %cst_22 = arith.constant dense<0.000000e+00> : vector<28x672xf32>
    %20 = tpu.matmul %17, %19, %cst_22 {dimension_numbers = #tpu.dot_dimension_numbers<[1], [0], [0], [1], [0, 0, 1, 1], [], []>} : vector<28x28xbf16>, vector<28x672xbf16>, vector<28x672xf32> -> vector<28x672xf32>
    %21 = arith.addf %15, %20 : vector<28x672xf32>
    %c3 = arith.constant 3 : index
    %c0_23 = arith.constant 0 : index
    %22 = vector.load %arg9[%c3, %c0_23] : memref<32x28xf32, #tpu.memory_space<vmem>>, vector<28x28xf32>
    %23 = arith.truncf %22 : vector<28x28xf32> to vector<28x28xbf16>
    %c3_24 = arith.constant 3 : index
    %c0_25 = arith.constant 0 : index
    %c0_26 = arith.constant 0 : index
    %24 = vector.load %arg2[%c3_24, %c0_25, %c0_26] : memref<5x28x672xbf16, #tpu.memory_space<vmem>>, vector<1x28x672xbf16>
    %25 = vector.shape_cast %24 : vector<1x28x672xbf16> to vector<28x672xbf16>
    %cst_27 = arith.constant dense<0.000000e+00> : vector<28x672xf32>
    %26 = tpu.matmul %23, %25, %cst_27 {dimension_numbers = #tpu.dot_dimension_numbers<[1], [0], [0], [1], [0, 0, 1, 1], [], []>} : vector<28x28xbf16>, vector<28x672xbf16>, vector<28x672xf32> -> vector<28x672xf32>
    %27 = arith.addf %21, %26 : vector<28x672xf32>
    %c4 = arith.constant 4 : index
    %c0_28 = arith.constant 0 : index
    %28 = vector.load %arg9[%c4, %c0_28] : memref<32x28xf32, #tpu.memory_space<vmem>>, vector<28x28xf32>
    %29 = arith.truncf %28 : vector<28x28xf32> to vector<28x28xbf16>
    %c4_29 = arith.constant 4 : index
    %c0_30 = arith.constant 0 : index
    %c0_31 = arith.constant 0 : index
    %30 = vector.load %arg2[%c4_29, %c0_30, %c0_31] : memref<5x28x672xbf16, #tpu.memory_space<vmem>>, vector<1x28x672xbf16>
    %31 = vector.shape_cast %30 : vector<1x28x672xbf16> to vector<28x672xbf16>
    %cst_32 = arith.constant dense<0.000000e+00> : vector<28x672xf32>
    %32 = tpu.matmul %29, %31, %cst_32 {dimension_numbers = #tpu.dot_dimension_numbers<[1], [0], [0], [1], [0, 0, 1, 1], [], []>} : vector<28x28xbf16>, vector<28x672xbf16>, vector<28x672xf32> -> vector<28x672xf32>
    %33 = arith.addf %27, %32 : vector<28x672xf32>
    %34 = vector.extract_strided_slice %33 {offsets = [0, 0], sizes = [28, 288], strides = [1, 1]} : vector<28x672xf32> to vector<28x288xf32>
    %35 = vector.extract_strided_slice %33 {offsets = [0, 384], sizes = [28, 288], strides = [1, 1]} : vector<28x672xf32> to vector<28x288xf32>
    %36 = arith.maximumf %34, %35 : vector<28x288xf32>
    %c0_33 = arith.constant 0 : index
    %c0_34 = arith.constant 0 : index
    %37 = vector.load %arg3[%c0_33, %c0_34] : memref<1x288xf32, #tpu.memory_space<vmem>>, vector<1x288xf32>
    %38 = vector.broadcast %37 : vector<1x288xf32> to vector<28x288xf32>
    %39 = arith.addf %36, %38 : vector<28x288xf32>
    %cst_35 = arith.constant 0.000000e+00 : f32
    %40 = vector.broadcast %cst_35 : f32 to vector<28x288xf32>
    %41 = arith.maximumf %39, %40 : vector<28x288xf32>
    %42 = vector.extract_strided_slice %41 {offsets = [0, 0], sizes = [27, 288], strides = [1, 1]} : vector<28x288xf32> to vector<27x288xf32>
    %43 = vector.extract_strided_slice %41 {offsets = [1, 0], sizes = [27, 288], strides = [1, 1]} : vector<28x288xf32> to vector<27x288xf32>
    %44 = arith.maximumf %42, %43 : vector<27x288xf32>
    %cst_36 = arith.constant 0.000000e+00 : f32
    %45 = vector.broadcast %cst_36 : f32 to vector<2x9x288xf32>
    %c0_37 = arith.constant 0 : index
    %c0_38 = arith.constant 0 : index
    %c0_39 = arith.constant 0 : index
    %46 = vector.load %arg10[%c0_37, %c0_38, %c0_39] : memref<2x9x288xf32, #tpu.memory_space<vmem>>, vector<2x9x288xf32>
    tpu.vector_store %arg10[%c0_37, %c0_38, %c0_39], %45 {strides = array<i32>} : memref<2x9x288xf32, #tpu.memory_space<vmem>>, vector<2x9x288xf32>,
    %47 = vector.extract_strided_slice %44 {offsets = [0, 0], sizes = [1, 288], strides = [1, 1]} : vector<27x288xf32> to vector<1x288xf32>
    %c0_40 = arith.constant 0 : index
    %c1_41 = arith.constant 1 : index
    %c0_42 = arith.constant 0 : index
    %48 = vector.load %arg10[%c0_40, %c1_41, %c0_42] : memref<2x9x288xf32, #tpu.memory_space<vmem>>, vector<1x1x288xf32>
    %49 = vector.shape_cast %48 : vector<1x1x288xf32> to vector<1x288xf32>
    %50 = vector.shape_cast %47 : vector<1x288xf32> to vector<1x1x288xf32>
    tpu.vector_store %arg10[%c0_40, %c1_41, %c0_42], %50 {strides = array<i32>} : memref<2x9x288xf32, #tpu.memory_space<vmem>>, vector<1x1x288xf32>,
    %51 = vector.extract_strided_slice %44 {offsets = [4, 0], sizes = [1, 288], strides = [1, 1]} : vector<27x288xf32> to vector<1x288xf32>
    %c0_43 = arith.constant 0 : index
    %c2_44 = arith.constant 2 : index
    %c0_45 = arith.constant 0 : index
    %52 = vector.load %arg10[%c0_43, %c2_44, %c0_45] : memref<2x9x288xf32, #tpu.memory_space<vmem>>, vector<1x1x288xf32>
    %53 = vector.shape_cast %52 : vector<1x1x288xf32> to vector<1x288xf32>
    %54 = vector.shape_cast %51 : vector<1x288xf32> to vector<1x1x288xf32>
    tpu.vector_store %arg10[%c0_43, %c2_44, %c0_45], %54 {strides = array<i32>} : memref<2x9x288xf32, #tpu.memory_space<vmem>>, vector<1x1x288xf32>,
    %55 = vector.extract_strided_slice %44 {offsets = [8, 0], sizes = [1, 288], strides = [1, 1]} : vector<27x288xf32> to vector<1x288xf32>
    %c0_46 = arith.constant 0 : index
    %c3_47 = arith.constant 3 : index
    %c0_48 = arith.constant 0 : index
    %56 = vector.load %arg10[%c0_46, %c3_47, %c0_48] : memref<2x9x288xf32, #tpu.memory_space<vmem>>, vector<1x1x288xf32>
    %57 = vector.shape_cast %56 : vector<1x1x288xf32> to vector<1x288xf32>
    %58 = vector.shape_cast %55 : vector<1x288xf32> to vector<1x1x288xf32>
    tpu.vector_store %arg10[%c0_46, %c3_47, %c0_48], %58 {strides = array<i32>} : memref<2x9x288xf32, #tpu.memory_space<vmem>>, vector<1x1x288xf32>,
    %59 = vector.extract_strided_slice %44 {offsets = [12, 0], sizes = [1, 288], strides = [1, 1]} : vector<27x288xf32> to vector<1x288xf32>
    %c0_49 = arith.constant 0 : index
    %c4_50 = arith.constant 4 : index
    %c0_51 = arith.constant 0 : index
    %60 = vector.load %arg10[%c0_49, %c4_50, %c0_51] : memref<2x9x288xf32, #tpu.memory_space<vmem>>, vector<1x1x288xf32>
    %61 = vector.shape_cast %60 : vector<1x1x288xf32> to vector<1x288xf32>
    %62 = vector.shape_cast %59 : vector<1x288xf32> to vector<1x1x288xf32>
    tpu.vector_store %arg10[%c0_49, %c4_50, %c0_51], %62 {strides = array<i32>} : memref<2x9x288xf32, #tpu.memory_space<vmem>>, vector<1x1x288xf32>,
    %63 = vector.extract_strided_slice %44 {offsets = [16, 0], sizes = [1, 288], strides = [1, 1]} : vector<27x288xf32> to vector<1x288xf32>
    %c0_52 = arith.constant 0 : index
    %c5 = arith.constant 5 : index
    %c0_53 = arith.constant 0 : index
    %64 = vector.load %arg10[%c0_52, %c5, %c0_53] : memref<2x9x288xf32, #tpu.memory_space<vmem>>, vector<1x1x288xf32>
    %65 = vector.shape_cast %64 : vector<1x1x288xf32> to vector<1x288xf32>
    %66 = vector.shape_cast %63 : vector<1x288xf32> to vector<1x1x288xf32>
    tpu.vector_store %arg10[%c0_52, %c5, %c0_53], %66 {strides = array<i32>} : memref<2x9x288xf32, #tpu.memory_space<vmem>>, vector<1x1x288xf32>,
    %67 = vector.extract_strided_slice %44 {offsets = [20, 0], sizes = [1, 288], strides = [1, 1]} : vector<27x288xf32> to vector<1x288xf32>
    %c0_54 = arith.constant 0 : index
    %c6 = arith.constant 6 : index
    %c0_55 = arith.constant 0 : index
    %68 = vector.load %arg10[%c0_54, %c6, %c0_55] : memref<2x9x288xf32, #tpu.memory_space<vmem>>, vector<1x1x288xf32>
    %69 = vector.shape_cast %68 : vector<1x1x288xf32> to vector<1x288xf32>
    %70 = vector.shape_cast %67 : vector<1x288xf32> to vector<1x1x288xf32>
    tpu.vector_store %arg10[%c0_54, %c6, %c0_55], %70 {strides = array<i32>} : memref<2x9x288xf32, #tpu.memory_space<vmem>>, vector<1x1x288xf32>,
    %71 = vector.extract_strided_slice %44 {offsets = [24, 0], sizes = [1, 288], strides = [1, 1]} : vector<27x288xf32> to vector<1x288xf32>
    %c0_56 = arith.constant 0 : index
    %c7 = arith.constant 7 : index
    %c0_57 = arith.constant 0 : index
    %72 = vector.load %arg10[%c0_56, %c7, %c0_57] : memref<2x9x288xf32, #tpu.memory_space<vmem>>, vector<1x1x288xf32>
    %73 = vector.shape_cast %72 : vector<1x1x288xf32> to vector<1x288xf32>
    %74 = vector.shape_cast %71 : vector<1x288xf32> to vector<1x1x288xf32>
    tpu.vector_store %arg10[%c0_56, %c7, %c0_57], %74 {strides = array<i32>} : memref<2x9x288xf32, #tpu.memory_space<vmem>>, vector<1x1x288xf32>,
    %75 = vector.extract_strided_slice %44 {offsets = [2, 0], sizes = [1, 288], strides = [1, 1]} : vector<27x288xf32> to vector<1x288xf32>
    %c1_58 = arith.constant 1 : index
    %c1_59 = arith.constant 1 : index
    %c0_60 = arith.constant 0 : index
    %76 = vector.load %arg10[%c1_58, %c1_59, %c0_60] : memref<2x9x288xf32, #tpu.memory_space<vmem>>, vector<1x1x288xf32>
    %77 = vector.shape_cast %76 : vector<1x1x288xf32> to vector<1x288xf32>
    %78 = vector.shape_cast %75 : vector<1x288xf32> to vector<1x1x288xf32>
    tpu.vector_store %arg10[%c1_58, %c1_59, %c0_60], %78 {strides = array<i32>} : memref<2x9x288xf32, #tpu.memory_space<vmem>>, vector<1x1x288xf32>,
    %79 = vector.extract_strided_slice %44 {offsets = [6, 0], sizes = [1, 288], strides = [1, 1]} : vector<27x288xf32> to vector<1x288xf32>
    %c1_61 = arith.constant 1 : index
    %c2_62 = arith.constant 2 : index
    %c0_63 = arith.constant 0 : index
    %80 = vector.load %arg10[%c1_61, %c2_62, %c0_63] : memref<2x9x288xf32, #tpu.memory_space<vmem>>, vector<1x1x288xf32>
    %81 = vector.shape_cast %80 : vector<1x1x288xf32> to vector<1x288xf32>
    %82 = vector.shape_cast %79 : vector<1x288xf32> to vector<1x1x288xf32>
    tpu.vector_store %arg10[%c1_61, %c2_62, %c0_63], %82 {strides = array<i32>} : memref<2x9x288xf32, #tpu.memory_space<vmem>>, vector<1x1x288xf32>,
    %83 = vector.extract_strided_slice %44 {offsets = [10, 0], sizes = [1, 288], strides = [1, 1]} : vector<27x288xf32> to vector<1x288xf32>
    %c1_64 = arith.constant 1 : index
    %c3_65 = arith.constant 3 : index
    %c0_66 = arith.constant 0 : index
    %84 = vector.load %arg10[%c1_64, %c3_65, %c0_66] : memref<2x9x288xf32, #tpu.memory_space<vmem>>, vector<1x1x288xf32>
    %85 = vector.shape_cast %84 : vector<1x1x288xf32> to vector<1x288xf32>
    %86 = vector.shape_cast %83 : vector<1x288xf32> to vector<1x1x288xf32>
    tpu.vector_store %arg10[%c1_64, %c3_65, %c0_66], %86 {strides = array<i32>} : memref<2x9x288xf32, #tpu.memory_space<vmem>>, vector<1x1x288xf32>,
    %87 = vector.extract_strided_slice %44 {offsets = [14, 0], sizes = [1, 288], strides = [1, 1]} : vector<27x288xf32> to vector<1x288xf32>
    %c1_67 = arith.constant 1 : index
    %c4_68 = arith.constant 4 : index
    %c0_69 = arith.constant 0 : index
    %88 = vector.load %arg10[%c1_67, %c4_68, %c0_69] : memref<2x9x288xf32, #tpu.memory_space<vmem>>, vector<1x1x288xf32>
    %89 = vector.shape_cast %88 : vector<1x1x288xf32> to vector<1x288xf32>
    %90 = vector.shape_cast %87 : vector<1x288xf32> to vector<1x1x288xf32>
    tpu.vector_store %arg10[%c1_67, %c4_68, %c0_69], %90 {strides = array<i32>} : memref<2x9x288xf32, #tpu.memory_space<vmem>>, vector<1x1x288xf32>,
    %91 = vector.extract_strided_slice %44 {offsets = [18, 0], sizes = [1, 288], strides = [1, 1]} : vector<27x288xf32> to vector<1x288xf32>
    %c1_70 = arith.constant 1 : index
    %c5_71 = arith.constant 5 : index
    %c0_72 = arith.constant 0 : index
    %92 = vector.load %arg10[%c1_70, %c5_71, %c0_72] : memref<2x9x288xf32, #tpu.memory_space<vmem>>, vector<1x1x288xf32>
    %93 = vector.shape_cast %92 : vector<1x1x288xf32> to vector<1x288xf32>
    %94 = vector.shape_cast %91 : vector<1x288xf32> to vector<1x1x288xf32>
    tpu.vector_store %arg10[%c1_70, %c5_71, %c0_72], %94 {strides = array<i32>} : memref<2x9x288xf32, #tpu.memory_space<vmem>>, vector<1x1x288xf32>,
    %95 = vector.extract_strided_slice %44 {offsets = [22, 0], sizes = [1, 288], strides = [1, 1]} : vector<27x288xf32> to vector<1x288xf32>
    %c1_73 = arith.constant 1 : index
    %c6_74 = arith.constant 6 : index
    %c0_75 = arith.constant 0 : index
    %96 = vector.load %arg10[%c1_73, %c6_74, %c0_75] : memref<2x9x288xf32, #tpu.memory_space<vmem>>, vector<1x1x288xf32>
    %97 = vector.shape_cast %96 : vector<1x1x288xf32> to vector<1x288xf32>
    %98 = vector.shape_cast %95 : vector<1x288xf32> to vector<1x1x288xf32>
    tpu.vector_store %arg10[%c1_73, %c6_74, %c0_75], %98 {strides = array<i32>} : memref<2x9x288xf32, #tpu.memory_space<vmem>>, vector<1x1x288xf32>,
    %99 = vector.extract_strided_slice %44 {offsets = [26, 0], sizes = [1, 288], strides = [1, 1]} : vector<27x288xf32> to vector<1x288xf32>
    %c1_76 = arith.constant 1 : index
    %c7_77 = arith.constant 7 : index
    %c0_78 = arith.constant 0 : index
    %100 = vector.load %arg10[%c1_76, %c7_77, %c0_78] : memref<2x9x288xf32, #tpu.memory_space<vmem>>, vector<1x1x288xf32>
    %101 = vector.shape_cast %100 : vector<1x1x288xf32> to vector<1x288xf32>
    %102 = vector.shape_cast %99 : vector<1x288xf32> to vector<1x1x288xf32>
    tpu.vector_store %arg10[%c1_76, %c7_77, %c0_78], %102 {strides = array<i32>} : memref<2x9x288xf32, #tpu.memory_space<vmem>>, vector<1x1x288xf32>,
    %c0_79 = arith.constant 0 : index
    %c0_80 = arith.constant 0 : index
    %c0_81 = arith.constant 0 : index
    %103 = vector.load %arg10[%c0_79, %c0_80, %c0_81] : memref<2x9x288xf32, #tpu.memory_space<vmem>>, vector<1x7x288xf32>
    %104 = vector.shape_cast %103 : vector<1x7x288xf32> to vector<7x288xf32>
    %105 = arith.truncf %104 : vector<7x288xf32> to vector<7x288xbf16>
    %c0_82 = arith.constant 0 : index
    %c0_83 = arith.constant 0 : index
    %c0_84 = arith.constant 0 : index
    %c0_85 = arith.constant 0 : index
    %106 = vector.load %arg4[%c0_82, %c0_83, %c0_84, %c0_85] : memref<2x3x288x1024xbf16, #tpu.memory_space<vmem>>, vector<1x1x288x1024xbf16>
    %107 = vector.shape_cast %106 : vector<1x1x288x1024xbf16> to vector<288x1024xbf16>
    %cst_86 = arith.constant dense<0.000000e+00> : vector<7x1024xf32>
    %108 = tpu.matmul %105, %107, %cst_86 {dimension_numbers = #tpu.dot_dimension_numbers<[1], [0], [0], [1], [0, 0, 1, 1], [], []>} : vector<7x288xbf16>, vector<288x1024xbf16>, vector<7x1024xf32> -> vector<7x1024xf32>
    %c0_87 = arith.constant 0 : index
    %c1_88 = arith.constant 1 : index
    %c0_89 = arith.constant 0 : index
    %109 = vector.load %arg10[%c0_87, %c1_88, %c0_89] : memref<2x9x288xf32, #tpu.memory_space<vmem>>, vector<1x7x288xf32>
    %110 = vector.shape_cast %109 : vector<1x7x288xf32> to vector<7x288xf32>
    %111 = arith.truncf %110 : vector<7x288xf32> to vector<7x288xbf16>
    %c0_90 = arith.constant 0 : index
    %c1_91 = arith.constant 1 : index
    %c0_92 = arith.constant 0 : index
    %c0_93 = arith.constant 0 : index
    %112 = vector.load %arg4[%c0_90, %c1_91, %c0_92, %c0_93] : memref<2x3x288x1024xbf16, #tpu.memory_space<vmem>>, vector<1x1x288x1024xbf16>
    %113 = vector.shape_cast %112 : vector<1x1x288x1024xbf16> to vector<288x1024xbf16>
    %cst_94 = arith.constant dense<0.000000e+00> : vector<7x1024xf32>
    %114 = tpu.matmul %111, %113, %cst_94 {dimension_numbers = #tpu.dot_dimension_numbers<[1], [0], [0], [1], [0, 0, 1, 1], [], []>} : vector<7x288xbf16>, vector<288x1024xbf16>, vector<7x1024xf32> -> vector<7x1024xf32>
    %115 = arith.addf %108, %114 : vector<7x1024xf32>
    %c0_95 = arith.constant 0 : index
    %c2_96 = arith.constant 2 : index
    %c0_97 = arith.constant 0 : index
    %116 = vector.load %arg10[%c0_95, %c2_96, %c0_97] : memref<2x9x288xf32, #tpu.memory_space<vmem>>, vector<1x7x288xf32>
    %117 = vector.shape_cast %116 : vector<1x7x288xf32> to vector<7x288xf32>
    %118 = arith.truncf %117 : vector<7x288xf32> to vector<7x288xbf16>
    %c0_98 = arith.constant 0 : index
    %c2_99 = arith.constant 2 : index
    %c0_100 = arith.constant 0 : index
    %c0_101 = arith.constant 0 : index
    %119 = vector.load %arg4[%c0_98, %c2_99, %c0_100, %c0_101] : memref<2x3x288x1024xbf16, #tpu.memory_space<vmem>>, vector<1x1x288x1024xbf16>
    %120 = vector.shape_cast %119 : vector<1x1x288x1024xbf16> to vector<288x1024xbf16>
    %cst_102 = arith.constant dense<0.000000e+00> : vector<7x1024xf32>
    %121 = tpu.matmul %118, %120, %cst_102 {dimension_numbers = #tpu.dot_dimension_numbers<[1], [0], [0], [1], [0, 0, 1, 1], [], []>} : vector<7x288xbf16>, vector<288x1024xbf16>, vector<7x1024xf32> -> vector<7x1024xf32>
    %122 = arith.addf %115, %121 : vector<7x1024xf32>
    %c1_103 = arith.constant 1 : index
    %c0_104 = arith.constant 0 : index
    %c0_105 = arith.constant 0 : index
    %123 = vector.load %arg10[%c1_103, %c0_104, %c0_105] : memref<2x9x288xf32, #tpu.memory_space<vmem>>, vector<1x7x288xf32>
    %124 = vector.shape_cast %123 : vector<1x7x288xf32> to vector<7x288xf32>
    %125 = arith.truncf %124 : vector<7x288xf32> to vector<7x288xbf16>
    %c1_106 = arith.constant 1 : index
    %c0_107 = arith.constant 0 : index
    %c0_108 = arith.constant 0 : index
    %c0_109 = arith.constant 0 : index
    %126 = vector.load %arg4[%c1_106, %c0_107, %c0_108, %c0_109] : memref<2x3x288x1024xbf16, #tpu.memory_space<vmem>>, vector<1x1x288x1024xbf16>
    %127 = vector.shape_cast %126 : vector<1x1x288x1024xbf16> to vector<288x1024xbf16>
    %cst_110 = arith.constant dense<0.000000e+00> : vector<7x1024xf32>
    %128 = tpu.matmul %125, %127, %cst_110 {dimension_numbers = #tpu.dot_dimension_numbers<[1], [0], [0], [1], [0, 0, 1, 1], [], []>} : vector<7x288xbf16>, vector<288x1024xbf16>, vector<7x1024xf32> -> vector<7x1024xf32>
    %129 = arith.addf %122, %128 : vector<7x1024xf32>
    %c1_111 = arith.constant 1 : index
    %c1_112 = arith.constant 1 : index
    %c0_113 = arith.constant 0 : index
    %130 = vector.load %arg10[%c1_111, %c1_112, %c0_113] : memref<2x9x288xf32, #tpu.memory_space<vmem>>, vector<1x7x288xf32>
    %131 = vector.shape_cast %130 : vector<1x7x288xf32> to vector<7x288xf32>
    %132 = arith.truncf %131 : vector<7x288xf32> to vector<7x288xbf16>
    %c1_114 = arith.constant 1 : index
    %c1_115 = arith.constant 1 : index
    %c0_116 = arith.constant 0 : index
    %c0_117 = arith.constant 0 : index
    %133 = vector.load %arg4[%c1_114, %c1_115, %c0_116, %c0_117] : memref<2x3x288x1024xbf16, #tpu.memory_space<vmem>>, vector<1x1x288x1024xbf16>
    %134 = vector.shape_cast %133 : vector<1x1x288x1024xbf16> to vector<288x1024xbf16>
    %cst_118 = arith.constant dense<0.000000e+00> : vector<7x1024xf32>
    %135 = tpu.matmul %132, %134, %cst_118 {dimension_numbers = #tpu.dot_dimension_numbers<[1], [0], [0], [1], [0, 0, 1, 1], [], []>} : vector<7x288xbf16>, vector<288x1024xbf16>, vector<7x1024xf32> -> vector<7x1024xf32>
    %136 = arith.addf %129, %135 : vector<7x1024xf32>
    %c1_119 = arith.constant 1 : index
    %c2_120 = arith.constant 2 : index
    %c0_121 = arith.constant 0 : index
    %137 = vector.load %arg10[%c1_119, %c2_120, %c0_121] : memref<2x9x288xf32, #tpu.memory_space<vmem>>, vector<1x7x288xf32>
    %138 = vector.shape_cast %137 : vector<1x7x288xf32> to vector<7x288xf32>
    %139 = arith.truncf %138 : vector<7x288xf32> to vector<7x288xbf16>
    %c1_122 = arith.constant 1 : index
    %c2_123 = arith.constant 2 : index
    %c0_124 = arith.constant 0 : index
    %c0_125 = arith.constant 0 : index
    %140 = vector.load %arg4[%c1_122, %c2_123, %c0_124, %c0_125] : memref<2x3x288x1024xbf16, #tpu.memory_space<vmem>>, vector<1x1x288x1024xbf16>
    %141 = vector.shape_cast %140 : vector<1x1x288x1024xbf16> to vector<288x1024xbf16>
    %cst_126 = arith.constant dense<0.000000e+00> : vector<7x1024xf32>
    %142 = tpu.matmul %139, %141, %cst_126 {dimension_numbers = #tpu.dot_dimension_numbers<[1], [0], [0], [1], [0, 0, 1, 1], [], []>} : vector<7x288xbf16>, vector<288x1024xbf16>, vector<7x1024xf32> -> vector<7x1024xf32>
    %143 = arith.addf %136, %142 : vector<7x1024xf32>
    %144 = vector.extract_strided_slice %143 {offsets = [0, 0], sizes = [7, 512], strides = [1, 1]} : vector<7x1024xf32> to vector<7x512xf32>
    %145 = vector.extract_strided_slice %143 {offsets = [0, 512], sizes = [7, 512], strides = [1, 1]} : vector<7x1024xf32> to vector<7x512xf32>
    %146 = arith.maximumf %144, %145 : vector<7x512xf32>
    %147 = vector.extract_strided_slice %146 {offsets = [0, 0], sizes = [7, 224], strides = [1, 1]} : vector<7x512xf32> to vector<7x224xf32>
    %148 = vector.extract_strided_slice %146 {offsets = [0, 256], sizes = [7, 224], strides = [1, 1]} : vector<7x512xf32> to vector<7x224xf32>
    %149 = arith.maximumf %147, %148 : vector<7x224xf32>
    %c0_127 = arith.constant 0 : index
    %c0_128 = arith.constant 0 : index
    %150 = vector.load %arg5[%c0_127, %c0_128] : memref<1x224xf32, #tpu.memory_space<vmem>>, vector<1x224xf32>
    %151 = vector.broadcast %150 : vector<1x224xf32> to vector<7x224xf32>
    %152 = arith.addf %149, %151 : vector<7x224xf32>
    %cst_129 = arith.constant 0.000000e+00 : f32
    %153 = vector.broadcast %cst_129 : f32 to vector<7x224xf32>
    %154 = arith.maximumf %152, %153 : vector<7x224xf32>
    %155 = arith.truncf %154 : vector<7x224xf32> to vector<7x224xbf16>
    %c0_130 = arith.constant 0 : index
    %c0_131 = arith.constant 0 : index
    %156 = vector.load %arg7[%c0_130, %c0_131] : memref<1x128xf32, #tpu.memory_space<vmem>>, vector<1x128xf32>
    %157 = vector.extract_strided_slice %155 {offsets = [0, 0], sizes = [1, 224], strides = [1, 1]} : vector<7x224xbf16> to vector<1x224xbf16>
    %c0_132 = arith.constant 0 : index
    %c0_133 = arith.constant 0 : index
    %c0_134 = arith.constant 0 : index
    %158 = vector.load %arg6[%c0_132, %c0_133, %c0_134] : memref<7x224x128xbf16, #tpu.memory_space<vmem>>, vector<1x224x128xbf16>
    %159 = vector.shape_cast %158 : vector<1x224x128xbf16> to vector<224x128xbf16>
    %cst_135 = arith.constant dense<0.000000e+00> : vector<1x128xf32>
    %160 = tpu.matmul %157, %159, %cst_135 {dimension_numbers = #tpu.dot_dimension_numbers<[1], [0], [0], [1], [0, 0, 1, 1], [], []>} : vector<1x224xbf16>, vector<224x128xbf16>, vector<1x128xf32> -> vector<1x128xf32>
    %161 = arith.addf %156, %160 : vector<1x128xf32>
    %162 = vector.extract_strided_slice %155 {offsets = [1, 0], sizes = [1, 224], strides = [1, 1]} : vector<7x224xbf16> to vector<1x224xbf16>
    %c1_136 = arith.constant 1 : index
    %c0_137 = arith.constant 0 : index
    %c0_138 = arith.constant 0 : index
    %163 = vector.load %arg6[%c1_136, %c0_137, %c0_138] : memref<7x224x128xbf16, #tpu.memory_space<vmem>>, vector<1x224x128xbf16>
    %164 = vector.shape_cast %163 : vector<1x224x128xbf16> to vector<224x128xbf16>
    %cst_139 = arith.constant dense<0.000000e+00> : vector<1x128xf32>
    %165 = tpu.matmul %162, %164, %cst_139 {dimension_numbers = #tpu.dot_dimension_numbers<[1], [0], [0], [1], [0, 0, 1, 1], [], []>} : vector<1x224xbf16>, vector<224x128xbf16>, vector<1x128xf32> -> vector<1x128xf32>
    %166 = arith.addf %161, %165 : vector<1x128xf32>
    %167 = vector.extract_strided_slice %155 {offsets = [2, 0], sizes = [1, 224], strides = [1, 1]} : vector<7x224xbf16> to vector<1x224xbf16>
    %c2_140 = arith.constant 2 : index
    %c0_141 = arith.constant 0 : index
    %c0_142 = arith.constant 0 : index
    %168 = vector.load %arg6[%c2_140, %c0_141, %c0_142] : memref<7x224x128xbf16, #tpu.memory_space<vmem>>, vector<1x224x128xbf16>
    %169 = vector.shape_cast %168 : vector<1x224x128xbf16> to vector<224x128xbf16>
    %cst_143 = arith.constant dense<0.000000e+00> : vector<1x128xf32>
    %170 = tpu.matmul %167, %169, %cst_143 {dimension_numbers = #tpu.dot_dimension_numbers<[1], [0], [0], [1], [0, 0, 1, 1], [], []>} : vector<1x224xbf16>, vector<224x128xbf16>, vector<1x128xf32> -> vector<1x128xf32>
    %171 = arith.addf %166, %170 : vector<1x128xf32>
    %172 = vector.extract_strided_slice %155 {offsets = [3, 0], sizes = [1, 224], strides = [1, 1]} : vector<7x224xbf16> to vector<1x224xbf16>
    %c3_144 = arith.constant 3 : index
    %c0_145 = arith.constant 0 : index
    %c0_146 = arith.constant 0 : index
    %173 = vector.load %arg6[%c3_144, %c0_145, %c0_146] : memref<7x224x128xbf16, #tpu.memory_space<vmem>>, vector<1x224x128xbf16>
    %174 = vector.shape_cast %173 : vector<1x224x128xbf16> to vector<224x128xbf16>
    %cst_147 = arith.constant dense<0.000000e+00> : vector<1x128xf32>
    %175 = tpu.matmul %172, %174, %cst_147 {dimension_numbers = #tpu.dot_dimension_numbers<[1], [0], [0], [1], [0, 0, 1, 1], [], []>} : vector<1x224xbf16>, vector<224x128xbf16>, vector<1x128xf32> -> vector<1x128xf32>
    %176 = arith.addf %171, %175 : vector<1x128xf32>
    %177 = vector.extract_strided_slice %155 {offsets = [4, 0], sizes = [1, 224], strides = [1, 1]} : vector<7x224xbf16> to vector<1x224xbf16>
    %c4_148 = arith.constant 4 : index
    %c0_149 = arith.constant 0 : index
    %c0_150 = arith.constant 0 : index
    %178 = vector.load %arg6[%c4_148, %c0_149, %c0_150] : memref<7x224x128xbf16, #tpu.memory_space<vmem>>, vector<1x224x128xbf16>
    %179 = vector.shape_cast %178 : vector<1x224x128xbf16> to vector<224x128xbf16>
    %cst_151 = arith.constant dense<0.000000e+00> : vector<1x128xf32>
    %180 = tpu.matmul %177, %179, %cst_151 {dimension_numbers = #tpu.dot_dimension_numbers<[1], [0], [0], [1], [0, 0, 1, 1], [], []>} : vector<1x224xbf16>, vector<224x128xbf16>, vector<1x128xf32> -> vector<1x128xf32>
    %181 = arith.addf %176, %180 : vector<1x128xf32>
    %182 = vector.extract_strided_slice %155 {offsets = [5, 0], sizes = [1, 224], strides = [1, 1]} : vector<7x224xbf16> to vector<1x224xbf16>
    %c5_152 = arith.constant 5 : index
    %c0_153 = arith.constant 0 : index
    %c0_154 = arith.constant 0 : index
    %183 = vector.load %arg6[%c5_152, %c0_153, %c0_154] : memref<7x224x128xbf16, #tpu.memory_space<vmem>>, vector<1x224x128xbf16>
    %184 = vector.shape_cast %183 : vector<1x224x128xbf16> to vector<224x128xbf16>
    %cst_155 = arith.constant dense<0.000000e+00> : vector<1x128xf32>
    %185 = tpu.matmul %182, %184, %cst_155 {dimension_numbers = #tpu.dot_dimension_numbers<[1], [0], [0], [1], [0, 0, 1, 1], [], []>} : vector<1x224xbf16>, vector<224x128xbf16>, vector<1x128xf32> -> vector<1x128xf32>
    %186 = arith.addf %181, %185 : vector<1x128xf32>
    %187 = vector.extract_strided_slice %155 {offsets = [6, 0], sizes = [1, 224], strides = [1, 1]} : vector<7x224xbf16> to vector<1x224xbf16>
    %c6_156 = arith.constant 6 : index
    %c0_157 = arith.constant 0 : index
    %c0_158 = arith.constant 0 : index
    %188 = vector.load %arg6[%c6_156, %c0_157, %c0_158] : memref<7x224x128xbf16, #tpu.memory_space<vmem>>, vector<1x224x128xbf16>
    %189 = vector.shape_cast %188 : vector<1x224x128xbf16> to vector<224x128xbf16>
    %cst_159 = arith.constant dense<0.000000e+00> : vector<1x128xf32>
    %190 = tpu.matmul %187, %189, %cst_159 {dimension_numbers = #tpu.dot_dimension_numbers<[1], [0], [0], [1], [0, 0, 1, 1], [], []>} : vector<1x224xbf16>, vector<224x128xbf16>, vector<1x128xf32> -> vector<1x128xf32>
    %191 = arith.addf %186, %190 : vector<1x128xf32>
    %c0_160 = arith.constant 0 : index
    %c0_161 = arith.constant 0 : index
    %c0_162 = arith.constant 0 : index
    %192 = vector.load %arg8[%c0_160, %c0_161, %c0_162] : memref<1x1x128xf32, #tpu.memory_space<vmem>>, vector<1x1x128xf32>
    %193 = vector.shape_cast %192 : vector<1x1x128xf32> to vector<1x128xf32>
    %194 = vector.shape_cast %191 : vector<1x128xf32> to vector<1x1x128xf32>
    tpu.vector_store %arg8[%c0_160, %c0_161, %c0_162], %194 {strides = array<i32>} : memref<1x1x128xf32, #tpu.memory_space<vmem>>, vector<1x1x128xf32>,
    return
  }
  func.func @transform_0(%arg0: i32) -> (i32, i32, i32, i32) {
    %c0_i32 = arith.constant 0 : i32
    %c0_i32_0 = arith.constant 0 : i32
    %c0_i32_1 = arith.constant 0 : i32
    %c0_i32_2 = arith.constant 0 : i32
    return %arg0, %c0_i32, %c0_i32_0, %c0_i32_1 : i32, i32, i32, i32
  }
  func.func @transform_1(%arg0: i32) -> (i32, i32, i32) {
    %c0_i32 = arith.constant 0 : i32
    %c0_i32_0 = arith.constant 0 : i32
    %c0_i32_1 = arith.constant 0 : i32
    %c0_i32_2 = arith.constant 0 : i32
    return %c0_i32, %c0_i32_0, %c0_i32_1 : i32, i32, i32
  }
  func.func @transform_2(%arg0: i32) -> (i32, i32) {
    %c0_i32 = arith.constant 0 : i32
    %c0_i32_0 = arith.constant 0 : i32
    %c0_i32_1 = arith.constant 0 : i32
    return %c0_i32, %c0_i32_0 : i32, i32
  }
  func.func @transform_3(%arg0: i32) -> (i32, i32, i32, i32) {
    %c0_i32 = arith.constant 0 : i32
    %c0_i32_0 = arith.constant 0 : i32
    %c0_i32_1 = arith.constant 0 : i32
    %c0_i32_2 = arith.constant 0 : i32
    %c0_i32_3 = arith.constant 0 : i32
    return %c0_i32, %c0_i32_0, %c0_i32_1, %c0_i32_2 : i32, i32, i32, i32
  }
  func.func @transform_4(%arg0: i32) -> (i32, i32) {
    %c0_i32 = arith.constant 0 : i32
    %c0_i32_0 = arith.constant 0 : i32
    %c0_i32_1 = arith.constant 0 : i32
    return %c0_i32, %c0_i32_0 : i32, i32
  }
  func.func @transform_5(%arg0: i32) -> (i32, i32, i32) {
    %c0_i32 = arith.constant 0 : i32
    %c0_i32_0 = arith.constant 0 : i32
    %c0_i32_1 = arith.constant 0 : i32
    %c0_i32_2 = arith.constant 0 : i32
    return %c0_i32, %c0_i32_0, %c0_i32_1 : i32, i32, i32
  }
  func.func @transform_6(%arg0: i32) -> (i32, i32) {
    %c0_i32 = arith.constant 0 : i32
    %c0_i32_0 = arith.constant 0 : i32
    %c0_i32_1 = arith.constant 0 : i32
    return %c0_i32, %c0_i32_0 : i32, i32
  }
  func.func @transform_7(%arg0: i32) -> (i32, i32, i32) {
    %c0_i32 = arith.constant 0 : i32
    %c0_i32_0 = arith.constant 0 : i32
    %c0_i32_1 = arith.constant 0 : i32
    return %arg0, %c0_i32, %c0_i32_0 : i32, i32, i32
  }
}

</mosaic_0001>

<llo_original>
// kernel: cnn_forward.1
$region0: #{cnn_forward.1}
  #allocation0 [shape = 'u32[]', space=smem, size = 0x4, offset = 0x4, fixed_abs, tag = 'smem constant byte address 0x4 - core index']
  #allocation1 [shape = 'u32[144,128]{1,0:T(1,128)}', space=vmem, size = 0x12000, scoped, tag = 'internal scratch']
  #allocation2 [shape = 'f32[32,28]{1,0:T(8,128)}', space=vmem, size = 0x4000, scoped, tag = 'scratch operand']
  #allocation3 [shape = 'f32[2,9,288]{2,1,0:T(8,128)}', space=vmem, size = 0xc000, scoped, tag = 'scratch operand']
  %s0 = inlined_call_operand.vmem [shape: f32[2,1,28,28], index: 0, kind: input, shape index: {}]
  %s1 = inlined_call_operand.hbm [shape: bf16[5,28,672], index: 1, kind: input, shape index: {}]
  %s2 = inlined_call_operand.hbm [shape: f32[1,288], index: 2, kind: input, shape index: {}]
  %s3 = inlined_call_operand.hbm [shape: bf16[2,3,288,1024], index: 3, kind: input, shape index: {}]
  %s4 = inlined_call_operand.hbm [shape: f32[1,224], index: 4, kind: input, shape index: {}]
  %s5 = inlined_call_operand.hbm [shape: bf16[7,224,128], index: 5, kind: input, shape index: {}]
  %s6 = inlined_call_operand.hbm [shape: f32[1,128], index: 6, kind: input, shape index: {}]
  %s7 = inlined_call_operand.hbm [shape: f32[2,1,128], index: 7, kind: output, shape index: {}]
  %s8 = sld [smem:[#allocation0]]
  $region85: #{cnn_forward.1} parent=0
    _
  %s10 = ssub.s32 1, %s8
  %s11 = scalar_select 0, %s10, %s8
  $region1: #{cnn_forward.1} parent=0
    #allocation4 [shape = 'u8[245760]{0}', space=vmem, size = 0x3c000, scoped, tag = 'input window, operand 1, single buffered']
    #allocation5 [shape = 's32[2]{0}', space=sflag, size = 0x8, scoped, tag = 'scoped memory for cnn_forward.1']
    #allocation6 [shape = 's32[2]{0}', space=sflag, size = 0x8, scoped, tag = 'scoped memory for cnn_forward.1']
    #allocation7 [shape = 'u8[1536]{0}', space=vmem, size = 0x800, scoped, tag = 'input window, operand 2, single buffered']
    #allocation8 [shape = 's32[1]{0}', space=sflag, size = 0x4, scoped, tag = 'scoped memory for cnn_forward.1']
    #allocation9 [shape = 'u8[3538944]{0}', space=vmem, size = 0x360000, scoped, tag = 'input window, operand 3, single buffered']
    #allocation10 [shape = 'u8[1024]{0}', space=vmem, size = 0x400, scoped, tag = 'input window, operand 4, single buffered']
    #allocation11 [shape = 's32[1]{0}', space=sflag, size = 0x4, scoped, tag = 'scoped memory for cnn_forward.1']
    #allocation12 [shape = 'u8[401408]{0}', space=vmem, size = 0x62000, scoped, tag = 'input window, operand 5, single buffered']
    #allocation13 [shape = 'u8[512]{0}', space=vmem, size = 0x400, scoped, tag = 'input window, operand 6, single buffered']
    #allocation14 [shape = 's32[1]{0}', space=sflag, size = 0x4, scoped, tag = 'scoped memory for cnn_forward.1']
    #allocation15 [shape = 'u8[1024]{0}', space=vmem, size = 0x400, scoped, tag = 'output window, operand 0']
    %12 = vsyncpa [#allocation5], 0
    %13 = vsyncpa [#allocation8], 0
    %14 = vsyncpa [#allocation11], 0
    %15 = vsyncpa [#allocation14], 0
    %16 = vsyncpa [#allocation6], 0
    %s17 = scalar_lea.sflag [#allocation6], 1
    %18 = vsyncpa %s17, 0
    loop: start=0, step=1, limit=4
    $region2: #{cnn_forward.1} parent=1 // loop_pre_header
      _
    $region3: #{cnn_forward.1} parent=1 // loop_header
      %s20 = sphi 0, %s24
      %p21 = scmp.ge.s32.totalorder %s20, 4
      %s30 = sphi 0, %s32
      %s33 = sphi 0, %s30
      %s34 = sphi 0, %s33
      %s50 = sphi 0, %s34
      %s54 = sphi 0, %s54
      %s56 = sphi 0, %s54
      %s57 = sphi 0, %s56
      %s71 = sphi 0, %s57
      %s75 = sphi 0, %s75
      %s77 = sphi 0, %s75
      %s78 = sphi 0, %s77
      %s92 = sphi 0, %s78
      %s96 = sphi 0, %s96
      %s98 = sphi 0, %s96
      %s99 = sphi 0, %s98
      %s113 = sphi 0, %s99
      %s117 = sphi 0, %s117
      %s119 = sphi 0, %s117
      %s120 = sphi 0, %s119
      %s134 = sphi 0, %s120
      %s138 = sphi 0, %s138
      %s140 = sphi 0, %s138
      %s141 = sphi 0, %s140
      %s155 = sphi 0, %s141
      %s159 = sphi 0, %s159
      %s161 = sphi 0, %s159
      %s162 = sphi 0, %s161
      %s176 = sphi 0, %s162
      %s182 = sphi 0, %s184
      %s185 = sphi 0, %s182
      %s186 = sphi 0, %s185
      %s202 = sphi 0, %s186
    $region4: #{cnn_forward.1} parent=1 // loop_header_branch
      %23 = sbr.rel (%p21) target = $region8
    $region5: #{cnn_forward.1} parent=1 // loop_body
      %s25 = ssub.s32 %s20, 1
      %s26 = ssub.s32 %s20, 2
      %s27 = sadd.s32 %s20, 1
      %s28 = ssub.s32 %s20, %s27
      %p29 = scmp.eq.s32.totalorder %s28, 0
      %s31 = sadd.s32 %s30, 1
      %s32 = scalar_select %p29, %s30, %s31
      %p35 = pneg %p29
      %p36 = scmp.eq.s32.totalorder %s20, 1
      %p37 = por %p35, %p36
      %p38 = scmp.ne.s32.totalorder %s30, %s33
      %p39 = scmp.eq.s32.totalorder %s20, 0
      %p40 = por %p38, %p39
      %p41 = scmp.ne.s32.totalorder %s30, %s33
      %p42 = scmp.eq.s32.totalorder %s25, 1
      %p43 = por %p41, %p42
      %p44 = scmp.ne.s32.totalorder %s33, %s34
      %p45 = scmp.eq.s32.totalorder %s25, 0
      %p46 = por %p44, %p45
      %p47 = scmp.ne.s32.totalorder %s33, %s34
      %p48 = scmp.eq.s32.totalorder %s26, 1
      %p49 = por %p47, %p48
      %p51 = scmp.ne.s32.totalorder %s34, %s50
      %p52 = scmp.eq.s32.totalorder %s26, 0
      %p53 = por %p51, %p52
      %s55 = sadd.s32 %s54, 1
      %p58 = scmp.eq.s32.totalorder %s20, 1
      %p59 = scmp.ne.s32.totalorder %s54, %s56
      %p60 = scmp.eq.s32.totalorder %s20, 0
      %p61 = por %p59, %p60
      %p62 = scmp.ne.s32.totalorder %s54, %s56
      %p63 = scmp.eq.s32.totalorder %s25, 1
      %p64 = por %p62, %p63
      %p65 = scmp.ne.s32.totalorder %s56, %s57
      %p66 = scmp.eq.s32.totalorder %s25, 0
      %p67 = por %p65, %p66
      %p68 = scmp.ne.s32.totalorder %s56, %s57
      %p69 = scmp.eq.s32.totalorder %s26, 1
      %p70 = por %p68, %p69
      %p72 = scmp.ne.s32.totalorder %s57, %s71
      %p73 = scmp.eq.s32.totalorder %s26, 0
      %p74 = por %p72, %p73
      %s76 = sadd.s32 %s75, 1
      %p79 = scmp.eq.s32.totalorder %s20, 1
      %p80 = scmp.ne.s32.totalorder %s75, %s77
      %p81 = scmp.eq.s32.totalorder %s20, 0
      %p82 = por %p80, %p81
      %p83 = scmp.ne.s32.totalorder %s75, %s77
      %p84 = scmp.eq.s32.totalorder %s25, 1
      %p85 = por %p83, %p84
      %p86 = scmp.ne.s32.totalorder %s77, %s78
      %p87 = scmp.eq.s32.totalorder %s25, 0
      %p88 = por %p86, %p87
      %p89 = scmp.ne.s32.totalorder %s77, %s78
      %p90 = scmp.eq.s32.totalorder %s26, 1
      %p91 = por %p89, %p90
      %p93 = scmp.ne.s32.totalorder %s78, %s92
      %p94 = scmp.eq.s32.totalorder %s26, 0
      %p95 = por %p93, %p94
      %s97 = sadd.s32 %s96, 1
      %p100 = scmp.eq.s32.totalorder %s20, 1
      %p101 = scmp.ne.s32.totalorder %s96, %s98
      %p102 = scmp.eq.s32.totalorder %s20, 0
      %p103 = por %p101, %p102
      %p104 = scmp.ne.s32.totalorder %s96, %s98
      %p105 = scmp.eq.s32.totalorder %s25, 1
      %p106 = por %p104, %p105
      %p107 = scmp.ne.s32.totalorder %s98, %s99
      %p108 = scmp.eq.s32.totalorder %s25, 0
      %p109 = por %p107, %p108
      %p110 = scmp.ne.s32.totalorder %s98, %s99
      %p111 = scmp.eq.s32.totalorder %s26, 1
      %p112 = por %p110, %p111
      %p114 = scmp.ne.s32.totalorder %s99, %s113
      %p115 = scmp.eq.s32.totalorder %s26, 0
      %p116 = por %p114, %p115
      %s118 = sadd.s32 %s117, 1
      %p121 = scmp.eq.s32.totalorder %s20, 1
      %p122 = scmp.ne.s32.totalorder %s117, %s119
      %p123 = scmp.eq.s32.totalorder %s20, 0
      %p124 = por %p122, %p123
      %p125 = scmp.ne.s32.totalorder %s117, %s119
      %p126 = scmp.eq.s32.totalorder %s25, 1
      %p127 = por %p125, %p126
      %p128 = scmp.ne.s32.totalorder %s119, %s120
      %p129 = scmp.eq.s32.totalorder %s25, 0
      %p130 = por %p128, %p129
      %p131 = scmp.ne.s32.totalorder %s119, %s120
      %p132 = scmp.eq.s32.totalorder %s26, 1
      %p133 = por %p131, %p132
      %p135 = scmp.ne.s32.totalorder %s120, %s134
      %p136 = scmp.eq.s32.totalorder %s26, 0
      %p137 = por %p135, %p136
      %s139 = sadd.s32 %s138, 1
      %p142 = scmp.eq.s32.totalorder %s20, 1
      %p143 = scmp.ne.s32.totalorder %s138, %s140
      %p144 = scmp.eq.s32.totalorder %s20, 0
      %p145 = por %p143, %p144
      %p146 = scmp.ne.s32.totalorder %s138, %s140
      %p147 = scmp.eq.s32.totalorder %s25, 1
      %p148 = por %p146, %p147
      %p149 = scmp.ne.s32.totalorder %s140, %s141
      %p150 = scmp.eq.s32.totalorder %s25, 0
      %p151 = por %p149, %p150
      %p152 = scmp.ne.s32.totalorder %s140, %s141
      %p153 = scmp.eq.s32.totalorder %s26, 1
      %p154 = por %p152, %p153
      %p156 = scmp.ne.s32.totalorder %s141, %s155
      %p157 = scmp.eq.s32.totalorder %s26, 0
      %p158 = por %p156, %p157
      %s160 = sadd.s32 %s159, 1
      %p163 = scmp.eq.s32.totalorder %s20, 1
      %p164 = scmp.ne.s32.totalorder %s159, %s161
      %p165 = scmp.eq.s32.totalorder %s20, 0
      %p166 = por %p164, %p165
      %p167 = scmp.ne.s32.totalorder %s159, %s161
      %p168 = scmp.eq.s32.totalorder %s25, 1
      %p169 = por %p167, %p168
      %p170 = scmp.ne.s32.totalorder %s161, %s162
      %p171 = scmp.eq.s32.totalorder %s25, 0
      %p172 = por %p170, %p171
      %p173 = scmp.ne.s32.totalorder %s161, %s162
      %p174 = scmp.eq.s32.totalorder %s26, 1
      %p175 = por %p173, %p174
      %p177 = scmp.ne.s32.totalorder %s162, %s176
      %p178 = scmp.eq.s32.totalorder %s26, 0
      %p179 = por %p177, %p178
      %s180 = ssub.s32 %s20, %s27
      %p181 = scmp.eq.s32.totalorder %s180, 0
      %s183 = sadd.s32 %s182, 1
      %s184 = scalar_select %p181, %s182, %s183
      %p187 = pneg %p181
      %p188 = scmp.eq.s32.totalorder %s20, 1
      %p189 = por %p187, %p188
      %p190 = scmp.ne.s32.totalorder %s182, %s185
      %p191 = scmp.eq.s32.totalorder %s20, 0
      %p192 = por %p190, %p191
      %p193 = scmp.ne.s32.totalorder %s182, %s185
      %p194 = scmp.eq.s32.totalorder %s25, 1
      %p195 = por %p193, %p194
      %p196 = scmp.ne.s32.totalorder %s185, %s186
      %p197 = scmp.eq.s32.totalorder %s25, 0
      %p198 = por %p196, %p197
      %p199 = scmp.ne.s32.totalorder %s185, %s186
      %p200 = scmp.eq.s32.totalorder %s26, 1
      %p201 = por %p199, %p200
      %p203 = scmp.ne.s32.totalorder %s186, %s202
      %p204 = scmp.eq.s32.totalorder %s26, 0
      %p205 = por %p203, %p204
      %p206 = scmp.le.s32.totalorder 1, %s20
      %p207 = scmp.lt.s32.totalorder %s20, 3
      %p208 = pnand %p206, %p207
      %p209 = pneg %p208
      // Predicated region
      $region9: #{cnn_forward.1} parent=5 // pred_check
        _
      $region10: #{cnn_forward.1} parent=5 // pred_check_branch
        %211 = sbr.rel (%p208) target = $region12
      $region11: #{cnn_forward.1} parent=5 // pred_region
        %s212 = ssub.s32 %s20, 1
        // Predicated region
        $region13: #{cnn_forward.1} parent=11 // pred_check
          %p213 = pneg %p67
        $region14: #{cnn_forward.1} parent=11 // pred_check_branch
          %215 = sbr.rel (%p213) target = $region16
        $region15: #{cnn_forward.1} parent=11 // pred_region
          %s217 = ssub.s32 7680, 7680
          %218 = vsyncadd [#allocation5], %s217
          %s219 = sshll.u32 [#allocation4], 4
          %s220 = int_to_ptr.vmem [resolvable:$true] %s219
          %225 = dma.hbm_to_vmem [thread:$0]  %s1, 7680, %s220, [#allocation5], 384, 384, 24
        $region16: #{cnn_forward.1} parent=11 // pred_fallthru
          _
        // Predicated region
        $region17: #{cnn_forward.1} parent=11 // pred_check
          %p226 = pneg %p88
        $region18: #{cnn_forward.1} parent=11 // pred_check_branch
          %228 = sbr.rel (%p226) target = $region20
        $region19: #{cnn_forward.1} parent=11 // pred_region
          %s230 = ssub.s32 48, 48
          %231 = vsyncadd [#allocation8], %s230
          %s233 = sshll.u32 [#allocation7], 4
          %s234 = int_to_ptr.vmem [resolvable:$true] %s233
          %236 = dma.hbm_to_vmem [thread:$0]  %s2, 48, %s234, [#allocation8]
        $region20: #{cnn_forward.1} parent=11 // pred_fallthru
          _
        // Predicated region
        $region21: #{cnn_forward.1} parent=11 // pred_check
          %p237 = pneg %p109
        $region22: #{cnn_forward.1} parent=11 // pred_check_branch
          %239 = sbr.rel (%p237) target = $region24
        $region23: #{cnn_forward.1} parent=11 // pred_region
          %s241 = ssub.s32 110592, 110592
          %242 = vsyncadd [#allocation8], %s241
          %s243 = sshll.u32 [#allocation9], 4
          %s244 = int_to_ptr.vmem [resolvable:$true] %s243
          %249 = dma.hbm_to_vmem [thread:$0]  %s3, 110592, %s244, [#allocation8], 512, 512, 32
        $region24: #{cnn_forward.1} parent=11 // pred_fallthru
          _
        // Predicated region
        $region25: #{cnn_forward.1} parent=11 // pred_check
          %p250 = pneg %p130
        $region26: #{cnn_forward.1} parent=11 // pred_check_branch
          %252 = sbr.rel (%p250) target = $region28
        $region27: #{cnn_forward.1} parent=11 // pred_region
          %s254 = ssub.s32 32, 32
          %255 = vsyncadd [#allocation11], %s254
          %s257 = sshll.u32 [#allocation10], 4
          %s258 = int_to_ptr.vmem [resolvable:$true] %s257
          %260 = dma.hbm_to_vmem [thread:$0]  %s4, 32, %s258, [#allocation11]
        $region28: #{cnn_forward.1} parent=11 // pred_fallthru
          _
        // Predicated region
        $region29: #{cnn_forward.1} parent=11 // pred_check
          %p261 = pneg %p151
        $region30: #{cnn_forward.1} parent=11 // pred_check_branch
          %263 = sbr.rel (%p261) target = $region32
        $region31: #{cnn_forward.1} parent=11 // pred_region
          %s265 = ssub.s32 12544, 12544
          %266 = vsyncadd [#allocation11], %s265
          %s267 = sshll.u32 [#allocation12], 4
          %s268 = int_to_ptr.vmem [resolvable:$true] %s267
          %273 = dma.hbm_to_vmem [thread:$0]  %s5, 12544, %s268, [#allocation11], 64, 64, 4
        $region32: #{cnn_forward.1} parent=11 // pred_fallthru
          _
        // Predicated region
        $region33: #{cnn_forward.1} parent=11 // pred_check
          %p274 = pneg %p172
        $region34: #{cnn_forward.1} parent=11 // pred_check_branch
          %276 = sbr.rel (%p274) target = $region36
        $region35: #{cnn_forward.1} parent=11 // pred_region
          %s278 = ssub.s32 16, 16
          %279 = vsyncadd [#allocation14], %s278
          %s281 = sshll.u32 [#allocation13], 4
          %s282 = int_to_ptr.vmem [resolvable:$true] %s281
          %284 = dma.hbm_to_vmem [thread:$0]  %s6, 16, %s282, [#allocation14]
        $region36: #{cnn_forward.1} parent=11 // pred_fallthru
          _
      $region12: #{cnn_forward.1} parent=5 // pred_fallthru
        _
      %p285 = scmp.lt.s32.totalorder %s20, 2
      // Predicated region
      $region37: #{cnn_forward.1} parent=5 // pred_check
        %p286 = pneg %p285
      $region38: #{cnn_forward.1} parent=5 // pred_check_branch
        %288 = sbr.rel (%p286) target = $region40
      $region39: #{cnn_forward.1} parent=5 // pred_region
        // Predicated region
        $region41: #{cnn_forward.1} parent=39 // pred_check
          %p289 = pneg %p40
        $region42: #{cnn_forward.1} parent=39 // pred_check_branch
          %291 = sbr.rel (%p289) target = $region44
        $region43: #{cnn_forward.1} parent=39 // pred_region
          %p292 = scmp.lt.s32.totalorder %s20, 1
          %s293 = scalar_select %p292, %s20, 1
          %s294 = smul.addr %s293, 4
          %s295 = smul.addr %s294, 8
          %s296 = scalar_lea.vmem %s0, %s295
        $region44: #{cnn_forward.1} parent=39 // pred_fallthru
          _
      $region40: #{cnn_forward.1} parent=5 // pred_fallthru
        _
      %p297 = scmp.le.s32.totalorder 1, %s20
      %p298 = scmp.lt.s32.totalorder %s20, 3
      %p299 = pnand %p297, %p298
      %p300 = pneg %p299
      // Predicated region
      $region45: #{cnn_forward.1} parent=5 // pred_check
        _
      $region46: #{cnn_forward.1} parent=5 // pred_check_branch
        %302 = sbr.rel (%p299) target = $region48
      $region47: #{cnn_forward.1} parent=5 // pred_region
        %s303 = ssub.s32 %s20, 1
        // Predicated region
        $region49: #{cnn_forward.1} parent=47 // pred_check
          %p304 = pneg %p67
        $region50: #{cnn_forward.1} parent=47 // pred_check_branch
          %306 = sbr.rel (%p304) target = $region52
        $region51: #{cnn_forward.1} parent=47 // pred_region
          %307 = dma.done [#allocation5], 7680
        $region52: #{cnn_forward.1} parent=47 // pred_fallthru
          _
        // Predicated region
        $region53: #{cnn_forward.1} parent=47 // pred_check
          %p308 = pneg %p88
        $region54: #{cnn_forward.1} parent=47 // pred_check_branch
          %310 = sbr.rel (%p308) target = $region56
        $region55: #{cnn_forward.1} parent=47 // pred_region
          %311 = dma.done [#allocation8], 48
        $region56: #{cnn_forward.1} parent=47 // pred_fallthru
          _
        // Predicated region
        $region57: #{cnn_forward.1} parent=47 // pred_check
          %p312 = pneg %p109
        $region58: #{cnn_forward.1} parent=47 // pred_check_branch
          %314 = sbr.rel (%p312) target = $region60
        $region59: #{cnn_forward.1} parent=47 // pred_region
          %315 = dma.done [#allocation8], 110592
        $region60: #{cnn_forward.1} parent=47 // pred_fallthru
          _
        // Predicated region
        $region61: #{cnn_forward.1} parent=47 // pred_check
          %p316 = pneg %p130
        $region62: #{cnn_forward.1} parent=47 // pred_check_branch
          %318 = sbr.rel (%p316) target = $region64
        $region63: #{cnn_forward.1} parent=47 // pred_region
          %319 = dma.done [#allocation11], 32
        $region64: #{cnn_forward.1} parent=47 // pred_fallthru
          _
        // Predicated region
        $region65: #{cnn_forward.1} parent=47 // pred_check
          %p320 = pneg %p151
        $region66: #{cnn_forward.1} parent=47 // pred_check_branch
          %322 = sbr.rel (%p320) target = $region68
        $region67: #{cnn_forward.1} parent=47 // pred_region
          %323 = dma.done [#allocation11], 12544
        $region68: #{cnn_forward.1} parent=47 // pred_fallthru
          _
        // Predicated region
        $region69: #{cnn_forward.1} parent=47 // pred_check
          %p324 = pneg %p172
        $region70: #{cnn_forward.1} parent=47 // pred_check_branch
          %326 = sbr.rel (%p324) target = $region72
        $region71: #{cnn_forward.1} parent=47 // pred_region
          %327 = dma.done [#allocation14], 16
        $region72: #{cnn_forward.1} parent=47 // pred_fallthru
          _
        %p328 = scmp.lt.s32.totalorder %s25, 1
        %s329 = scalar_select %p328, %s25, 1
        %s330 = smul.addr %s329, 4
        %s331 = smul.addr %s330, 8
        %s332 = scalar_lea.vmem %s0, %s331
        %p333 = pneg %p46
        %p334 = pneg %p43
        %p335 = pneg %p67
        %p336 = pneg %p64
        %p337 = pneg %p88
        %p338 = pneg %p85
        %p339 = pneg %p109
        %p340 = pneg %p106
        %p341 = pneg %p130
        %p342 = pneg %p127
        %p343 = pneg %p151
        %p344 = pneg %p148
        %p345 = pneg %p172
        %p346 = pneg %p169
        %p347 = pneg %p198
        %p348 = pneg %p195
        %s349 = sand.u32 %s185, 1
        %s350 = scalar_lea.sflag [#allocation6], %s349
        %s351 = sand.u32 %s185, 1
        %s352 = scalar_lea.vmem [#allocation15], %s351
        %p353 = scmp.lt.s32.totalorder %s25, 1
        %s354 = scalar_select %p353, %s25, 1
        %s355 = smul.addr %s354, 4
        %s356 = smul.addr %s355, 8
        %s357 = scalar_lea.vmem %s0, %s356
        %vm359 = vcmask 228352
        %360 = vst.msk [vmem:[#allocation2] sm:$0xff] %vm359, 0.0
        %361 = vst.msk [vmem:[#allocation2 + $0x8] sm:$0xff] %vm359, 0.0
        %362 = vst.msk [vmem:[#allocation2 + $0x10] sm:$0xff] %vm359, 0.0
        %363 = vst.msk [vmem:[#allocation2 + $0x18] sm:$0xff] %vm359, 0.0
        %v364 = vld [vmem:[%s357] sm:$0xff]
        %v365 = vld [vmem:[%s357 + $0x8] sm:$0xff]
        %v366 = vld [vmem:[%s357 + $0x10] sm:$0xff]
        %v367 = vld [vmem:[%s357 + $0x18] sm:$0xf]
        %368 = vst.msk [vmem:[#allocation2 + $0x2] sm:$0xff] %vm359, %v364
        %369 = vst.msk [vmem:[#allocation2 + $0xa] sm:$0xff] %vm359, %v365
        %370 = vst.msk [vmem:[#allocation2 + $0x12] sm:$0xff] %vm359, %v366
        %vm371 = vcmask 224256
        %372 = vst.msk [vmem:[#allocation2 + $0x1a] sm:$0xf] %vm371, %v367
        %v373 = vld [vmem:[#allocation2] sm:$0xff]
        %v374 = vld [vmem:[#allocation2 + $0x8] sm:$0xff]
        %v375 = vld [vmem:[#allocation2 + $0x10] sm:$0xff]
        %v376 = vld [vmem:[#allocation2 + $0x18] sm:$0xf]
        %v377 = vpack.c.bf16 %v374, %v373
        %v378 = vpack.c.bf16 %v376, %v375
        %v379 = vld [vmem:[#allocation4] sm:$0xff]
        %v380 = vld [vmem:[#allocation4 + $0x8] sm:$0xff]
        %v381 = vld [vmem:[#allocation4 + $0x10] sm:$0xff]
        %v382 = vld [vmem:[#allocation4 + $0x18] sm:$0xff]
        %v383 = vld [vmem:[#allocation4 + $0x20] sm:$0xff]
        %v384 = vld [vmem:[#allocation4 + $0x28] sm:$0xff]
        %v385 = vld [vmem:[#allocation4 + $0x30] sm:$0xff]
        %v386 = vld [vmem:[#allocation4 + $0x38] sm:$0xff]
        %v387 = vld [vmem:[#allocation4 + $0x40] sm:$0xff]
        %v388 = vld [vmem:[#allocation4 + $0x48] sm:$0x33]
        %v389 = vld [vmem:[#allocation4 + $0x50] sm:$0x33]
        %v390 = vld [vmem:[#allocation4 + $0x58] sm:$0x33]
        %v391 = vld [vmem:[#allocation2 + $0x1] sm:$0xff]
        %v392 = vld [vmem:[#allocation2 + $0x9] sm:$0xff]
        %v393 = vld [vmem:[#allocation2 + $0x11] sm:$0xff]
        %v394 = vld [vmem:[#allocation2 + $0x19] sm:$0xf]
        %v395 = vpack.c.bf16 %v392, %v391
        %v396 = vpack.c.bf16 %v394, %v393
        %s397 = scalar_lea.vmem [#allocation4], 96
        %v398 = vld [vmem:[%s397] sm:$0xff]
        %v399 = vld [vmem:[%s397 + $0x8] sm:$0xff]
        %v400 = vld [vmem:[%s397 + $0x10] sm:$0xff]
        %v401 = vld [vmem:[%s397 + $0x18] sm:$0xff]
        %v402 = vld [vmem:[%s397 + $0x20] sm:$0xff]
        %v403 = vld [vmem:[%s397 + $0x28] sm:$0xff]
        %v404 = vld [vmem:[%s397 + $0x30] sm:$0xff]
        %v405 = vld [vmem:[%s397 + $0x38] sm:$0xff]
        %v406 = vld [vmem:[%s397 + $0x40] sm:$0xff]
        %v407 = vld [vmem:[%s397 + $0x48] sm:$0x33]
        %v408 = vld [vmem:[%s397 + $0x50] sm:$0x33]
        %v409 = vld [vmem:[%s397 + $0x58] sm:$0x33]
        %v422 = vunpack.c.l.b16 %v398
        %v423 = vunpack.c.h.b16 %v398
        %v424 = vunpack.c.l.b16 %v399
        %v425 = vunpack.c.h.b16 %v399
        %v426 = vunpack.c.l.b16 %v400
        %v427 = vunpack.c.h.b16 %v400
        %v428 = vunpack.c.l.b16 %v401
        %v429 = vunpack.c.h.b16 %v401
        %v430 = vunpack.c.l.b16 %v402
        %v431 = vunpack.c.h.b16 %v402
        %v432 = vunpack.c.l.b16 %v403
        %v433 = vunpack.c.h.b16 %v403
        %v434 = vunpack.c.l.b16 %v404
        %v435 = vunpack.c.h.b16 %v404
        %v436 = vunpack.c.l.b16 %v405
        %v437 = vunpack.c.h.b16 %v405
        %v438 = vunpack.c.l.b16 %v406
        %v439 = vunpack.c.h.b16 %v406
        %v440 = vunpack.c.l.b16 %v407
        %v441 = vunpack.c.h.b16 %v407
        %v442 = vunpack.c.l.b16 %v408
        %v443 = vunpack.c.h.b16 %v408
        %v444 = vunpack.c.l.b16 %v409
        %v445 = vunpack.c.h.b16 %v409
        %v446 = vpack.c.b16 %v428, %v422
        %v447 = vpack.c.b16 %v429, %v423
        %v448 = vpack.c.b16 %v430, %v424
        %v449 = vpack.c.b16 %v431, %v425
        %v450 = vpack.c.b16 %v432, %v426
        %v451 = vpack.c.b16 %v433, %v427
        %v452 = vpack.c.b16 %v440, %v434
        %v453 = vpack.c.b16 %v441, %v435
        %v454 = vpack.c.b16 %v442, %v436
        %v455 = vpack.c.b16 %v443, %v437
        %v456 = vpack.c.b16 %v444, %v438
        %v457 = vpack.c.b16 %v445, %v439
        %v465 = vsel %vm359, %v395, 0
        %v468 = vsel %vm359, %v396, 0
        %vm470 = vcmask 1045504
        %v472 = vsel %vm470, %v452, 0
        %v475 = vsel %vm470, %v453, 0
        %v478 = vsel %vm470, %v454, 0
        %v481 = vsel %vm470, %v455, 0
        %v484 = vsel %vm470, %v456, 0
        %v487 = vsel %vm470, %v457, 0
        %489 = vmatprep.subr.bf16.mxu0 %v447
        %490 = vmatpush1.bf16.msra.mxu0 %v446
        %491 = vmatprep.subr.bf16.mxu0 %v475
        %492 = vmatpush1.bf16.msra.mxu0 %v472
        %493 = vmatprep.subr.bf16.mxu0 0
        %494 = vmatpush1.bf16.msra.mxu0 0
        %495 = vmatprep.subr.bf16.mxu0 0
        %496 = vmatpush1.bf16.msra.mxu0 0
        %497 = vmatprep.subr.bf16.mxu0 0
        %498 = vmatpush1.bf16.msra.mxu0 0
        %499 = vmatprep.subr.bf16.mxu0 0
        %500 = vmatpush1.bf16.msra.mxu0 0
        %501 = vmatprep.subr.bf16.mxu0 0
        %502 = vmatpush1.bf16.msra.mxu0 0
        %503 = vmatprep.subr.bf16.mxu0 0
        %504 = vmatpush1.bf16.msra.mxu0 0
        %505 = vmatprep.subr.bf16.mxu0 0
        %506 = vmatpush1.bf16.msra.mxu0 0
        %507 = vmatprep.subr.bf16.mxu0 0
        %508 = vmatpush1.bf16.msra.mxu0 0
        %509 = vmatprep.subr.bf16.mxu0 0
        %510 = vmatpush1.bf16.msra.mxu0 0
        %511 = vmatprep.subr.bf16.mxu0 0
        %512 = vmatpush1.bf16.msra.mxu0 0
        %513 = vmatprep.subr.bf16.mxu0 0
        %514 = vmatpush1.bf16.msra.mxu0 0
        %515 = vmatprep.subr.bf16.mxu0 0
        %516 = vmatpush1.bf16.msra.mxu0 0
        %517 = vmatprep.subr.bf16.mxu0 0
        %518 = vmatpush1.bf16.msra.mxu0 0
        %519 = vmatprep.subr.bf16.mxu0 0
        %520 = vmatpush1.bf16.msra.mxu0 0
        %521 = vmatprep.mubr.bf16.mxu0 0
        %522 = vmatmul.mubr.bf16.gmra.mrb[0].mxu0 %v465
        %v523 = vpop.f32.mrb[0].mxu0
        %v524 = vadd.f32 0.0, %v523
        %v525 = vpop.f32.mrb[0].mxu0
        %v526 = vadd.f32 0.0, %v525
        %v527 = vpop.f32.mrb[0].mxu0
        %v528 = vadd.f32 0.0, %v527
        %v529 = vpop.f32.mrb[0].mxu0
        %v530 = vadd.f32 0.0, %v529
        %531 = vmatprep.mubr.bf16.mxu0 0
        %532 = vmatmul.mubr.bf16.gmra.mrb[0].mxu0 %v468
        %v533 = vpop.f32.mrb[0].mxu0
        %v534 = vadd.f32 0.0, %v533
        %v535 = vpop.f32.mrb[0].mxu0
        %v536 = vadd.f32 0.0, %v535
        %v537 = vpop.f32.mrb[0].mxu0
        %v538 = vadd.f32 0.0, %v537
        %v539 = vpop.f32.mrb[0].mxu0
        %v540 = vadd.f32 0.0, %v539
        %541 = vdwg.mxu0
        %542 = vmatprep.subr.bf16.mxu0 %v449
        %543 = vmatpush1.bf16.msra.mxu0 %v448
        %544 = vmatprep.subr.bf16.mxu0 %v481
        %545 = vmatpush1.bf16.msra.mxu0 %v478
        %546 = vmatprep.subr.bf16.mxu0 0
        %547 = vmatpush1.bf16.msra.mxu0 0
        %548 = vmatprep.subr.bf16.mxu0 0
        %549 = vmatpush1.bf16.msra.mxu0 0
        %550 = vmatprep.subr.bf16.mxu0 0
        %551 = vmatpush1.bf16.msra.mxu0 0
        %552 = vmatprep.subr.bf16.mxu0 0
        %553 = vmatpush1.bf16.msra.mxu0 0
        %554 = vmatprep.subr.bf16.mxu0 0
        %555 = vmatpush1.bf16.msra.mxu0 0
        %556 = vmatprep.subr.bf16.mxu0 0
        %557 = vmatpush1.bf16.msra.mxu0 0
        %558 = vmatprep.subr.bf16.mxu0 0
        %559 = vmatpush1.bf16.msra.mxu0 0
        %560 = vmatprep.subr.bf16.mxu0 0
        %561 = vmatpush1.bf16.msra.mxu0 0
        %562 = vmatprep.subr.bf16.mxu0 0
        %563 = vmatpush1.bf16.msra.mxu0 0
        %564 = vmatprep.subr.bf16.mxu0 0
        %565 = vmatpush1.bf16.msra.mxu0 0
        %566 = vmatprep.subr.bf16.mxu0 0
        %567 = vmatpush1.bf16.msra.mxu0 0
        %568 = vmatprep.subr.bf16.mxu0 0
        %569 = vmatpush1.bf16.msra.mxu0 0
        %570 = vmatprep.subr.bf16.mxu0 0
        %571 = vmatpush1.bf16.msra.mxu0 0
        %572 = vmatprep.subr.bf16.mxu0 0
        %573 = vmatpush1.bf16.msra.mxu0 0
        %574 = vmatprep.mubr.bf16.mxu0 0
        %575 = vmatmul.mubr.bf16.gmra.mrb[0].mxu0 %v465
        %v576 = vpop.f32.mrb[0].mxu0
        %v577 = vadd.f32 0.0, %v576
        %v578 = vpop.f32.mrb[0].mxu0
        %v579 = vadd.f32 0.0, %v578
        %v580 = vpop.f32.mrb[0].mxu0
        %v581 = vadd.f32 0.0, %v580
        %v582 = vpop.f32.mrb[0].mxu0
        %v583 = vadd.f32 0.0, %v582
        %584 = vmatprep.mubr.bf16.mxu0 0
        %585 = vmatmul.mubr.bf16.gmra.mrb[0].mxu0 %v468
        %v586 = vpop.f32.mrb[0].mxu0
        %v587 = vadd.f32 0.0, %v586
        %v588 = vpop.f32.mrb[0].mxu0
        %v589 = vadd.f32 0.0, %v588
        %v590 = vpop.f32.mrb[0].mxu0
        %v591 = vadd.f32 0.0, %v590
        %v592 = vpop.f32.mrb[0].mxu0
        %v593 = vadd.f32 0.0, %v592
        %594 = vdwg.mxu0
        %595 = vmatprep.subr.bf16.mxu0 %v451
        %596 = vmatpush1.bf16.msra.mxu0 %v450
        %597 = vmatprep.subr.bf16.mxu0 %v487
        %598 = vmatpush1.bf16.msra.mxu0 %v484
        %599 = vmatprep.subr.bf16.mxu0 0
        %600 = vmatpush1.bf16.msra.mxu0 0
        %601 = vmatprep.subr.bf16.mxu0 0
        %602 = vmatpush1.bf16.msra.mxu0 0
        %603 = vmatprep.subr.bf16.mxu0 0
        %604 = vmatpush1.bf16.msra.mxu0 0
        %605 = vmatprep.subr.bf16.mxu0 0
        %606 = vmatpush1.bf16.msra.mxu0 0
        %607 = vmatprep.subr.bf16.mxu0 0
        %608 = vmatpush1.bf16.msra.mxu0 0
        %609 = vmatprep.subr.bf16.mxu0 0
        %610 = vmatpush1.bf16.msra.mxu0 0
        %611 = vmatprep.subr.bf16.mxu0 0
        %612 = vmatpush1.bf16.msra.mxu0 0
        %613 = vmatprep.subr.bf16.mxu0 0
        %614 = vmatpush1.bf16.msra.mxu0 0
        %615 = vmatprep.subr.bf16.mxu0 0
        %616 = vmatpush1.bf16.msra.mxu0 0
        %617 = vmatprep.subr.bf16.mxu0 0
        %618 = vmatpush1.bf16.msra.mxu0 0
        %619 = vmatprep.subr.bf16.mxu0 0
        %620 = vmatpush1.bf16.msra.mxu0 0
        %621 = vmatprep.subr.bf16.mxu0 0
        %622 = vmatpush1.bf16.msra.mxu0 0
        %623 = vmatprep.subr.bf16.mxu0 0
        %624 = vmatpush1.bf16.msra.mxu0 0
        %625 = vmatprep.subr.bf16.mxu0 0
        %626 = vmatpush1.bf16.msra.mxu0 0
        %627 = vmatprep.mubr.bf16.mxu0 0
        %628 = vmatmul.mubr.bf16.gmra.mrb[0].mxu0 %v465
        %v629 = vpop.f32.mrb[0].mxu0
        %v630 = vadd.f32 0.0, %v629
        %v631 = vpop.f32.mrb[0].mxu0
        %v632 = vadd.f32 0.0, %v631
        %v633 = vpop.f32.mrb[0].mxu0
        %v634 = vadd.f32 0.0, %v633
        %v635 = vpop.f32.mrb[0].mxu0
        %v636 = vadd.f32 0.0, %v635
        %637 = vmatprep.mubr.bf16.mxu0 0
        %638 = vmatmul.mubr.bf16.gmra.mrb[0].mxu0 %v468
        %v639 = vpop.f32.mrb[0].mxu0
        %v640 = vadd.f32 0.0, %v639
        %v641 = vpop.f32.mrb[0].mxu0
        %v642 = vadd.f32 0.0, %v641
        %v643 = vpop.f32.mrb[0].mxu0
        %v644 = vadd.f32 0.0, %v643
        %v645 = vpop.f32.mrb[0].mxu0
        %v646 = vadd.f32 0.0, %v645
        %647 = vdwg.mxu0
        %v660 = vunpack.c.l.b16 %v379
        %v661 = vunpack.c.h.b16 %v379
        %v662 = vunpack.c.l.b16 %v380
        %v663 = vunpack.c.h.b16 %v380
        %v664 = vunpack.c.l.b16 %v381
        %v665 = vunpack.c.h.b16 %v381
        %v666 = vunpack.c.l.b16 %v382
        %v667 = vunpack.c.h.b16 %v382
        %v668 = vunpack.c.l.b16 %v383
        %v669 = vunpack.c.h.b16 %v383
        %v670 = vunpack.c.l.b16 %v384
        %v671 = vunpack.c.h.b16 %v384
        %v672 = vunpack.c.l.b16 %v385
        %v673 = vunpack.c.h.b16 %v385
        %v674 = vunpack.c.l.b16 %v386
        %v675 = vunpack.c.h.b16 %v386
        %v676 = vunpack.c.l.b16 %v387
        %v677 = vunpack.c.h.b16 %v387
        %v678 = vunpack.c.l.b16 %v388
        %v679 = vunpack.c.h.b16 %v388
        %v680 = vunpack.c.l.b16 %v389
        %v681 = vunpack.c.h.b16 %v389
        %v682 = vunpack.c.l.b16 %v390
        %v683 = vunpack.c.h.b16 %v390
        %v684 = vpack.c.b16 %v666, %v660
        %v685 = vpack.c.b16 %v667, %v661
        %v686 = vpack.c.b16 %v668, %v662
        %v687 = vpack.c.b16 %v669, %v663
        %v688 = vpack.c.b16 %v670, %v664
        %v689 = vpack.c.b16 %v671, %v665
        %v690 = vpack.c.b16 %v678, %v672
        %v691 = vpack.c.b16 %v679, %v673
        %v692 = vpack.c.b16 %v680, %v674
        %v693 = vpack.c.b16 %v681, %v675
        %v694 = vpack.c.b16 %v682, %v676
        %v695 = vpack.c.b16 %v683, %v677
        %v703 = vsel %vm359, %v377, 0
        %v706 = vsel %vm359, %v378, 0
        %v709 = vsel %vm470, %v690, 0
        %v712 = vsel %vm470, %v691, 0
        %v715 = vsel %vm470, %v692, 0
        %v718 = vsel %vm470, %v693, 0
        %v721 = vsel %vm470, %v694, 0
        %v724 = vsel %vm470, %v695, 0
        %726 = vmatprep.subr.bf16.mxu0 %v685
        %727 = vmatpush1.bf16.msra.mxu0 %v684
        %728 = vmatprep.subr.bf16.mxu0 %v712
        %729 = vmatpush1.bf16.msra.mxu0 %v709
        %730 = vmatprep.subr.bf16.mxu0 0
        %731 = vmatpush1.bf16.msra.mxu0 0
        %732 = vmatprep.subr.bf16.mxu0 0
        %733 = vmatpush1.bf16.msra.mxu0 0
        %734 = vmatprep.subr.bf16.mxu0 0
        %735 = vmatpush1.bf16.msra.mxu0 0
        %736 = vmatprep.subr.bf16.mxu0 0
        %737 = vmatpush1.bf16.msra.mxu0 0
        %738 = vmatprep.subr.bf16.mxu0 0
        %739 = vmatpush1.bf16.msra.mxu0 0
        %740 = vmatprep.subr.bf16.mxu0 0
        %741 = vmatpush1.bf16.msra.mxu0 0
        %742 = vmatprep.subr.bf16.mxu0 0
        %743 = vmatpush1.bf16.msra.mxu0 0
        %744 = vmatprep.subr.bf16.mxu0 0
        %745 = vmatpush1.bf16.msra.mxu0 0
        %746 = vmatprep.subr.bf16.mxu0 0
        %747 = vmatpush1.bf16.msra.mxu0 0
        %748 = vmatprep.subr.bf16.mxu0 0
        %749 = vmatpush1.bf16.msra.mxu0 0
        %750 = vmatprep.subr.bf16.mxu0 0
        %751 = vmatpush1.bf16.msra.mxu0 0
        %752 = vmatprep.subr.bf16.mxu0 0
        %753 = vmatpush1.bf16.msra.mxu0 0
        %754 = vmatprep.subr.bf16.mxu0 0
        %755 = vmatpush1.bf16.msra.mxu0 0
        %756 = vmatprep.subr.bf16.mxu0 0
        %757 = vmatpush1.bf16.msra.mxu0 0
        %758 = vmatprep.mubr.bf16.mxu0 0
        %759 = vmatmul.mubr.bf16.gmra.mrb[0].mxu0 %v703
        %v760 = vpop.f32.mrb[0].mxu0
        %v761 = vadd.f32 %v524, %v760
        %v762 = vpop.f32.mrb[0].mxu0
        %v763 = vadd.f32 %v526, %v762
        %v764 = vpop.f32.mrb[0].mxu0
        %v765 = vadd.f32 %v528, %v764
        %v766 = vpop.f32.mrb[0].mxu0
        %v767 = vadd.f32 %v530, %v766
        %768 = vmatprep.mubr.bf16.mxu0 0
        %769 = vmatmul.mubr.bf16.gmra.mrb[0].mxu0 %v706
        %v770 = vpop.f32.mrb[0].mxu0
        %v771 = vadd.f32 %v534, %v770
        %v772 = vpop.f32.mrb[0].mxu0
        %v773 = vadd.f32 %v536, %v772
        %v774 = vpop.f32.mrb[0].mxu0
        %v775 = vadd.f32 %v538, %v774
        %v776 = vpop.f32.mrb[0].mxu0
        %v777 = vadd.f32 %v540, %v776
        %778 = vdwg.mxu0
        %779 = vmatprep.subr.bf16.mxu0 %v687
        %780 = vmatpush1.bf16.msra.mxu0 %v686
        %781 = vmatprep.subr.bf16.mxu0 %v718
        %782 = vmatpush1.bf16.msra.mxu0 %v715
        %783 = vmatprep.subr.bf16.mxu0 0
        %784 = vmatpush1.bf16.msra.mxu0 0
        %785 = vmatprep.subr.bf16.mxu0 0
        %786 = vmatpush1.bf16.msra.mxu0 0
        %787 = vmatprep.subr.bf16.mxu0 0
        %788 = vmatpush1.bf16.msra.mxu0 0
        %789 = vmatprep.subr.bf16.mxu0 0
        %790 = vmatpush1.bf16.msra.mxu0 0
        %791 = vmatprep.subr.bf16.mxu0 0
        %792 = vmatpush1.bf16.msra.mxu0 0
        %793 = vmatprep.subr.bf16.mxu0 0
        %794 = vmatpush1.bf16.msra.mxu0 0
        %795 = vmatprep.subr.bf16.mxu0 0
        %796 = vmatpush1.bf16.msra.mxu0 0
        %797 = vmatprep.subr.bf16.mxu0 0
        %798 = vmatpush1.bf16.msra.mxu0 0
        %799 = vmatprep.subr.bf16.mxu0 0
        %800 = vmatpush1.bf16.msra.mxu0 0
        %801 = vmatprep.subr.bf16.mxu0 0
        %802 = vmatpush1.bf16.msra.mxu0 0
        %803 = vmatprep.subr.bf16.mxu0 0
        %804 = vmatpush1.bf16.msra.mxu0 0
        %805 = vmatprep.subr.bf16.mxu0 0
        %806 = vmatpush1.bf16.msra.mxu0 0
        %807 = vmatprep.subr.bf16.mxu0 0
        %808 = vmatpush1.bf16.msra.mxu0 0
        %809 = vmatprep.subr.bf16.mxu0 0
        %810 = vmatpush1.bf16.msra.mxu0 0
        %811 = vmatprep.mubr.bf16.mxu0 0
        %812 = vmatmul.mubr.bf16.gmra.mrb[0].mxu0 %v703
        %v813 = vpop.f32.mrb[0].mxu0
        %v814 = vadd.f32 %v577, %v813
        %v815 = vpop.f32.mrb[0].mxu0
        %v816 = vadd.f32 %v579, %v815
        %v817 = vpop.f32.mrb[0].mxu0
        %v818 = vadd.f32 %v581, %v817
        %v819 = vpop.f32.mrb[0].mxu0
        %v820 = vadd.f32 %v583, %v819
        %821 = vmatprep.mubr.bf16.mxu0 0
        %822 = vmatmul.mubr.bf16.gmra.mrb[0].mxu0 %v706
        %v823 = vpop.f32.mrb[0].mxu0
        %v824 = vadd.f32 %v587, %v823
        %v825 = vpop.f32.mrb[0].mxu0
        %v826 = vadd.f32 %v589, %v825
        %v827 = vpop.f32.mrb[0].mxu0
        %v828 = vadd.f32 %v591, %v827
        %v829 = vpop.f32.mrb[0].mxu0
        %v830 = vadd.f32 %v593, %v829
        %831 = vdwg.mxu0
        %832 = vmatprep.subr.bf16.mxu0 %v689
        %833 = vmatpush1.bf16.msra.mxu0 %v688
        %834 = vmatprep.subr.bf16.mxu0 %v724
        %835 = vmatpush1.bf16.msra.mxu0 %v721
        %836 = vmatprep.subr.bf16.mxu0 0
        %837 = vmatpush1.bf16.msra.mxu0 0
        %838 = vmatprep.subr.bf16.mxu0 0
        %839 = vmatpush1.bf16.msra.mxu0 0
        %840 = vmatprep.subr.bf16.mxu0 0
        %841 = vmatpush1.bf16.msra.mxu0 0
        %842 = vmatprep.subr.bf16.mxu0 0
        %843 = vmatpush1.bf16.msra.mxu0 0
        %844 = vmatprep.subr.bf16.mxu0 0
        %845 = vmatpush1.bf16.msra.mxu0 0
        %846 = vmatprep.subr.bf16.mxu0 0
        %847 = vmatpush1.bf16.msra.mxu0 0
        %848 = vmatprep.subr.bf16.mxu0 0
        %849 = vmatpush1.bf16.msra.mxu0 0
        %850 = vmatprep.subr.bf16.mxu0 0
        %851 = vmatpush1.bf16.msra.mxu0 0
        %852 = vmatprep.subr.bf16.mxu0 0
        %853 = vmatpush1.bf16.msra.mxu0 0
        %854 = vmatprep.subr.bf16.mxu0 0
        %855 = vmatpush1.bf16.msra.mxu0 0
        %856 = vmatprep.subr.bf16.mxu0 0
        %857 = vmatpush1.bf16.msra.mxu0 0
        %858 = vmatprep.subr.bf16.mxu0 0
        %859 = vmatpush1.bf16.msra.mxu0 0
        %860 = vmatprep.subr.bf16.mxu0 0
        %861 = vmatpush1.bf16.msra.mxu0 0
        %862 = vmatprep.subr.bf16.mxu0 0
        %863 = vmatpush1.bf16.msra.mxu0 0
        %864 = vmatprep.mubr.bf16.mxu0 0
        %865 = vmatmul.mubr.bf16.gmra.mrb[0].mxu0 %v703
        %v866 = vpop.f32.mrb[0].mxu0
        %v867 = vadd.f32 %v630, %v866
        %v868 = vpop.f32.mrb[0].mxu0
        %v869 = vadd.f32 %v632, %v868
        %v870 = vpop.f32.mrb[0].mxu0
        %v871 = vadd.f32 %v634, %v870
        %v872 = vpop.f32.mrb[0].mxu0
        %v873 = vadd.f32 %v636, %v872
        %874 = vmatprep.mubr.bf16.mxu0 0
        %875 = vmatmul.mubr.bf16.gmra.mrb[0].mxu0 %v706
        %v876 = vpop.f32.mrb[0].mxu0
        %v877 = vadd.f32 %v640, %v876
        %v878 = vpop.f32.mrb[0].mxu0
        %v879 = vadd.f32 %v642, %v878
        %v880 = vpop.f32.mrb[0].mxu0
        %v881 = vadd.f32 %v644, %v880
        %v882 = vpop.f32.mrb[0].mxu0
        %v883 = vadd.f32 %v646, %v882
        %884 = vdwg.mxu0
        %v885 = vld [vmem:[#allocation2 + $0x2] sm:$0xff]
        %v886 = vld [vmem:[#allocation2 + $0xa] sm:$0xff]
        %v887 = vld [vmem:[#allocation2 + $0x12] sm:$0xff]
        %v888 = vld [vmem:[#allocation2 + $0x1a] sm:$0xf]
        %v889 = vpack.c.bf16 %v886, %v885
        %v890 = vpack.c.bf16 %v888, %v887
        %s891 = scalar_lea.vmem [#allocation4], 192
        %v892 = vld [vmem:[%s891] sm:$0xff]
        %v893 = vld [vmem:[%s891 + $0x8] sm:$0xff]
        %v894 = vld [vmem:[%s891 + $0x10] sm:$0xff]
        %v895 = vld [vmem:[%s891 + $0x18] sm:$0xff]
        %v896 = vld [vmem:[%s891 + $0x20] sm:$0xff]
        %v897 = vld [vmem:[%s891 + $0x28] sm:$0xff]
        %v898 = vld [vmem:[%s891 + $0x30] sm:$0xff]
        %v899 = vld [vmem:[%s891 + $0x38] sm:$0xff]
        %v900 = vld [vmem:[%s891 + $0x40] sm:$0xff]
        %v901 = vld [vmem:[%s891 + $0x48] sm:$0x33]
        %v902 = vld [vmem:[%s891 + $0x50] sm:$0x33]
        %v903 = vld [vmem:[%s891 + $0x58] sm:$0x33]
        %v916 = vunpack.c.l.b16 %v892
        %v917 = vunpack.c.h.b16 %v892
        %v918 = vunpack.c.l.b16 %v893
        %v919 = vunpack.c.h.b16 %v893
        %v920 = vunpack.c.l.b16 %v894
        %v921 = vunpack.c.h.b16 %v894
        %v922 = vunpack.c.l.b16 %v895
        %v923 = vunpack.c.h.b16 %v895
        %v924 = vunpack.c.l.b16 %v896
        %v925 = vunpack.c.h.b16 %v896
        %v926 = vunpack.c.l.b16 %v897
        %v927 = vunpack.c.h.b16 %v897
        %v928 = vunpack.c.l.b16 %v898
        %v929 = vunpack.c.h.b16 %v898
        %v930 = vunpack.c.l.b16 %v899
        %v931 = vunpack.c.h.b16 %v899
        %v932 = vunpack.c.l.b16 %v900
        %v933 = vunpack.c.h.b16 %v900
        %v934 = vunpack.c.l.b16 %v901
        %v935 = vunpack.c.h.b16 %v901
        %v936 = vunpack.c.l.b16 %v902
        %v937 = vunpack.c.h.b16 %v902
        %v938 = vunpack.c.l.b16 %v903
        %v939 = vunpack.c.h.b16 %v903
        %v940 = vpack.c.b16 %v922, %v916
        %v941 = vpack.c.b16 %v923, %v917
        %v942 = vpack.c.b16 %v924, %v918
        %v943 = vpack.c.b16 %v925, %v919
        %v944 = vpack.c.b16 %v926, %v920
        %v945 = vpack.c.b16 %v927, %v921
        %v946 = vpack.c.b16 %v934, %v928
        %v947 = vpack.c.b16 %v935, %v929
        %v948 = vpack.c.b16 %v936, %v930
        %v949 = vpack.c.b16 %v937, %v931
        %v950 = vpack.c.b16 %v938, %v932
        %v951 = vpack.c.b16 %v939, %v933
        %v959 = vsel %vm359, %v889, 0
        %v962 = vsel %vm359, %v890, 0
        %v965 = vsel %vm470, %v946, 0
        %v968 = vsel %vm470, %v947, 0
        %v971 = vsel %vm470, %v948, 0
        %v974 = vsel %vm470, %v949, 0
        %v977 = vsel %vm470, %v950, 0
        %v980 = vsel %vm470, %v951, 0
        %982 = vmatprep.subr.bf16.mxu0 %v941
        %983 = vmatpush1.bf16.msra.mxu0 %v940
        %984 = vmatprep.subr.bf16.mxu0 %v968
        %985 = vmatpush1.bf16.msra.mxu0 %v965
        %986 = vmatprep.subr.bf16.mxu0 0
        %987 = vmatpush1.bf16.msra.mxu0 0
        %988 = vmatprep.subr.bf16.mxu0 0
        %989 = vmatpush1.bf16.msra.mxu0 0
        %990 = vmatprep.subr.bf16.mxu0 0
        %991 = vmatpush1.bf16.msra.mxu0 0
        %992 = vmatprep.subr.bf16.mxu0 0
        %993 = vmatpush1.bf16.msra.mxu0 0
        %994 = vmatprep.subr.bf16.mxu0 0
        %995 = vmatpush1.bf16.msra.mxu0 0
        %996 = vmatprep.subr.bf16.mxu0 0
        %997 = vmatpush1.bf16.msra.mxu0 0
        %998 = vmatprep.subr.bf16.mxu0 0
        %999 = vmatpush1.bf16.msra.mxu0 0
        %1000 = vmatprep.subr.bf16.mxu0 0
        %1001 = vmatpush1.bf16.msra.mxu0 0
        %1002 = vmatprep.subr.bf16.mxu0 0
        %1003 = vmatpush1.bf16.msra.mxu0 0
        %1004 = vmatprep.subr.bf16.mxu0 0
        %1005 = vmatpush1.bf16.msra.mxu0 0
        %1006 = vmatprep.subr.bf16.mxu0 0
        %1007 = vmatpush1.bf16.msra.mxu0 0
        %1008 = vmatprep.subr.bf16.mxu0 0
        %1009 = vmatpush1.bf16.msra.mxu0 0
        %1010 = vmatprep.subr.bf16.mxu0 0
        %1011 = vmatpush1.bf16.msra.mxu0 0
        %1012 = vmatprep.subr.bf16.mxu0 0
        %1013 = vmatpush1.bf16.msra.mxu0 0
        %1014 = vmatprep.mubr.bf16.mxu0 0
        %1015 = vmatmul.mubr.bf16.gmra.mrb[0].mxu0 %v959
        %v1016 = vpop.f32.mrb[0].mxu0
        %v1017 = vadd.f32 0.0, %v1016
        %v1018 = vpop.f32.mrb[0].mxu0
        %v1019 = vadd.f32 0.0, %v1018
        %v1020 = vpop.f32.mrb[0].mxu0
        %v1021 = vadd.f32 0.0, %v1020
        %v1022 = vpop.f32.mrb[0].mxu0
        %v1023 = vadd.f32 0.0, %v1022
        %1024 = vmatprep.mubr.bf16.mxu0 0
        %1025 = vmatmul.mubr.bf16.gmra.mrb[0].mxu0 %v962
        %v1026 = vpop.f32.mrb[0].mxu0
        %v1027 = vadd.f32 0.0, %v1026
        %v1028 = vpop.f32.mrb[0].mxu0
        %v1029 = vadd.f32 0.0, %v1028
        %v1030 = vpop.f32.mrb[0].mxu0
        %v1031 = vadd.f32 0.0, %v1030
        %v1032 = vpop.f32.mrb[0].mxu0
        %v1033 = vadd.f32 0.0, %v1032
        %1034 = vdwg.mxu0
        %1035 = vmatprep.subr.bf16.mxu0 %v943
        %1036 = vmatpush1.bf16.msra.mxu0 %v942
        %1037 = vmatprep.subr.bf16.mxu0 %v974
        %1038 = vmatpush1.bf16.msra.mxu0 %v971
        %1039 = vmatprep.subr.bf16.mxu0 0
        %1040 = vmatpush1.bf16.msra.mxu0 0
        %1041 = vmatprep.subr.bf16.mxu0 0
        %1042 = vmatpush1.bf16.msra.mxu0 0
        %1043 = vmatprep.subr.bf16.mxu0 0
        %1044 = vmatpush1.bf16.msra.mxu0 0
        %1045 = vmatprep.subr.bf16.mxu0 0
        %1046 = vmatpush1.bf16.msra.mxu0 0
        %1047 = vmatprep.subr.bf16.mxu0 0
        %1048 = vmatpush1.bf16.msra.mxu0 0
        %1049 = vmatprep.subr.bf16.mxu0 0
        %1050 = vmatpush1.bf16.msra.mxu0 0
        %1051 = vmatprep.subr.bf16.mxu0 0
        %1052 = vmatpush1.bf16.msra.mxu0 0
        %1053 = vmatprep.subr.bf16.mxu0 0
        %1054 = vmatpush1.bf16.msra.mxu0 0
        %1055 = vmatprep.subr.bf16.mxu0 0
        %1056 = vmatpush1.bf16.msra.mxu0 0
        %1057 = vmatprep.subr.bf16.mxu0 0
        %1058 = vmatpush1.bf16.msra.mxu0 0
        %1059 = vmatprep.subr.bf16.mxu0 0
        %1060 = vmatpush1.bf16.msra.mxu0 0
        %1061 = vmatprep.subr.bf16.mxu0 0
        %1062 = vmatpush1.bf16.msra.mxu0 0
        %1063 = vmatprep.subr.bf16.mxu0 0
        %1064 = vmatpush1.bf16.msra.mxu0 0
        %1065 = vmatprep.subr.bf16.mxu0 0
        %1066 = vmatpush1.bf16.msra.mxu0 0
        %1067 = vmatprep.mubr.bf16.mxu0 0
        %1068 = vmatmul.mubr.bf16.gmra.mrb[0].mxu0 %v959
        %v1069 = vpop.f32.mrb[0].mxu0
        %v1070 = vadd.f32 0.0, %v1069
        %v1071 = vpop.f32.mrb[0].mxu0
        %v1072 = vadd.f32 0.0, %v1071
        %v1073 = vpop.f32.mrb[0].mxu0
        %v1074 = vadd.f32 0.0, %v1073
        %v1075 = vpop.f32.mrb[0].mxu0
        %v1076 = vadd.f32 0.0, %v1075
        %1077 = vmatprep.mubr.bf16.mxu0 0
        %1078 = vmatmul.mubr.bf16.gmra.mrb[0].mxu0 %v962
        %v1079 = vpop.f32.mrb[0].mxu0
        %v1080 = vadd.f32 0.0, %v1079
        %v1081 = vpop.f32.mrb[0].mxu0
        %v1082 = vadd.f32 0.0, %v1081
        %v1083 = vpop.f32.mrb[0].mxu0
        %v1084 = vadd.f32 0.0, %v1083
        %v1085 = vpop.f32.mrb[0].mxu0
        %v1086 = vadd.f32 0.0, %v1085
        %1087 = vdwg.mxu0
        %1088 = vmatprep.subr.bf16.mxu0 %v945
        %1089 = vmatpush1.bf16.msra.mxu0 %v944
        %1090 = vmatprep.subr.bf16.mxu0 %v980
        %1091 = vmatpush1.bf16.msra.mxu0 %v977
        %1092 = vmatprep.subr.bf16.mxu0 0
        %1093 = vmatpush1.bf16.msra.mxu0 0
        %1094 = vmatprep.subr.bf16.mxu0 0
        %1095 = vmatpush1.bf16.msra.mxu0 0
        %1096 = vmatprep.subr.bf16.mxu0 0
        %1097 = vmatpush1.bf16.msra.mxu0 0
        %1098 = vmatprep.subr.bf16.mxu0 0
        %1099 = vmatpush1.bf16.msra.mxu0 0
        %1100 = vmatprep.subr.bf16.mxu0 0
        %1101 = vmatpush1.bf16.msra.mxu0 0
        %1102 = vmatprep.subr.bf16.mxu0 0
        %1103 = vmatpush1.bf16.msra.mxu0 0
        %1104 = vmatprep.subr.bf16.mxu0 0
        %1105 = vmatpush1.bf16.msra.mxu0 0
        %1106 = vmatprep.subr.bf16.mxu0 0
        %1107 = vmatpush1.bf16.msra.mxu0 0
        %1108 = vmatprep.subr.bf16.mxu0 0
        %1109 = vmatpush1.bf16.msra.mxu0 0
        %1110 = vmatprep.subr.bf16.mxu0 0
        %1111 = vmatpush1.bf16.msra.mxu0 0
        %1112 = vmatprep.subr.bf16.mxu0 0
        %1113 = vmatpush1.bf16.msra.mxu0 0
        %1114 = vmatprep.subr.bf16.mxu0 0
        %1115 = vmatpush1.bf16.msra.mxu0 0
        %1116 = vmatprep.subr.bf16.mxu0 0
        %1117 = vmatpush1.bf16.msra.mxu0 0
        %1118 = vmatprep.subr.bf16.mxu0 0
        %1119 = vmatpush1.bf16.msra.mxu0 0
        %1120 = vmatprep.mubr.bf16.mxu0 0
        %1121 = vmatmul.mubr.bf16.gmra.mrb[0].mxu0 %v959
        %v1122 = vpop.f32.mrb[0].mxu0
        %v1123 = vadd.f32 0.0, %v1122
        %v1124 = vpop.f32.mrb[0].mxu0
        %v1125 = vadd.f32 0.0, %v1124
        %v1126 = vpop.f32.mrb[0].mxu0
        %v1127 = vadd.f32 0.0, %v1126
        %v1128 = vpop.f32.mrb[0].mxu0
        %v1129 = vadd.f32 0.0, %v1128
        %1130 = vmatprep.mubr.bf16.mxu0 0
        %1131 = vmatmul.mubr.bf16.gmra.mrb[0].mxu0 %v962
        %v1132 = vpop.f32.mrb[0].mxu0
        %v1133 = vadd.f32 0.0, %v1132
        %v1134 = vpop.f32.mrb[0].mxu0
        %v1135 = vadd.f32 0.0, %v1134
        %v1136 = vpop.f32.mrb[0].mxu0
        %v1137 = vadd.f32 0.0, %v1136
        %v1138 = vpop.f32.mrb[0].mxu0
        %v1139 = vadd.f32 0.0, %v1138
        %1140 = vdwg.mxu0
        %v1141 = vadd.f32 %v761, %v1017
        %v1142 = vadd.f32 %v763, %v1019
        %v1143 = vadd.f32 %v814, %v1070
        %v1144 = vadd.f32 %v816, %v1072
        %v1145 = vadd.f32 %v867, %v1123
        %v1146 = vadd.f32 %v869, %v1125
        %v1147 = vadd.f32 %v765, %v1021
        %v1148 = vadd.f32 %v767, %v1023
        %v1149 = vadd.f32 %v818, %v1074
        %v1150 = vadd.f32 %v820, %v1076
        %v1151 = vadd.f32 %v871, %v1127
        %v1152 = vadd.f32 %v873, %v1129
        %v1153 = vadd.f32 %v771, %v1027
        %v1154 = vadd.f32 %v773, %v1029
        %v1155 = vadd.f32 %v824, %v1080
        %v1156 = vadd.f32 %v826, %v1082
        %v1157 = vadd.f32 %v877, %v1133
        %v1158 = vadd.f32 %v879, %v1135
        %v1159 = vadd.f32 %v775, %v1031
        %v1160 = vadd.f32 %v777, %v1033
        %v1161 = vadd.f32 %v828, %v1084
        %v1162 = vadd.f32 %v830, %v1086
        %v1163 = vadd.f32 %v881, %v1137
        %v1164 = vadd.f32 %v883, %v1139
        %v1165 = vld [vmem:[#allocation2 + $0x3] sm:$0xff]
        %v1166 = vld [vmem:[#allocation2 + $0xb] sm:$0xff]
        %v1167 = vld [vmem:[#allocation2 + $0x13] sm:$0xff]
        %v1168 = vld [vmem:[#allocation2 + $0x1b] sm:$0xf]
        %v1169 = vpack.c.bf16 %v1166, %v1165
        %v1170 = vpack.c.bf16 %v1168, %v1167
        %s1171 = scalar_lea.vmem [#allocation4], 288
        %v1172 = vld [vmem:[%s1171] sm:$0xff]
        %v1173 = vld [vmem:[%s1171 + $0x8] sm:$0xff]
        %v1174 = vld [vmem:[%s1171 + $0x10] sm:$0xff]
        %v1175 = vld [vmem:[%s1171 + $0x18] sm:$0xff]
        %v1176 = vld [vmem:[%s1171 + $0x20] sm:$0xff]
        %v1177 = vld [vmem:[%s1171 + $0x28] sm:$0xff]
        %v1178 = vld [vmem:[%s1171 + $0x30] sm:$0xff]
        %v1179 = vld [vmem:[%s1171 + $0x38] sm:$0xff]
        %v1180 = vld [vmem:[%s1171 + $0x40] sm:$0xff]
        %v1181 = vld [vmem:[%s1171 + $0x48] sm:$0x33]
        %v1182 = vld [vmem:[%s1171 + $0x50] sm:$0x33]
        %v1183 = vld [vmem:[%s1171 + $0x58] sm:$0x33]
        %v1196 = vunpack.c.l.b16 %v1172
        %v1197 = vunpack.c.h.b16 %v1172
        %v1198 = vunpack.c.l.b16 %v1173
        %v1199 = vunpack.c.h.b16 %v1173
        %v1200 = vunpack.c.l.b16 %v1174
        %v1201 = vunpack.c.h.b16 %v1174
        %v1202 = vunpack.c.l.b16 %v1175
        %v1203 = vunpack.c.h.b16 %v1175
        %v1204 = vunpack.c.l.b16 %v1176
        %v1205 = vunpack.c.h.b16 %v1176
        %v1206 = vunpack.c.l.b16 %v1177
        %v1207 = vunpack.c.h.b16 %v1177
        %v1208 = vunpack.c.l.b16 %v1178
        %v1209 = vunpack.c.h.b16 %v1178
        %v1210 = vunpack.c.l.b16 %v1179
        %v1211 = vunpack.c.h.b16 %v1179
        %v1212 = vunpack.c.l.b16 %v1180
        %v1213 = vunpack.c.h.b16 %v1180
        %v1214 = vunpack.c.l.b16 %v1181
        %v1215 = vunpack.c.h.b16 %v1181
        %v1216 = vunpack.c.l.b16 %v1182
        %v1217 = vunpack.c.h.b16 %v1182
        %v1218 = vunpack.c.l.b16 %v1183
        %v1219 = vunpack.c.h.b16 %v1183
        %v1220 = vpack.c.b16 %v1202, %v1196
        %v1221 = vpack.c.b16 %v1203, %v1197
        %v1222 = vpack.c.b16 %v1204, %v1198
        %v1223 = vpack.c.b16 %v1205, %v1199
        %v1224 = vpack.c.b16 %v1206, %v1200
        %v1225 = vpack.c.b16 %v1207, %v1201
        %v1226 = vpack.c.b16 %v1214, %v1208
        %v1227 = vpack.c.b16 %v1215, %v1209
        %v1228 = vpack.c.b16 %v1216, %v1210
        %v1229 = vpack.c.b16 %v1217, %v1211
        %v1230 = vpack.c.b16 %v1218, %v1212
        %v1231 = vpack.c.b16 %v1219, %v1213
        %v1239 = vsel %vm359, %v1169, 0
        %v1242 = vsel %vm359, %v1170, 0
        %v1245 = vsel %vm470, %v1226, 0
        %v1248 = vsel %vm470, %v1227, 0
        %v1251 = vsel %vm470, %v1228, 0
        %v1254 = vsel %vm470, %v1229, 0
        %v1257 = vsel %vm470, %v1230, 0
        %v1260 = vsel %vm470, %v1231, 0
        %1262 = vmatprep.subr.bf16.mxu0 %v1221
        %1263 = vmatpush1.bf16.msra.mxu0 %v1220
        %1264 = vmatprep.subr.bf16.mxu0 %v1248
        %1265 = vmatpush1.bf16.msra.mxu0 %v1245
        %1266 = vmatprep.subr.bf16.mxu0 0
        %1267 = vmatpush1.bf16.msra.mxu0 0
        %1268 = vmatprep.subr.bf16.mxu0 0
        %1269 = vmatpush1.bf16.msra.mxu0 0
        %1270 = vmatprep.subr.bf16.mxu0 0
        %1271 = vmatpush1.bf16.msra.mxu0 0
        %1272 = vmatprep.subr.bf16.mxu0 0
        %1273 = vmatpush1.bf16.msra.mxu0 0
        %1274 = vmatprep.subr.bf16.mxu0 0
        %1275 = vmatpush1.bf16.msra.mxu0 0
        %1276 = vmatprep.subr.bf16.mxu0 0
        %1277 = vmatpush1.bf16.msra.mxu0 0
        %1278 = vmatprep.subr.bf16.mxu0 0
        %1279 = vmatpush1.bf16.msra.mxu0 0
        %1280 = vmatprep.subr.bf16.mxu0 0
        %1281 = vmatpush1.bf16.msra.mxu0 0
        %1282 = vmatprep.subr.bf16.mxu0 0
        %1283 = vmatpush1.bf16.msra.mxu0 0
        %1284 = vmatprep.subr.bf16.mxu0 0
        %1285 = vmatpush1.bf16.msra.mxu0 0
        %1286 = vmatprep.subr.bf16.mxu0 0
        %1287 = vmatpush1.bf16.msra.mxu0 0
        %1288 = vmatprep.subr.bf16.mxu0 0
        %1289 = vmatpush1.bf16.msra.mxu0 0
        %1290 = vmatprep.subr.bf16.mxu0 0
        %1291 = vmatpush1.bf16.msra.mxu0 0
        %1292 = vmatprep.subr.bf16.mxu0 0
        %1293 = vmatpush1.bf16.msra.mxu0 0
        %1294 = vmatprep.mubr.bf16.mxu0 0
        %1295 = vmatmul.mubr.bf16.gmra.mrb[0].mxu0 %v1239
        %v1296 = vpop.f32.mrb[0].mxu0
        %v1297 = vadd.f32 0.0, %v1296
        %v1298 = vpop.f32.mrb[0].mxu0
        %v1299 = vadd.f32 0.0, %v1298
        %v1300 = vpop.f32.mrb[0].mxu0
        %v1301 = vadd.f32 0.0, %v1300
        %v1302 = vpop.f32.mrb[0].mxu0
        %v1303 = vadd.f32 0.0, %v1302
        %1304 = vmatprep.mubr.bf16.mxu0 0
        %1305 = vmatmul.mubr.bf16.gmra.mrb[0].mxu0 %v1242
        %v1306 = vpop.f32.mrb[0].mxu0
        %v1307 = vadd.f32 0.0, %v1306
        %v1308 = vpop.f32.mrb[0].mxu0
        %v1309 = vadd.f32 0.0, %v1308
        %v1310 = vpop.f32.mrb[0].mxu0
        %v1311 = vadd.f32 0.0, %v1310
        %v1312 = vpop.f32.mrb[0].mxu0
        %v1313 = vadd.f32 0.0, %v1312
        %1314 = vdwg.mxu0
        %1315 = vmatprep.subr.bf16.mxu0 %v1223
        %1316 = vmatpush1.bf16.msra.mxu0 %v1222
        %1317 = vmatprep.subr.bf16.mxu0 %v1254
        %1318 = vmatpush1.bf16.msra.mxu0 %v1251
        %1319 = vmatprep.subr.bf16.mxu0 0
        %1320 = vmatpush1.bf16.msra.mxu0 0
        %1321 = vmatprep.subr.bf16.mxu0 0
        %1322 = vmatpush1.bf16.msra.mxu0 0
        %1323 = vmatprep.subr.bf16.mxu0 0
        %1324 = vmatpush1.bf16.msra.mxu0 0
        %1325 = vmatprep.subr.bf16.mxu0 0
        %1326 = vmatpush1.bf16.msra.mxu0 0
        %1327 = vmatprep.subr.bf16.mxu0 0
        %1328 = vmatpush1.bf16.msra.mxu0 0
        %1329 = vmatprep.subr.bf16.mxu0 0
        %1330 = vmatpush1.bf16.msra.mxu0 0
        %1331 = vmatprep.subr.bf16.mxu0 0
        %1332 = vmatpush1.bf16.msra.mxu0 0
        %1333 = vmatprep.subr.bf16.mxu0 0
        %1334 = vmatpush1.bf16.msra.mxu0 0
        %1335 = vmatprep.subr.bf16.mxu0 0
        %1336 = vmatpush1.bf16.msra.mxu0 0
        %1337 = vmatprep.subr.bf16.mxu0 0
        %1338 = vmatpush1.bf16.msra.mxu0 0
        %1339 = vmatprep.subr.bf16.mxu0 0
        %1340 = vmatpush1.bf16.msra.mxu0 0
        %1341 = vmatprep.subr.bf16.mxu0 0
        %1342 = vmatpush1.bf16.msra.mxu0 0
        %1343 = vmatprep.subr.bf16.mxu0 0
        %1344 = vmatpush1.bf16.msra.mxu0 0
        %1345 = vmatprep.subr.bf16.mxu0 0
        %1346 = vmatpush1.bf16.msra.mxu0 0
        %1347 = vmatprep.mubr.bf16.mxu0 0
        %1348 = vmatmul.mubr.bf16.gmra.mrb[0].mxu0 %v1239
        %v1349 = vpop.f32.mrb[0].mxu0
        %v1350 = vadd.f32 0.0, %v1349
        %v1351 = vpop.f32.mrb[0].mxu0
        %v1352 = vadd.f32 0.0, %v1351
        %v1353 = vpop.f32.mrb[0].mxu0
        %v1354 = vadd.f32 0.0, %v1353
        %v1355 = vpop.f32.mrb[0].mxu0
        %v1356 = vadd.f32 0.0, %v1355
        %1357 = vmatprep.mubr.bf16.mxu0 0
        %1358 = vmatmul.mubr.bf16.gmra.mrb[0].mxu0 %v1242
        %v1359 = vpop.f32.mrb[0].mxu0
        %v1360 = vadd.f32 0.0, %v1359
        %v1361 = vpop.f32.mrb[0].mxu0
        %v1362 = vadd.f32 0.0, %v1361
        %v1363 = vpop.f32.mrb[0].mxu0
        %v1364 = vadd.f32 0.0, %v1363
        %v1365 = vpop.f32.mrb[0].mxu0
        %v1366 = vadd.f32 0.0, %v1365
        %1367 = vdwg.mxu0
        %1368 = vmatprep.subr.bf16.mxu0 %v1225
        %1369 = vmatpush1.bf16.msra.mxu0 %v1224
        %1370 = vmatprep.subr.bf16.mxu0 %v1260
        %1371 = vmatpush1.bf16.msra.mxu0 %v1257
        %1372 = vmatprep.subr.bf16.mxu0 0
        %1373 = vmatpush1.bf16.msra.mxu0 0
        %1374 = vmatprep.subr.bf16.mxu0 0
        %1375 = vmatpush1.bf16.msra.mxu0 0
        %1376 = vmatprep.subr.bf16.mxu0 0
        %1377 = vmatpush1.bf16.msra.mxu0 0
        %1378 = vmatprep.subr.bf16.mxu0 0
        %1379 = vmatpush1.bf16.msra.mxu0 0
        %1380 = vmatprep.subr.bf16.mxu0 0
        %1381 = vmatpush1.bf16.msra.mxu0 0
        %1382 = vmatprep.subr.bf16.mxu0 0
        %1383 = vmatpush1.bf16.msra.mxu0 0
        %1384 = vmatprep.subr.bf16.mxu0 0
        %1385 = vmatpush1.bf16.msra.mxu0 0
        %1386 = vmatprep.subr.bf16.mxu0 0
        %1387 = vmatpush1.bf16.msra.mxu0 0
        %1388 = vmatprep.subr.bf16.mxu0 0
        %1389 = vmatpush1.bf16.msra.mxu0 0
        %1390 = vmatprep.subr.bf16.mxu0 0
        %1391 = vmatpush1.bf16.msra.mxu0 0
        %1392 = vmatprep.subr.bf16.mxu0 0
        %1393 = vmatpush1.bf16.msra.mxu0 0
        %1394 = vmatprep.subr.bf16.mxu0 0
        %1395 = vmatpush1.bf16.msra.mxu0 0
        %1396 = vmatprep.subr.bf16.mxu0 0
        %1397 = vmatpush1.bf16.msra.mxu0 0
        %1398 = vmatprep.subr.bf16.mxu0 0
        %1399 = vmatpush1.bf16.msra.mxu0 0
        %1400 = vmatprep.mubr.bf16.mxu0 0
        %1401 = vmatmul.mubr.bf16.gmra.mrb[0].mxu0 %v1239
        %v1402 = vpop.f32.mrb[0].mxu0
        %v1403 = vadd.f32 0.0, %v1402
        %v1404 = vpop.f32.mrb[0].mxu0
        %v1405 = vadd.f32 0.0, %v1404
        %v1406 = vpop.f32.mrb[0].mxu0
        %v1407 = vadd.f32 0.0, %v1406
        %v1408 = vpop.f32.mrb[0].mxu0
        %v1409 = vadd.f32 0.0, %v1408
        %1410 = vmatprep.mubr.bf16.mxu0 0
        %1411 = vmatmul.mubr.bf16.gmra.mrb[0].mxu0 %v1242
        %v1412 = vpop.f32.mrb[0].mxu0
        %v1413 = vadd.f32 0.0, %v1412
        %v1414 = vpop.f32.mrb[0].mxu0
        %v1415 = vadd.f32 0.0, %v1414
        %v1416 = vpop.f32.mrb[0].mxu0
        %v1417 = vadd.f32 0.0, %v1416
        %v1418 = vpop.f32.mrb[0].mxu0
        %v1419 = vadd.f32 0.0, %v1418
        %1420 = vdwg.mxu0
        %v1421 = vadd.f32 %v1141, %v1297
        %v1422 = vadd.f32 %v1142, %v1299
        %v1423 = vadd.f32 %v1143, %v1350
        %v1424 = vadd.f32 %v1144, %v1352
        %v1425 = vadd.f32 %v1145, %v1403
        %v1426 = vadd.f32 %v1146, %v1405
        %v1427 = vadd.f32 %v1147, %v1301
        %v1428 = vadd.f32 %v1148, %v1303
        %v1429 = vadd.f32 %v1149, %v1354
        %v1430 = vadd.f32 %v1150, %v1356
        %v1431 = vadd.f32 %v1151, %v1407
        %v1432 = vadd.f32 %v1152, %v1409
        %v1433 = vadd.f32 %v1153, %v1307
        %v1434 = vadd.f32 %v1154, %v1309
        %v1435 = vadd.f32 %v1155, %v1360
        %v1436 = vadd.f32 %v1156, %v1362
        %v1437 = vadd.f32 %v1157, %v1413
        %v1438 = vadd.f32 %v1158, %v1415
        %v1439 = vadd.f32 %v1159, %v1311
        %v1440 = vadd.f32 %v1160, %v1313
        %v1441 = vadd.f32 %v1161, %v1364
        %v1442 = vadd.f32 %v1162, %v1366
        %v1443 = vadd.f32 %v1163, %v1417
        %v1444 = vadd.f32 %v1164, %v1419
        %v1445 = vld [vmem:[#allocation2 + $0x4] sm:$0xff]
        %v1446 = vld [vmem:[#allocation2 + $0xc] sm:$0xff]
        %v1447 = vld [vmem:[#allocation2 + $0x14] sm:$0xff]
        %v1448 = vld [vmem:[#allocation2 + $0x1c] sm:$0xf]
        %v1449 = vpack.c.bf16 %v1446, %v1445
        %v1450 = vpack.c.bf16 %v1448, %v1447
        %s1451 = scalar_lea.vmem [#allocation4], 384
        %v1452 = vld [vmem:[%s1451] sm:$0xff]
        %v1453 = vld [vmem:[%s1451 + $0x8] sm:$0xff]
        %v1454 = vld [vmem:[%s1451 + $0x10] sm:$0xff]
        %v1455 = vld [vmem:[%s1451 + $0x18] sm:$0xff]
        %v1456 = vld [vmem:[%s1451 + $0x20] sm:$0xff]
        %v1457 = vld [vmem:[%s1451 + $0x28] sm:$0xff]
        %v1458 = vld [vmem:[%s1451 + $0x30] sm:$0xff]
        %v1459 = vld [vmem:[%s1451 + $0x38] sm:$0xff]
        %v1460 = vld [vmem:[%s1451 + $0x40] sm:$0xff]
        %v1461 = vld [vmem:[%s1451 + $0x48] sm:$0x33]
        %v1462 = vld [vmem:[%s1451 + $0x50] sm:$0x33]
        %v1463 = vld [vmem:[%s1451 + $0x58] sm:$0x33]
        %v1476 = vunpack.c.l.b16 %v1452
        %v1477 = vunpack.c.h.b16 %v1452
        %v1478 = vunpack.c.l.b16 %v1453
        %v1479 = vunpack.c.h.b16 %v1453
        %v1480 = vunpack.c.l.b16 %v1454
        %v1481 = vunpack.c.h.b16 %v1454
        %v1482 = vunpack.c.l.b16 %v1455
        %v1483 = vunpack.c.h.b16 %v1455
        %v1484 = vunpack.c.l.b16 %v1456
        %v1485 = vunpack.c.h.b16 %v1456
        %v1486 = vunpack.c.l.b16 %v1457
        %v1487 = vunpack.c.h.b16 %v1457
        %v1488 = vunpack.c.l.b16 %v1458
        %v1489 = vunpack.c.h.b16 %v1458
        %v1490 = vunpack.c.l.b16 %v1459
        %v1491 = vunpack.c.h.b16 %v1459
        %v1492 = vunpack.c.l.b16 %v1460
        %v1493 = vunpack.c.h.b16 %v1460
        %v1494 = vunpack.c.l.b16 %v1461
        %v1495 = vunpack.c.h.b16 %v1461
        %v1496 = vunpack.c.l.b16 %v1462
        %v1497 = vunpack.c.h.b16 %v1462
        %v1498 = vunpack.c.l.b16 %v1463
        %v1499 = vunpack.c.h.b16 %v1463
        %v1500 = vpack.c.b16 %v1482, %v1476
        %v1501 = vpack.c.b16 %v1483, %v1477
        %v1502 = vpack.c.b16 %v1484, %v1478
        %v1503 = vpack.c.b16 %v1485, %v1479
        %v1504 = vpack.c.b16 %v1486, %v1480
        %v1505 = vpack.c.b16 %v1487, %v1481
        %v1506 = vpack.c.b16 %v1494, %v1488
        %v1507 = vpack.c.b16 %v1495, %v1489
        %v1508 = vpack.c.b16 %v1496, %v1490
        %v1509 = vpack.c.b16 %v1497, %v1491
        %v1510 = vpack.c.b16 %v1498, %v1492
        %v1511 = vpack.c.b16 %v1499, %v1493
        %v1519 = vsel %vm359, %v1449, 0
        %v1522 = vsel %vm359, %v1450, 0
        %v1525 = vsel %vm470, %v1506, 0
        %v1528 = vsel %vm470, %v1507, 0
        %v1531 = vsel %vm470, %v1508, 0
        %v1534 = vsel %vm470, %v1509, 0
        %v1537 = vsel %vm470, %v1510, 0
        %v1540 = vsel %vm470, %v1511, 0
        %1542 = vmatprep.subr.bf16.mxu0 %v1501
        %1543 = vmatpush1.bf16.msra.mxu0 %v1500
        %1544 = vmatprep.subr.bf16.mxu0 %v1528
        %1545 = vmatpush1.bf16.msra.mxu0 %v1525
        %1546 = vmatprep.subr.bf16.mxu0 0
        %1547 = vmatpush1.bf16.msra.mxu0 0
        %1548 = vmatprep.subr.bf16.mxu0 0
        %1549 = vmatpush1.bf16.msra.mxu0 0
        %1550 = vmatprep.subr.bf16.mxu0 0
        %1551 = vmatpush1.bf16.msra.mxu0 0
        %1552 = vmatprep.subr.bf16.mxu0 0
        %1553 = vmatpush1.bf16.msra.mxu0 0
        %1554 = vmatprep.subr.bf16.mxu0 0
        %1555 = vmatpush1.bf16.msra.mxu0 0
        %1556 = vmatprep.subr.bf16.mxu0 0
        %1557 = vmatpush1.bf16.msra.mxu0 0
        %1558 = vmatprep.subr.bf16.mxu0 0
        %1559 = vmatpush1.bf16.msra.mxu0 0
        %1560 = vmatprep.subr.bf16.mxu0 0
        %1561 = vmatpush1.bf16.msra.mxu0 0
        %1562 = vmatprep.subr.bf16.mxu0 0
        %1563 = vmatpush1.bf16.msra.mxu0 0
        %1564 = vmatprep.subr.bf16.mxu0 0
        %1565 = vmatpush1.bf16.msra.mxu0 0
        %1566 = vmatprep.subr.bf16.mxu0 0
        %1567 = vmatpush1.bf16.msra.mxu0 0
        %1568 = vmatprep.subr.bf16.mxu0 0
        %1569 = vmatpush1.bf16.msra.mxu0 0
        %1570 = vmatprep.subr.bf16.mxu0 0
        %1571 = vmatpush1.bf16.msra.mxu0 0
        %1572 = vmatprep.subr.bf16.mxu0 0
        %1573 = vmatpush1.bf16.msra.mxu0 0
        %1574 = vmatprep.mubr.bf16.mxu0 0
        %1575 = vmatmul.mubr.bf16.gmra.mrb[0].mxu0 %v1519
        %v1576 = vpop.f32.mrb[0].mxu0
        %v1577 = vadd.f32 0.0, %v1576
        %v1578 = vpop.f32.mrb[0].mxu0
        %v1579 = vadd.f32 0.0, %v1578
        %v1580 = vpop.f32.mrb[0].mxu0
        %v1581 = vadd.f32 0.0, %v1580
        %v1582 = vpop.f32.mrb[0].mxu0
        %v1583 = vadd.f32 0.0, %v1582
        %1584 = vmatprep.mubr.bf16.mxu0 0
        %1585 = vmatmul.mubr.bf16.gmra.mrb[0].mxu0 %v1522
        %v1586 = vpop.f32.mrb[0].mxu0
        %v1587 = vadd.f32 0.0, %v1586
        %v1588 = vpop.f32.mrb[0].mxu0
        %v1589 = vadd.f32 0.0, %v1588
        %v1590 = vpop.f32.mrb[0].mxu0
        %v1591 = vadd.f32 0.0, %v1590
        %v1592 = vpop.f32.mrb[0].mxu0
        %v1593 = vadd.f32 0.0, %v1592
        %1594 = vdwg.mxu0
        %1595 = vmatprep.subr.bf16.mxu0 %v1503
        %1596 = vmatpush1.bf16.msra.mxu0 %v1502
        %1597 = vmatprep.subr.bf16.mxu0 %v1534
        %1598 = vmatpush1.bf16.msra.mxu0 %v1531
        %1599 = vmatprep.subr.bf16.mxu0 0
        %1600 = vmatpush1.bf16.msra.mxu0 0
        %1601 = vmatprep.subr.bf16.mxu0 0
        %1602 = vmatpush1.bf16.msra.mxu0 0
        %1603 = vmatprep.subr.bf16.mxu0 0
        %1604 = vmatpush1.bf16.msra.mxu0 0
        %1605 = vmatprep.subr.bf16.mxu0 0
        %1606 = vmatpush1.bf16.msra.mxu0 0
        %1607 = vmatprep.subr.bf16.mxu0 0
        %1608 = vmatpush1.bf16.msra.mxu0 0
        %1609 = vmatprep.subr.bf16.mxu0 0
        %1610 = vmatpush1.bf16.msra.mxu0 0
        %1611 = vmatprep.subr.bf16.mxu0 0
        %1612 = vmatpush1.bf16.msra.mxu0 0
        %1613 = vmatprep.subr.bf16.mxu0 0
        %1614 = vmatpush1.bf16.msra.mxu0 0
        %1615 = vmatprep.subr.bf16.mxu0 0
        %1616 = vmatpush1.bf16.msra.mxu0 0
        %1617 = vmatprep.subr.bf16.mxu0 0
        %1618 = vmatpush1.bf16.msra.mxu0 0
        %1619 = vmatprep.subr.bf16.mxu0 0
        %1620 = vmatpush1.bf16.msra.mxu0 0
        %1621 = vmatprep.subr.bf16.mxu0 0
        %1622 = vmatpush1.bf16.msra.mxu0 0
        %1623 = vmatprep.subr.bf16.mxu0 0
        %1624 = vmatpush1.bf16.msra.mxu0 0
        %1625 = vmatprep.subr.bf16.mxu0 0
        %1626 = vmatpush1.bf16.msra.mxu0 0
        %1627 = vmatprep.mubr.bf16.mxu0 0
        %1628 = vmatmul.mubr.bf16.gmra.mrb[0].mxu0 %v1519
        %v1629 = vpop.f32.mrb[0].mxu0
        %v1630 = vadd.f32 0.0, %v1629
        %v1631 = vpop.f32.mrb[0].mxu0
        %v1632 = vadd.f32 0.0, %v1631
        %v1633 = vpop.f32.mrb[0].mxu0
        %v1634 = vadd.f32 0.0, %v1633
        %v1635 = vpop.f32.mrb[0].mxu0
        %v1636 = vadd.f32 0.0, %v1635
        %1637 = vmatprep.mubr.bf16.mxu0 0
        %1638 = vmatmul.mubr.bf16.gmra.mrb[0].mxu0 %v1522
        %v1639 = vpop.f32.mrb[0].mxu0
        %v1640 = vadd.f32 0.0, %v1639
        %v1641 = vpop.f32.mrb[0].mxu0
        %v1642 = vadd.f32 0.0, %v1641
        %v1643 = vpop.f32.mrb[0].mxu0
        %v1644 = vadd.f32 0.0, %v1643
        %v1645 = vpop.f32.mrb[0].mxu0
        %v1646 = vadd.f32 0.0, %v1645
        %1647 = vdwg.mxu0
        %1648 = vmatprep.subr.bf16.mxu0 %v1505
        %1649 = vmatpush1.bf16.msra.mxu0 %v1504
        %1650 = vmatprep.subr.bf16.mxu0 %v1540
        %1651 = vmatpush1.bf16.msra.mxu0 %v1537
        %1652 = vmatprep.subr.bf16.mxu0 0
        %1653 = vmatpush1.bf16.msra.mxu0 0
        %1654 = vmatprep.subr.bf16.mxu0 0
        %1655 = vmatpush1.bf16.msra.mxu0 0
        %1656 = vmatprep.subr.bf16.mxu0 0
        %1657 = vmatpush1.bf16.msra.mxu0 0
        %1658 = vmatprep.subr.bf16.mxu0 0
        %1659 = vmatpush1.bf16.msra.mxu0 0
        %1660 = vmatprep.subr.bf16.mxu0 0
        %1661 = vmatpush1.bf16.msra.mxu0 0
        %1662 = vmatprep.subr.bf16.mxu0 0
        %1663 = vmatpush1.bf16.msra.mxu0 0
        %1664 = vmatprep.subr.bf16.mxu0 0
        %1665 = vmatpush1.bf16.msra.mxu0 0
        %1666 = vmatprep.subr.bf16.mxu0 0
        %1667 = vmatpush1.bf16.msra.mxu0 0
        %1668 = vmatprep.subr.bf16.mxu0 0
        %1669 = vmatpush1.bf16.msra.mxu0 0
        %1670 = vmatprep.subr.bf16.mxu0 0
        %1671 = vmatpush1.bf16.msra.mxu0 0
        %1672 = vmatprep.subr.bf16.mxu0 0
        %1673 = vmatpush1.bf16.msra.mxu0 0
        %1674 = vmatprep.subr.bf16.mxu0 0
        %1675 = vmatpush1.bf16.msra.mxu0 0
        %1676 = vmatprep.subr.bf16.mxu0 0
        %1677 = vmatpush1.bf16.msra.mxu0 0
        %1678 = vmatprep.subr.bf16.mxu0 0
        %1679 = vmatpush1.bf16.msra.mxu0 0
        %1680 = vmatprep.mubr.bf16.mxu0 0
        %1681 = vmatmul.mubr.bf16.gmra.mrb[0].mxu0 %v1519
        %v1682 = vpop.f32.mrb[0].mxu0
        %v1683 = vadd.f32 0.0, %v1682
        %v1684 = vpop.f32.mrb[0].mxu0
        %v1685 = vadd.f32 0.0, %v1684
        %v1686 = vpop.f32.mrb[0].mxu0
        %v1687 = vadd.f32 0.0, %v1686
        %v1688 = vpop.f32.mrb[0].mxu0
        %v1689 = vadd.f32 0.0, %v1688
        %1690 = vmatprep.mubr.bf16.mxu0 0
        %1691 = vmatmul.mubr.bf16.gmra.mrb[0].mxu0 %v1522
        %v1692 = vpop.f32.mrb[0].mxu0
        %v1693 = vadd.f32 0.0, %v1692
        %v1694 = vpop.f32.mrb[0].mxu0
        %v1695 = vadd.f32 0.0, %v1694
        %v1696 = vpop.f32.mrb[0].mxu0
        %v1697 = vadd.f32 0.0, %v1696
        %v1698 = vpop.f32.mrb[0].mxu0
        %v1699 = vadd.f32 0.0, %v1698
        %1700 = vdwg.mxu0
        %v1701 = vadd.f32 %v1421, %v1577
        %v1702 = vadd.f32 %v1422, %v1579
        %v1703 = vadd.f32 %v1423, %v1630
        %v1704 = vadd.f32 %v1424, %v1632
        %v1705 = vadd.f32 %v1425, %v1683
        %v1706 = vadd.f32 %v1426, %v1685
        %v1707 = vadd.f32 %v1427, %v1581
        %v1708 = vadd.f32 %v1428, %v1583
        %v1709 = vadd.f32 %v1429, %v1634
        %v1710 = vadd.f32 %v1430, %v1636
        %v1711 = vadd.f32 %v1431, %v1687
        %v1712 = vadd.f32 %v1432, %v1689
        %v1713 = vadd.f32 %v1433, %v1587
        %v1714 = vadd.f32 %v1434, %v1589
        %v1715 = vadd.f32 %v1435, %v1640
        %v1716 = vadd.f32 %v1436, %v1642
        %v1717 = vadd.f32 %v1437, %v1693
        %v1718 = vadd.f32 %v1438, %v1695
        %v1719 = vadd.f32 %v1439, %v1591
        %v1720 = vadd.f32 %v1440, %v1593
        %v1721 = vadd.f32 %v1441, %v1644
        %v1722 = vadd.f32 %v1442, %v1646
        %v1723 = vadd.f32 %v1443, %v1697
        %v1724 = vadd.f32 %v1444, %v1699
        %v1725 = vmax.f32 %v1701, %v1704
        %v1726 = vmax.f32 %v1702, %v1705
        %v1727 = vmax.f32 %v1703, %v1706
        %v1728 = vmax.f32 %v1707, %v1710
        %v1729 = vmax.f32 %v1708, %v1711
        %v1730 = vmax.f32 %v1709, %v1712
        %v1731 = vmax.f32 %v1713, %v1716
        %v1732 = vmax.f32 %v1714, %v1717
        %v1733 = vmax.f32 %v1715, %v1718
        %v1734 = vmax.f32 %v1719, %v1722
        %v1735 = vmax.f32 %v1720, %v1723
        %v1736 = vmax.f32 %v1721, %v1724
        %v1737 = vld [vmem:[#allocation7] sm:$0x7]
        %v1739 = vlaneseq
        %v1740 = vshrl.u32 %v1739, 7
        %v1741 = vsub.s32 0, %v1740
        %v1742 = vrot.slane %v1737, %v1741
        %v1743 = vlaneseq
        %v1744 = vshrl.u32 %v1743, 7
        %v1745 = vsub.s32 1, %v1744
        %v1746 = vrot.slane %v1737, %v1745
        %v1747 = vlaneseq
        %v1748 = vshrl.u32 %v1747, 7
        %v1749 = vsub.s32 2, %v1748
        %v1750 = vrot.slane %v1737, %v1749
        %v1754 = vadd.f32 %v1725, %v1742
        %v1755 = vadd.f32 %v1726, %v1746
        %v1756 = vadd.f32 %v1727, %v1750
        %v1757 = vadd.f32 %v1728, %v1742
        %v1758 = vadd.f32 %v1729, %v1746
        %v1759 = vadd.f32 %v1730, %v1750
        %v1760 = vadd.f32 %v1731, %v1742
        %v1761 = vadd.f32 %v1732, %v1746
        %v1762 = vadd.f32 %v1733, %v1750
        %v1763 = vadd.f32 %v1734, %v1742
        %v1764 = vadd.f32 %v1735, %v1746
        %v1765 = vadd.f32 %v1736, %v1750
        %v1766 = vmax.f32 %v1754, 0.0
        %v1767 = vmax.f32 %v1755, 0.0
        %v1768 = vmax.f32 %v1756, 0.0
        %v1769 = vmax.f32 %v1757, 0.0
        %v1770 = vmax.f32 %v1758, 0.0
        %v1771 = vmax.f32 %v1759, 0.0
        %v1772 = vmax.f32 %v1760, 0.0
        %v1773 = vmax.f32 %v1761, 0.0
        %v1774 = vmax.f32 %v1762, 0.0
        %v1775 = vmax.f32 %v1763, 0.0
        %v1776 = vmax.f32 %v1764, 0.0
        %v1777 = vmax.f32 %v1765, 0.0
        %vm1790 = vcmask 1046528
        %v1791 = vrot.slane %v1766, 1
        %v1792 = vrot.slane %v1769, 1
        %v1793 = vsel %vm1790, %v1791, %v1792
        %v1794 = vrot.slane %v1767, 1
        %v1795 = vrot.slane %v1770, 1
        %v1796 = vsel %vm1790, %v1794, %v1795
        %v1797 = vrot.slane %v1768, 1
        %v1798 = vrot.slane %v1771, 1
        %v1799 = vsel %vm1790, %v1797, %v1798
        %v1800 = vrot.slane %v1772, 1
        %v1801 = vsel %vm1790, %v1792, %v1800
        %v1802 = vrot.slane %v1773, 1
        %v1803 = vsel %vm1790, %v1795, %v1802
        %v1804 = vrot.slane %v1774, 1
        %v1805 = vsel %vm1790, %v1798, %v1804
        %v1806 = vrot.slane %v1775, 1
        %v1807 = vsel %vm1790, %v1800, %v1806
        %v1808 = vrot.slane %v1776, 1
        %v1809 = vsel %vm1790, %v1802, %v1808
        %v1810 = vrot.slane %v1777, 1
        %v1811 = vsel %vm1790, %v1804, %v1810
        %v1824 = vmax.f32 %v1766, %v1793
        %v1825 = vmax.f32 %v1767, %v1796
        %v1826 = vmax.f32 %v1768, %v1799
        %v1827 = vmax.f32 %v1769, %v1801
        %v1828 = vmax.f32 %v1770, %v1803
        %v1829 = vmax.f32 %v1771, %v1805
        %v1830 = vmax.f32 %v1772, %v1807
        %v1831 = vmax.f32 %v1773, %v1809
        %v1832 = vmax.f32 %v1774, %v1811
        %v1833 = vmax.f32 %v1775, %v1806
        %v1834 = vmax.f32 %v1776, %v1808
        %v1835 = vmax.f32 %v1777, %v1810
        %1836 = vst [vmem:[#allocation3] sm:$0xff] 0.0
        %1837 = vst [vmem:[#allocation3 + $0x8] sm:$0xff] 0.0
        %vm1838 = vcmask 261120
        %1839 = vst.msk [vmem:[#allocation3 + $0x10] sm:$0xff] %vm1838, 0.0
        %1840 = vst [vmem:[#allocation3 + $0x18] sm:$0x1] 0.0
        %1841 = vst [vmem:[#allocation3 + $0x20] sm:$0x1] 0.0
        %vm1842 = vcmask 253952
        %1843 = vst.msk [vmem:[#allocation3 + $0x28] sm:$0x1] %vm1842, 0.0
        %1844 = vst [vmem:[#allocation3 + $0x30] sm:$0xff] 0.0
        %1845 = vst [vmem:[#allocation3 + $0x38] sm:$0xff] 0.0
        %1846 = vst.msk [vmem:[#allocation3 + $0x40] sm:$0xff] %vm1838, 0.0
        %1847 = vst [vmem:[#allocation3 + $0x48] sm:$0x1] 0.0
        %1848 = vst [vmem:[#allocation3 + $0x50] sm:$0x1] 0.0
        %1849 = vst.msk [vmem:[#allocation3 + $0x58] sm:$0x1] %vm1842, 0.0
        %v1853 = vcombine.low %v1824, %v1825
        %v1855 = vunpack.c.l.s4 1966171168
        %v1856 = vunpack.c.0.s8 %v1855
        %v1857 = vlaneseq
        %v1858 = vshrl.u32 %v1857, 7
        %v1859 = vsub.s32 %v1856, %v1858
        %v1860 = vrot.slane %v1853, %v1859
        %v1862 = vunpack.c.l.s4 1966171168
        %v1863 = vunpack.c.0.s8 %v1862
        %v1864 = vlaneseq
        %v1865 = vshrl.u32 %v1864, 7
        %v1866 = vsub.s32 %v1863, %v1865
        %v1867 = vrot.slane %v1826, %v1866
        %v1868 = vcombine.low %v1860, %v1867
        %v1870 = vunpack.c.l.s4 1966171168
        %v1871 = vunpack.c.0.s8 %v1870
        %v1872 = vlaneseq
        %v1873 = vshrl.u32 %v1872, 7
        %v1874 = vsub.s32 %v1871, %v1873
        %v1875 = vrot.slane %v1868, %v1874
        %v1877 = vlaneseq
        %vm1878 = vcmp.ge.s32.totalorder %v1877, 0
        %vm1879 = vcmp.lt.s32.totalorder %v1877, 288
        %vm1880 = vmand %vm1878, %vm1879
        %s1881 = scalar_lea.vmem [#allocation3], 1
        %1882 = vst.msk [vmem:[%s1881] ss:$8 sm:$0x7] %vm1880, %v1875
        %1883 = vst.msk [vmem:[%s1881] ss:$8 sm:$0x0] %vm1880, %v1875
        %v1884 = vcombine.high %v1824, %v1825
        %v1885 = vcombine.high %v1826, %v1826
        %v1887 = vunpack.c.l.s4 1966171168
        %v1888 = vunpack.c.0.s8 %v1887
        %v1889 = vlaneseq
        %v1890 = vshrl.u32 %v1889, 7
        %v1891 = vsub.s32 %v1888, %v1890
        %v1892 = vrot.slane %v1884, %v1891
        %v1894 = vunpack.c.l.s4 1966171168
        %v1895 = vunpack.c.0.s8 %v1894
        %v1896 = vlaneseq
        %v1897 = vshrl.u32 %v1896, 7
        %v1898 = vsub.s32 %v1895, %v1897
        %v1899 = vrot.slane %v1885, %v1898
        %v1900 = vcombine.low %v1892, %v1899
        %v1902 = vunpack.c.l.s4 1966171168
        %v1903 = vunpack.c.0.s8 %v1902
        %v1904 = vlaneseq
        %v1905 = vshrl.u32 %v1904, 7
        %v1906 = vsub.s32 %v1903, %v1905
        %v1907 = vrot.slane %v1900, %v1906
        %s1909 = scalar_lea.vmem [#allocation3], 2
        %1910 = vst.msk [vmem:[%s1909] ss:$8 sm:$0x7] %vm1880, %v1907
        %1911 = vst.msk [vmem:[%s1909] ss:$8 sm:$0x0] %vm1880, %v1907
        %v1915 = vcombine.low %v1827, %v1828
        %v1917 = vunpack.c.l.s4 1966171168
        %v1918 = vunpack.c.0.s8 %v1917
        %v1919 = vlaneseq
        %v1920 = vshrl.u32 %v1919, 7
        %v1921 = vsub.s32 %v1918, %v1920
        %v1922 = vrot.slane %v1915, %v1921
        %v1924 = vunpack.c.l.s4 1966171168
        %v1925 = vunpack.c.0.s8 %v1924
        %v1926 = vlaneseq
        %v1927 = vshrl.u32 %v1926, 7
        %v1928 = vsub.s32 %v1925, %v1927
        %v1929 = vrot.slane %v1829, %v1928
        %v1930 = vcombine.low %v1922, %v1929
        %v1932 = vunpack.c.l.s4 1966171168
        %v1933 = vunpack.c.0.s8 %v1932
        %v1934 = vlaneseq
        %v1935 = vshrl.u32 %v1934, 7
        %v1936 = vsub.s32 %v1933, %v1935
        %v1937 = vrot.slane %v1930, %v1936
        %s1939 = scalar_lea.vmem [#allocation3], 3
        %1940 = vst.msk [vmem:[%s1939] ss:$8 sm:$0x7] %vm1880, %v1937
        %1941 = vst.msk [vmem:[%s1939] ss:$8 sm:$0x0] %vm1880, %v1937
        %v1942 = vcombine.high %v1827, %v1828
        %v1943 = vcombine.high %v1829, %v1829
        %v1945 = vunpack.c.l.s4 1966171168
        %v1946 = vunpack.c.0.s8 %v1945
        %v1947 = vlaneseq
        %v1948 = vshrl.u32 %v1947, 7
        %v1949 = vsub.s32 %v1946, %v1948
        %v1950 = vrot.slane %v1942, %v1949
        %v1952 = vunpack.c.l.s4 1966171168
        %v1953 = vunpack.c.0.s8 %v1952
        %v1954 = vlaneseq
        %v1955 = vshrl.u32 %v1954, 7
        %v1956 = vsub.s32 %v1953, %v1955
        %v1957 = vrot.slane %v1943, %v1956
        %v1958 = vcombine.low %v1950, %v1957
        %v1960 = vunpack.c.l.s4 1966171168
        %v1961 = vunpack.c.0.s8 %v1960
        %v1962 = vlaneseq
        %v1963 = vshrl.u32 %v1962, 7
        %v1964 = vsub.s32 %v1961, %v1963
        %v1965 = vrot.slane %v1958, %v1964
        %s1967 = scalar_lea.vmem [#allocation3], 4
        %1968 = vst.msk [vmem:[%s1967] ss:$8 sm:$0x7] %vm1880, %v1965
        %1969 = vst.msk [vmem:[%s1967] ss:$8 sm:$0x0] %vm1880, %v1965
        %v1973 = vcombine.low %v1830, %v1831
        %v1975 = vunpack.c.l.s4 1966171168
        %v1976 = vunpack.c.0.s8 %v1975
        %v1977 = vlaneseq
        %v1978 = vshrl.u32 %v1977, 7
        %v1979 = vsub.s32 %v1976, %v1978
        %v1980 = vrot.slane %v1973, %v1979
        %v1982 = vunpack.c.l.s4 1966171168
        %v1983 = vunpack.c.0.s8 %v1982
        %v1984 = vlaneseq
        %v1985 = vshrl.u32 %v1984, 7
        %v1986 = vsub.s32 %v1983, %v1985
        %v1987 = vrot.slane %v1832, %v1986
        %v1988 = vcombine.low %v1980, %v1987
        %v1990 = vunpack.c.l.s4 1966171168
        %v1991 = vunpack.c.0.s8 %v1990
        %v1992 = vlaneseq
        %v1993 = vshrl.u32 %v1992, 7
        %v1994 = vsub.s32 %v1991, %v1993
        %v1995 = vrot.slane %v1988, %v1994
        %s1997 = scalar_lea.vmem [#allocation3], 5
        %1998 = vst.msk [vmem:[%s1997] ss:$8 sm:$0x7] %vm1880, %v1995
        %1999 = vst.msk [vmem:[%s1997] ss:$8 sm:$0x0] %vm1880, %v1995
        %v2000 = vcombine.high %v1830, %v1831
        %v2001 = vcombine.high %v1832, %v1832
        %v2003 = vunpack.c.l.s4 1966171168
        %v2004 = vunpack.c.0.s8 %v2003
        %v2005 = vlaneseq
        %v2006 = vshrl.u32 %v2005, 7
        %v2007 = vsub.s32 %v2004, %v2006
        %v2008 = vrot.slane %v2000, %v2007
        %v2010 = vunpack.c.l.s4 1966171168
        %v2011 = vunpack.c.0.s8 %v2010
        %v2012 = vlaneseq
        %v2013 = vshrl.u32 %v2012, 7
        %v2014 = vsub.s32 %v2011, %v2013
        %v2015 = vrot.slane %v2001, %v2014
        %v2016 = vcombine.low %v2008, %v2015
        %v2018 = vunpack.c.l.s4 1966171168
        %v2019 = vunpack.c.0.s8 %v2018
        %v2020 = vlaneseq
        %v2021 = vshrl.u32 %v2020, 7
        %v2022 = vsub.s32 %v2019, %v2021
        %v2023 = vrot.slane %v2016, %v2022
        %s2025 = scalar_lea.vmem [#allocation3], 6
        %2026 = vst.msk [vmem:[%s2025] ss:$8 sm:$0x7] %vm1880, %v2023
        %2027 = vst.msk [vmem:[%s2025] ss:$8 sm:$0x0] %vm1880, %v2023
        %v2031 = vcombine.low %v1833, %v1834
        %v2033 = vunpack.c.l.s4 1966171168
        %v2034 = vunpack.c.0.s8 %v2033
        %v2035 = vlaneseq
        %v2036 = vshrl.u32 %v2035, 7
        %v2037 = vsub.s32 %v2034, %v2036
        %v2038 = vrot.slane %v2031, %v2037
        %v2040 = vunpack.c.l.s4 1966171168
        %v2041 = vunpack.c.0.s8 %v2040
        %v2042 = vlaneseq
        %v2043 = vshrl.u32 %v2042, 7
        %v2044 = vsub.s32 %v2041, %v2043
        %v2045 = vrot.slane %v1835, %v2044
        %v2046 = vcombine.low %v2038, %v2045
        %v2048 = vunpack.c.l.s4 1966171168
        %v2049 = vunpack.c.0.s8 %v2048
        %v2050 = vlaneseq
        %v2051 = vshrl.u32 %v2050, 7
        %v2052 = vsub.s32 %v2049, %v2051
        %v2053 = vrot.slane %v2046, %v2052
        %s2055 = scalar_lea.vmem [#allocation3], 7
        %2056 = vst.msk [vmem:[%s2055] ss:$8 sm:$0x7] %vm1880, %v2053
        %2057 = vst.msk [vmem:[%s2055] ss:$8 sm:$0x0] %vm1880, %v2053
        %v2058 = vcombine.high %v1875, %v1875
        %s2060 = scalar_lea.vmem [#allocation3], 48
        %s2061 = scalar_lea.vmem %s2060, 1 [#allocation3]
        %2062 = vst.msk [vmem:[%s2061] ss:$8 sm:$0x7] %vm1880, %v2058
        %2063 = vst.msk [vmem:[%s2061] ss:$8 sm:$0x0] %vm1880, %v2058
        %v2064 = vcombine.high %v1907, %v1907
        %s2066 = scalar_lea.vmem %s2060, 2 [#allocation3]
        %2067 = vst.msk [vmem:[%s2066] ss:$8 sm:$0x7] %vm1880, %v2064
        %2068 = vst.msk [vmem:[%s2066] ss:$8 sm:$0x0] %vm1880, %v2064
        %v2069 = vcombine.high %v1937, %v1937
        %s2071 = scalar_lea.vmem %s2060, 3 [#allocation3]
        %2072 = vst.msk [vmem:[%s2071] ss:$8 sm:$0x7] %vm1880, %v2069
        %2073 = vst.msk [vmem:[%s2071] ss:$8 sm:$0x0] %vm1880, %v2069
        %v2074 = vcombine.high %v1965, %v1965
        %s2076 = scalar_lea.vmem %s2060, 4 [#allocation3]
        %2077 = vst.msk [vmem:[%s2076] ss:$8 sm:$0x7] %vm1880, %v2074
        %2078 = vst.msk [vmem:[%s2076] ss:$8 sm:$0x0] %vm1880, %v2074
        %v2079 = vcombine.high %v1995, %v1995
        %s2081 = scalar_lea.vmem %s2060, 5 [#allocation3]
        %2082 = vst.msk [vmem:[%s2081] ss:$8 sm:$0x7] %vm1880, %v2079
        %2083 = vst.msk [vmem:[%s2081] ss:$8 sm:$0x0] %vm1880, %v2079
        %v2084 = vcombine.high %v2023, %v2023
        %s2086 = scalar_lea.vmem %s2060, 6 [#allocation3]
        %2087 = vst.msk [vmem:[%s2086] ss:$8 sm:$0x7] %vm1880, %v2084
        %2088 = vst.msk [vmem:[%s2086] ss:$8 sm:$0x0] %vm1880, %v2084
        %v2089 = vcombine.high %v2053, %v2053
        %s2091 = scalar_lea.vmem %s2060, 7 [#allocation3]
        %2092 = vst.msk [vmem:[%s2091] ss:$8 sm:$0x7] %vm1880, %v2089
        %2093 = vst.msk [vmem:[%s2091] ss:$8 sm:$0x0] %vm1880, %v2089
        %v2094 = vld [vmem:[#allocation3] sm:$0x7f]
        %v2095 = vld [vmem:[#allocation3 + $0x8] sm:$0x7f]
        %v2096 = vld [vmem:[#allocation3 + $0x10] sm:$0x7f]
        %v2097 = vpack.c.bf16 %v2094, %v2094
        %v2098 = vpack.c.bf16 %v2095, %v2095
        %v2099 = vpack.c.bf16 %v2096, %v2096
        %v2100 = vld [vmem:[#allocation9] sm:$0xff]
        %v2101 = vld [vmem:[#allocation9 + $0x8] sm:$0xff]
        %v2102 = vld [vmem:[#allocation9 + $0x10] sm:$0xff]
        %v2103 = vld [vmem:[#allocation9 + $0x18] sm:$0xff]
        %v2104 = vld [vmem:[#allocation9 + $0x20] sm:$0xff]
        %v2105 = vld [vmem:[#allocation9 + $0x28] sm:$0xff]
        %v2106 = vld [vmem:[#allocation9 + $0x30] sm:$0xff]
        %v2107 = vld [vmem:[#allocation9 + $0x38] sm:$0xff]
        %v2108 = vld [vmem:[#allocation9 + $0x40] sm:$0xff]
        %v2109 = vld [vmem:[#allocation9 + $0x48] sm:$0xff]
        %v2110 = vld [vmem:[#allocation9 + $0x50] sm:$0xff]
        %v2111 = vld [vmem:[#allocation9 + $0x58] sm:$0xff]
        %v2112 = vld [vmem:[#allocation9 + $0x60] sm:$0xff]
        %v2113 = vld [vmem:[#allocation9 + $0x68] sm:$0xff]
        %v2114 = vld [vmem:[#allocation9 + $0x70] sm:$0xff]
        %v2115 = vld [vmem:[#allocation9 + $0x78] sm:$0xff]
        %v2116 = vld [vmem:[#allocation9 + $0x80] sm:$0xff]
        %v2117 = vld [vmem:[#allocation9 + $0x88] sm:$0xff]
        %v2118 = vld [vmem:[#allocation9 + $0x90] sm:$0xff]
        %v2119 = vld [vmem:[#allocation9 + $0x98] sm:$0xff]
        %v2120 = vld [vmem:[#allocation9 + $0xa0] sm:$0xff]
        %v2121 = vld [vmem:[#allocation9 + $0xa8] sm:$0xff]
        %v2122 = vld [vmem:[#allocation9 + $0xb0] sm:$0xff]
        %v2123 = vld [vmem:[#allocation9 + $0xb8] sm:$0xff]
        %v2124 = vld [vmem:[#allocation9 + $0xc0] sm:$0xff]
        %v2125 = vld [vmem:[#allocation9 + $0xc8] sm:$0xff]
        %v2126 = vld [vmem:[#allocation9 + $0xd0] sm:$0xff]
        %v2127 = vld [vmem:[#allocation9 + $0xd8] sm:$0xff]
        %v2128 = vld [vmem:[#allocation9 + $0xe0] sm:$0xff]
        %v2129 = vld [vmem:[#allocation9 + $0xe8] sm:$0xff]
        %v2130 = vld [vmem:[#allocation9 + $0xf0] sm:$0xff]
        %v2131 = vld [vmem:[#allocation9 + $0xf8] sm:$0xff]
        %v2132 = vld [vmem:[#allocation9 + $0x100] sm:$0xff]
        %v2133 = vld [vmem:[#allocation9 + $0x108] sm:$0xff]
        %v2134 = vld [vmem:[#allocation9 + $0x110] sm:$0xff]
        %v2135 = vld [vmem:[#allocation9 + $0x118] sm:$0xff]
        %v2136 = vld [vmem:[#allocation9 + $0x120] sm:$0xff]
        %v2137 = vld [vmem:[#allocation9 + $0x128] sm:$0xff]
        %v2138 = vld [vmem:[#allocation9 + $0x130] sm:$0xff]
        %v2139 = vld [vmem:[#allocation9 + $0x138] sm:$0xff]
        %v2140 = vld [vmem:[#allocation9 + $0x140] sm:$0xff]
        %v2141 = vld [vmem:[#allocation9 + $0x148] sm:$0xff]
        %v2142 = vld [vmem:[#allocation9 + $0x150] sm:$0xff]
        %v2143 = vld [vmem:[#allocation9 + $0x158] sm:$0xff]
        %v2144 = vld [vmem:[#allocation9 + $0x160] sm:$0xff]
        %v2145 = vld [vmem:[#allocation9 + $0x168] sm:$0xff]
        %v2146 = vld [vmem:[#allocation9 + $0x170] sm:$0xff]
        %v2147 = vld [vmem:[#allocation9 + $0x178] sm:$0xff]
        %v2148 = vld [vmem:[#allocation9 + $0x180] sm:$0xff]
        %v2149 = vld [vmem:[#allocation9 + $0x188] sm:$0xff]
        %v2150 = vld [vmem:[#allocation9 + $0x190] sm:$0xff]
        %v2151 = vld [vmem:[#allocation9 + $0x198] sm:$0xff]
        %v2152 = vld [vmem:[#allocation9 + $0x1a0] sm:$0xff]
        %v2153 = vld [vmem:[#allocation9 + $0x1a8] sm:$0xff]
        %v2154 = vld [vmem:[#allocation9 + $0x1b0] sm:$0xff]
        %v2155 = vld [vmem:[#allocation9 + $0x1b8] sm:$0xff]
        %v2156 = vld [vmem:[#allocation9 + $0x1c0] sm:$0xff]
        %v2157 = vld [vmem:[#allocation9 + $0x1c8] sm:$0xff]
        %v2158 = vld [vmem:[#allocation9 + $0x1d0] sm:$0xff]
        %v2159 = vld [vmem:[#allocation9 + $0x1d8] sm:$0xff]
        %v2160 = vld [vmem:[#allocation9 + $0x1e0] sm:$0xff]
        %v2161 = vld [vmem:[#allocation9 + $0x1e8] sm:$0xff]
        %v2162 = vld [vmem:[#allocation9 + $0x1f0] sm:$0xff]
        %v2163 = vld [vmem:[#allocation9 + $0x1f8] sm:$0xff]
        %v2164 = vld [vmem:[#allocation9 + $0x200] sm:$0xff]
        %v2165 = vld [vmem:[#allocation9 + $0x208] sm:$0xff]
        %v2166 = vld [vmem:[#allocation9 + $0x210] sm:$0xff]
        %v2167 = vld [vmem:[#allocation9 + $0x218] sm:$0xff]
        %v2168 = vld [vmem:[#allocation9 + $0x220] sm:$0xff]
        %v2169 = vld [vmem:[#allocation9 + $0x228] sm:$0xff]
        %v2170 = vld [vmem:[#allocation9 + $0x230] sm:$0xff]
        %v2171 = vld [vmem:[#allocation9 + $0x238] sm:$0xff]
        %v2172 = vld [vmem:[#allocation9 + $0x240] sm:$0xff]
        %v2173 = vld [vmem:[#allocation9 + $0x248] sm:$0xff]
        %v2174 = vld [vmem:[#allocation9 + $0x250] sm:$0xff]
        %v2175 = vld [vmem:[#allocation9 + $0x258] sm:$0xff]
        %v2176 = vld [vmem:[#allocation9 + $0x260] sm:$0xff]
        %v2177 = vld [vmem:[#allocation9 + $0x268] sm:$0xff]
        %v2178 = vld [vmem:[#allocation9 + $0x270] sm:$0xff]
        %v2179 = vld [vmem:[#allocation9 + $0x278] sm:$0xff]
        %v2180 = vld [vmem:[#allocation9 + $0x280] sm:$0xff]
        %v2181 = vld [vmem:[#allocation9 + $0x288] sm:$0xff]
        %v2182 = vld [vmem:[#allocation9 + $0x290] sm:$0xff]
        %v2183 = vld [vmem:[#allocation9 + $0x298] sm:$0xff]
        %v2184 = vld [vmem:[#allocation9 + $0x2a0] sm:$0xff]
        %v2185 = vld [vmem:[#allocation9 + $0x2a8] sm:$0xff]
        %v2186 = vld [vmem:[#allocation9 + $0x2b0] sm:$0xff]
        %v2187 = vld [vmem:[#allocation9 + $0x2b8] sm:$0xff]
        %v2188 = vld [vmem:[#allocation9 + $0x2c0] sm:$0xff]
        %v2189 = vld [vmem:[#allocation9 + $0x2c8] sm:$0xff]
        %v2190 = vld [vmem:[#allocation9 + $0x2d0] sm:$0xff]
        %v2191 = vld [vmem:[#allocation9 + $0x2d8] sm:$0xff]
        %v2192 = vld [vmem:[#allocation9 + $0x2e0] sm:$0xff]
        %v2193 = vld [vmem:[#allocation9 + $0x2e8] sm:$0xff]
        %v2194 = vld [vmem:[#allocation9 + $0x2f0] sm:$0xff]
        %v2195 = vld [vmem:[#allocation9 + $0x2f8] sm:$0xff]
        %v2196 = vld [vmem:[#allocation9 + $0x300] sm:$0xff]
        %v2197 = vld [vmem:[#allocation9 + $0x308] sm:$0xff]
        %v2198 = vld [vmem:[#allocation9 + $0x310] sm:$0xff]
        %v2199 = vld [vmem:[#allocation9 + $0x318] sm:$0xff]
        %v2200 = vld [vmem:[#allocation9 + $0x320] sm:$0xff]
        %v2201 = vld [vmem:[#allocation9 + $0x328] sm:$0xff]
        %v2202 = vld [vmem:[#allocation9 + $0x330] sm:$0xff]
        %v2203 = vld [vmem:[#allocation9 + $0x338] sm:$0xff]
        %v2204 = vld [vmem:[#allocation9 + $0x340] sm:$0xff]
        %v2205 = vld [vmem:[#allocation9 + $0x348] sm:$0xff]
        %v2206 = vld [vmem:[#allocation9 + $0x350] sm:$0xff]
        %v2207 = vld [vmem:[#allocation9 + $0x358] sm:$0xff]
        %v2208 = vld [vmem:[#allocation9 + $0x360] sm:$0xff]
        %v2209 = vld [vmem:[#allocation9 + $0x368] sm:$0xff]
        %v2210 = vld [vmem:[#allocation9 + $0x370] sm:$0xff]
        %v2211 = vld [vmem:[#allocation9 + $0x378] sm:$0xff]
        %v2212 = vld [vmem:[#allocation9 + $0x380] sm:$0xff]
        %v2213 = vld [vmem:[#allocation9 + $0x388] sm:$0xff]
        %v2214 = vld [vmem:[#allocation9 + $0x390] sm:$0xff]
        %v2215 = vld [vmem:[#allocation9 + $0x398] sm:$0xff]
        %v2216 = vld [vmem:[#allocation9 + $0x3a0] sm:$0xff]
        %v2217 = vld [vmem:[#allocation9 + $0x3a8] sm:$0xff]
        %v2218 = vld [vmem:[#allocation9 + $0x3b0] sm:$0xff]
        %v2219 = vld [vmem:[#allocation9 + $0x3b8] sm:$0xff]
        %v2220 = vld [vmem:[#allocation9 + $0x3c0] sm:$0xff]
        %v2221 = vld [vmem:[#allocation9 + $0x3c8] sm:$0xff]
        %v2222 = vld [vmem:[#allocation9 + $0x3d0] sm:$0xff]
        %v2223 = vld [vmem:[#allocation9 + $0x3d8] sm:$0xff]
        %v2224 = vld [vmem:[#allocation9 + $0x3e0] sm:$0xff]
        %v2225 = vld [vmem:[#allocation9 + $0x3e8] sm:$0xff]
        %v2226 = vld [vmem:[#allocation9 + $0x3f0] sm:$0xff]
        %v2227 = vld [vmem:[#allocation9 + $0x3f8] sm:$0xff]
        %v2228 = vld [vmem:[#allocation9 + $0x400] sm:$0xff]
        %v2229 = vld [vmem:[#allocation9 + $0x408] sm:$0xff]
        %v2230 = vld [vmem:[#allocation9 + $0x410] sm:$0xff]
        %v2231 = vld [vmem:[#allocation9 + $0x418] sm:$0xff]
        %v2232 = vld [vmem:[#allocation9 + $0x420] sm:$0xff]
        %v2233 = vld [vmem:[#allocation9 + $0x428] sm:$0xff]
        %v2234 = vld [vmem:[#allocation9 + $0x430] sm:$0xff]
        %v2235 = vld [vmem:[#allocation9 + $0x438] sm:$0xff]
        %v2236 = vld [vmem:[#allocation9 + $0x440] sm:$0xff]
        %v2237 = vld [vmem:[#allocation9 + $0x448] sm:$0xff]
        %v2238 = vld [vmem:[#allocation9 + $0x450] sm:$0xff]
        %v2239 = vld [vmem:[#allocation9 + $0x458] sm:$0xff]
        %v2240 = vld [vmem:[#allocation9 + $0x460] sm:$0xff]
        %v2241 = vld [vmem:[#allocation9 + $0x468] sm:$0xff]
        %v2242 = vld [vmem:[#allocation9 + $0x470] sm:$0xff]
        %v2243 = vld [vmem:[#allocation9 + $0x478] sm:$0xff]
        %v2244 = vld [vmem:[#allocation3] sm:$0xfe]
        %v2245 = vld [vmem:[#allocation3 + $0x8] sm:$0xfe]
        %v2246 = vld [vmem:[#allocation3 + $0x10] sm:$0xfe]
        %v2247 = vpack.c.bf16 %v2244, %v2244
        %v2248 = vpack.c.bf16 %v2245, %v2245
        %v2249 = vpack.c.bf16 %v2246, %v2246
        %s2250 = scalar_lea.vmem [#allocation9], 1152
        %v2251 = vld [vmem:[%s2250] sm:$0xff]
        %v2252 = vld [vmem:[%s2250 + $0x8] sm:$0xff]
        %v2253 = vld [vmem:[%s2250 + $0x10] sm:$0xff]
        %v2254 = vld [vmem:[%s2250 + $0x18] sm:$0xff]
        %v2255 = vld [vmem:[%s2250 + $0x20] sm:$0xff]
        %v2256 = vld [vmem:[%s2250 + $0x28] sm:$0xff]
        %v2257 = vld [vmem:[%s2250 + $0x30] sm:$0xff]
        %v2258 = vld [vmem:[%s2250 + $0x38] sm:$0xff]
        %v2259 = vld [vmem:[%s2250 + $0x40] sm:$0xff]
        %v2260 = vld [vmem:[%s2250 + $0x48] sm:$0xff]
        %v2261 = vld [vmem:[%s2250 + $0x50] sm:$0xff]
        %v2262 = vld [vmem:[%s2250 + $0x58] sm:$0xff]
        %v2263 = vld [vmem:[%s2250 + $0x60] sm:$0xff]
        %v2264 = vld [vmem:[%s2250 + $0x68] sm:$0xff]
        %v2265 = vld [vmem:[%s2250 + $0x70] sm:$0xff]
        %v2266 = vld [vmem:[%s2250 + $0x78] sm:$0xff]
        %v2267 = vld [vmem:[%s2250 + $0x80] sm:$0xff]
        %v2268 = vld [vmem:[%s2250 + $0x88] sm:$0xff]
        %v2269 = vld [vmem:[%s2250 + $0x90] sm:$0xff]
        %v2270 = vld [vmem:[%s2250 + $0x98] sm:$0xff]
        %v2271 = vld [vmem:[%s2250 + $0xa0] sm:$0xff]
        %v2272 = vld [vmem:[%s2250 + $0xa8] sm:$0xff]
        %v2273 = vld [vmem:[%s2250 + $0xb0] sm:$0xff]
        %v2274 = vld [vmem:[%s2250 + $0xb8] sm:$0xff]
        %v2275 = vld [vmem:[%s2250 + $0xc0] sm:$0xff]
        %v2276 = vld [vmem:[%s2250 + $0xc8] sm:$0xff]
        %v2277 = vld [vmem:[%s2250 + $0xd0] sm:$0xff]
        %v2278 = vld [vmem:[%s2250 + $0xd8] sm:$0xff]
        %v2279 = vld [vmem:[%s2250 + $0xe0] sm:$0xff]
        %v2280 = vld [vmem:[%s2250 + $0xe8] sm:$0xff]
        %v2281 = vld [vmem:[%s2250 + $0xf0] sm:$0xff]
        %v2282 = vld [vmem:[%s2250 + $0xf8] sm:$0xff]
        %v2283 = vld [vmem:[%s2250 + $0x100] sm:$0xff]
        %v2284 = vld [vmem:[%s2250 + $0x108] sm:$0xff]
        %v2285 = vld [vmem:[%s2250 + $0x110] sm:$0xff]
        %v2286 = vld [vmem:[%s2250 + $0x118] sm:$0xff]
        %v2287 = vld [vmem:[%s2250 + $0x120] sm:$0xff]
        %v2288 = vld [vmem:[%s2250 + $0x128] sm:$0xff]
        %v2289 = vld [vmem:[%s2250 + $0x130] sm:$0xff]
        %v2290 = vld [vmem:[%s2250 + $0x138] sm:$0xff]
        %v2291 = vld [vmem:[%s2250 + $0x140] sm:$0xff]
        %v2292 = vld [vmem:[%s2250 + $0x148] sm:$0xff]
        %v2293 = vld [vmem:[%s2250 + $0x150] sm:$0xff]
        %v2294 = vld [vmem:[%s2250 + $0x158] sm:$0xff]
        %v2295 = vld [vmem:[%s2250 + $0x160] sm:$0xff]
        %v2296 = vld [vmem:[%s2250 + $0x168] sm:$0xff]
        %v2297 = vld [vmem:[%s2250 + $0x170] sm:$0xff]
        %v2298 = vld [vmem:[%s2250 + $0x178] sm:$0xff]
        %v2299 = vld [vmem:[%s2250 + $0x180] sm:$0xff]
        %v2300 = vld [vmem:[%s2250 + $0x188] sm:$0xff]
        %v2301 = vld [vmem:[%s2250 + $0x190] sm:$0xff]
        %v2302 = vld [vmem:[%s2250 + $0x198] sm:$0xff]
        %v2303 = vld [vmem:[%s2250 + $0x1a0] sm:$0xff]
        %v2304 = vld [vmem:[%s2250 + $0x1a8] sm:$0xff]
        %v2305 = vld [vmem:[%s2250 + $0x1b0] sm:$0xff]
        %v2306 = vld [vmem:[%s2250 + $0x1b8] sm:$0xff]
        %v2307 = vld [vmem:[%s2250 + $0x1c0] sm:$0xff]
        %v2308 = vld [vmem:[%s2250 + $0x1c8] sm:$0xff]
        %v2309 = vld [vmem:[%s2250 + $0x1d0] sm:$0xff]
        %v2310 = vld [vmem:[%s2250 + $0x1d8] sm:$0xff]
        %v2311 = vld [vmem:[%s2250 + $0x1e0] sm:$0xff]
        %v2312 = vld [vmem:[%s2250 + $0x1e8] sm:$0xff]
        %v2313 = vld [vmem:[%s2250 + $0x1f0] sm:$0xff]
        %v2314 = vld [vmem:[%s2250 + $0x1f8] sm:$0xff]
        %v2315 = vld [vmem:[%s2250 + $0x200] sm:$0xff]
        %v2316 = vld [vmem:[%s2250 + $0x208] sm:$0xff]
        %v2317 = vld [vmem:[%s2250 + $0x210] sm:$0xff]
        %v2318 = vld [vmem:[%s2250 + $0x218] sm:$0xff]
        %v2319 = vld [vmem:[%s2250 + $0x220] sm:$0xff]
        %v2320 = vld [vmem:[%s2250 + $0x228] sm:$0xff]
        %v2321 = vld [vmem:[%s2250 + $0x230] sm:$0xff]
        %v2322 = vld [vmem:[%s2250 + $0x238] sm:$0xff]
        %v2323 = vld [vmem:[%s2250 + $0x240] sm:$0xff]
        %v2324 = vld [vmem:[%s2250 + $0x248] sm:$0xff]
        %v2325 = vld [vmem:[%s2250 + $0x250] sm:$0xff]
        %v2326 = vld [vmem:[%s2250 + $0x258] sm:$0xff]
        %v2327 = vld [vmem:[%s2250 + $0x260] sm:$0xff]
        %v2328 = vld [vmem:[%s2250 + $0x268] sm:$0xff]
        %v2329 = vld [vmem:[%s2250 + $0x270] sm:$0xff]
        %v2330 = vld [vmem:[%s2250 + $0x278] sm:$0xff]
        %v2331 = vld [vmem:[%s2250 + $0x280] sm:$0xff]
        %v2332 = vld [vmem:[%s2250 + $0x288] sm:$0xff]
        %v2333 = vld [vmem:[%s2250 + $0x290] sm:$0xff]
        %v2334 = vld [vmem:[%s2250 + $0x298] sm:$0xff]
        %v2335 = vld [vmem:[%s2250 + $0x2a0] sm:$0xff]
        %v2336 = vld [vmem:[%s2250 + $0x2a8] sm:$0xff]
        %v2337 = vld [vmem:[%s2250 + $0x2b0] sm:$0xff]
        %v2338 = vld [vmem:[%s2250 + $0x2b8] sm:$0xff]
        %v2339 = vld [vmem:[%s2250 + $0x2c0] sm:$0xff]
        %v2340 = vld [vmem:[%s2250 + $0x2c8] sm:$0xff]
        %v2341 = vld [vmem:[%s2250 + $0x2d0] sm:$0xff]
        %v2342 = vld [vmem:[%s2250 + $0x2d8] sm:$0xff]
        %v2343 = vld [vmem:[%s2250 + $0x2e0] sm:$0xff]
        %v2344 = vld [vmem:[%s2250 + $0x2e8] sm:$0xff]
        %v2345 = vld [vmem:[%s2250 + $0x2f0] sm:$0xff]
        %v2346 = vld [vmem:[%s2250 + $0x2f8] sm:$0xff]
        %v2347 = vld [vmem:[%s2250 + $0x300] sm:$0xff]
        %v2348 = vld [vmem:[%s2250 + $0x308] sm:$0xff]
        %v2349 = vld [vmem:[%s2250 + $0x310] sm:$0xff]
        %v2350 = vld [vmem:[%s2250 + $0x318] sm:$0xff]
        %v2351 = vld [vmem:[%s2250 + $0x320] sm:$0xff]
        %v2352 = vld [vmem:[%s2250 + $0x328] sm:$0xff]
        %v2353 = vld [vmem:[%s2250 + $0x330] sm:$0xff]
        %v2354 = vld [vmem:[%s2250 + $0x338] sm:$0xff]
        %v2355 = vld [vmem:[%s2250 + $0x340] sm:$0xff]
        %v2356 = vld [vmem:[%s2250 + $0x348] sm:$0xff]
        %v2357 = vld [vmem:[%s2250 + $0x350] sm:$0xff]
        %v2358 = vld [vmem:[%s2250 + $0x358] sm:$0xff]
        %v2359 = vld [vmem:[%s2250 + $0x360] sm:$0xff]
        %v2360 = vld [vmem:[%s2250 + $0x368] sm:$0xff]
        %v2361 = vld [vmem:[%s2250 + $0x370] sm:$0xff]
        %v2362 = vld [vmem:[%s2250 + $0x378] sm:$0xff]
        %v2363 = vld [vmem:[%s2250 + $0x380] sm:$0xff]
        %v2364 = vld [vmem:[%s2250 + $0x388] sm:$0xff]
        %v2365 = vld [vmem:[%s2250 + $0x390] sm:$0xff]
        %v2366 = vld [vmem:[%s2250 + $0x398] sm:$0xff]
        %v2367 = vld [vmem:[%s2250 + $0x3a0] sm:$0xff]
        %v2368 = vld [vmem:[%s2250 + $0x3a8] sm:$0xff]
        %v2369 = vld [vmem:[%s2250 + $0x3b0] sm:$0xff]
        %v2370 = vld [vmem:[%s2250 + $0x3b8] sm:$0xff]
        %v2371 = vld [vmem:[%s2250 + $0x3c0] sm:$0xff]
        %v2372 = vld [vmem:[%s2250 + $0x3c8] sm:$0xff]
        %v2373 = vld [vmem:[%s2250 + $0x3d0] sm:$0xff]
        %v2374 = vld [vmem:[%s2250 + $0x3d8] sm:$0xff]
        %v2375 = vld [vmem:[%s2250 + $0x3e0] sm:$0xff]
        %v2376 = vld [vmem:[%s2250 + $0x3e8] sm:$0xff]
        %v2377 = vld [vmem:[%s2250 + $0x3f0] sm:$0xff]
        %v2378 = vld [vmem:[%s2250 + $0x3f8] sm:$0xff]
        %v2379 = vld [vmem:[%s2250 + $0x400] sm:$0xff]
        %v2380 = vld [vmem:[%s2250 + $0x408] sm:$0xff]
        %v2381 = vld [vmem:[%s2250 + $0x410] sm:$0xff]
        %v2382 = vld [vmem:[%s2250 + $0x418] sm:$0xff]
        %v2383 = vld [vmem:[%s2250 + $0x420] sm:$0xff]
        %v2384 = vld [vmem:[%s2250 + $0x428] sm:$0xff]
        %v2385 = vld [vmem:[%s2250 + $0x430] sm:$0xff]
        %v2386 = vld [vmem:[%s2250 + $0x438] sm:$0xff]
        %v2387 = vld [vmem:[%s2250 + $0x440] sm:$0xff]
        %v2388 = vld [vmem:[%s2250 + $0x448] sm:$0xff]
        %v2389 = vld [vmem:[%s2250 + $0x450] sm:$0xff]
        %v2390 = vld [vmem:[%s2250 + $0x458] sm:$0xff]
        %v2391 = vld [vmem:[%s2250 + $0x460] sm:$0xff]
        %v2392 = vld [vmem:[%s2250 + $0x468] sm:$0xff]
        %v2393 = vld [vmem:[%s2250 + $0x470] sm:$0xff]
        %v2394 = vld [vmem:[%s2250 + $0x478] sm:$0xff]
        %v2396 = vshrl.u32 %v2247, 16
        %v2398 = vshll.u32 %v2247, 16
        %v2400 = vrot.slane %v2398, 1
        %v2401 = vor.u32 %v2396, %v2400
        %v2403 = vshrl.u32 %v2248, 16
        %v2405 = vshll.u32 %v2248, 16
        %v2407 = vrot.slane %v2405, 1
        %v2408 = vor.u32 %v2403, %v2407
        %v2410 = vshrl.u32 %v2249, 16
        %v2412 = vshll.u32 %v2249, 16
        %v2414 = vrot.slane %v2412, 1
        %v2415 = vor.u32 %v2410, %v2414
        %v2562 = vunpack.c.l.b16 %v2251
        %v2563 = vunpack.c.h.b16 %v2251
        %v2564 = vunpack.c.l.b16 %v2252
        %v2565 = vunpack.c.h.b16 %v2252
        %v2566 = vunpack.c.l.b16 %v2253
        %v2567 = vunpack.c.h.b16 %v2253
        %v2568 = vunpack.c.l.b16 %v2254
        %v2569 = vunpack.c.h.b16 %v2254
        %v2570 = vunpack.c.l.b16 %v2255
        %v2571 = vunpack.c.h.b16 %v2255
        %v2572 = vunpack.c.l.b16 %v2256
        %v2573 = vunpack.c.h.b16 %v2256
        %v2574 = vunpack.c.l.b16 %v2257
        %v2575 = vunpack.c.h.b16 %v2257
        %v2576 = vunpack.c.l.b16 %v2258
        %v2577 = vunpack.c.h.b16 %v2258
        %v2578 = vunpack.c.l.b16 %v2259
        %v2579 = vunpack.c.h.b16 %v2259
        %v2580 = vunpack.c.l.b16 %v2260
        %v2581 = vunpack.c.h.b16 %v2260
        %v2582 = vunpack.c.l.b16 %v2261
        %v2583 = vunpack.c.h.b16 %v2261
        %v2584 = vunpack.c.l.b16 %v2262
        %v2585 = vunpack.c.h.b16 %v2262
        %v2586 = vunpack.c.l.b16 %v2263
        %v2587 = vunpack.c.h.b16 %v2263
        %v2588 = vunpack.c.l.b16 %v2264
        %v2589 = vunpack.c.h.b16 %v2264
        %v2590 = vunpack.c.l.b16 %v2265
        %v2591 = vunpack.c.h.b16 %v2265
        %v2592 = vunpack.c.l.b16 %v2266
        %v2593 = vunpack.c.h.b16 %v2266
        %v2594 = vunpack.c.l.b16 %v2267
        %v2595 = vunpack.c.h.b16 %v2267
        %v2596 = vunpack.c.l.b16 %v2268
        %v2597 = vunpack.c.h.b16 %v2268
        %v2598 = vunpack.c.l.b16 %v2269
        %v2599 = vunpack.c.h.b16 %v2269
        %v2600 = vunpack.c.l.b16 %v2270
        %v2601 = vunpack.c.h.b16 %v2270
        %v2602 = vunpack.c.l.b16 %v2271
        %v2603 = vunpack.c.h.b16 %v2271
        %v2604 = vunpack.c.l.b16 %v2272
        %v2605 = vunpack.c.h.b16 %v2272
        %v2606 = vunpack.c.l.b16 %v2273
        %v2607 = vunpack.c.h.b16 %v2273
        %v2608 = vunpack.c.l.b16 %v2274
        %v2609 = vunpack.c.h.b16 %v2274
        %v2610 = vunpack.c.l.b16 %v2275
        %v2611 = vunpack.c.h.b16 %v2275
        %v2612 = vunpack.c.l.b16 %v2276
        %v2613 = vunpack.c.h.b16 %v2276
        %v2614 = vunpack.c.l.b16 %v2277
        %v2615 = vunpack.c.h.b16 %v2277
        %v2616 = vunpack.c.l.b16 %v2278
        %v2617 = vunpack.c.h.b16 %v2278
        %v2618 = vunpack.c.l.b16 %v2279
        %v2619 = vunpack.c.h.b16 %v2279
        %v2620 = vunpack.c.l.b16 %v2280
        %v2621 = vunpack.c.h.b16 %v2280
        %v2622 = vunpack.c.l.b16 %v2281
        %v2623 = vunpack.c.h.b16 %v2281
        %v2624 = vunpack.c.l.b16 %v2282
        %v2625 = vunpack.c.h.b16 %v2282
        %v2626 = vunpack.c.l.b16 %v2283
        %v2627 = vunpack.c.h.b16 %v2283
        %v2628 = vunpack.c.l.b16 %v2284
        %v2629 = vunpack.c.h.b16 %v2284
        %v2630 = vunpack.c.l.b16 %v2285
        %v2631 = vunpack.c.h.b16 %v2285
        %v2632 = vunpack.c.l.b16 %v2286
        %v2633 = vunpack.c.h.b16 %v2286
        %v2634 = vunpack.c.l.b16 %v2287
        %v2635 = vunpack.c.h.b16 %v2287
        %v2636 = vunpack.c.l.b16 %v2288
        %v2637 = vunpack.c.h.b16 %v2288
        %v2638 = vunpack.c.l.b16 %v2289
        %v2639 = vunpack.c.h.b16 %v2289
        %v2640 = vunpack.c.l.b16 %v2290
        %v2641 = vunpack.c.h.b16 %v2290
        %v2642 = vunpack.c.l.b16 %v2291
        %v2643 = vunpack.c.h.b16 %v2291
        %v2644 = vunpack.c.l.b16 %v2292
        %v2645 = vunpack.c.h.b16 %v2292
        %v2646 = vunpack.c.l.b16 %v2293
        %v2647 = vunpack.c.h.b16 %v2293
        %v2648 = vunpack.c.l.b16 %v2294
        %v2649 = vunpack.c.h.b16 %v2294
        %v2650 = vunpack.c.l.b16 %v2295
        %v2651 = vunpack.c.h.b16 %v2295
        %v2652 = vunpack.c.l.b16 %v2296
        %v2653 = vunpack.c.h.b16 %v2296
        %v2654 = vunpack.c.l.b16 %v2297
        %v2655 = vunpack.c.h.b16 %v2297
        %v2656 = vunpack.c.l.b16 %v2298
        %v2657 = vunpack.c.h.b16 %v2298
        %v2658 = vunpack.c.l.b16 %v2299
        %v2659 = vunpack.c.h.b16 %v2299
        %v2660 = vunpack.c.l.b16 %v2300
        %v2661 = vunpack.c.h.b16 %v2300
        %v2662 = vunpack.c.l.b16 %v2301
        %v2663 = vunpack.c.h.b16 %v2301
        %v2664 = vunpack.c.l.b16 %v2302
        %v2665 = vunpack.c.h.b16 %v2302
        %v2666 = vunpack.c.l.b16 %v2303
        %v2667 = vunpack.c.h.b16 %v2303
        %v2668 = vunpack.c.l.b16 %v2304
        %v2669 = vunpack.c.h.b16 %v2304
        %v2670 = vunpack.c.l.b16 %v2305
        %v2671 = vunpack.c.h.b16 %v2305
        %v2672 = vunpack.c.l.b16 %v2306
        %v2673 = vunpack.c.h.b16 %v2306
        %v2674 = vunpack.c.l.b16 %v2307
        %v2675 = vunpack.c.h.b16 %v2307
        %v2676 = vunpack.c.l.b16 %v2308
        %v2677 = vunpack.c.h.b16 %v2308
        %v2678 = vunpack.c.l.b16 %v2309
        %v2679 = vunpack.c.h.b16 %v2309
        %v2680 = vunpack.c.l.b16 %v2310
        %v2681 = vunpack.c.h.b16 %v2310
        %v2682 = vunpack.c.l.b16 %v2311
        %v2683 = vunpack.c.h.b16 %v2311
        %v2684 = vunpack.c.l.b16 %v2312
        %v2685 = vunpack.c.h.b16 %v2312
        %v2686 = vunpack.c.l.b16 %v2313
        %v2687 = vunpack.c.h.b16 %v2313
        %v2688 = vunpack.c.l.b16 %v2314
        %v2689 = vunpack.c.h.b16 %v2314
        %v2690 = vunpack.c.l.b16 %v2315
        %v2691 = vunpack.c.h.b16 %v2315
        %v2692 = vunpack.c.l.b16 %v2316
        %v2693 = vunpack.c.h.b16 %v2316
        %v2694 = vunpack.c.l.b16 %v2317
        %v2695 = vunpack.c.h.b16 %v2317
        %v2696 = vunpack.c.l.b16 %v2318
        %v2697 = vunpack.c.h.b16 %v2318
        %v2698 = vunpack.c.l.b16 %v2319
        %v2699 = vunpack.c.h.b16 %v2319
        %v2700 = vunpack.c.l.b16 %v2320
        %v2701 = vunpack.c.h.b16 %v2320
        %v2702 = vunpack.c.l.b16 %v2321
        %v2703 = vunpack.c.h.b16 %v2321
        %v2704 = vunpack.c.l.b16 %v2322
        %v2705 = vunpack.c.h.b16 %v2322
        %v2706 = vunpack.c.l.b16 %v2323
        %v2707 = vunpack.c.h.b16 %v2323
        %v2708 = vunpack.c.l.b16 %v2324
        %v2709 = vunpack.c.h.b16 %v2324
        %v2710 = vunpack.c.l.b16 %v2325
        %v2711 = vunpack.c.h.b16 %v2325
        %v2712 = vunpack.c.l.b16 %v2326
        %v2713 = vunpack.c.h.b16 %v2326
        %v2714 = vunpack.c.l.b16 %v2327
        %v2715 = vunpack.c.h.b16 %v2327
        %v2716 = vunpack.c.l.b16 %v2328
        %v2717 = vunpack.c.h.b16 %v2328
        %v2718 = vunpack.c.l.b16 %v2329
        %v2719 = vunpack.c.h.b16 %v2329
        %v2720 = vunpack.c.l.b16 %v2330
        %v2721 = vunpack.c.h.b16 %v2330
        %v2722 = vunpack.c.l.b16 %v2331
        %v2723 = vunpack.c.h.b16 %v2331
        %v2724 = vunpack.c.l.b16 %v2332
        %v2725 = vunpack.c.h.b16 %v2332
        %v2726 = vunpack.c.l.b16 %v2333
        %v2727 = vunpack.c.h.b16 %v2333
        %v2728 = vunpack.c.l.b16 %v2334
        %v2729 = vunpack.c.h.b16 %v2334
        %v2730 = vunpack.c.l.b16 %v2335
        %v2731 = vunpack.c.h.b16 %v2335
        %v2732 = vunpack.c.l.b16 %v2336
        %v2733 = vunpack.c.h.b16 %v2336
        %v2734 = vunpack.c.l.b16 %v2337
        %v2735 = vunpack.c.h.b16 %v2337
        %v2736 = vunpack.c.l.b16 %v2338
        %v2737 = vunpack.c.h.b16 %v2338
        %v2738 = vunpack.c.l.b16 %v2339
        %v2739 = vunpack.c.h.b16 %v2339
        %v2740 = vunpack.c.l.b16 %v2340
        %v2741 = vunpack.c.h.b16 %v2340
        %v2742 = vunpack.c.l.b16 %v2341
        %v2743 = vunpack.c.h.b16 %v2341
        %v2744 = vunpack.c.l.b16 %v2342
        %v2745 = vunpack.c.h.b16 %v2342
        %v2746 = vunpack.c.l.b16 %v2343
        %v2747 = vunpack.c.h.b16 %v2343
        %v2748 = vunpack.c.l.b16 %v2344
        %v2749 = vunpack.c.h.b16 %v2344
        %v2750 = vunpack.c.l.b16 %v2345
        %v2751 = vunpack.c.h.b16 %v2345
        %v2752 = vunpack.c.l.b16 %v2346
        %v2753 = vunpack.c.h.b16 %v2346
        %v2754 = vunpack.c.l.b16 %v2347
        %v2755 = vunpack.c.h.b16 %v2347
        %v2756 = vunpack.c.l.b16 %v2348
        %v2757 = vunpack.c.h.b16 %v2348
        %v2758 = vunpack.c.l.b16 %v2349
        %v2759 = vunpack.c.h.b16 %v2349
        %v2760 = vunpack.c.l.b16 %v2350
        %v2761 = vunpack.c.h.b16 %v2350
        %v2762 = vunpack.c.l.b16 %v2351
        %v2763 = vunpack.c.h.b16 %v2351
        %v2764 = vunpack.c.l.b16 %v2352
        %v2765 = vunpack.c.h.b16 %v2352
        %v2766 = vunpack.c.l.b16 %v2353
        %v2767 = vunpack.c.h.b16 %v2353
        %v2768 = vunpack.c.l.b16 %v2354
        %v2769 = vunpack.c.h.b16 %v2354
        %v2770 = vunpack.c.l.b16 %v2355
        %v2771 = vunpack.c.h.b16 %v2355
        %v2772 = vunpack.c.l.b16 %v2356
        %v2773 = vunpack.c.h.b16 %v2356
        %v2774 = vunpack.c.l.b16 %v2357
        %v2775 = vunpack.c.h.b16 %v2357
        %v2776 = vunpack.c.l.b16 %v2358
        %v2777 = vunpack.c.h.b16 %v2358
        %v2778 = vunpack.c.l.b16 %v2359
        %v2779 = vunpack.c.h.b16 %v2359
        %v2780 = vunpack.c.l.b16 %v2360
        %v2781 = vunpack.c.h.b16 %v2360
        %v2782 = vunpack.c.l.b16 %v2361
        %v2783 = vunpack.c.h.b16 %v2361
        %v2784 = vunpack.c.l.b16 %v2362
        %v2785 = vunpack.c.h.b16 %v2362
        %v2786 = vunpack.c.l.b16 %v2363
        %v2787 = vunpack.c.h.b16 %v2363
        %v2788 = vunpack.c.l.b16 %v2364
        %v2789 = vunpack.c.h.b16 %v2364
        %v2790 = vunpack.c.l.b16 %v2365
        %v2791 = vunpack.c.h.b16 %v2365
        %v2792 = vunpack.c.l.b16 %v2366
        %v2793 = vunpack.c.h.b16 %v2366
        %v2794 = vunpack.c.l.b16 %v2367
        %v2795 = vunpack.c.h.b16 %v2367
        %v2796 = vunpack.c.l.b16 %v2368
        %v2797 = vunpack.c.h.b16 %v2368
        %v2798 = vunpack.c.l.b16 %v2369
        %v2799 = vunpack.c.h.b16 %v2369
        %v2800 = vunpack.c.l.b16 %v2370
        %v2801 = vunpack.c.h.b16 %v2370
        %v2802 = vunpack.c.l.b16 %v2371
        %v2803 = vunpack.c.h.b16 %v2371
        %v2804 = vunpack.c.l.b16 %v2372
        %v2805 = vunpack.c.h.b16 %v2372
        %v2806 = vunpack.c.l.b16 %v2373
        %v2807 = vunpack.c.h.b16 %v2373
        %v2808 = vunpack.c.l.b16 %v2374
        %v2809 = vunpack.c.h.b16 %v2374
        %v2810 = vunpack.c.l.b16 %v2375
        %v2811 = vunpack.c.h.b16 %v2375
        %v2812 = vunpack.c.l.b16 %v2376
        %v2813 = vunpack.c.h.b16 %v2376
        %v2814 = vunpack.c.l.b16 %v2377
        %v2815 = vunpack.c.h.b16 %v2377
        %v2816 = vunpack.c.l.b16 %v2378
        %v2817 = vunpack.c.h.b16 %v2378
        %v2818 = vunpack.c.l.b16 %v2379
        %v2819 = vunpack.c.h.b16 %v2379
        %v2820 = vunpack.c.l.b16 %v2380
        %v2821 = vunpack.c.h.b16 %v2380
        %v2822 = vunpack.c.l.b16 %v2381
        %v2823 = vunpack.c.h.b16 %v2381
        %v2824 = vunpack.c.l.b16 %v2382
        %v2825 = vunpack.c.h.b16 %v2382
        %v2826 = vunpack.c.l.b16 %v2383
        %v2827 = vunpack.c.h.b16 %v2383
        %v2828 = vunpack.c.l.b16 %v2384
        %v2829 = vunpack.c.h.b16 %v2384
        %v2830 = vunpack.c.l.b16 %v2385
        %v2831 = vunpack.c.h.b16 %v2385
        %v2832 = vunpack.c.l.b16 %v2386
        %v2833 = vunpack.c.h.b16 %v2386
        %v2834 = vunpack.c.l.b16 %v2387
        %v2835 = vunpack.c.h.b16 %v2387
        %v2836 = vunpack.c.l.b16 %v2388
        %v2837 = vunpack.c.h.b16 %v2388
        %v2838 = vunpack.c.l.b16 %v2389
        %v2839 = vunpack.c.h.b16 %v2389
        %v2840 = vunpack.c.l.b16 %v2390
        %v2841 = vunpack.c.h.b16 %v2390
        %v2842 = vunpack.c.l.b16 %v2391
        %v2843 = vunpack.c.h.b16 %v2391
        %v2844 = vunpack.c.l.b16 %v2392
        %v2845 = vunpack.c.h.b16 %v2392
        %v2846 = vunpack.c.l.b16 %v2393
        %v2847 = vunpack.c.h.b16 %v2393
        %v2848 = vunpack.c.l.b16 %v2394
        %v2849 = vunpack.c.h.b16 %v2394
        %v2850 = vpack.c.b16 %v2570, %v2562
        %v2851 = vpack.c.b16 %v2571, %v2563
        %v2852 = vpack.c.b16 %v2572, %v2564
        %v2853 = vpack.c.b16 %v2573, %v2565
        %v2854 = vpack.c.b16 %v2574, %v2566
        %v2855 = vpack.c.b16 %v2575, %v2567
        %v2856 = vpack.c.b16 %v2576, %v2568
        %v2857 = vpack.c.b16 %v2577, %v2569
        %v2858 = vpack.c.b16 %v2586, %v2578
        %v2859 = vpack.c.b16 %v2587, %v2579
        %v2860 = vpack.c.b16 %v2588, %v2580
        %v2861 = vpack.c.b16 %v2589, %v2581
        %v2862 = vpack.c.b16 %v2590, %v2582
        %v2863 = vpack.c.b16 %v2591, %v2583
        %v2864 = vpack.c.b16 %v2592, %v2584
        %v2865 = vpack.c.b16 %v2593, %v2585
        %v2866 = vpack.c.b16 %v2602, %v2594
        %v2867 = vpack.c.b16 %v2603, %v2595
        %v2868 = vpack.c.b16 %v2604, %v2596
        %v2869 = vpack.c.b16 %v2605, %v2597
        %v2870 = vpack.c.b16 %v2606, %v2598
        %v2871 = vpack.c.b16 %v2607, %v2599
        %v2872 = vpack.c.b16 %v2608, %v2600
        %v2873 = vpack.c.b16 %v2609, %v2601
        %v2874 = vpack.c.b16 %v2618, %v2610
        %v2875 = vpack.c.b16 %v2619, %v2611
        %v2876 = vpack.c.b16 %v2620, %v2612
        %v2877 = vpack.c.b16 %v2621, %v2613
        %v2878 = vpack.c.b16 %v2622, %v2614
        %v2879 = vpack.c.b16 %v2623, %v2615
        %v2880 = vpack.c.b16 %v2624, %v2616
        %v2881 = vpack.c.b16 %v2625, %v2617
        %v2882 = vpack.c.b16 %v2634, %v2626
        %v2883 = vpack.c.b16 %v2635, %v2627
        %v2884 = vpack.c.b16 %v2636, %v2628
        %v2885 = vpack.c.b16 %v2637, %v2629
        %v2886 = vpack.c.b16 %v2638, %v2630
        %v2887 = vpack.c.b16 %v2639, %v2631
        %v2888 = vpack.c.b16 %v2640, %v2632
        %v2889 = vpack.c.b16 %v2641, %v2633
        %v2890 = vpack.c.b16 %v2650, %v2642
        %v2891 = vpack.c.b16 %v2651, %v2643
        %v2892 = vpack.c.b16 %v2652, %v2644
        %v2893 = vpack.c.b16 %v2653, %v2645
        %v2894 = vpack.c.b16 %v2654, %v2646
        %v2895 = vpack.c.b16 %v2655, %v2647
        %v2896 = vpack.c.b16 %v2656, %v2648
        %v2897 = vpack.c.b16 %v2657, %v2649
        %v2898 = vpack.c.b16 %v2666, %v2658
        %v2899 = vpack.c.b16 %v2667, %v2659
        %v2900 = vpack.c.b16 %v2668, %v2660
        %v2901 = vpack.c.b16 %v2669, %v2661
        %v2902 = vpack.c.b16 %v2670, %v2662
        %v2903 = vpack.c.b16 %v2671, %v2663
        %v2904 = vpack.c.b16 %v2672, %v2664
        %v2905 = vpack.c.b16 %v2673, %v2665
        %v2906 = vpack.c.b16 %v2682, %v2674
        %v2907 = vpack.c.b16 %v2683, %v2675
        %v2908 = vpack.c.b16 %v2684, %v2676
        %v2909 = vpack.c.b16 %v2685, %v2677
        %v2910 = vpack.c.b16 %v2686, %v2678
        %v2911 = vpack.c.b16 %v2687, %v2679
        %v2912 = vpack.c.b16 %v2688, %v2680
        %v2913 = vpack.c.b16 %v2689, %v2681
        %v2914 = vpack.c.b16 %v2698, %v2690
        %v2915 = vpack.c.b16 %v2699, %v2691
        %v2916 = vpack.c.b16 %v2700, %v2692
        %v2917 = vpack.c.b16 %v2701, %v2693
        %v2918 = vpack.c.b16 %v2702, %v2694
        %v2919 = vpack.c.b16 %v2703, %v2695
        %v2920 = vpack.c.b16 %v2704, %v2696
        %v2921 = vpack.c.b16 %v2705, %v2697
        %v2922 = vpack.c.b16 %v2714, %v2706
        %v2923 = vpack.c.b16 %v2715, %v2707
        %v2924 = vpack.c.b16 %v2716, %v2708
        %v2925 = vpack.c.b16 %v2717, %v2709
        %v2926 = vpack.c.b16 %v2718, %v2710
        %v2927 = vpack.c.b16 %v2719, %v2711
        %v2928 = vpack.c.b16 %v2720, %v2712
        %v2929 = vpack.c.b16 %v2721, %v2713
        %v2930 = vpack.c.b16 %v2730, %v2722
        %v2931 = vpack.c.b16 %v2731, %v2723
        %v2932 = vpack.c.b16 %v2732, %v2724
        %v2933 = vpack.c.b16 %v2733, %v2725
        %v2934 = vpack.c.b16 %v2734, %v2726
        %v2935 = vpack.c.b16 %v2735, %v2727
        %v2936 = vpack.c.b16 %v2736, %v2728
        %v2937 = vpack.c.b16 %v2737, %v2729
        %v2938 = vpack.c.b16 %v2746, %v2738
        %v2939 = vpack.c.b16 %v2747, %v2739
        %v2940 = vpack.c.b16 %v2748, %v2740
        %v2941 = vpack.c.b16 %v2749, %v2741
        %v2942 = vpack.c.b16 %v2750, %v2742
        %v2943 = vpack.c.b16 %v2751, %v2743
        %v2944 = vpack.c.b16 %v2752, %v2744
        %v2945 = vpack.c.b16 %v2753, %v2745
        %v2946 = vpack.c.b16 %v2762, %v2754
        %v2947 = vpack.c.b16 %v2763, %v2755
        %v2948 = vpack.c.b16 %v2764, %v2756
        %v2949 = vpack.c.b16 %v2765, %v2757
        %v2950 = vpack.c.b16 %v2766, %v2758
        %v2951 = vpack.c.b16 %v2767, %v2759
        %v2952 = vpack.c.b16 %v2768, %v2760
        %v2953 = vpack.c.b16 %v2769, %v2761
        %v2954 = vpack.c.b16 %v2778, %v2770
        %v2955 = vpack.c.b16 %v2779, %v2771
        %v2956 = vpack.c.b16 %v2780, %v2772
        %v2957 = vpack.c.b16 %v2781, %v2773
        %v2958 = vpack.c.b16 %v2782, %v2774
        %v2959 = vpack.c.b16 %v2783, %v2775
        %v2960 = vpack.c.b16 %v2784, %v2776
        %v2961 = vpack.c.b16 %v2785, %v2777
        %v2962 = vpack.c.b16 %v2794, %v2786
        %v2963 = vpack.c.b16 %v2795, %v2787
        %v2964 = vpack.c.b16 %v2796, %v2788
        %v2965 = vpack.c.b16 %v2797, %v2789
        %v2966 = vpack.c.b16 %v2798, %v2790
        %v2967 = vpack.c.b16 %v2799, %v2791
        %v2968 = vpack.c.b16 %v2800, %v2792
        %v2969 = vpack.c.b16 %v2801, %v2793
        %v2970 = vpack.c.b16 %v2810, %v2802
        %v2971 = vpack.c.b16 %v2811, %v2803
        %v2972 = vpack.c.b16 %v2812, %v2804
        %v2973 = vpack.c.b16 %v2813, %v2805
        %v2974 = vpack.c.b16 %v2814, %v2806
        %v2975 = vpack.c.b16 %v2815, %v2807
        %v2976 = vpack.c.b16 %v2816, %v2808
        %v2977 = vpack.c.b16 %v2817, %v2809
        %v2978 = vpack.c.b16 %v2826, %v2818
        %v2979 = vpack.c.b16 %v2827, %v2819
        %v2980 = vpack.c.b16 %v2828, %v2820
        %v2981 = vpack.c.b16 %v2829, %v2821
        %v2982 = vpack.c.b16 %v2830, %v2822
        %v2983 = vpack.c.b16 %v2831, %v2823
        %v2984 = vpack.c.b16 %v2832, %v2824
        %v2985 = vpack.c.b16 %v2833, %v2825
        %v2986 = vpack.c.b16 %v2842, %v2834
        %v2987 = vpack.c.b16 %v2843, %v2835
        %v2988 = vpack.c.b16 %v2844, %v2836
        %v2989 = vpack.c.b16 %v2845, %v2837
        %v2990 = vpack.c.b16 %v2846, %v2838
        %v2991 = vpack.c.b16 %v2847, %v2839
        %v2992 = vpack.c.b16 %v2848, %v2840
        %v2993 = vpack.c.b16 %v2849, %v2841
        %v3139 = vsel %vm1838, %v2415, 0
        %3141 = vmatprep.subr.bf16.mxu0 %v2851
        %3142 = vmatpush1.bf16.msra.mxu0 %v2850
        %3143 = vmatprep.subr.bf16.mxu0 %v2859
        %3144 = vmatpush1.bf16.msra.mxu0 %v2858
        %3145 = vmatprep.subr.bf16.mxu0 %v2867
        %3146 = vmatpush1.bf16.msra.mxu0 %v2866
        %3147 = vmatprep.subr.bf16.mxu0 %v2875
        %3148 = vmatpush1.bf16.msra.mxu0 %v2874
        %3149 = vmatprep.subr.bf16.mxu0 %v2883
        %3150 = vmatpush1.bf16.msra.mxu0 %v2882
        %3151 = vmatprep.subr.bf16.mxu0 %v2891
        %3152 = vmatpush1.bf16.msra.mxu0 %v2890
        %3153 = vmatprep.subr.bf16.mxu0 %v2899
        %3154 = vmatpush1.bf16.msra.mxu0 %v2898
        %3155 = vmatprep.subr.bf16.mxu0 %v2907
        %3156 = vmatpush1.bf16.msra.mxu0 %v2906
        %3157 = vmatprep.subr.bf16.mxu0 %v2915
        %3158 = vmatpush1.bf16.msra.mxu0 %v2914
        %3159 = vmatprep.subr.bf16.mxu0 %v2923
        %3160 = vmatpush1.bf16.msra.mxu0 %v2922
        %3161 = vmatprep.subr.bf16.mxu0 %v2931
        %3162 = vmatpush1.bf16.msra.mxu0 %v2930
        %3163 = vmatprep.subr.bf16.mxu0 %v2939
        %3164 = vmatpush1.bf16.msra.mxu0 %v2938
        %3165 = vmatprep.subr.bf16.mxu0 %v2947
        %3166 = vmatpush1.bf16.msra.mxu0 %v2946
        %3167 = vmatprep.subr.bf16.mxu0 %v2955
        %3168 = vmatpush1.bf16.msra.mxu0 %v2954
        %3169 = vmatprep.subr.bf16.mxu0 %v2963
        %3170 = vmatpush1.bf16.msra.mxu0 %v2962
        %3171 = vmatprep.subr.bf16.mxu0 %v2971
        %3172 = vmatpush1.bf16.msra.mxu0 %v2970
        %3173 = vmatprep.mubr.bf16.mxu0 %v2408
        %3174 = vmatmul.mubr.bf16.gmra.mrb[0].mxu0 %v2401
        %v3175 = vpop.f32.mrb[0].mxu0
        %v3176 = vadd.f32 0.0, %v3175
        %v3177 = vpop.f32.mrb[0].mxu0
        %v3178 = vadd.f32 0.0, %v3177
        %v3179 = vpop.f32.mrb[0].mxu0
        %v3180 = vpop.f32.mrb[0].mxu0
        %3181 = vdwg.mxu0
        %3182 = vmatprep.subr.bf16.mxu0 %v2979
        %3183 = vmatpush1.bf16.msra.mxu0 %v2978
        %3184 = vmatprep.subr.bf16.mxu0 %v2987
        %3185 = vmatpush1.bf16.msra.mxu0 %v2986
        %3186 = vmatprep.subr.bf16.mxu0 0
        %3187 = vmatpush1.bf16.msra.mxu0 0
        %3188 = vmatprep.subr.bf16.mxu0 0
        %3189 = vmatpush1.bf16.msra.mxu0 0
        %3190 = vmatprep.subr.bf16.mxu0 0
        %3191 = vmatpush1.bf16.msra.mxu0 0
        %3192 = vmatprep.subr.bf16.mxu0 0
        %3193 = vmatpush1.bf16.msra.mxu0 0
        %3194 = vmatprep.subr.bf16.mxu0 0
        %3195 = vmatpush1.bf16.msra.mxu0 0
        %3196 = vmatprep.subr.bf16.mxu0 0
        %3197 = vmatpush1.bf16.msra.mxu0 0
        %3198 = vmatprep.subr.bf16.mxu0 0
        %3199 = vmatpush1.bf16.msra.mxu0 0
        %3200 = vmatprep.subr.bf16.mxu0 0
        %3201 = vmatpush1.bf16.msra.mxu0 0
        %3202 = vmatprep.subr.bf16.mxu0 0
        %3203 = vmatpush1.bf16.msra.mxu0 0
        %3204 = vmatprep.subr.bf16.mxu0 0
        %3205 = vmatpush1.bf16.msra.mxu0 0
        %3206 = vmatprep.subr.bf16.mxu0 0
        %3207 = vmatpush1.bf16.msra.mxu0 0
        %3208 = vmatprep.subr.bf16.mxu0 0
        %3209 = vmatpush1.bf16.msra.mxu0 0
        %3210 = vmatprep.subr.bf16.mxu0 0
        %3211 = vmatpush1.bf16.msra.mxu0 0
        %3212 = vmatprep.subr.bf16.mxu0 0
        %3213 = vmatpush1.bf16.msra.mxu0 0
        %3214 = vmatprep.mubr.bf16.mxu0 0
        %3215 = vmatmul.mubr.bf16.gmra.mrb[0].mxu0 %v3139
        %v3216 = vpop.f32.mrb[0].mxu0
        %v3217 = vadd.f32 %v3176, %v3216
        %v3218 = vpop.f32.mrb[0].mxu0
        %v3219 = vadd.f32 %v3178, %v3218
        %v3220 = vpop.f32.mrb[0].mxu0
        %v3221 = vpop.f32.mrb[0].mxu0
        %3222 = vdwg.mxu0
        %3223 = vmatprep.subr.bf16.mxu0 %v2853
        %3224 = vmatpush1.bf16.msra.mxu0 %v2852
        %3225 = vmatprep.subr.bf16.mxu0 %v2861
        %3226 = vmatpush1.bf16.msra.mxu0 %v2860
        %3227 = vmatprep.subr.bf16.mxu0 %v2869
        %3228 = vmatpush1.bf16.msra.mxu0 %v2868
        %3229 = vmatprep.subr.bf16.mxu0 %v2877
        %3230 = vmatpush1.bf16.msra.mxu0 %v2876
        %3231 = vmatprep.subr.bf16.mxu0 %v2885
        %3232 = vmatpush1.bf16.msra.mxu0 %v2884
        %3233 = vmatprep.subr.bf16.mxu0 %v2893
        %3234 = vmatpush1.bf16.msra.mxu0 %v2892
        %3235 = vmatprep.subr.bf16.mxu0 %v2901
        %3236 = vmatpush1.bf16.msra.mxu0 %v2900
        %3237 = vmatprep.subr.bf16.mxu0 %v2909
        %3238 = vmatpush1.bf16.msra.mxu0 %v2908
        %3239 = vmatprep.subr.bf16.mxu0 %v2917
        %3240 = vmatpush1.bf16.msra.mxu0 %v2916
        %3241 = vmatprep.subr.bf16.mxu0 %v2925
        %3242 = vmatpush1.bf16.msra.mxu0 %v2924
        %3243 = vmatprep.subr.bf16.mxu0 %v2933
        %3244 = vmatpush1.bf16.msra.mxu0 %v2932
        %3245 = vmatprep.subr.bf16.mxu0 %v2941
        %3246 = vmatpush1.bf16.msra.mxu0 %v2940
        %3247 = vmatprep.subr.bf16.mxu0 %v2949
        %3248 = vmatpush1.bf16.msra.mxu0 %v2948
        %3249 = vmatprep.subr.bf16.mxu0 %v2957
        %3250 = vmatpush1.bf16.msra.mxu0 %v2956
        %3251 = vmatprep.subr.bf16.mxu0 %v2965
        %3252 = vmatpush1.bf16.msra.mxu0 %v2964
        %3253 = vmatprep.subr.bf16.mxu0 %v2973
        %3254 = vmatpush1.bf16.msra.mxu0 %v2972
        %3255 = vmatprep.mubr.bf16.mxu0 %v2408
        %3256 = vmatmul.mubr.bf16.gmra.mrb[0].mxu0 %v2401
        %v3257 = vpop.f32.mrb[0].mxu0
        %v3258 = vadd.f32 0.0, %v3257
        %v3259 = vpop.f32.mrb[0].mxu0
        %v3260 = vadd.f32 0.0, %v3259
        %v3261 = vpop.f32.mrb[0].mxu0
        %v3262 = vpop.f32.mrb[0].mxu0
        %3263 = vdwg.mxu0
        %3264 = vmatprep.subr.bf16.mxu0 %v2981
        %3265 = vmatpush1.bf16.msra.mxu0 %v2980
        %3266 = vmatprep.subr.bf16.mxu0 %v2989
        %3267 = vmatpush1.bf16.msra.mxu0 %v2988
        %3268 = vmatprep.subr.bf16.mxu0 0
        %3269 = vmatpush1.bf16.msra.mxu0 0
        %3270 = vmatprep.subr.bf16.mxu0 0
        %3271 = vmatpush1.bf16.msra.mxu0 0
        %3272 = vmatprep.subr.bf16.mxu0 0
        %3273 = vmatpush1.bf16.msra.mxu0 0
        %3274 = vmatprep.subr.bf16.mxu0 0
        %3275 = vmatpush1.bf16.msra.mxu0 0
        %3276 = vmatprep.subr.bf16.mxu0 0
        %3277 = vmatpush1.bf16.msra.mxu0 0
        %3278 = vmatprep.subr.bf16.mxu0 0
        %3279 = vmatpush1.bf16.msra.mxu0 0
        %3280 = vmatprep.subr.bf16.mxu0 0
        %3281 = vmatpush1.bf16.msra.mxu0 0
        %3282 = vmatprep.subr.bf16.mxu0 0
        %3283 = vmatpush1.bf16.msra.mxu0 0
        %3284 = vmatprep.subr.bf16.mxu0 0
        %3285 = vmatpush1.bf16.msra.mxu0 0
        %3286 = vmatprep.subr.bf16.mxu0 0
        %3287 = vmatpush1.bf16.msra.mxu0 0
        %3288 = vmatprep.subr.bf16.mxu0 0
        %3289 = vmatpush1.bf16.msra.mxu0 0
        %3290 = vmatprep.subr.bf16.mxu0 0
        %3291 = vmatpush1.bf16.msra.mxu0 0
        %3292 = vmatprep.subr.bf16.mxu0 0
        %3293 = vmatpush1.bf16.msra.mxu0 0
        %3294 = vmatprep.subr.bf16.mxu0 0
        %3295 = vmatpush1.bf16.msra.mxu0 0
        %3296 = vmatprep.mubr.bf16.mxu0 0
        %3297 = vmatmul.mubr.bf16.gmra.mrb[0].mxu0 %v3139
        %v3298 = vpop.f32.mrb[0].mxu0
        %v3299 = vadd.f32 %v3258, %v3298
        %v3300 = vpop.f32.mrb[0].mxu0
        %v3301 = vadd.f32 %v3260, %v3300
        %v3302 = vpop.f32.mrb[0].mxu0
        %v3303 = vpop.f32.mrb[0].mxu0
        %3304 = vdwg.mxu0
        %3305 = vmatprep.subr.bf16.mxu0 %v2855
        %3306 = vmatpush1.bf16.msra.mxu0 %v2854
        %3307 = vmatprep.subr.bf16.mxu0 %v2863
        %3308 = vmatpush1.bf16.msra.mxu0 %v2862
        %3309 = vmatprep.subr.bf16.mxu0 %v2871
        %3310 = vmatpush1.bf16.msra.mxu0 %v2870
        %3311 = vmatprep.subr.bf16.mxu0 %v2879
        %3312 = vmatpush1.bf16.msra.mxu0 %v2878
        %3313 = vmatprep.subr.bf16.mxu0 %v2887
        %3314 = vmatpush1.bf16.msra.mxu0 %v2886
        %3315 = vmatprep.subr.bf16.mxu0 %v2895
        %3316 = vmatpush1.bf16.msra.mxu0 %v2894
        %3317 = vmatprep.subr.bf16.mxu0 %v2903
        %3318 = vmatpush1.bf16.msra.mxu0 %v2902
        %3319 = vmatprep.subr.bf16.mxu0 %v2911
        %3320 = vmatpush1.bf16.msra.mxu0 %v2910
        %3321 = vmatprep.subr.bf16.mxu0 %v2919
        %3322 = vmatpush1.bf16.msra.mxu0 %v2918
        %3323 = vmatprep.subr.bf16.mxu0 %v2927
        %3324 = vmatpush1.bf16.msra.mxu0 %v2926
        %3325 = vmatprep.subr.bf16.mxu0 %v2935
        %3326 = vmatpush1.bf16.msra.mxu0 %v2934
        %3327 = vmatprep.subr.bf16.mxu0 %v2943
        %3328 = vmatpush1.bf16.msra.mxu0 %v2942
        %3329 = vmatprep.subr.bf16.mxu0 %v2951
        %3330 = vmatpush1.bf16.msra.mxu0 %v2950
        %3331 = vmatprep.subr.bf16.mxu0 %v2959
        %3332 = vmatpush1.bf16.msra.mxu0 %v2958
        %3333 = vmatprep.subr.bf16.mxu0 %v2967
        %3334 = vmatpush1.bf16.msra.mxu0 %v2966
        %3335 = vmatprep.subr.bf16.mxu0 %v2975
        %3336 = vmatpush1.bf16.msra.mxu0 %v2974
        %3337 = vmatprep.mubr.bf16.mxu0 %v2408
        %3338 = vmatmul.mubr.bf16.gmra.mrb[0].mxu0 %v2401
        %v3339 = vpop.f32.mrb[0].mxu0
        %v3340 = vadd.f32 0.0, %v3339
        %v3341 = vpop.f32.mrb[0].mxu0
        %v3342 = vadd.f32 0.0, %v3341
        %v3343 = vpop.f32.mrb[0].mxu0
        %v3344 = vpop.f32.mrb[0].mxu0
        %3345 = vdwg.mxu0
        %3346 = vmatprep.subr.bf16.mxu0 %v2983
        %3347 = vmatpush1.bf16.msra.mxu0 %v2982
        %3348 = vmatprep.subr.bf16.mxu0 %v2991
        %3349 = vmatpush1.bf16.msra.mxu0 %v2990
        %3350 = vmatprep.subr.bf16.mxu0 0
        %3351 = vmatpush1.bf16.msra.mxu0 0
        %3352 = vmatprep.subr.bf16.mxu0 0
        %3353 = vmatpush1.bf16.msra.mxu0 0
        %3354 = vmatprep.subr.bf16.mxu0 0
        %3355 = vmatpush1.bf16.msra.mxu0 0
        %3356 = vmatprep.subr.bf16.mxu0 0
        %3357 = vmatpush1.bf16.msra.mxu0 0
        %3358 = vmatprep.subr.bf16.mxu0 0
        %3359 = vmatpush1.bf16.msra.mxu0 0
        %3360 = vmatprep.subr.bf16.mxu0 0
        %3361 = vmatpush1.bf16.msra.mxu0 0
        %3362 = vmatprep.subr.bf16.mxu0 0
        %3363 = vmatpush1.bf16.msra.mxu0 0
        %3364 = vmatprep.subr.bf16.mxu0 0
        %3365 = vmatpush1.bf16.msra.mxu0 0
        %3366 = vmatprep.subr.bf16.mxu0 0
        %3367 = vmatpush1.bf16.msra.mxu0 0
        %3368 = vmatprep.subr.bf16.mxu0 0
        %3369 = vmatpush1.bf16.msra.mxu0 0
        %3370 = vmatprep.subr.bf16.mxu0 0
        %3371 = vmatpush1.bf16.msra.mxu0 0
        %3372 = vmatprep.subr.bf16.mxu0 0
        %3373 = vmatpush1.bf16.msra.mxu0 0
        %3374 = vmatprep.subr.bf16.mxu0 0
        %3375 = vmatpush1.bf16.msra.mxu0 0
        %3376 = vmatprep.subr.bf16.mxu0 0
        %3377 = vmatpush1.bf16.msra.mxu0 0
        %3378 = vmatprep.mubr.bf16.mxu0 0
        %3379 = vmatmul.mubr.bf16.gmra.mrb[0].mxu0 %v3139
        %v3380 = vpop.f32.mrb[0].mxu0
        %v3381 = vadd.f32 %v3340, %v3380
        %v3382 = vpop.f32.mrb[0].mxu0
        %v3383 = vadd.f32 %v3342, %v3382
        %v3384 = vpop.f32.mrb[0].mxu0
        %v3385 = vpop.f32.mrb[0].mxu0
        %3386 = vdwg.mxu0
        %3387 = vmatprep.subr.bf16.mxu0 %v2857
        %3388 = vmatpush1.bf16.msra.mxu0 %v2856
        %3389 = vmatprep.subr.bf16.mxu0 %v2865
        %3390 = vmatpush1.bf16.msra.mxu0 %v2864
        %3391 = vmatprep.subr.bf16.mxu0 %v2873
        %3392 = vmatpush1.bf16.msra.mxu0 %v2872
        %3393 = vmatprep.subr.bf16.mxu0 %v2881
        %3394 = vmatpush1.bf16.msra.mxu0 %v2880
        %3395 = vmatprep.subr.bf16.mxu0 %v2889
        %3396 = vmatpush1.bf16.msra.mxu0 %v2888
        %3397 = vmatprep.subr.bf16.mxu0 %v2897
        %3398 = vmatpush1.bf16.msra.mxu0 %v2896
        %3399 = vmatprep.subr.bf16.mxu0 %v2905
        %3400 = vmatpush1.bf16.msra.mxu0 %v2904
        %3401 = vmatprep.subr.bf16.mxu0 %v2913
        %3402 = vmatpush1.bf16.msra.mxu0 %v2912
        %3403 = vmatprep.subr.bf16.mxu0 %v2921
        %3404 = vmatpush1.bf16.msra.mxu0 %v2920
        %3405 = vmatprep.subr.bf16.mxu0 %v2929
        %3406 = vmatpush1.bf16.msra.mxu0 %v2928
        %3407 = vmatprep.subr.bf16.mxu0 %v2937
        %3408 = vmatpush1.bf16.msra.mxu0 %v2936
        %3409 = vmatprep.subr.bf16.mxu0 %v2945
        %3410 = vmatpush1.bf16.msra.mxu0 %v2944
        %3411 = vmatprep.subr.bf16.mxu0 %v2953
        %3412 = vmatpush1.bf16.msra.mxu0 %v2952
        %3413 = vmatprep.subr.bf16.mxu0 %v2961
        %3414 = vmatpush1.bf16.msra.mxu0 %v2960
        %3415 = vmatprep.subr.bf16.mxu0 %v2969
        %3416 = vmatpush1.bf16.msra.mxu0 %v2968
        %3417 = vmatprep.subr.bf16.mxu0 %v2977
        %3418 = vmatpush1.bf16.msra.mxu0 %v2976
        %3419 = vmatprep.mubr.bf16.mxu0 %v2408
        %3420 = vmatmul.mubr.bf16.gmra.mrb[0].mxu0 %v2401
        %v3421 = vpop.f32.mrb[0].mxu0
        %v3422 = vadd.f32 0.0, %v3421
        %v3423 = vpop.f32.mrb[0].mxu0
        %v3424 = vadd.f32 0.0, %v3423
        %v3425 = vpop.f32.mrb[0].mxu0
        %v3426 = vpop.f32.mrb[0].mxu0
        %3427 = vdwg.mxu0
        %3428 = vmatprep.subr.bf16.mxu0 %v2985
        %3429 = vmatpush1.bf16.msra.mxu0 %v2984
        %3430 = vmatprep.subr.bf16.mxu0 %v2993
        %3431 = vmatpush1.bf16.msra.mxu0 %v2992
        %3432 = vmatprep.subr.bf16.mxu0 0
        %3433 = vmatpush1.bf16.msra.mxu0 0
        %3434 = vmatprep.subr.bf16.mxu0 0
        %3435 = vmatpush1.bf16.msra.mxu0 0
        %3436 = vmatprep.subr.bf16.mxu0 0
        %3437 = vmatpush1.bf16.msra.mxu0 0
        %3438 = vmatprep.subr.bf16.mxu0 0
        %3439 = vmatpush1.bf16.msra.mxu0 0
        %3440 = vmatprep.subr.bf16.mxu0 0
        %3441 = vmatpush1.bf16.msra.mxu0 0
        %3442 = vmatprep.subr.bf16.mxu0 0
        %3443 = vmatpush1.bf16.msra.mxu0 0
        %3444 = vmatprep.subr.bf16.mxu0 0
        %3445 = vmatpush1.bf16.msra.mxu0 0
        %3446 = vmatprep.subr.bf16.mxu0 0
        %3447 = vmatpush1.bf16.msra.mxu0 0
        %3448 = vmatprep.subr.bf16.mxu0 0
        %3449 = vmatpush1.bf16.msra.mxu0 0
        %3450 = vmatprep.subr.bf16.mxu0 0
        %3451 = vmatpush1.bf16.msra.mxu0 0
        %3452 = vmatprep.subr.bf16.mxu0 0
        %3453 = vmatpush1.bf16.msra.mxu0 0
        %3454 = vmatprep.subr.bf16.mxu0 0
        %3455 = vmatpush1.bf16.msra.mxu0 0
        %3456 = vmatprep.subr.bf16.mxu0 0
        %3457 = vmatpush1.bf16.msra.mxu0 0
        %3458 = vmatprep.subr.bf16.mxu0 0
        %3459 = vmatpush1.bf16.msra.mxu0 0
        %3460 = vmatprep.mubr.bf16.mxu0 0
        %3461 = vmatmul.mubr.bf16.gmra.mrb[0].mxu0 %v3139
        %v3462 = vpop.f32.mrb[0].mxu0
        %v3463 = vadd.f32 %v3422, %v3462
        %v3464 = vpop.f32.mrb[0].mxu0
        %v3465 = vadd.f32 %v3424, %v3464
        %v3466 = vpop.f32.mrb[0].mxu0
        %v3467 = vpop.f32.mrb[0].mxu0
        %3468 = vdwg.mxu0
        %v3613 = vunpack.c.l.b16 %v2100
        %v3614 = vunpack.c.h.b16 %v2100
        %v3615 = vunpack.c.l.b16 %v2101
        %v3616 = vunpack.c.h.b16 %v2101
        %v3617 = vunpack.c.l.b16 %v2102
        %v3618 = vunpack.c.h.b16 %v2102
        %v3619 = vunpack.c.l.b16 %v2103
        %v3620 = vunpack.c.h.b16 %v2103
        %v3621 = vunpack.c.l.b16 %v2104
        %v3622 = vunpack.c.h.b16 %v2104
        %v3623 = vunpack.c.l.b16 %v2105
        %v3624 = vunpack.c.h.b16 %v2105
        %v3625 = vunpack.c.l.b16 %v2106
        %v3626 = vunpack.c.h.b16 %v2106
        %v3627 = vunpack.c.l.b16 %v2107
        %v3628 = vunpack.c.h.b16 %v2107
        %v3629 = vunpack.c.l.b16 %v2108
        %v3630 = vunpack.c.h.b16 %v2108
        %v3631 = vunpack.c.l.b16 %v2109
        %v3632 = vunpack.c.h.b16 %v2109
        %v3633 = vunpack.c.l.b16 %v2110
        %v3634 = vunpack.c.h.b16 %v2110
        %v3635 = vunpack.c.l.b16 %v2111
        %v3636 = vunpack.c.h.b16 %v2111
        %v3637 = vunpack.c.l.b16 %v2112
        %v3638 = vunpack.c.h.b16 %v2112
        %v3639 = vunpack.c.l.b16 %v2113
        %v3640 = vunpack.c.h.b16 %v2113
        %v3641 = vunpack.c.l.b16 %v2114
        %v3642 = vunpack.c.h.b16 %v2114
        %v3643 = vunpack.c.l.b16 %v2115
        %v3644 = vunpack.c.h.b16 %v2115
        %v3645 = vunpack.c.l.b16 %v2116
        %v3646 = vunpack.c.h.b16 %v2116
        %v3647 = vunpack.c.l.b16 %v2117
        %v3648 = vunpack.c.h.b16 %v2117
        %v3649 = vunpack.c.l.b16 %v2118
        %v3650 = vunpack.c.h.b16 %v2118
        %v3651 = vunpack.c.l.b16 %v2119
        %v3652 = vunpack.c.h.b16 %v2119
        %v3653 = vunpack.c.l.b16 %v2120
        %v3654 = vunpack.c.h.b16 %v2120
        %v3655 = vunpack.c.l.b16 %v2121
        %v3656 = vunpack.c.h.b16 %v2121
        %v3657 = vunpack.c.l.b16 %v2122
        %v3658 = vunpack.c.h.b16 %v2122
        %v3659 = vunpack.c.l.b16 %v2123
        %v3660 = vunpack.c.h.b16 %v2123
        %v3661 = vunpack.c.l.b16 %v2124
        %v3662 = vunpack.c.h.b16 %v2124
        %v3663 = vunpack.c.l.b16 %v2125
        %v3664 = vunpack.c.h.b16 %v2125
        %v3665 = vunpack.c.l.b16 %v2126
        %v3666 = vunpack.c.h.b16 %v2126
        %v3667 = vunpack.c.l.b16 %v2127
        %v3668 = vunpack.c.h.b16 %v2127
        %v3669 = vunpack.c.l.b16 %v2128
        %v3670 = vunpack.c.h.b16 %v2128
        %v3671 = vunpack.c.l.b16 %v2129
        %v3672 = vunpack.c.h.b16 %v2129
        %v3673 = vunpack.c.l.b16 %v2130
        %v3674 = vunpack.c.h.b16 %v2130
        %v3675 = vunpack.c.l.b16 %v2131
        %v3676 = vunpack.c.h.b16 %v2131
        %v3677 = vunpack.c.l.b16 %v2132
        %v3678 = vunpack.c.h.b16 %v2132
        %v3679 = vunpack.c.l.b16 %v2133
        %v3680 = vunpack.c.h.b16 %v2133
        %v3681 = vunpack.c.l.b16 %v2134
        %v3682 = vunpack.c.h.b16 %v2134
        %v3683 = vunpack.c.l.b16 %v2135
        %v3684 = vunpack.c.h.b16 %v2135
        %v3685 = vunpack.c.l.b16 %v2136
        %v3686 = vunpack.c.h.b16 %v2136
        %v3687 = vunpack.c.l.b16 %v2137
        %v3688 = vunpack.c.h.b16 %v2137
        %v3689 = vunpack.c.l.b16 %v2138
        %v3690 = vunpack.c.h.b16 %v2138
        %v3691 = vunpack.c.l.b16 %v2139
        %v3692 = vunpack.c.h.b16 %v2139
        %v3693 = vunpack.c.l.b16 %v2140
        %v3694 = vunpack.c.h.b16 %v2140
        %v3695 = vunpack.c.l.b16 %v2141
        %v3696 = vunpack.c.h.b16 %v2141
        %v3697 = vunpack.c.l.b16 %v2142
        %v3698 = vunpack.c.h.b16 %v2142
        %v3699 = vunpack.c.l.b16 %v2143
        %v3700 = vunpack.c.h.b16 %v2143
        %v3701 = vunpack.c.l.b16 %v2144
        %v3702 = vunpack.c.h.b16 %v2144
        %v3703 = vunpack.c.l.b16 %v2145
        %v3704 = vunpack.c.h.b16 %v2145
        %v3705 = vunpack.c.l.b16 %v2146
        %v3706 = vunpack.c.h.b16 %v2146
        %v3707 = vunpack.c.l.b16 %v2147
        %v3708 = vunpack.c.h.b16 %v2147
        %v3709 = vunpack.c.l.b16 %v2148
        %v3710 = vunpack.c.h.b16 %v2148
        %v3711 = vunpack.c.l.b16 %v2149
        %v3712 = vunpack.c.h.b16 %v2149
        %v3713 = vunpack.c.l.b16 %v2150
        %v3714 = vunpack.c.h.b16 %v2150
        %v3715 = vunpack.c.l.b16 %v2151
        %v3716 = vunpack.c.h.b16 %v2151
        %v3717 = vunpack.c.l.b16 %v2152
        %v3718 = vunpack.c.h.b16 %v2152
        %v3719 = vunpack.c.l.b16 %v2153
        %v3720 = vunpack.c.h.b16 %v2153
        %v3721 = vunpack.c.l.b16 %v2154
        %v3722 = vunpack.c.h.b16 %v2154
        %v3723 = vunpack.c.l.b16 %v2155
        %v3724 = vunpack.c.h.b16 %v2155
        %v3725 = vunpack.c.l.b16 %v2156
        %v3726 = vunpack.c.h.b16 %v2156
        %v3727 = vunpack.c.l.b16 %v2157
        %v3728 = vunpack.c.h.b16 %v2157
        %v3729 = vunpack.c.l.b16 %v2158
        %v3730 = vunpack.c.h.b16 %v2158
        %v3731 = vunpack.c.l.b16 %v2159
        %v3732 = vunpack.c.h.b16 %v2159
        %v3733 = vunpack.c.l.b16 %v2160
        %v3734 = vunpack.c.h.b16 %v2160
        %v3735 = vunpack.c.l.b16 %v2161
        %v3736 = vunpack.c.h.b16 %v2161
        %v3737 = vunpack.c.l.b16 %v2162
        %v3738 = vunpack.c.h.b16 %v2162
        %v3739 = vunpack.c.l.b16 %v2163
        %v3740 = vunpack.c.h.b16 %v2163
        %v3741 = vunpack.c.l.b16 %v2164
        %v3742 = vunpack.c.h.b16 %v2164
        %v3743 = vunpack.c.l.b16 %v2165
        %v3744 = vunpack.c.h.b16 %v2165
        %v3745 = vunpack.c.l.b16 %v2166
        %v3746 = vunpack.c.h.b16 %v2166
        %v3747 = vunpack.c.l.b16 %v2167
        %v3748 = vunpack.c.h.b16 %v2167
        %v3749 = vunpack.c.l.b16 %v2168
        %v3750 = vunpack.c.h.b16 %v2168
        %v3751 = vunpack.c.l.b16 %v2169
        %v3752 = vunpack.c.h.b16 %v2169
        %v3753 = vunpack.c.l.b16 %v2170
        %v3754 = vunpack.c.h.b16 %v2170
        %v3755 = vunpack.c.l.b16 %v2171
        %v3756 = vunpack.c.h.b16 %v2171
        %v3757 = vunpack.c.l.b16 %v2172
        %v3758 = vunpack.c.h.b16 %v2172
        %v3759 = vunpack.c.l.b16 %v2173
        %v3760 = vunpack.c.h.b16 %v2173
        %v3761 = vunpack.c.l.b16 %v2174
        %v3762 = vunpack.c.h.b16 %v2174
        %v3763 = vunpack.c.l.b16 %v2175
        %v3764 = vunpack.c.h.b16 %v2175
        %v3765 = vunpack.c.l.b16 %v2176
        %v3766 = vunpack.c.h.b16 %v2176
        %v3767 = vunpack.c.l.b16 %v2177
        %v3768 = vunpack.c.h.b16 %v2177
        %v3769 = vunpack.c.l.b16 %v2178
        %v3770 = vunpack.c.h.b16 %v2178
        %v3771 = vunpack.c.l.b16 %v2179
        %v3772 = vunpack.c.h.b16 %v2179
        %v3773 = vunpack.c.l.b16 %v2180
        %v3774 = vunpack.c.h.b16 %v2180
        %v3775 = vunpack.c.l.b16 %v2181
        %v3776 = vunpack.c.h.b16 %v2181
        %v3777 = vunpack.c.l.b16 %v2182
        %v3778 = vunpack.c.h.b16 %v2182
        %v3779 = vunpack.c.l.b16 %v2183
        %v3780 = vunpack.c.h.b16 %v2183
        %v3781 = vunpack.c.l.b16 %v2184
        %v3782 = vunpack.c.h.b16 %v2184
        %v3783 = vunpack.c.l.b16 %v2185
        %v3784 = vunpack.c.h.b16 %v2185
        %v3785 = vunpack.c.l.b16 %v2186
        %v3786 = vunpack.c.h.b16 %v2186
        %v3787 = vunpack.c.l.b16 %v2187
        %v3788 = vunpack.c.h.b16 %v2187
        %v3789 = vunpack.c.l.b16 %v2188
        %v3790 = vunpack.c.h.b16 %v2188
        %v3791 = vunpack.c.l.b16 %v2189
        %v3792 = vunpack.c.h.b16 %v2189
        %v3793 = vunpack.c.l.b16 %v2190
        %v3794 = vunpack.c.h.b16 %v2190
        %v3795 = vunpack.c.l.b16 %v2191
        %v3796 = vunpack.c.h.b16 %v2191
        %v3797 = vunpack.c.l.b16 %v2192
        %v3798 = vunpack.c.h.b16 %v2192
        %v3799 = vunpack.c.l.b16 %v2193
        %v3800 = vunpack.c.h.b16 %v2193
        %v3801 = vunpack.c.l.b16 %v2194
        %v3802 = vunpack.c.h.b16 %v2194
        %v3803 = vunpack.c.l.b16 %v2195
        %v3804 = vunpack.c.h.b16 %v2195
        %v3805 = vunpack.c.l.b16 %v2196
        %v3806 = vunpack.c.h.b16 %v2196
        %v3807 = vunpack.c.l.b16 %v2197
        %v3808 = vunpack.c.h.b16 %v2197
        %v3809 = vunpack.c.l.b16 %v2198
        %v3810 = vunpack.c.h.b16 %v2198
        %v3811 = vunpack.c.l.b16 %v2199
        %v3812 = vunpack.c.h.b16 %v2199
        %v3813 = vunpack.c.l.b16 %v2200
        %v3814 = vunpack.c.h.b16 %v2200
        %v3815 = vunpack.c.l.b16 %v2201
        %v3816 = vunpack.c.h.b16 %v2201
        %v3817 = vunpack.c.l.b16 %v2202
        %v3818 = vunpack.c.h.b16 %v2202
        %v3819 = vunpack.c.l.b16 %v2203
        %v3820 = vunpack.c.h.b16 %v2203
        %v3821 = vunpack.c.l.b16 %v2204
        %v3822 = vunpack.c.h.b16 %v2204
        %v3823 = vunpack.c.l.b16 %v2205
        %v3824 = vunpack.c.h.b16 %v2205
        %v3825 = vunpack.c.l.b16 %v2206
        %v3826 = vunpack.c.h.b16 %v2206
        %v3827 = vunpack.c.l.b16 %v2207
        %v3828 = vunpack.c.h.b16 %v2207
        %v3829 = vunpack.c.l.b16 %v2208
        %v3830 = vunpack.c.h.b16 %v2208
        %v3831 = vunpack.c.l.b16 %v2209
        %v3832 = vunpack.c.h.b16 %v2209
        %v3833 = vunpack.c.l.b16 %v2210
        %v3834 = vunpack.c.h.b16 %v2210
        %v3835 = vunpack.c.l.b16 %v2211
        %v3836 = vunpack.c.h.b16 %v2211
        %v3837 = vunpack.c.l.b16 %v2212
        %v3838 = vunpack.c.h.b16 %v2212
        %v3839 = vunpack.c.l.b16 %v2213
        %v3840 = vunpack.c.h.b16 %v2213
        %v3841 = vunpack.c.l.b16 %v2214
        %v3842 = vunpack.c.h.b16 %v2214
        %v3843 = vunpack.c.l.b16 %v2215
        %v3844 = vunpack.c.h.b16 %v2215
        %v3845 = vunpack.c.l.b16 %v2216
        %v3846 = vunpack.c.h.b16 %v2216
        %v3847 = vunpack.c.l.b16 %v2217
        %v3848 = vunpack.c.h.b16 %v2217
        %v3849 = vunpack.c.l.b16 %v2218
        %v3850 = vunpack.c.h.b16 %v2218
        %v3851 = vunpack.c.l.b16 %v2219
        %v3852 = vunpack.c.h.b16 %v2219
        %v3853 = vunpack.c.l.b16 %v2220
        %v3854 = vunpack.c.h.b16 %v2220
        %v3855 = vunpack.c.l.b16 %v2221
        %v3856 = vunpack.c.h.b16 %v2221
        %v3857 = vunpack.c.l.b16 %v2222
        %v3858 = vunpack.c.h.b16 %v2222
        %v3859 = vunpack.c.l.b16 %v2223
        %v3860 = vunpack.c.h.b16 %v2223
        %v3861 = vunpack.c.l.b16 %v2224
        %v3862 = vunpack.c.h.b16 %v2224
        %v3863 = vunpack.c.l.b16 %v2225
        %v3864 = vunpack.c.h.b16 %v2225
        %v3865 = vunpack.c.l.b16 %v2226
        %v3866 = vunpack.c.h.b16 %v2226
        %v3867 = vunpack.c.l.b16 %v2227
        %v3868 = vunpack.c.h.b16 %v2227
        %v3869 = vunpack.c.l.b16 %v2228
        %v3870 = vunpack.c.h.b16 %v2228
        %v3871 = vunpack.c.l.b16 %v2229
        %v3872 = vunpack.c.h.b16 %v2229
        %v3873 = vunpack.c.l.b16 %v2230
        %v3874 = vunpack.c.h.b16 %v2230
        %v3875 = vunpack.c.l.b16 %v2231
        %v3876 = vunpack.c.h.b16 %v2231
        %v3877 = vunpack.c.l.b16 %v2232
        %v3878 = vunpack.c.h.b16 %v2232
        %v3879 = vunpack.c.l.b16 %v2233
        %v3880 = vunpack.c.h.b16 %v2233
        %v3881 = vunpack.c.l.b16 %v2234
        %v3882 = vunpack.c.h.b16 %v2234
        %v3883 = vunpack.c.l.b16 %v2235
        %v3884 = vunpack.c.h.b16 %v2235
        %v3885 = vunpack.c.l.b16 %v2236
        %v3886 = vunpack.c.h.b16 %v2236
        %v3887 = vunpack.c.l.b16 %v2237
        %v3888 = vunpack.c.h.b16 %v2237
        %v3889 = vunpack.c.l.b16 %v2238
        %v3890 = vunpack.c.h.b16 %v2238
        %v3891 = vunpack.c.l.b16 %v2239
        %v3892 = vunpack.c.h.b16 %v2239
        %v3893 = vunpack.c.l.b16 %v2240
        %v3894 = vunpack.c.h.b16 %v2240
        %v3895 = vunpack.c.l.b16 %v2241
        %v3896 = vunpack.c.h.b16 %v2241
        %v3897 = vunpack.c.l.b16 %v2242
        %v3898 = vunpack.c.h.b16 %v2242
        %v3899 = vunpack.c.l.b16 %v2243
        %v3900 = vunpack.c.h.b16 %v2243
        %v3901 = vpack.c.b16 %v3621, %v3613
        %v3902 = vpack.c.b16 %v3622, %v3614
        %v3903 = vpack.c.b16 %v3623, %v3615
        %v3904 = vpack.c.b16 %v3624, %v3616
        %v3905 = vpack.c.b16 %v3625, %v3617
        %v3906 = vpack.c.b16 %v3626, %v3618
        %v3907 = vpack.c.b16 %v3627, %v3619
        %v3908 = vpack.c.b16 %v3628, %v3620
        %v3909 = vpack.c.b16 %v3637, %v3629
        %v3910 = vpack.c.b16 %v3638, %v3630
        %v3911 = vpack.c.b16 %v3639, %v3631
        %v3912 = vpack.c.b16 %v3640, %v3632
        %v3913 = vpack.c.b16 %v3641, %v3633
        %v3914 = vpack.c.b16 %v3642, %v3634
        %v3915 = vpack.c.b16 %v3643, %v3635
        %v3916 = vpack.c.b16 %v3644, %v3636
        %v3917 = vpack.c.b16 %v3653, %v3645
        %v3918 = vpack.c.b16 %v3654, %v3646
        %v3919 = vpack.c.b16 %v3655, %v3647
        %v3920 = vpack.c.b16 %v3656, %v3648
        %v3921 = vpack.c.b16 %v3657, %v3649
        %v3922 = vpack.c.b16 %v3658, %v3650
        %v3923 = vpack.c.b16 %v3659, %v3651
        %v3924 = vpack.c.b16 %v3660, %v3652
        %v3925 = vpack.c.b16 %v3669, %v3661
        %v3926 = vpack.c.b16 %v3670, %v3662
        %v3927 = vpack.c.b16 %v3671, %v3663
        %v3928 = vpack.c.b16 %v3672, %v3664
        %v3929 = vpack.c.b16 %v3673, %v3665
        %v3930 = vpack.c.b16 %v3674, %v3666
        %v3931 = vpack.c.b16 %v3675, %v3667
        %v3932 = vpack.c.b16 %v3676, %v3668
        %v3933 = vpack.c.b16 %v3685, %v3677
        %v3934 = vpack.c.b16 %v3686, %v3678
        %v3935 = vpack.c.b16 %v3687, %v3679
        %v3936 = vpack.c.b16 %v3688, %v3680
        %v3937 = vpack.c.b16 %v3689, %v3681
        %v3938 = vpack.c.b16 %v3690, %v3682
        %v3939 = vpack.c.b16 %v3691, %v3683
        %v3940 = vpack.c.b16 %v3692, %v3684
        %v3941 = vpack.c.b16 %v3701, %v3693
        %v3942 = vpack.c.b16 %v3702, %v3694
        %v3943 = vpack.c.b16 %v3703, %v3695
        %v3944 = vpack.c.b16 %v3704, %v3696
        %v3945 = vpack.c.b16 %v3705, %v3697
        %v3946 = vpack.c.b16 %v3706, %v3698
        %v3947 = vpack.c.b16 %v3707, %v3699
        %v3948 = vpack.c.b16 %v3708, %v3700
        %v3949 = vpack.c.b16 %v3717, %v3709
        %v3950 = vpack.c.b16 %v3718, %v3710
        %v3951 = vpack.c.b16 %v3719, %v3711
        %v3952 = vpack.c.b16 %v3720, %v3712
        %v3953 = vpack.c.b16 %v3721, %v3713
        %v3954 = vpack.c.b16 %v3722, %v3714
        %v3955 = vpack.c.b16 %v3723, %v3715
        %v3956 = vpack.c.b16 %v3724, %v3716
        %v3957 = vpack.c.b16 %v3733, %v3725
        %v3958 = vpack.c.b16 %v3734, %v3726
        %v3959 = vpack.c.b16 %v3735, %v3727
        %v3960 = vpack.c.b16 %v3736, %v3728
        %v3961 = vpack.c.b16 %v3737, %v3729
        %v3962 = vpack.c.b16 %v3738, %v3730
        %v3963 = vpack.c.b16 %v3739, %v3731
        %v3964 = vpack.c.b16 %v3740, %v3732
        %v3965 = vpack.c.b16 %v3749, %v3741
        %v3966 = vpack.c.b16 %v3750, %v3742
        %v3967 = vpack.c.b16 %v3751, %v3743
        %v3968 = vpack.c.b16 %v3752, %v3744
        %v3969 = vpack.c.b16 %v3753, %v3745
        %v3970 = vpack.c.b16 %v3754, %v3746
        %v3971 = vpack.c.b16 %v3755, %v3747
        %v3972 = vpack.c.b16 %v3756, %v3748
        %v3973 = vpack.c.b16 %v3765, %v3757
        %v3974 = vpack.c.b16 %v3766, %v3758
        %v3975 = vpack.c.b16 %v3767, %v3759
        %v3976 = vpack.c.b16 %v3768, %v3760
        %v3977 = vpack.c.b16 %v3769, %v3761
        %v3978 = vpack.c.b16 %v3770, %v3762
        %v3979 = vpack.c.b16 %v3771, %v3763
        %v3980 = vpack.c.b16 %v3772, %v3764
        %v3981 = vpack.c.b16 %v3781, %v3773
        %v3982 = vpack.c.b16 %v3782, %v3774
        %v3983 = vpack.c.b16 %v3783, %v3775
        %v3984 = vpack.c.b16 %v3784, %v3776
        %v3985 = vpack.c.b16 %v3785, %v3777
        %v3986 = vpack.c.b16 %v3786, %v3778
        %v3987 = vpack.c.b16 %v3787, %v3779
        %v3988 = vpack.c.b16 %v3788, %v3780
        %v3989 = vpack.c.b16 %v3797, %v3789
        %v3990 = vpack.c.b16 %v3798, %v3790
        %v3991 = vpack.c.b16 %v3799, %v3791
        %v3992 = vpack.c.b16 %v3800, %v3792
        %v3993 = vpack.c.b16 %v3801, %v3793
        %v3994 = vpack.c.b16 %v3802, %v3794
        %v3995 = vpack.c.b16 %v3803, %v3795
        %v3996 = vpack.c.b16 %v3804, %v3796
        %v3997 = vpack.c.b16 %v3813, %v3805
        %v3998 = vpack.c.b16 %v3814, %v3806
        %v3999 = vpack.c.b16 %v3815, %v3807
        %v4000 = vpack.c.b16 %v3816, %v3808
        %v4001 = vpack.c.b16 %v3817, %v3809
        %v4002 = vpack.c.b16 %v3818, %v3810
        %v4003 = vpack.c.b16 %v3819, %v3811
        %v4004 = vpack.c.b16 %v3820, %v3812
        %v4005 = vpack.c.b16 %v3829, %v3821
        %v4006 = vpack.c.b16 %v3830, %v3822
        %v4007 = vpack.c.b16 %v3831, %v3823
        %v4008 = vpack.c.b16 %v3832, %v3824
        %v4009 = vpack.c.b16 %v3833, %v3825
        %v4010 = vpack.c.b16 %v3834, %v3826
        %v4011 = vpack.c.b16 %v3835, %v3827
        %v4012 = vpack.c.b16 %v3836, %v3828
        %v4013 = vpack.c.b16 %v3845, %v3837
        %v4014 = vpack.c.b16 %v3846, %v3838
        %v4015 = vpack.c.b16 %v3847, %v3839
        %v4016 = vpack.c.b16 %v3848, %v3840
        %v4017 = vpack.c.b16 %v3849, %v3841
        %v4018 = vpack.c.b16 %v3850, %v3842
        %v4019 = vpack.c.b16 %v3851, %v3843
        %v4020 = vpack.c.b16 %v3852, %v3844
        %v4021 = vpack.c.b16 %v3861, %v3853
        %v4022 = vpack.c.b16 %v3862, %v3854
        %v4023 = vpack.c.b16 %v3863, %v3855
        %v4024 = vpack.c.b16 %v3864, %v3856
        %v4025 = vpack.c.b16 %v3865, %v3857
        %v4026 = vpack.c.b16 %v3866, %v3858
        %v4027 = vpack.c.b16 %v3867, %v3859
        %v4028 = vpack.c.b16 %v3868, %v3860
        %v4029 = vpack.c.b16 %v3877, %v3869
        %v4030 = vpack.c.b16 %v3878, %v3870
        %v4031 = vpack.c.b16 %v3879, %v3871
        %v4032 = vpack.c.b16 %v3880, %v3872
        %v4033 = vpack.c.b16 %v3881, %v3873
        %v4034 = vpack.c.b16 %v3882, %v3874
        %v4035 = vpack.c.b16 %v3883, %v3875
        %v4036 = vpack.c.b16 %v3884, %v3876
        %v4037 = vpack.c.b16 %v3893, %v3885
        %v4038 = vpack.c.b16 %v3894, %v3886
        %v4039 = vpack.c.b16 %v3895, %v3887
        %v4040 = vpack.c.b16 %v3896, %v3888
        %v4041 = vpack.c.b16 %v3897, %v3889
        %v4042 = vpack.c.b16 %v3898, %v3890
        %v4043 = vpack.c.b16 %v3899, %v3891
        %v4044 = vpack.c.b16 %v3900, %v3892
        %v4190 = vsel %vm1838, %v2099, 0
        %4192 = vmatprep.subr.bf16.mxu0 %v3902
        %4193 = vmatpush1.bf16.msra.mxu0 %v3901
        %4194 = vmatprep.subr.bf16.mxu0 %v3910
        %4195 = vmatpush1.bf16.msra.mxu0 %v3909
        %4196 = vmatprep.subr.bf16.mxu0 %v3918
        %4197 = vmatpush1.bf16.msra.mxu0 %v3917
        %4198 = vmatprep.subr.bf16.mxu0 %v3926
        %4199 = vmatpush1.bf16.msra.mxu0 %v3925
        %4200 = vmatprep.subr.bf16.mxu0 %v3934
        %4201 = vmatpush1.bf16.msra.mxu0 %v3933
        %4202 = vmatprep.subr.bf16.mxu0 %v3942
        %4203 = vmatpush1.bf16.msra.mxu0 %v3941
        %4204 = vmatprep.subr.bf16.mxu0 %v3950
        %4205 = vmatpush1.bf16.msra.mxu0 %v3949
        %4206 = vmatprep.subr.bf16.mxu0 %v3958
        %4207 = vmatpush1.bf16.msra.mxu0 %v3957
        %4208 = vmatprep.subr.bf16.mxu0 %v3966
        %4209 = vmatpush1.bf16.msra.mxu0 %v3965
        %4210 = vmatprep.subr.bf16.mxu0 %v3974
        %4211 = vmatpush1.bf16.msra.mxu0 %v3973
        %4212 = vmatprep.subr.bf16.mxu0 %v3982
        %4213 = vmatpush1.bf16.msra.mxu0 %v3981
        %4214 = vmatprep.subr.bf16.mxu0 %v3990
        %4215 = vmatpush1.bf16.msra.mxu0 %v3989
        %4216 = vmatprep.subr.bf16.mxu0 %v3998
        %4217 = vmatpush1.bf16.msra.mxu0 %v3997
        %4218 = vmatprep.subr.bf16.mxu0 %v4006
        %4219 = vmatpush1.bf16.msra.mxu0 %v4005
        %4220 = vmatprep.subr.bf16.mxu0 %v4014
        %4221 = vmatpush1.bf16.msra.mxu0 %v4013
        %4222 = vmatprep.subr.bf16.mxu0 %v4022
        %4223 = vmatpush1.bf16.msra.mxu0 %v4021
        %4224 = vmatprep.mubr.bf16.mxu0 %v2098
        %4225 = vmatmul.mubr.bf16.gmra.mrb[0].mxu0 %v2097
        %v4226 = vpop.f32.mrb[0].mxu0
        %v4227 = vadd.f32 %v3217, %v4226
        %v4228 = vpop.f32.mrb[0].mxu0
        %v4229 = vadd.f32 %v3219, %v4228
        %v4230 = vpop.f32.mrb[0].mxu0
        %v4231 = vpop.f32.mrb[0].mxu0
        %4232 = vdwg.mxu0
        %4233 = vmatprep.subr.bf16.mxu0 %v4030
        %4234 = vmatpush1.bf16.msra.mxu0 %v4029
        %4235 = vmatprep.subr.bf16.mxu0 %v4038
        %4236 = vmatpush1.bf16.msra.mxu0 %v4037
        %4237 = vmatprep.subr.bf16.mxu0 0
        %4238 = vmatpush1.bf16.msra.mxu0 0
        %4239 = vmatprep.subr.bf16.mxu0 0
        %4240 = vmatpush1.bf16.msra.mxu0 0
        %4241 = vmatprep.subr.bf16.mxu0 0
        %4242 = vmatpush1.bf16.msra.mxu0 0
        %4243 = vmatprep.subr.bf16.mxu0 0
        %4244 = vmatpush1.bf16.msra.mxu0 0
        %4245 = vmatprep.subr.bf16.mxu0 0
        %4246 = vmatpush1.bf16.msra.mxu0 0
        %4247 = vmatprep.subr.bf16.mxu0 0
        %4248 = vmatpush1.bf16.msra.mxu0 0
        %4249 = vmatprep.subr.bf16.mxu0 0
        %4250 = vmatpush1.bf16.msra.mxu0 0
        %4251 = vmatprep.subr.bf16.mxu0 0
        %4252 = vmatpush1.bf16.msra.mxu0 0
        %4253 = vmatprep.subr.bf16.mxu0 0
        %4254 = vmatpush1.bf16.msra.mxu0 0
        %4255 = vmatprep.subr.bf16.mxu0 0
        %4256 = vmatpush1.bf16.msra.mxu0 0
        %4257 = vmatprep.subr.bf16.mxu0 0
        %4258 = vmatpush1.bf16.msra.mxu0 0
        %4259 = vmatprep.subr.bf16.mxu0 0
        %4260 = vmatpush1.bf16.msra.mxu0 0
        %4261 = vmatprep.subr.bf16.mxu0 0
        %4262 = vmatpush1.bf16.msra.mxu0 0
        %4263 = vmatprep.subr.bf16.mxu0 0
        %4264 = vmatpush1.bf16.msra.mxu0 0
        %4265 = vmatprep.mubr.bf16.mxu0 0
        %4266 = vmatmul.mubr.bf16.gmra.mrb[0].mxu0 %v4190
        %v4267 = vpop.f32.mrb[0].mxu0
        %v4268 = vadd.f32 %v4227, %v4267
        %v4269 = vpop.f32.mrb[0].mxu0
        %v4270 = vadd.f32 %v4229, %v4269
        %v4271 = vpop.f32.mrb[0].mxu0
        %v4272 = vpop.f32.mrb[0].mxu0
        %4273 = vdwg.mxu0
        %4274 = vmatprep.subr.bf16.mxu0 %v3904
        %4275 = vmatpush1.bf16.msra.mxu0 %v3903
        %4276 = vmatprep.subr.bf16.mxu0 %v3912
        %4277 = vmatpush1.bf16.msra.mxu0 %v3911
        %4278 = vmatprep.subr.bf16.mxu0 %v3920
        %4279 = vmatpush1.bf16.msra.mxu0 %v3919
        %4280 = vmatprep.subr.bf16.mxu0 %v3928
        %4281 = vmatpush1.bf16.msra.mxu0 %v3927
        %4282 = vmatprep.subr.bf16.mxu0 %v3936
        %4283 = vmatpush1.bf16.msra.mxu0 %v3935
        %4284 = vmatprep.subr.bf16.mxu0 %v3944
        %4285 = vmatpush1.bf16.msra.mxu0 %v3943
        %4286 = vmatprep.subr.bf16.mxu0 %v3952
        %4287 = vmatpush1.bf16.msra.mxu0 %v3951
        %4288 = vmatprep.subr.bf16.mxu0 %v3960
        %4289 = vmatpush1.bf16.msra.mxu0 %v3959
        %4290 = vmatprep.subr.bf16.mxu0 %v3968
        %4291 = vmatpush1.bf16.msra.mxu0 %v3967
        %4292 = vmatprep.subr.bf16.mxu0 %v3976
        %4293 = vmatpush1.bf16.msra.mxu0 %v3975
        %4294 = vmatprep.subr.bf16.mxu0 %v3984
        %4295 = vmatpush1.bf16.msra.mxu0 %v3983
        %4296 = vmatprep.subr.bf16.mxu0 %v3992
        %4297 = vmatpush1.bf16.msra.mxu0 %v3991
        %4298 = vmatprep.subr.bf16.mxu0 %v4000
        %4299 = vmatpush1.bf16.msra.mxu0 %v3999
        %4300 = vmatprep.subr.bf16.mxu0 %v4008
        %4301 = vmatpush1.bf16.msra.mxu0 %v4007
        %4302 = vmatprep.subr.bf16.mxu0 %v4016
        %4303 = vmatpush1.bf16.msra.mxu0 %v4015
        %4304 = vmatprep.subr.bf16.mxu0 %v4024
        %4305 = vmatpush1.bf16.msra.mxu0 %v4023
        %4306 = vmatprep.mubr.bf16.mxu0 %v2098
        %4307 = vmatmul.mubr.bf16.gmra.mrb[0].mxu0 %v2097
        %v4308 = vpop.f32.mrb[0].mxu0
        %v4309 = vadd.f32 %v3299, %v4308
        %v4310 = vpop.f32.mrb[0].mxu0
        %v4311 = vadd.f32 %v3301, %v4310
        %v4312 = vpop.f32.mrb[0].mxu0
        %v4313 = vpop.f32.mrb[0].mxu0
        %4314 = vdwg.mxu0
        %4315 = vmatprep.subr.bf16.mxu0 %v4032
        %4316 = vmatpush1.bf16.msra.mxu0 %v4031
        %4317 = vmatprep.subr.bf16.mxu0 %v4040
        %4318 = vmatpush1.bf16.msra.mxu0 %v4039
        %4319 = vmatprep.subr.bf16.mxu0 0
        %4320 = vmatpush1.bf16.msra.mxu0 0
        %4321 = vmatprep.subr.bf16.mxu0 0
        %4322 = vmatpush1.bf16.msra.mxu0 0
        %4323 = vmatprep.subr.bf16.mxu0 0
        %4324 = vmatpush1.bf16.msra.mxu0 0
        %4325 = vmatprep.subr.bf16.mxu0 0
        %4326 = vmatpush1.bf16.msra.mxu0 0
        %4327 = vmatprep.subr.bf16.mxu0 0
        %4328 = vmatpush1.bf16.msra.mxu0 0
        %4329 = vmatprep.subr.bf16.mxu0 0
        %4330 = vmatpush1.bf16.msra.mxu0 0
        %4331 = vmatprep.subr.bf16.mxu0 0
        %4332 = vmatpush1.bf16.msra.mxu0 0
        %4333 = vmatprep.subr.bf16.mxu0 0
        %4334 = vmatpush1.bf16.msra.mxu0 0
        %4335 = vmatprep.subr.bf16.mxu0 0
        %4336 = vmatpush1.bf16.msra.mxu0 0
        %4337 = vmatprep.subr.bf16.mxu0 0
        %4338 = vmatpush1.bf16.msra.mxu0 0
        %4339 = vmatprep.subr.bf16.mxu0 0
        %4340 = vmatpush1.bf16.msra.mxu0 0
        %4341 = vmatprep.subr.bf16.mxu0 0
        %4342 = vmatpush1.bf16.msra.mxu0 0
        %4343 = vmatprep.subr.bf16.mxu0 0
        %4344 = vmatpush1.bf16.msra.mxu0 0
        %4345 = vmatprep.subr.bf16.mxu0 0
        %4346 = vmatpush1.bf16.msra.mxu0 0
        %4347 = vmatprep.mubr.bf16.mxu0 0
        %4348 = vmatmul.mubr.bf16.gmra.mrb[0].mxu0 %v4190
        %v4349 = vpop.f32.mrb[0].mxu0
        %v4350 = vadd.f32 %v4309, %v4349
        %v4351 = vpop.f32.mrb[0].mxu0
        %v4352 = vadd.f32 %v4311, %v4351
        %v4353 = vpop.f32.mrb[0].mxu0
        %v4354 = vpop.f32.mrb[0].mxu0
        %4355 = vdwg.mxu0
        %4356 = vmatprep.subr.bf16.mxu0 %v3906
        %4357 = vmatpush1.bf16.msra.mxu0 %v3905
        %4358 = vmatprep.subr.bf16.mxu0 %v3914
        %4359 = vmatpush1.bf16.msra.mxu0 %v3913
        %4360 = vmatprep.subr.bf16.mxu0 %v3922
        %4361 = vmatpush1.bf16.msra.mxu0 %v3921
        %4362 = vmatprep.subr.bf16.mxu0 %v3930
        %4363 = vmatpush1.bf16.msra.mxu0 %v3929
        %4364 = vmatprep.subr.bf16.mxu0 %v3938
        %4365 = vmatpush1.bf16.msra.mxu0 %v3937
        %4366 = vmatprep.subr.bf16.mxu0 %v3946
        %4367 = vmatpush1.bf16.msra.mxu0 %v3945
        %4368 = vmatprep.subr.bf16.mxu0 %v3954
        %4369 = vmatpush1.bf16.msra.mxu0 %v3953
        %4370 = vmatprep.subr.bf16.mxu0 %v3962
        %4371 = vmatpush1.bf16.msra.mxu0 %v3961
        %4372 = vmatprep.subr.bf16.mxu0 %v3970
        %4373 = vmatpush1.bf16.msra.mxu0 %v3969
        %4374 = vmatprep.subr.bf16.mxu0 %v3978
        %4375 = vmatpush1.bf16.msra.mxu0 %v3977
        %4376 = vmatprep.subr.bf16.mxu0 %v3986
        %4377 = vmatpush1.bf16.msra.mxu0 %v3985
        %4378 = vmatprep.subr.bf16.mxu0 %v3994
        %4379 = vmatpush1.bf16.msra.mxu0 %v3993
        %4380 = vmatprep.subr.bf16.mxu0 %v4002
        %4381 = vmatpush1.bf16.msra.mxu0 %v4001
        %4382 = vmatprep.subr.bf16.mxu0 %v4010
        %4383 = vmatpush1.bf16.msra.mxu0 %v4009
        %4384 = vmatprep.subr.bf16.mxu0 %v4018
        %4385 = vmatpush1.bf16.msra.mxu0 %v4017
        %4386 = vmatprep.subr.bf16.mxu0 %v4026
        %4387 = vmatpush1.bf16.msra.mxu0 %v4025
        %4388 = vmatprep.mubr.bf16.mxu0 %v2098
        %4389 = vmatmul.mubr.bf16.gmra.mrb[0].mxu0 %v2097
        %v4390 = vpop.f32.mrb[0].mxu0
        %v4391 = vadd.f32 %v3381, %v4390
        %v4392 = vpop.f32.mrb[0].mxu0
        %v4393 = vadd.f32 %v3383, %v4392
        %v4394 = vpop.f32.mrb[0].mxu0
        %v4395 = vpop.f32.mrb[0].mxu0
        %4396 = vdwg.mxu0
        %4397 = vmatprep.subr.bf16.mxu0 %v4034
        %4398 = vmatpush1.bf16.msra.mxu0 %v4033
        %4399 = vmatprep.subr.bf16.mxu0 %v4042
        %4400 = vmatpush1.bf16.msra.mxu0 %v4041
        %4401 = vmatprep.subr.bf16.mxu0 0
        %4402 = vmatpush1.bf16.msra.mxu0 0
        %4403 = vmatprep.subr.bf16.mxu0 0
        %4404 = vmatpush1.bf16.msra.mxu0 0
        %4405 = vmatprep.subr.bf16.mxu0 0
        %4406 = vmatpush1.bf16.msra.mxu0 0
        %4407 = vmatprep.subr.bf16.mxu0 0
        %4408 = vmatpush1.bf16.msra.mxu0 0
        %4409 = vmatprep.subr.bf16.mxu0 0
        %4410 = vmatpush1.bf16.msra.mxu0 0
        %4411 = vmatprep.subr.bf16.mxu0 0
        %4412 = vmatpush1.bf16.msra.mxu0 0
        %4413 = vmatprep.subr.bf16.mxu0 0
        %4414 = vmatpush1.bf16.msra.mxu0 0
        %4415 = vmatprep.subr.bf16.mxu0 0
        %4416 = vmatpush1.bf16.msra.mxu0 0
        %4417 = vmatprep.subr.bf16.mxu0 0
        %4418 = vmatpush1.bf16.msra.mxu0 0
        %4419 = vmatprep.subr.bf16.mxu0 0
        %4420 = vmatpush1.bf16.msra.mxu0 0
        %4421 = vmatprep.subr.bf16.mxu0 0
        %4422 = vmatpush1.bf16.msra.mxu0 0
        %4423 = vmatprep.subr.bf16.mxu0 0
        %4424 = vmatpush1.bf16.msra.mxu0 0
        %4425 = vmatprep.subr.bf16.mxu0 0
        %4426 = vmatpush1.bf16.msra.mxu0 0
        %4427 = vmatprep.subr.bf16.mxu0 0
        %4428 = vmatpush1.bf16.msra.mxu0 0
        %4429 = vmatprep.mubr.bf16.mxu0 0
        %4430 = vmatmul.mubr.bf16.gmra.mrb[0].mxu0 %v4190
        %v4431 = vpop.f32.mrb[0].mxu0
        %v4432 = vadd.f32 %v4391, %v4431
        %v4433 = vpop.f32.mrb[0].mxu0
        %v4434 = vadd.f32 %v4393, %v4433
        %v4435 = vpop.f32.mrb[0].mxu0
        %v4436 = vpop.f32.mrb[0].mxu0
        %4437 = vdwg.mxu0
        %4438 = vmatprep.subr.bf16.mxu0 %v3908
        %4439 = vmatpush1.bf16.msra.mxu0 %v3907
        %4440 = vmatprep.subr.bf16.mxu0 %v3916
        %4441 = vmatpush1.bf16.msra.mxu0 %v3915
        %4442 = vmatprep.subr.bf16.mxu0 %v3924
        %4443 = vmatpush1.bf16.msra.mxu0 %v3923
        %4444 = vmatprep.subr.bf16.mxu0 %v3932
        %4445 = vmatpush1.bf16.msra.mxu0 %v3931
        %4446 = vmatprep.subr.bf16.mxu0 %v3940
        %4447 = vmatpush1.bf16.msra.mxu0 %v3939
        %4448 = vmatprep.subr.bf16.mxu0 %v3948
        %4449 = vmatpush1.bf16.msra.mxu0 %v3947
        %4450 = vmatprep.subr.bf16.mxu0 %v3956
        %4451 = vmatpush1.bf16.msra.mxu0 %v3955
        %4452 = vmatprep.subr.bf16.mxu0 %v3964
        %4453 = vmatpush1.bf16.msra.mxu0 %v3963
        %4454 = vmatprep.subr.bf16.mxu0 %v3972
        %4455 = vmatpush1.bf16.msra.mxu0 %v3971
        %4456 = vmatprep.subr.bf16.mxu0 %v3980
        %4457 = vmatpush1.bf16.msra.mxu0 %v3979
        %4458 = vmatprep.subr.bf16.mxu0 %v3988
        %4459 = vmatpush1.bf16.msra.mxu0 %v3987
        %4460 = vmatprep.subr.bf16.mxu0 %v3996
        %4461 = vmatpush1.bf16.msra.mxu0 %v3995
        %4462 = vmatprep.subr.bf16.mxu0 %v4004
        %4463 = vmatpush1.bf16.msra.mxu0 %v4003
        %4464 = vmatprep.subr.bf16.mxu0 %v4012
        %4465 = vmatpush1.bf16.msra.mxu0 %v4011
        %4466 = vmatprep.subr.bf16.mxu0 %v4020
        %4467 = vmatpush1.bf16.msra.mxu0 %v4019
        %4468 = vmatprep.subr.bf16.mxu0 %v4028
        %4469 = vmatpush1.bf16.msra.mxu0 %v4027
        %4470 = vmatprep.mubr.bf16.mxu0 %v2098
        %4471 = vmatmul.mubr.bf16.gmra.mrb[0].mxu0 %v2097
        %v4472 = vpop.f32.mrb[0].mxu0
        %v4473 = vadd.f32 %v3463, %v4472
        %v4474 = vpop.f32.mrb[0].mxu0
        %v4475 = vadd.f32 %v3465, %v4474
        %v4476 = vpop.f32.mrb[0].mxu0
        %v4477 = vpop.f32.mrb[0].mxu0
        %4478 = vdwg.mxu0
        %4479 = vmatprep.subr.bf16.mxu0 %v4036
        %4480 = vmatpush1.bf16.msra.mxu0 %v4035
        %4481 = vmatprep.subr.bf16.mxu0 %v4044
        %4482 = vmatpush1.bf16.msra.mxu0 %v4043
        %4483 = vmatprep.subr.bf16.mxu0 0
        %4484 = vmatpush1.bf16.msra.mxu0 0
        %4485 = vmatprep.subr.bf16.mxu0 0
        %4486 = vmatpush1.bf16.msra.mxu0 0
        %4487 = vmatprep.subr.bf16.mxu0 0
        %4488 = vmatpush1.bf16.msra.mxu0 0
        %4489 = vmatprep.subr.bf16.mxu0 0
        %4490 = vmatpush1.bf16.msra.mxu0 0
        %4491 = vmatprep.subr.bf16.mxu0 0
        %4492 = vmatpush1.bf16.msra.mxu0 0
        %4493 = vmatprep.subr.bf16.mxu0 0
        %4494 = vmatpush1.bf16.msra.mxu0 0
        %4495 = vmatprep.subr.bf16.mxu0 0
        %4496 = vmatpush1.bf16.msra.mxu0 0
        %4497 = vmatprep.subr.bf16.mxu0 0
        %4498 = vmatpush1.bf16.msra.mxu0 0
        %4499 = vmatprep.subr.bf16.mxu0 0
        %4500 = vmatpush1.bf16.msra.mxu0 0
        %4501 = vmatprep.subr.bf16.mxu0 0
        %4502 = vmatpush1.bf16.msra.mxu0 0
        %4503 = vmatprep.subr.bf16.mxu0 0
        %4504 = vmatpush1.bf16.msra.mxu0 0
        %4505 = vmatprep.subr.bf16.mxu0 0
        %4506 = vmatpush1.bf16.msra.mxu0 0
        %4507 = vmatprep.subr.bf16.mxu0 0
        %4508 = vmatpush1.bf16.msra.mxu0 0
        %4509 = vmatprep.subr.bf16.mxu0 0
        %4510 = vmatpush1.bf16.msra.mxu0 0
        %4511 = vmatprep.mubr.bf16.mxu0 0
        %4512 = vmatmul.mubr.bf16.gmra.mrb[0].mxu0 %v4190
        %v4513 = vpop.f32.mrb[0].mxu0
        %v4514 = vadd.f32 %v4473, %v4513
        %v4515 = vpop.f32.mrb[0].mxu0
        %v4516 = vadd.f32 %v4475, %v4515
        %v4517 = vpop.f32.mrb[0].mxu0
        %v4518 = vpop.f32.mrb[0].mxu0
        %4519 = vdwg.mxu0
        %v4520 = vld [vmem:[#allocation3] sm:$0xfc]
        %v4521 = vld [vmem:[#allocation3 + $0x8] sm:$0xfc]
        %v4522 = vld [vmem:[#allocation3 + $0x10] sm:$0xfc]
        %v4523 = vld [vmem:[#allocation3 + $0x18] sm:$0x1]
        %v4524 = vld [vmem:[#allocation3 + $0x20] sm:$0x1]
        %v4525 = vld [vmem:[#allocation3 + $0x28] sm:$0x1]
        %v4526 = vpack.c.bf16 %v4523, %v4520
        %v4527 = vpack.c.bf16 %v4524, %v4521
        %v4528 = vpack.c.bf16 %v4525, %v4522
        %s4529 = scalar_lea.vmem [#allocation9], 2304
        %v4530 = vld [vmem:[%s4529] sm:$0xff]
        %v4531 = vld [vmem:[%s4529 + $0x8] sm:$0xff]
        %v4532 = vld [vmem:[%s4529 + $0x10] sm:$0xff]
        %v4533 = vld [vmem:[%s4529 + $0x18] sm:$0xff]
        %v4534 = vld [vmem:[%s4529 + $0x20] sm:$0xff]
        %v4535 = vld [vmem:[%s4529 + $0x28] sm:$0xff]
        %v4536 = vld [vmem:[%s4529 + $0x30] sm:$0xff]
        %v4537 = vld [vmem:[%s4529 + $0x38] sm:$0xff]
        %v4538 = vld [vmem:[%s4529 + $0x40] sm:$0xff]
        %v4539 = vld [vmem:[%s4529 + $0x48] sm:$0xff]
        %v4540 = vld [vmem:[%s4529 + $0x50] sm:$0xff]
        %v4541 = vld [vmem:[%s4529 + $0x58] sm:$0xff]
        %v4542 = vld [vmem:[%s4529 + $0x60] sm:$0xff]
        %v4543 = vld [vmem:[%s4529 + $0x68] sm:$0xff]
        %v4544 = vld [vmem:[%s4529 + $0x70] sm:$0xff]
        %v4545 = vld [vmem:[%s4529 + $0x78] sm:$0xff]
        %v4546 = vld [vmem:[%s4529 + $0x80] sm:$0xff]
        %v4547 = vld [vmem:[%s4529 + $0x88] sm:$0xff]
        %v4548 = vld [vmem:[%s4529 + $0x90] sm:$0xff]
        %v4549 = vld [vmem:[%s4529 + $0x98] sm:$0xff]
        %v4550 = vld [vmem:[%s4529 + $0xa0] sm:$0xff]
        %v4551 = vld [vmem:[%s4529 + $0xa8] sm:$0xff]
        %v4552 = vld [vmem:[%s4529 + $0xb0] sm:$0xff]
        %v4553 = vld [vmem:[%s4529 + $0xb8] sm:$0xff]
        %v4554 = vld [vmem:[%s4529 + $0xc0] sm:$0xff]
        %v4555 = vld [vmem:[%s4529 + $0xc8] sm:$0xff]
        %v4556 = vld [vmem:[%s4529 + $0xd0] sm:$0xff]
        %v4557 = vld [vmem:[%s4529 + $0xd8] sm:$0xff]
        %v4558 = vld [vmem:[%s4529 + $0xe0] sm:$0xff]
        %v4559 = vld [vmem:[%s4529 + $0xe8] sm:$0xff]
        %v4560 = vld [vmem:[%s4529 + $0xf0] sm:$0xff]
        %v4561 = vld [vmem:[%s4529 + $0xf8] sm:$0xff]
        %v4562 = vld [vmem:[%s4529 + $0x100] sm:$0xff]
        %v4563 = vld [vmem:[%s4529 + $0x108] sm:$0xff]
        %v4564 = vld [vmem:[%s4529 + $0x110] sm:$0xff]
        %v4565 = vld [vmem:[%s4529 + $0x118] sm:$0xff]
        %v4566 = vld [vmem:[%s4529 + $0x120] sm:$0xff]
        %v4567 = vld [vmem:[%s4529 + $0x128] sm:$0xff]
        %v4568 = vld [vmem:[%s4529 + $0x130] sm:$0xff]
        %v4569 = vld [vmem:[%s4529 + $0x138] sm:$0xff]
        %v4570 = vld [vmem:[%s4529 + $0x140] sm:$0xff]
        %v4571 = vld [vmem:[%s4529 + $0x148] sm:$0xff]
        %v4572 = vld [vmem:[%s4529 + $0x150] sm:$0xff]
        %v4573 = vld [vmem:[%s4529 + $0x158] sm:$0xff]
        %v4574 = vld [vmem:[%s4529 + $0x160] sm:$0xff]
        %v4575 = vld [vmem:[%s4529 + $0x168] sm:$0xff]
        %v4576 = vld [vmem:[%s4529 + $0x170] sm:$0xff]
        %v4577 = vld [vmem:[%s4529 + $0x178] sm:$0xff]
        %v4578 = vld [vmem:[%s4529 + $0x180] sm:$0xff]
        %v4579 = vld [vmem:[%s4529 + $0x188] sm:$0xff]
        %v4580 = vld [vmem:[%s4529 + $0x190] sm:$0xff]
        %v4581 = vld [vmem:[%s4529 + $0x198] sm:$0xff]
        %v4582 = vld [vmem:[%s4529 + $0x1a0] sm:$0xff]
        %v4583 = vld [vmem:[%s4529 + $0x1a8] sm:$0xff]
        %v4584 = vld [vmem:[%s4529 + $0x1b0] sm:$0xff]
        %v4585 = vld [vmem:[%s4529 + $0x1b8] sm:$0xff]
        %v4586 = vld [vmem:[%s4529 + $0x1c0] sm:$0xff]
        %v4587 = vld [vmem:[%s4529 + $0x1c8] sm:$0xff]
        %v4588 = vld [vmem:[%s4529 + $0x1d0] sm:$0xff]
        %v4589 = vld [vmem:[%s4529 + $0x1d8] sm:$0xff]
        %v4590 = vld [vmem:[%s4529 + $0x1e0] sm:$0xff]
        %v4591 = vld [vmem:[%s4529 + $0x1e8] sm:$0xff]
        %v4592 = vld [vmem:[%s4529 + $0x1f0] sm:$0xff]
        %v4593 = vld [vmem:[%s4529 + $0x1f8] sm:$0xff]
        %v4594 = vld [vmem:[%s4529 + $0x200] sm:$0xff]
        %v4595 = vld [vmem:[%s4529 + $0x208] sm:$0xff]
        %v4596 = vld [vmem:[%s4529 + $0x210] sm:$0xff]
        %v4597 = vld [vmem:[%s4529 + $0x218] sm:$0xff]
        %v4598 = vld [vmem:[%s4529 + $0x220] sm:$0xff]
        %v4599 = vld [vmem:[%s4529 + $0x228] sm:$0xff]
        %v4600 = vld [vmem:[%s4529 + $0x230] sm:$0xff]
        %v4601 = vld [vmem:[%s4529 + $0x238] sm:$0xff]
        %v4602 = vld [vmem:[%s4529 + $0x240] sm:$0xff]
        %v4603 = vld [vmem:[%s4529 + $0x248] sm:$0xff]
        %v4604 = vld [vmem:[%s4529 + $0x250] sm:$0xff]
        %v4605 = vld [vmem:[%s4529 + $0x258] sm:$0xff]
        %v4606 = vld [vmem:[%s4529 + $0x260] sm:$0xff]
        %v4607 = vld [vmem:[%s4529 + $0x268] sm:$0xff]
        %v4608 = vld [vmem:[%s4529 + $0x270] sm:$0xff]
        %v4609 = vld [vmem:[%s4529 + $0x278] sm:$0xff]
        %v4610 = vld [vmem:[%s4529 + $0x280] sm:$0xff]
        %v4611 = vld [vmem:[%s4529 + $0x288] sm:$0xff]
        %v4612 = vld [vmem:[%s4529 + $0x290] sm:$0xff]
        %v4613 = vld [vmem:[%s4529 + $0x298] sm:$0xff]
        %v4614 = vld [vmem:[%s4529 + $0x2a0] sm:$0xff]
        %v4615 = vld [vmem:[%s4529 + $0x2a8] sm:$0xff]
        %v4616 = vld [vmem:[%s4529 + $0x2b0] sm:$0xff]
        %v4617 = vld [vmem:[%s4529 + $0x2b8] sm:$0xff]
        %v4618 = vld [vmem:[%s4529 + $0x2c0] sm:$0xff]
        %v4619 = vld [vmem:[%s4529 + $0x2c8] sm:$0xff]
        %v4620 = vld [vmem:[%s4529 + $0x2d0] sm:$0xff]
        %v4621 = vld [vmem:[%s4529 + $0x2d8] sm:$0xff]
        %v4622 = vld [vmem:[%s4529 + $0x2e0] sm:$0xff]
        %v4623 = vld [vmem:[%s4529 + $0x2e8] sm:$0xff]
        %v4624 = vld [vmem:[%s4529 + $0x2f0] sm:$0xff]
        %v4625 = vld [vmem:[%s4529 + $0x2f8] sm:$0xff]
        %v4626 = vld [vmem:[%s4529 + $0x300] sm:$0xff]
        %v4627 = vld [vmem:[%s4529 + $0x308] sm:$0xff]
        %v4628 = vld [vmem:[%s4529 + $0x310] sm:$0xff]
        %v4629 = vld [vmem:[%s4529 + $0x318] sm:$0xff]
        %v4630 = vld [vmem:[%s4529 + $0x320] sm:$0xff]
        %v4631 = vld [vmem:[%s4529 + $0x328] sm:$0xff]
        %v4632 = vld [vmem:[%s4529 + $0x330] sm:$0xff]
        %v4633 = vld [vmem:[%s4529 + $0x338] sm:$0xff]
        %v4634 = vld [vmem:[%s4529 + $0x340] sm:$0xff]
        %v4635 = vld [vmem:[%s4529 + $0x348] sm:$0xff]
        %v4636 = vld [vmem:[%s4529 + $0x350] sm:$0xff]
        %v4637 = vld [vmem:[%s4529 + $0x358] sm:$0xff]
        %v4638 = vld [vmem:[%s4529 + $0x360] sm:$0xff]
        %v4639 = vld [vmem:[%s4529 + $0x368] sm:$0xff]
        %v4640 = vld [vmem:[%s4529 + $0x370] sm:$0xff]
        %v4641 = vld [vmem:[%s4529 + $0x378] sm:$0xff]
        %v4642 = vld [vmem:[%s4529 + $0x380] sm:$0xff]
        %v4643 = vld [vmem:[%s4529 + $0x388] sm:$0xff]
        %v4644 = vld [vmem:[%s4529 + $0x390] sm:$0xff]
        %v4645 = vld [vmem:[%s4529 + $0x398] sm:$0xff]
        %v4646 = vld [vmem:[%s4529 + $0x3a0] sm:$0xff]
        %v4647 = vld [vmem:[%s4529 + $0x3a8] sm:$0xff]
        %v4648 = vld [vmem:[%s4529 + $0x3b0] sm:$0xff]
        %v4649 = vld [vmem:[%s4529 + $0x3b8] sm:$0xff]
        %v4650 = vld [vmem:[%s4529 + $0x3c0] sm:$0xff]
        %v4651 = vld [vmem:[%s4529 + $0x3c8] sm:$0xff]
        %v4652 = vld [vmem:[%s4529 + $0x3d0] sm:$0xff]
        %v4653 = vld [vmem:[%s4529 + $0x3d8] sm:$0xff]
        %v4654 = vld [vmem:[%s4529 + $0x3e0] sm:$0xff]
        %v4655 = vld [vmem:[%s4529 + $0x3e8] sm:$0xff]
        %v4656 = vld [vmem:[%s4529 + $0x3f0] sm:$0xff]
        %v4657 = vld [vmem:[%s4529 + $0x3f8] sm:$0xff]
        %v4658 = vld [vmem:[%s4529 + $0x400] sm:$0xff]
        %v4659 = vld [vmem:[%s4529 + $0x408] sm:$0xff]
        %v4660 = vld [vmem:[%s4529 + $0x410] sm:$0xff]
        %v4661 = vld [vmem:[%s4529 + $0x418] sm:$0xff]
        %v4662 = vld [vmem:[%s4529 + $0x420] sm:$0xff]
        %v4663 = vld [vmem:[%s4529 + $0x428] sm:$0xff]
        %v4664 = vld [vmem:[%s4529 + $0x430] sm:$0xff]
        %v4665 = vld [vmem:[%s4529 + $0x438] sm:$0xff]
        %v4666 = vld [vmem:[%s4529 + $0x440] sm:$0xff]
        %v4667 = vld [vmem:[%s4529 + $0x448] sm:$0xff]
        %v4668 = vld [vmem:[%s4529 + $0x450] sm:$0xff]
        %v4669 = vld [vmem:[%s4529 + $0x458] sm:$0xff]
        %v4670 = vld [vmem:[%s4529 + $0x460] sm:$0xff]
        %v4671 = vld [vmem:[%s4529 + $0x468] sm:$0xff]
        %v4672 = vld [vmem:[%s4529 + $0x470] sm:$0xff]
        %v4673 = vld [vmem:[%s4529 + $0x478] sm:$0xff]
        %v4677 = vrot.slane %v4526, 1
        %v4678 = vrot.slane %v4527, 1
        %v4679 = vrot.slane %v4528, 1
        %v4826 = vunpack.c.l.b16 %v4530
        %v4827 = vunpack.c.h.b16 %v4530
        %v4828 = vunpack.c.l.b16 %v4531
        %v4829 = vunpack.c.h.b16 %v4531
        %v4830 = vunpack.c.l.b16 %v4532
        %v4831 = vunpack.c.h.b16 %v4532
        %v4832 = vunpack.c.l.b16 %v4533
        %v4833 = vunpack.c.h.b16 %v4533
        %v4834 = vunpack.c.l.b16 %v4534
        %v4835 = vunpack.c.h.b16 %v4534
        %v4836 = vunpack.c.l.b16 %v4535
        %v4837 = vunpack.c.h.b16 %v4535
        %v4838 = vunpack.c.l.b16 %v4536
        %v4839 = vunpack.c.h.b16 %v4536
        %v4840 = vunpack.c.l.b16 %v4537
        %v4841 = vunpack.c.h.b16 %v4537
        %v4842 = vunpack.c.l.b16 %v4538
        %v4843 = vunpack.c.h.b16 %v4538
        %v4844 = vunpack.c.l.b16 %v4539
        %v4845 = vunpack.c.h.b16 %v4539
        %v4846 = vunpack.c.l.b16 %v4540
        %v4847 = vunpack.c.h.b16 %v4540
        %v4848 = vunpack.c.l.b16 %v4541
        %v4849 = vunpack.c.h.b16 %v4541
        %v4850 = vunpack.c.l.b16 %v4542
        %v4851 = vunpack.c.h.b16 %v4542
        %v4852 = vunpack.c.l.b16 %v4543
        %v4853 = vunpack.c.h.b16 %v4543
        %v4854 = vunpack.c.l.b16 %v4544
        %v4855 = vunpack.c.h.b16 %v4544
        %v4856 = vunpack.c.l.b16 %v4545
        %v4857 = vunpack.c.h.b16 %v4545
        %v4858 = vunpack.c.l.b16 %v4546
        %v4859 = vunpack.c.h.b16 %v4546
        %v4860 = vunpack.c.l.b16 %v4547
        %v4861 = vunpack.c.h.b16 %v4547
        %v4862 = vunpack.c.l.b16 %v4548
        %v4863 = vunpack.c.h.b16 %v4548
        %v4864 = vunpack.c.l.b16 %v4549
        %v4865 = vunpack.c.h.b16 %v4549
        %v4866 = vunpack.c.l.b16 %v4550
        %v4867 = vunpack.c.h.b16 %v4550
        %v4868 = vunpack.c.l.b16 %v4551
        %v4869 = vunpack.c.h.b16 %v4551
        %v4870 = vunpack.c.l.b16 %v4552
        %v4871 = vunpack.c.h.b16 %v4552
        %v4872 = vunpack.c.l.b16 %v4553
        %v4873 = vunpack.c.h.b16 %v4553
        %v4874 = vunpack.c.l.b16 %v4554
        %v4875 = vunpack.c.h.b16 %v4554
        %v4876 = vunpack.c.l.b16 %v4555
        %v4877 = vunpack.c.h.b16 %v4555
        %v4878 = vunpack.c.l.b16 %v4556
        %v4879 = vunpack.c.h.b16 %v4556
        %v4880 = vunpack.c.l.b16 %v4557
        %v4881 = vunpack.c.h.b16 %v4557
        %v4882 = vunpack.c.l.b16 %v4558
        %v4883 = vunpack.c.h.b16 %v4558
        %v4884 = vunpack.c.l.b16 %v4559
        %v4885 = vunpack.c.h.b16 %v4559
        %v4886 = vunpack.c.l.b16 %v4560
        %v4887 = vunpack.c.h.b16 %v4560
        %v4888 = vunpack.c.l.b16 %v4561
        %v4889 = vunpack.c.h.b16 %v4561
        %v4890 = vunpack.c.l.b16 %v4562
        %v4891 = vunpack.c.h.b16 %v4562
        %v4892 = vunpack.c.l.b16 %v4563
        %v4893 = vunpack.c.h.b16 %v4563
        %v4894 = vunpack.c.l.b16 %v4564
        %v4895 = vunpack.c.h.b16 %v4564
        %v4896 = vunpack.c.l.b16 %v4565
        %v4897 = vunpack.c.h.b16 %v4565
        %v4898 = vunpack.c.l.b16 %v4566
        %v4899 = vunpack.c.h.b16 %v4566
        %v4900 = vunpack.c.l.b16 %v4567
        %v4901 = vunpack.c.h.b16 %v4567
        %v4902 = vunpack.c.l.b16 %v4568
        %v4903 = vunpack.c.h.b16 %v4568
        %v4904 = vunpack.c.l.b16 %v4569
        %v4905 = vunpack.c.h.b16 %v4569
        %v4906 = vunpack.c.l.b16 %v4570
        %v4907 = vunpack.c.h.b16 %v4570
        %v4908 = vunpack.c.l.b16 %v4571
        %v4909 = vunpack.c.h.b16 %v4571
        %v4910 = vunpack.c.l.b16 %v4572
        %v4911 = vunpack.c.h.b16 %v4572
        %v4912 = vunpack.c.l.b16 %v4573
        %v4913 = vunpack.c.h.b16 %v4573
        %v4914 = vunpack.c.l.b16 %v4574
        %v4915 = vunpack.c.h.b16 %v4574
        %v4916 = vunpack.c.l.b16 %v4575
        %v4917 = vunpack.c.h.b16 %v4575
        %v4918 = vunpack.c.l.b16 %v4576
        %v4919 = vunpack.c.h.b16 %v4576
        %v4920 = vunpack.c.l.b16 %v4577
        %v4921 = vunpack.c.h.b16 %v4577
        %v4922 = vunpack.c.l.b16 %v4578
        %v4923 = vunpack.c.h.b16 %v4578
        %v4924 = vunpack.c.l.b16 %v4579
        %v4925 = vunpack.c.h.b16 %v4579
        %v4926 = vunpack.c.l.b16 %v4580
        %v4927 = vunpack.c.h.b16 %v4580
        %v4928 = vunpack.c.l.b16 %v4581
        %v4929 = vunpack.c.h.b16 %v4581
        %v4930 = vunpack.c.l.b16 %v4582
        %v4931 = vunpack.c.h.b16 %v4582
        %v4932 = vunpack.c.l.b16 %v4583
        %v4933 = vunpack.c.h.b16 %v4583
        %v4934 = vunpack.c.l.b16 %v4584
        %v4935 = vunpack.c.h.b16 %v4584
        %v4936 = vunpack.c.l.b16 %v4585
        %v4937 = vunpack.c.h.b16 %v4585
        %v4938 = vunpack.c.l.b16 %v4586
        %v4939 = vunpack.c.h.b16 %v4586
        %v4940 = vunpack.c.l.b16 %v4587
        %v4941 = vunpack.c.h.b16 %v4587
        %v4942 = vunpack.c.l.b16 %v4588
        %v4943 = vunpack.c.h.b16 %v4588
        %v4944 = vunpack.c.l.b16 %v4589
        %v4945 = vunpack.c.h.b16 %v4589
        %v4946 = vunpack.c.l.b16 %v4590
        %v4947 = vunpack.c.h.b16 %v4590
        %v4948 = vunpack.c.l.b16 %v4591
        %v4949 = vunpack.c.h.b16 %v4591
        %v4950 = vunpack.c.l.b16 %v4592
        %v4951 = vunpack.c.h.b16 %v4592
        %v4952 = vunpack.c.l.b16 %v4593
        %v4953 = vunpack.c.h.b16 %v4593
        %v4954 = vunpack.c.l.b16 %v4594
        %v4955 = vunpack.c.h.b16 %v4594
        %v4956 = vunpack.c.l.b16 %v4595
        %v4957 = vunpack.c.h.b16 %v4595
        %v4958 = vunpack.c.l.b16 %v4596
        %v4959 = vunpack.c.h.b16 %v4596
        %v4960 = vunpack.c.l.b16 %v4597
        %v4961 = vunpack.c.h.b16 %v4597
        %v4962 = vunpack.c.l.b16 %v4598
        %v4963 = vunpack.c.h.b16 %v4598
        %v4964 = vunpack.c.l.b16 %v4599
        %v4965 = vunpack.c.h.b16 %v4599
        %v4966 = vunpack.c.l.b16 %v4600
        %v4967 = vunpack.c.h.b16 %v4600
        %v4968 = vunpack.c.l.b16 %v4601
        %v4969 = vunpack.c.h.b16 %v4601
        %v4970 = vunpack.c.l.b16 %v4602
        %v4971 = vunpack.c.h.b16 %v4602
        %v4972 = vunpack.c.l.b16 %v4603
        %v4973 = vunpack.c.h.b16 %v4603
        %v4974 = vunpack.c.l.b16 %v4604
        %v4975 = vunpack.c.h.b16 %v4604
        %v4976 = vunpack.c.l.b16 %v4605
        %v4977 = vunpack.c.h.b16 %v4605
        %v4978 = vunpack.c.l.b16 %v4606
        %v4979 = vunpack.c.h.b16 %v4606
        %v4980 = vunpack.c.l.b16 %v4607
        %v4981 = vunpack.c.h.b16 %v4607
        %v4982 = vunpack.c.l.b16 %v4608
        %v4983 = vunpack.c.h.b16 %v4608
        %v4984 = vunpack.c.l.b16 %v4609
        %v4985 = vunpack.c.h.b16 %v4609
        %v4986 = vunpack.c.l.b16 %v4610
        %v4987 = vunpack.c.h.b16 %v4610
        %v4988 = vunpack.c.l.b16 %v4611
        %v4989 = vunpack.c.h.b16 %v4611
        %v4990 = vunpack.c.l.b16 %v4612
        %v4991 = vunpack.c.h.b16 %v4612
        %v4992 = vunpack.c.l.b16 %v4613
        %v4993 = vunpack.c.h.b16 %v4613
        %v4994 = vunpack.c.l.b16 %v4614
        %v4995 = vunpack.c.h.b16 %v4614
        %v4996 = vunpack.c.l.b16 %v4615
        %v4997 = vunpack.c.h.b16 %v4615
        %v4998 = vunpack.c.l.b16 %v4616
        %v4999 = vunpack.c.h.b16 %v4616
        %v5000 = vunpack.c.l.b16 %v4617
        %v5001 = vunpack.c.h.b16 %v4617
        %v5002 = vunpack.c.l.b16 %v4618
        %v5003 = vunpack.c.h.b16 %v4618
        %v5004 = vunpack.c.l.b16 %v4619
        %v5005 = vunpack.c.h.b16 %v4619
        %v5006 = vunpack.c.l.b16 %v4620
        %v5007 = vunpack.c.h.b16 %v4620
        %v5008 = vunpack.c.l.b16 %v4621
        %v5009 = vunpack.c.h.b16 %v4621
        %v5010 = vunpack.c.l.b16 %v4622
        %v5011 = vunpack.c.h.b16 %v4622
        %v5012 = vunpack.c.l.b16 %v4623
        %v5013 = vunpack.c.h.b16 %v4623
        %v5014 = vunpack.c.l.b16 %v4624
        %v5015 = vunpack.c.h.b16 %v4624
        %v5016 = vunpack.c.l.b16 %v4625
        %v5017 = vunpack.c.h.b16 %v4625
        %v5018 = vunpack.c.l.b16 %v4626
        %v5019 = vunpack.c.h.b16 %v4626
        %v5020 = vunpack.c.l.b16 %v4627
        %v5021 = vunpack.c.h.b16 %v4627
        %v5022 = vunpack.c.l.b16 %v4628
        %v5023 = vunpack.c.h.b16 %v4628
        %v5024 = vunpack.c.l.b16 %v4629
        %v5025 = vunpack.c.h.b16 %v4629
        %v5026 = vunpack.c.l.b16 %v4630
        %v5027 = vunpack.c.h.b16 %v4630
        %v5028 = vunpack.c.l.b16 %v4631
        %v5029 = vunpack.c.h.b16 %v4631
        %v5030 = vunpack.c.l.b16 %v4632
        %v5031 = vunpack.c.h.b16 %v4632
        %v5032 = vunpack.c.l.b16 %v4633
        %v5033 = vunpack.c.h.b16 %v4633
        %v5034 = vunpack.c.l.b16 %v4634
        %v5035 = vunpack.c.h.b16 %v4634
        %v5036 = vunpack.c.l.b16 %v4635
        %v5037 = vunpack.c.h.b16 %v4635
        %v5038 = vunpack.c.l.b16 %v4636
        %v5039 = vunpack.c.h.b16 %v4636
        %v5040 = vunpack.c.l.b16 %v4637
        %v5041 = vunpack.c.h.b16 %v4637
        %v5042 = vunpack.c.l.b16 %v4638
        %v5043 = vunpack.c.h.b16 %v4638
        %v5044 = vunpack.c.l.b16 %v4639
        %v5045 = vunpack.c.h.b16 %v4639
        %v5046 = vunpack.c.l.b16 %v4640
        %v5047 = vunpack.c.h.b16 %v4640
        %v5048 = vunpack.c.l.b16 %v4641
        %v5049 = vunpack.c.h.b16 %v4641
        %v5050 = vunpack.c.l.b16 %v4642
        %v5051 = vunpack.c.h.b16 %v4642
        %v5052 = vunpack.c.l.b16 %v4643
        %v5053 = vunpack.c.h.b16 %v4643
        %v5054 = vunpack.c.l.b16 %v4644
        %v5055 = vunpack.c.h.b16 %v4644
        %v5056 = vunpack.c.l.b16 %v4645
        %v5057 = vunpack.c.h.b16 %v4645
        %v5058 = vunpack.c.l.b16 %v4646
        %v5059 = vunpack.c.h.b16 %v4646
        %v5060 = vunpack.c.l.b16 %v4647
        %v5061 = vunpack.c.h.b16 %v4647
        %v5062 = vunpack.c.l.b16 %v4648
        %v5063 = vunpack.c.h.b16 %v4648
        %v5064 = vunpack.c.l.b16 %v4649
        %v5065 = vunpack.c.h.b16 %v4649
        %v5066 = vunpack.c.l.b16 %v4650
        %v5067 = vunpack.c.h.b16 %v4650
        %v5068 = vunpack.c.l.b16 %v4651
        %v5069 = vunpack.c.h.b16 %v4651
        %v5070 = vunpack.c.l.b16 %v4652
        %v5071 = vunpack.c.h.b16 %v4652
        %v5072 = vunpack.c.l.b16 %v4653
        %v5073 = vunpack.c.h.b16 %v4653
        %v5074 = vunpack.c.l.b16 %v4654
        %v5075 = vunpack.c.h.b16 %v4654
        %v5076 = vunpack.c.l.b16 %v4655
        %v5077 = vunpack.c.h.b16 %v4655
        %v5078 = vunpack.c.l.b16 %v4656
        %v5079 = vunpack.c.h.b16 %v4656
        %v5080 = vunpack.c.l.b16 %v4657
        %v5081 = vunpack.c.h.b16 %v4657
        %v5082 = vunpack.c.l.b16 %v4658
        %v5083 = vunpack.c.h.b16 %v4658
        %v5084 = vunpack.c.l.b16 %v4659
        %v5085 = vunpack.c.h.b16 %v4659
        %v5086 = vunpack.c.l.b16 %v4660
        %v5087 = vunpack.c.h.b16 %v4660
        %v5088 = vunpack.c.l.b16 %v4661
        %v5089 = vunpack.c.h.b16 %v4661
        %v5090 = vunpack.c.l.b16 %v4662
        %v5091 = vunpack.c.h.b16 %v4662
        %v5092 = vunpack.c.l.b16 %v4663
        %v5093 = vunpack.c.h.b16 %v4663
        %v5094 = vunpack.c.l.b16 %v4664
        %v5095 = vunpack.c.h.b16 %v4664
        %v5096 = vunpack.c.l.b16 %v4665
        %v5097 = vunpack.c.h.b16 %v4665
        %v5098 = vunpack.c.l.b16 %v4666
        %v5099 = vunpack.c.h.b16 %v4666
        %v5100 = vunpack.c.l.b16 %v4667
        %v5101 = vunpack.c.h.b16 %v4667
        %v5102 = vunpack.c.l.b16 %v4668
        %v5103 = vunpack.c.h.b16 %v4668
        %v5104 = vunpack.c.l.b16 %v4669
        %v5105 = vunpack.c.h.b16 %v4669
        %v5106 = vunpack.c.l.b16 %v4670
        %v5107 = vunpack.c.h.b16 %v4670
        %v5108 = vunpack.c.l.b16 %v4671
        %v5109 = vunpack.c.h.b16 %v4671
        %v5110 = vunpack.c.l.b16 %v4672
        %v5111 = vunpack.c.h.b16 %v4672
        %v5112 = vunpack.c.l.b16 %v4673
        %v5113 = vunpack.c.h.b16 %v4673
        %v5114 = vpack.c.b16 %v4834, %v4826
        %v5115 = vpack.c.b16 %v4835, %v4827
        %v5116 = vpack.c.b16 %v4836, %v4828
        %v5117 = vpack.c.b16 %v4837, %v4829
        %v5118 = vpack.c.b16 %v4838, %v4830
        %v5119 = vpack.c.b16 %v4839, %v4831
        %v5120 = vpack.c.b16 %v4840, %v4832
        %v5121 = vpack.c.b16 %v4841, %v4833
        %v5122 = vpack.c.b16 %v4850, %v4842
        %v5123 = vpack.c.b16 %v4851, %v4843
        %v5124 = vpack.c.b16 %v4852, %v4844
        %v5125 = vpack.c.b16 %v4853, %v4845
        %v5126 = vpack.c.b16 %v4854, %v4846
        %v5127 = vpack.c.b16 %v4855, %v4847
        %v5128 = vpack.c.b16 %v4856, %v4848
        %v5129 = vpack.c.b16 %v4857, %v4849
        %v5130 = vpack.c.b16 %v4866, %v4858
        %v5131 = vpack.c.b16 %v4867, %v4859
        %v5132 = vpack.c.b16 %v4868, %v4860
        %v5133 = vpack.c.b16 %v4869, %v4861
        %v5134 = vpack.c.b16 %v4870, %v4862
        %v5135 = vpack.c.b16 %v4871, %v4863
        %v5136 = vpack.c.b16 %v4872, %v4864
        %v5137 = vpack.c.b16 %v4873, %v4865
        %v5138 = vpack.c.b16 %v4882, %v4874
        %v5139 = vpack.c.b16 %v4883, %v4875
        %v5140 = vpack.c.b16 %v4884, %v4876
        %v5141 = vpack.c.b16 %v4885, %v4877
        %v5142 = vpack.c.b16 %v4886, %v4878
        %v5143 = vpack.c.b16 %v4887, %v4879
        %v5144 = vpack.c.b16 %v4888, %v4880
        %v5145 = vpack.c.b16 %v4889, %v4881
        %v5146 = vpack.c.b16 %v4898, %v4890
        %v5147 = vpack.c.b16 %v4899, %v4891
        %v5148 = vpack.c.b16 %v4900, %v4892
        %v5149 = vpack.c.b16 %v4901, %v4893
        %v5150 = vpack.c.b16 %v4902, %v4894
        %v5151 = vpack.c.b16 %v4903, %v4895
        %v5152 = vpack.c.b16 %v4904, %v4896
        %v5153 = vpack.c.b16 %v4905, %v4897
        %v5154 = vpack.c.b16 %v4914, %v4906
        %v5155 = vpack.c.b16 %v4915, %v4907
        %v5156 = vpack.c.b16 %v4916, %v4908
        %v5157 = vpack.c.b16 %v4917, %v4909
        %v5158 = vpack.c.b16 %v4918, %v4910
        %v5159 = vpack.c.b16 %v4919, %v4911
        %v5160 = vpack.c.b16 %v4920, %v4912
        %v5161 = vpack.c.b16 %v4921, %v4913
        %v5162 = vpack.c.b16 %v4930, %v4922
        %v5163 = vpack.c.b16 %v4931, %v4923
        %v5164 = vpack.c.b16 %v4932, %v4924
        %v5165 = vpack.c.b16 %v4933, %v4925
        %v5166 = vpack.c.b16 %v4934, %v4926
        %v5167 = vpack.c.b16 %v4935, %v4927
        %v5168 = vpack.c.b16 %v4936, %v4928
        %v5169 = vpack.c.b16 %v4937, %v4929
        %v5170 = vpack.c.b16 %v4946, %v4938
        %v5171 = vpack.c.b16 %v4947, %v4939
        %v5172 = vpack.c.b16 %v4948, %v4940
        %v5173 = vpack.c.b16 %v4949, %v4941
        %v5174 = vpack.c.b16 %v4950, %v4942
        %v5175 = vpack.c.b16 %v4951, %v4943
        %v5176 = vpack.c.b16 %v4952, %v4944
        %v5177 = vpack.c.b16 %v4953, %v4945
        %v5178 = vpack.c.b16 %v4962, %v4954
        %v5179 = vpack.c.b16 %v4963, %v4955
        %v5180 = vpack.c.b16 %v4964, %v4956
        %v5181 = vpack.c.b16 %v4965, %v4957
        %v5182 = vpack.c.b16 %v4966, %v4958
        %v5183 = vpack.c.b16 %v4967, %v4959
        %v5184 = vpack.c.b16 %v4968, %v4960
        %v5185 = vpack.c.b16 %v4969, %v4961
        %v5186 = vpack.c.b16 %v4978, %v4970
        %v5187 = vpack.c.b16 %v4979, %v4971
        %v5188 = vpack.c.b16 %v4980, %v4972
        %v5189 = vpack.c.b16 %v4981, %v4973
        %v5190 = vpack.c.b16 %v4982, %v4974
        %v5191 = vpack.c.b16 %v4983, %v4975
        %v5192 = vpack.c.b16 %v4984, %v4976
        %v5193 = vpack.c.b16 %v4985, %v4977
        %v5194 = vpack.c.b16 %v4994, %v4986
        %v5195 = vpack.c.b16 %v4995, %v4987
        %v5196 = vpack.c.b16 %v4996, %v4988
        %v5197 = vpack.c.b16 %v4997, %v4989
        %v5198 = vpack.c.b16 %v4998, %v4990
        %v5199 = vpack.c.b16 %v4999, %v4991
        %v5200 = vpack.c.b16 %v5000, %v4992
        %v5201 = vpack.c.b16 %v5001, %v4993
        %v5202 = vpack.c.b16 %v5010, %v5002
        %v5203 = vpack.c.b16 %v5011, %v5003
        %v5204 = vpack.c.b16 %v5012, %v5004
        %v5205 = vpack.c.b16 %v5013, %v5005
        %v5206 = vpack.c.b16 %v5014, %v5006
        %v5207 = vpack.c.b16 %v5015, %v5007
        %v5208 = vpack.c.b16 %v5016, %v5008
        %v5209 = vpack.c.b16 %v5017, %v5009
        %v5210 = vpack.c.b16 %v5026, %v5018
        %v5211 = vpack.c.b16 %v5027, %v5019
        %v5212 = vpack.c.b16 %v5028, %v5020
        %v5213 = vpack.c.b16 %v5029, %v5021
        %v5214 = vpack.c.b16 %v5030, %v5022
        %v5215 = vpack.c.b16 %v5031, %v5023
        %v5216 = vpack.c.b16 %v5032, %v5024
        %v5217 = vpack.c.b16 %v5033, %v5025
        %v5218 = vpack.c.b16 %v5042, %v5034
        %v5219 = vpack.c.b16 %v5043, %v5035
        %v5220 = vpack.c.b16 %v5044, %v5036
        %v5221 = vpack.c.b16 %v5045, %v5037
        %v5222 = vpack.c.b16 %v5046, %v5038
        %v5223 = vpack.c.b16 %v5047, %v5039
        %v5224 = vpack.c.b16 %v5048, %v5040
        %v5225 = vpack.c.b16 %v5049, %v5041
        %v5226 = vpack.c.b16 %v5058, %v5050
        %v5227 = vpack.c.b16 %v5059, %v5051
        %v5228 = vpack.c.b16 %v5060, %v5052
        %v5229 = vpack.c.b16 %v5061, %v5053
        %v5230 = vpack.c.b16 %v5062, %v5054
        %v5231 = vpack.c.b16 %v5063, %v5055
        %v5232 = vpack.c.b16 %v5064, %v5056
        %v5233 = vpack.c.b16 %v5065, %v5057
        %v5234 = vpack.c.b16 %v5074, %v5066
        %v5235 = vpack.c.b16 %v5075, %v5067
        %v5236 = vpack.c.b16 %v5076, %v5068
        %v5237 = vpack.c.b16 %v5077, %v5069
        %v5238 = vpack.c.b16 %v5078, %v5070
        %v5239 = vpack.c.b16 %v5079, %v5071
        %v5240 = vpack.c.b16 %v5080, %v5072
        %v5241 = vpack.c.b16 %v5081, %v5073
        %v5242 = vpack.c.b16 %v5090, %v5082
        %v5243 = vpack.c.b16 %v5091, %v5083
        %v5244 = vpack.c.b16 %v5092, %v5084
        %v5245 = vpack.c.b16 %v5093, %v5085
        %v5246 = vpack.c.b16 %v5094, %v5086
        %v5247 = vpack.c.b16 %v5095, %v5087
        %v5248 = vpack.c.b16 %v5096, %v5088
        %v5249 = vpack.c.b16 %v5097, %v5089
        %v5250 = vpack.c.b16 %v5106, %v5098
        %v5251 = vpack.c.b16 %v5107, %v5099
        %v5252 = vpack.c.b16 %v5108, %v5100
        %v5253 = vpack.c.b16 %v5109, %v5101
        %v5254 = vpack.c.b16 %v5110, %v5102
        %v5255 = vpack.c.b16 %v5111, %v5103
        %v5256 = vpack.c.b16 %v5112, %v5104
        %v5257 = vpack.c.b16 %v5113, %v5105
        %v5403 = vsel %vm1838, %v4679, 0
        %5405 = vmatprep.subr.bf16.mxu0 %v5115
        %5406 = vmatpush1.bf16.msra.mxu0 %v5114
        %5407 = vmatprep.subr.bf16.mxu0 %v5123
        %5408 = vmatpush1.bf16.msra.mxu0 %v5122
        %5409 = vmatprep.subr.bf16.mxu0 %v5131
        %5410 = vmatpush1.bf16.msra.mxu0 %v5130
        %5411 = vmatprep.subr.bf16.mxu0 %v5139
        %5412 = vmatpush1.bf16.msra.mxu0 %v5138
        %5413 = vmatprep.subr.bf16.mxu0 %v5147
        %5414 = vmatpush1.bf16.msra.mxu0 %v5146
        %5415 = vmatprep.subr.bf16.mxu0 %v5155
        %5416 = vmatpush1.bf16.msra.mxu0 %v5154
        %5417 = vmatprep.subr.bf16.mxu0 %v5163
        %5418 = vmatpush1.bf16.msra.mxu0 %v5162
        %5419 = vmatprep.subr.bf16.mxu0 %v5171
        %5420 = vmatpush1.bf16.msra.mxu0 %v5170
        %5421 = vmatprep.subr.bf16.mxu0 %v5179
        %5422 = vmatpush1.bf16.msra.mxu0 %v5178
        %5423 = vmatprep.subr.bf16.mxu0 %v5187
        %5424 = vmatpush1.bf16.msra.mxu0 %v5186
        %5425 = vmatprep.subr.bf16.mxu0 %v5195
        %5426 = vmatpush1.bf16.msra.mxu0 %v5194
        %5427 = vmatprep.subr.bf16.mxu0 %v5203
        %5428 = vmatpush1.bf16.msra.mxu0 %v5202
        %5429 = vmatprep.subr.bf16.mxu0 %v5211
        %5430 = vmatpush1.bf16.msra.mxu0 %v5210
        %5431 = vmatprep.subr.bf16.mxu0 %v5219
        %5432 = vmatpush1.bf16.msra.mxu0 %v5218
        %5433 = vmatprep.subr.bf16.mxu0 %v5227
        %5434 = vmatpush1.bf16.msra.mxu0 %v5226
        %5435 = vmatprep.subr.bf16.mxu0 %v5235
        %5436 = vmatpush1.bf16.msra.mxu0 %v5234
        %5437 = vmatprep.mubr.bf16.mxu0 %v4678
        %5438 = vmatmul.mubr.bf16.gmra.mrb[0].mxu0 %v4677
        %v5439 = vpop.f32.mrb[0].mxu0
        %v5440 = vadd.f32 0.0, %v5439
        %v5441 = vpop.f32.mrb[0].mxu0
        %v5442 = vadd.f32 0.0, %v5441
        %v5443 = vpop.f32.mrb[0].mxu0
        %v5444 = vpop.f32.mrb[0].mxu0
        %5445 = vdwg.mxu0
        %5446 = vmatprep.subr.bf16.mxu0 %v5243
        %5447 = vmatpush1.bf16.msra.mxu0 %v5242
        %5448 = vmatprep.subr.bf16.mxu0 %v5251
        %5449 = vmatpush1.bf16.msra.mxu0 %v5250
        %5450 = vmatprep.subr.bf16.mxu0 0
        %5451 = vmatpush1.bf16.msra.mxu0 0
        %5452 = vmatprep.subr.bf16.mxu0 0
        %5453 = vmatpush1.bf16.msra.mxu0 0
        %5454 = vmatprep.subr.bf16.mxu0 0
        %5455 = vmatpush1.bf16.msra.mxu0 0
        %5456 = vmatprep.subr.bf16.mxu0 0
        %5457 = vmatpush1.bf16.msra.mxu0 0
        %5458 = vmatprep.subr.bf16.mxu0 0
        %5459 = vmatpush1.bf16.msra.mxu0 0
        %5460 = vmatprep.subr.bf16.mxu0 0
        %5461 = vmatpush1.bf16.msra.mxu0 0
        %5462 = vmatprep.subr.bf16.mxu0 0
        %5463 = vmatpush1.bf16.msra.mxu0 0
        %5464 = vmatprep.subr.bf16.mxu0 0
        %5465 = vmatpush1.bf16.msra.mxu0 0
        %5466 = vmatprep.subr.bf16.mxu0 0
        %5467 = vmatpush1.bf16.msra.mxu0 0
        %5468 = vmatprep.subr.bf16.mxu0 0
        %5469 = vmatpush1.bf16.msra.mxu0 0
        %5470 = vmatprep.subr.bf16.mxu0 0
        %5471 = vmatpush1.bf16.msra.mxu0 0
        %5472 = vmatprep.subr.bf16.mxu0 0
        %5473 = vmatpush1.bf16.msra.mxu0 0
        %5474 = vmatprep.subr.bf16.mxu0 0
        %5475 = vmatpush1.bf16.msra.mxu0 0
        %5476 = vmatprep.subr.bf16.mxu0 0
        %5477 = vmatpush1.bf16.msra.mxu0 0
        %5478 = vmatprep.mubr.bf16.mxu0 0
        %5479 = vmatmul.mubr.bf16.gmra.mrb[0].mxu0 %v5403
        %v5480 = vpop.f32.mrb[0].mxu0
        %v5481 = vadd.f32 %v5440, %v5480
        %v5482 = vpop.f32.mrb[0].mxu0
        %v5483 = vadd.f32 %v5442, %v5482
        %v5484 = vpop.f32.mrb[0].mxu0
        %v5485 = vpop.f32.mrb[0].mxu0
        %5486 = vdwg.mxu0
        %5487 = vmatprep.subr.bf16.mxu0 %v5117
        %5488 = vmatpush1.bf16.msra.mxu0 %v5116
        %5489 = vmatprep.subr.bf16.mxu0 %v5125
        %5490 = vmatpush1.bf16.msra.mxu0 %v5124
        %5491 = vmatprep.subr.bf16.mxu0 %v5133
        %5492 = vmatpush1.bf16.msra.mxu0 %v5132
        %5493 = vmatprep.subr.bf16.mxu0 %v5141
        %5494 = vmatpush1.bf16.msra.mxu0 %v5140
        %5495 = vmatprep.subr.bf16.mxu0 %v5149
        %5496 = vmatpush1.bf16.msra.mxu0 %v5148
        %5497 = vmatprep.subr.bf16.mxu0 %v5157
        %5498 = vmatpush1.bf16.msra.mxu0 %v5156
        %5499 = vmatprep.subr.bf16.mxu0 %v5165
        %5500 = vmatpush1.bf16.msra.mxu0 %v5164
        %5501 = vmatprep.subr.bf16.mxu0 %v5173
        %5502 = vmatpush1.bf16.msra.mxu0 %v5172
        %5503 = vmatprep.subr.bf16.mxu0 %v5181
        %5504 = vmatpush1.bf16.msra.mxu0 %v5180
        %5505 = vmatprep.subr.bf16.mxu0 %v5189
        %5506 = vmatpush1.bf16.msra.mxu0 %v5188
        %5507 = vmatprep.subr.bf16.mxu0 %v5197
        %5508 = vmatpush1.bf16.msra.mxu0 %v5196
        %5509 = vmatprep.subr.bf16.mxu0 %v5205
        %5510 = vmatpush1.bf16.msra.mxu0 %v5204
        %5511 = vmatprep.subr.bf16.mxu0 %v5213
        %5512 = vmatpush1.bf16.msra.mxu0 %v5212
        %5513 = vmatprep.subr.bf16.mxu0 %v5221
        %5514 = vmatpush1.bf16.msra.mxu0 %v5220
        %5515 = vmatprep.subr.bf16.mxu0 %v5229
        %5516 = vmatpush1.bf16.msra.mxu0 %v5228
        %5517 = vmatprep.subr.bf16.mxu0 %v5237
        %5518 = vmatpush1.bf16.msra.mxu0 %v5236
        %5519 = vmatprep.mubr.bf16.mxu0 %v4678
        %5520 = vmatmul.mubr.bf16.gmra.mrb[0].mxu0 %v4677
        %v5521 = vpop.f32.mrb[0].mxu0
        %v5522 = vadd.f32 0.0, %v5521
        %v5523 = vpop.f32.mrb[0].mxu0
        %v5524 = vadd.f32 0.0, %v5523
        %v5525 = vpop.f32.mrb[0].mxu0
        %v5526 = vpop.f32.mrb[0].mxu0
        %5527 = vdwg.mxu0
        %5528 = vmatprep.subr.bf16.mxu0 %v5245
        %5529 = vmatpush1.bf16.msra.mxu0 %v5244
        %5530 = vmatprep.subr.bf16.mxu0 %v5253
        %5531 = vmatpush1.bf16.msra.mxu0 %v5252
        %5532 = vmatprep.subr.bf16.mxu0 0
        %5533 = vmatpush1.bf16.msra.mxu0 0
        %5534 = vmatprep.subr.bf16.mxu0 0
        %5535 = vmatpush1.bf16.msra.mxu0 0
        %5536 = vmatprep.subr.bf16.mxu0 0
        %5537 = vmatpush1.bf16.msra.mxu0 0
        %5538 = vmatprep.subr.bf16.mxu0 0
        %5539 = vmatpush1.bf16.msra.mxu0 0
        %5540 = vmatprep.subr.bf16.mxu0 0
        %5541 = vmatpush1.bf16.msra.mxu0 0
        %5542 = vmatprep.subr.bf16.mxu0 0
        %5543 = vmatpush1.bf16.msra.mxu0 0
        %5544 = vmatprep.subr.bf16.mxu0 0
        %5545 = vmatpush1.bf16.msra.mxu0 0
        %5546 = vmatprep.subr.bf16.mxu0 0
        %5547 = vmatpush1.bf16.msra.mxu0 0
        %5548 = vmatprep.subr.bf16.mxu0 0
        %5549 = vmatpush1.bf16.msra.mxu0 0
        %5550 = vmatprep.subr.bf16.mxu0 0
        %5551 = vmatpush1.bf16.msra.mxu0 0
        %5552 = vmatprep.subr.bf16.mxu0 0
        %5553 = vmatpush1.bf16.msra.mxu0 0
        %5554 = vmatprep.subr.bf16.mxu0 0
        %5555 = vmatpush1.bf16.msra.mxu0 0
        %5556 = vmatprep.subr.bf16.mxu0 0
        %5557 = vmatpush1.bf16.msra.mxu0 0
        %5558 = vmatprep.subr.bf16.mxu0 0
        %5559 = vmatpush1.bf16.msra.mxu0 0
        %5560 = vmatprep.mubr.bf16.mxu0 0
        %5561 = vmatmul.mubr.bf16.gmra.mrb[0].mxu0 %v5403
        %v5562 = vpop.f32.mrb[0].mxu0
        %v5563 = vadd.f32 %v5522, %v5562
        %v5564 = vpop.f32.mrb[0].mxu0
        %v5565 = vadd.f32 %v5524, %v5564
        %v5566 = vpop.f32.mrb[0].mxu0
        %v5567 = vpop.f32.mrb[0].mxu0
        %5568 = vdwg.mxu0
        %5569 = vmatprep.subr.bf16.mxu0 %v5119
        %5570 = vmatpush1.bf16.msra.mxu0 %v5118
        %5571 = vmatprep.subr.bf16.mxu0 %v5127
        %5572 = vmatpush1.bf16.msra.mxu0 %v5126
        %5573 = vmatprep.subr.bf16.mxu0 %v5135
        %5574 = vmatpush1.bf16.msra.mxu0 %v5134
        %5575 = vmatprep.subr.bf16.mxu0 %v5143
        %5576 = vmatpush1.bf16.msra.mxu0 %v5142
        %5577 = vmatprep.subr.bf16.mxu0 %v5151
        %5578 = vmatpush1.bf16.msra.mxu0 %v5150
        %5579 = vmatprep.subr.bf16.mxu0 %v5159
        %5580 = vmatpush1.bf16.msra.mxu0 %v5158
        %5581 = vmatprep.subr.bf16.mxu0 %v5167
        %5582 = vmatpush1.bf16.msra.mxu0 %v5166
        %5583 = vmatprep.subr.bf16.mxu0 %v5175
        %5584 = vmatpush1.bf16.msra.mxu0 %v5174
        %5585 = vmatprep.subr.bf16.mxu0 %v5183
        %5586 = vmatpush1.bf16.msra.mxu0 %v5182
        %5587 = vmatprep.subr.bf16.mxu0 %v5191
        %5588 = vmatpush1.bf16.msra.mxu0 %v5190
        %5589 = vmatprep.subr.bf16.mxu0 %v5199
        %5590 = vmatpush1.bf16.msra.mxu0 %v5198
        %5591 = vmatprep.subr.bf16.mxu0 %v5207
        %5592 = vmatpush1.bf16.msra.mxu0 %v5206
        %5593 = vmatprep.subr.bf16.mxu0 %v5215
        %5594 = vmatpush1.bf16.msra.mxu0 %v5214
        %5595 = vmatprep.subr.bf16.mxu0 %v5223
        %5596 = vmatpush1.bf16.msra.mxu0 %v5222
        %5597 = vmatprep.subr.bf16.mxu0 %v5231
        %5598 = vmatpush1.bf16.msra.mxu0 %v5230
        %5599 = vmatprep.subr.bf16.mxu0 %v5239
        %5600 = vmatpush1.bf16.msra.mxu0 %v5238
        %5601 = vmatprep.mubr.bf16.mxu0 %v4678
        %5602 = vmatmul.mubr.bf16.gmra.mrb[0].mxu0 %v4677
        %v5603 = vpop.f32.mrb[0].mxu0
        %v5604 = vadd.f32 0.0, %v5603
        %v5605 = vpop.f32.mrb[0].mxu0
        %v5606 = vadd.f32 0.0, %v5605
        %v5607 = vpop.f32.mrb[0].mxu0
        %v5608 = vpop.f32.mrb[0].mxu0
        %5609 = vdwg.mxu0
        %5610 = vmatprep.subr.bf16.mxu0 %v5247
        %5611 = vmatpush1.bf16.msra.mxu0 %v5246
        %5612 = vmatprep.subr.bf16.mxu0 %v5255
        %5613 = vmatpush1.bf16.msra.mxu0 %v5254
        %5614 = vmatprep.subr.bf16.mxu0 0
        %5615 = vmatpush1.bf16.msra.mxu0 0
        %5616 = vmatprep.subr.bf16.mxu0 0
        %5617 = vmatpush1.bf16.msra.mxu0 0
        %5618 = vmatprep.subr.bf16.mxu0 0
        %5619 = vmatpush1.bf16.msra.mxu0 0
        %5620 = vmatprep.subr.bf16.mxu0 0
        %5621 = vmatpush1.bf16.msra.mxu0 0
        %5622 = vmatprep.subr.bf16.mxu0 0
        %5623 = vmatpush1.bf16.msra.mxu0 0
        %5624 = vmatprep.subr.bf16.mxu0 0
        %5625 = vmatpush1.bf16.msra.mxu0 0
        %5626 = vmatprep.subr.bf16.mxu0 0
        %5627 = vmatpush1.bf16.msra.mxu0 0
        %5628 = vmatprep.subr.bf16.mxu0 0
        %5629 = vmatpush1.bf16.msra.mxu0 0
        %5630 = vmatprep.subr.bf16.mxu0 0
        %5631 = vmatpush1.bf16.msra.mxu0 0
        %5632 = vmatprep.subr.bf16.mxu0 0
        %5633 = vmatpush1.bf16.msra.mxu0 0
        %5634 = vmatprep.subr.bf16.mxu0 0
        %5635 = vmatpush1.bf16.msra.mxu0 0
        %5636 = vmatprep.subr.bf16.mxu0 0
        %5637 = vmatpush1.bf16.msra.mxu0 0
        %5638 = vmatprep.subr.bf16.mxu0 0
        %5639 = vmatpush1.bf16.msra.mxu0 0
        %5640 = vmatprep.subr.bf16.mxu0 0
        %5641 = vmatpush1.bf16.msra.mxu0 0
        %5642 = vmatprep.mubr.bf16.mxu0 0
        %5643 = vmatmul.mubr.bf16.gmra.mrb[0].mxu0 %v5403
        %v5644 = vpop.f32.mrb[0].mxu0
        %v5645 = vadd.f32 %v5604, %v5644
        %v5646 = vpop.f32.mrb[0].mxu0
        %v5647 = vadd.f32 %v5606, %v5646
        %v5648 = vpop.f32.mrb[0].mxu0
        %v5649 = vpop.f32.mrb[0].mxu0
        %5650 = vdwg.mxu0
        %5651 = vmatprep.subr.bf16.mxu0 %v5121
        %5652 = vmatpush1.bf16.msra.mxu0 %v5120
        %5653 = vmatprep.subr.bf16.mxu0 %v5129
        %5654 = vmatpush1.bf16.msra.mxu0 %v5128
        %5655 = vmatprep.subr.bf16.mxu0 %v5137
        %5656 = vmatpush1.bf16.msra.mxu0 %v5136
        %5657 = vmatprep.subr.bf16.mxu0 %v5145
        %5658 = vmatpush1.bf16.msra.mxu0 %v5144
        %5659 = vmatprep.subr.bf16.mxu0 %v5153
        %5660 = vmatpush1.bf16.msra.mxu0 %v5152
        %5661 = vmatprep.subr.bf16.mxu0 %v5161
        %5662 = vmatpush1.bf16.msra.mxu0 %v5160
        %5663 = vmatprep.subr.bf16.mxu0 %v5169
        %5664 = vmatpush1.bf16.msra.mxu0 %v5168
        %5665 = vmatprep.subr.bf16.mxu0 %v5177
        %5666 = vmatpush1.bf16.msra.mxu0 %v5176
        %5667 = vmatprep.subr.bf16.mxu0 %v5185
        %5668 = vmatpush1.bf16.msra.mxu0 %v5184
        %5669 = vmatprep.subr.bf16.mxu0 %v5193
        %5670 = vmatpush1.bf16.msra.mxu0 %v5192
        %5671 = vmatprep.subr.bf16.mxu0 %v5201
        %5672 = vmatpush1.bf16.msra.mxu0 %v5200
        %5673 = vmatprep.subr.bf16.mxu0 %v5209
        %5674 = vmatpush1.bf16.msra.mxu0 %v5208
        %5675 = vmatprep.subr.bf16.mxu0 %v5217
        %5676 = vmatpush1.bf16.msra.mxu0 %v5216
        %5677 = vmatprep.subr.bf16.mxu0 %v5225
        %5678 = vmatpush1.bf16.msra.mxu0 %v5224
        %5679 = vmatprep.subr.bf16.mxu0 %v5233
        %5680 = vmatpush1.bf16.msra.mxu0 %v5232
        %5681 = vmatprep.subr.bf16.mxu0 %v5241
        %5682 = vmatpush1.bf16.msra.mxu0 %v5240
        %5683 = vmatprep.mubr.bf16.mxu0 %v4678
        %5684 = vmatmul.mubr.bf16.gmra.mrb[0].mxu0 %v4677
        %v5685 = vpop.f32.mrb[0].mxu0
        %v5686 = vadd.f32 0.0, %v5685
        %v5687 = vpop.f32.mrb[0].mxu0
        %v5688 = vadd.f32 0.0, %v5687
        %v5689 = vpop.f32.mrb[0].mxu0
        %v5690 = vpop.f32.mrb[0].mxu0
        %5691 = vdwg.mxu0
        %5692 = vmatprep.subr.bf16.mxu0 %v5249
        %5693 = vmatpush1.bf16.msra.mxu0 %v5248
        %5694 = vmatprep.subr.bf16.mxu0 %v5257
        %5695 = vmatpush1.bf16.msra.mxu0 %v5256
        %5696 = vmatprep.subr.bf16.mxu0 0
        %5697 = vmatpush1.bf16.msra.mxu0 0
        %5698 = vmatprep.subr.bf16.mxu0 0
        %5699 = vmatpush1.bf16.msra.mxu0 0
        %5700 = vmatprep.subr.bf16.mxu0 0
        %5701 = vmatpush1.bf16.msra.mxu0 0
        %5702 = vmatprep.subr.bf16.mxu0 0
        %5703 = vmatpush1.bf16.msra.mxu0 0
        %5704 = vmatprep.subr.bf16.mxu0 0
        %5705 = vmatpush1.bf16.msra.mxu0 0
        %5706 = vmatprep.subr.bf16.mxu0 0
        %5707 = vmatpush1.bf16.msra.mxu0 0
        %5708 = vmatprep.subr.bf16.mxu0 0
        %5709 = vmatpush1.bf16.msra.mxu0 0
        %5710 = vmatprep.subr.bf16.mxu0 0
        %5711 = vmatpush1.bf16.msra.mxu0 0
        %5712 = vmatprep.subr.bf16.mxu0 0
        %5713 = vmatpush1.bf16.msra.mxu0 0
        %5714 = vmatprep.subr.bf16.mxu0 0
        %5715 = vmatpush1.bf16.msra.mxu0 0
        %5716 = vmatprep.subr.bf16.mxu0 0
        %5717 = vmatpush1.bf16.msra.mxu0 0
        %5718 = vmatprep.subr.bf16.mxu0 0
        %5719 = vmatpush1.bf16.msra.mxu0 0
        %5720 = vmatprep.subr.bf16.mxu0 0
        %5721 = vmatpush1.bf16.msra.mxu0 0
        %5722 = vmatprep.subr.bf16.mxu0 0
        %5723 = vmatpush1.bf16.msra.mxu0 0
        %5724 = vmatprep.mubr.bf16.mxu0 0
        %5725 = vmatmul.mubr.bf16.gmra.mrb[0].mxu0 %v5403
        %v5726 = vpop.f32.mrb[0].mxu0
        %v5727 = vadd.f32 %v5686, %v5726
        %v5728 = vpop.f32.mrb[0].mxu0
        %v5729 = vadd.f32 %v5688, %v5728
        %v5730 = vpop.f32.mrb[0].mxu0
        %v5731 = vpop.f32.mrb[0].mxu0
        %5732 = vdwg.mxu0
        %v5733 = vadd.f32 %v4268, %v5481
        %v5734 = vadd.f32 %v4270, %v5483
        %v5735 = vadd.f32 %v4350, %v5563
        %v5736 = vadd.f32 %v4352, %v5565
        %v5737 = vadd.f32 %v4432, %v5645
        %v5738 = vadd.f32 %v4434, %v5647
        %v5739 = vadd.f32 %v4514, %v5727
        %v5740 = vadd.f32 %v4516, %v5729
        %v5741 = vld [vmem:[%s2060] sm:$0x7f]
        %v5742 = vld [vmem:[%s2060 + $0x8] sm:$0x7f]
        %v5743 = vld [vmem:[%s2060 + $0x10] sm:$0x7f]
        %v5744 = vpack.c.bf16 %v5741, %v5741
        %v5745 = vpack.c.bf16 %v5742, %v5742
        %v5746 = vpack.c.bf16 %v5743, %v5743
        %s5747 = scalar_lea.vmem [#allocation9], 3456
        %v5748 = vld [vmem:[%s5747] sm:$0xff]
        %v5749 = vld [vmem:[%s5747 + $0x8] sm:$0xff]
        %v5750 = vld [vmem:[%s5747 + $0x10] sm:$0xff]
        %v5751 = vld [vmem:[%s5747 + $0x18] sm:$0xff]
        %v5752 = vld [vmem:[%s5747 + $0x20] sm:$0xff]
        %v5753 = vld [vmem:[%s5747 + $0x28] sm:$0xff]
        %v5754 = vld [vmem:[%s5747 + $0x30] sm:$0xff]
        %v5755 = vld [vmem:[%s5747 + $0x38] sm:$0xff]
        %v5756 = vld [vmem:[%s5747 + $0x40] sm:$0xff]
        %v5757 = vld [vmem:[%s5747 + $0x48] sm:$0xff]
        %v5758 = vld [vmem:[%s5747 + $0x50] sm:$0xff]
        %v5759 = vld [vmem:[%s5747 + $0x58] sm:$0xff]
        %v5760 = vld [vmem:[%s5747 + $0x60] sm:$0xff]
        %v5761 = vld [vmem:[%s5747 + $0x68] sm:$0xff]
        %v5762 = vld [vmem:[%s5747 + $0x70] sm:$0xff]
        %v5763 = vld [vmem:[%s5747 + $0x78] sm:$0xff]
        %v5764 = vld [vmem:[%s5747 + $0x80] sm:$0xff]
        %v5765 = vld [vmem:[%s5747 + $0x88] sm:$0xff]
        %v5766 = vld [vmem:[%s5747 + $0x90] sm:$0xff]
        %v5767 = vld [vmem:[%s5747 + $0x98] sm:$0xff]
        %v5768 = vld [vmem:[%s5747 + $0xa0] sm:$0xff]
        %v5769 = vld [vmem:[%s5747 + $0xa8] sm:$0xff]
        %v5770 = vld [vmem:[%s5747 + $0xb0] sm:$0xff]
        %v5771 = vld [vmem:[%s5747 + $0xb8] sm:$0xff]
        %v5772 = vld [vmem:[%s5747 + $0xc0] sm:$0xff]
        %v5773 = vld [vmem:[%s5747 + $0xc8] sm:$0xff]
        %v5774 = vld [vmem:[%s5747 + $0xd0] sm:$0xff]
        %v5775 = vld [vmem:[%s5747 + $0xd8] sm:$0xff]
        %v5776 = vld [vmem:[%s5747 + $0xe0] sm:$0xff]
        %v5777 = vld [vmem:[%s5747 + $0xe8] sm:$0xff]
        %v5778 = vld [vmem:[%s5747 + $0xf0] sm:$0xff]
        %v5779 = vld [vmem:[%s5747 + $0xf8] sm:$0xff]
        %v5780 = vld [vmem:[%s5747 + $0x100] sm:$0xff]
        %v5781 = vld [vmem:[%s5747 + $0x108] sm:$0xff]
        %v5782 = vld [vmem:[%s5747 + $0x110] sm:$0xff]
        %v5783 = vld [vmem:[%s5747 + $0x118] sm:$0xff]
        %v5784 = vld [vmem:[%s5747 + $0x120] sm:$0xff]
        %v5785 = vld [vmem:[%s5747 + $0x128] sm:$0xff]
        %v5786 = vld [vmem:[%s5747 + $0x130] sm:$0xff]
        %v5787 = vld [vmem:[%s5747 + $0x138] sm:$0xff]
        %v5788 = vld [vmem:[%s5747 + $0x140] sm:$0xff]
        %v5789 = vld [vmem:[%s5747 + $0x148] sm:$0xff]
        %v5790 = vld [vmem:[%s5747 + $0x150] sm:$0xff]
        %v5791 = vld [vmem:[%s5747 + $0x158] sm:$0xff]
        %v5792 = vld [vmem:[%s5747 + $0x160] sm:$0xff]
        %v5793 = vld [vmem:[%s5747 + $0x168] sm:$0xff]
        %v5794 = vld [vmem:[%s5747 + $0x170] sm:$0xff]
        %v5795 = vld [vmem:[%s5747 + $0x178] sm:$0xff]
        %v5796 = vld [vmem:[%s5747 + $0x180] sm:$0xff]
        %v5797 = vld [vmem:[%s5747 + $0x188] sm:$0xff]
        %v5798 = vld [vmem:[%s5747 + $0x190] sm:$0xff]
        %v5799 = vld [vmem:[%s5747 + $0x198] sm:$0xff]
        %v5800 = vld [vmem:[%s5747 + $0x1a0] sm:$0xff]
        %v5801 = vld [vmem:[%s5747 + $0x1a8] sm:$0xff]
        %v5802 = vld [vmem:[%s5747 + $0x1b0] sm:$0xff]
        %v5803 = vld [vmem:[%s5747 + $0x1b8] sm:$0xff]
        %v5804 = vld [vmem:[%s5747 + $0x1c0] sm:$0xff]
        %v5805 = vld [vmem:[%s5747 + $0x1c8] sm:$0xff]
        %v5806 = vld [vmem:[%s5747 + $0x1d0] sm:$0xff]
        %v5807 = vld [vmem:[%s5747 + $0x1d8] sm:$0xff]
        %v5808 = vld [vmem:[%s5747 + $0x1e0] sm:$0xff]
        %v5809 = vld [vmem:[%s5747 + $0x1e8] sm:$0xff]
        %v5810 = vld [vmem:[%s5747 + $0x1f0] sm:$0xff]
        %v5811 = vld [vmem:[%s5747 + $0x1f8] sm:$0xff]
        %v5812 = vld [vmem:[%s5747 + $0x200] sm:$0xff]
        %v5813 = vld [vmem:[%s5747 + $0x208] sm:$0xff]
        %v5814 = vld [vmem:[%s5747 + $0x210] sm:$0xff]
        %v5815 = vld [vmem:[%s5747 + $0x218] sm:$0xff]
        %v5816 = vld [vmem:[%s5747 + $0x220] sm:$0xff]
        %v5817 = vld [vmem:[%s5747 + $0x228] sm:$0xff]
        %v5818 = vld [vmem:[%s5747 + $0x230] sm:$0xff]
        %v5819 = vld [vmem:[%s5747 + $0x238] sm:$0xff]
        %v5820 = vld [vmem:[%s5747 + $0x240] sm:$0xff]
        %v5821 = vld [vmem:[%s5747 + $0x248] sm:$0xff]
        %v5822 = vld [vmem:[%s5747 + $0x250] sm:$0xff]
        %v5823 = vld [vmem:[%s5747 + $0x258] sm:$0xff]
        %v5824 = vld [vmem:[%s5747 + $0x260] sm:$0xff]
        %v5825 = vld [vmem:[%s5747 + $0x268] sm:$0xff]
        %v5826 = vld [vmem:[%s5747 + $0x270] sm:$0xff]
        %v5827 = vld [vmem:[%s5747 + $0x278] sm:$0xff]
        %v5828 = vld [vmem:[%s5747 + $0x280] sm:$0xff]
        %v5829 = vld [vmem:[%s5747 + $0x288] sm:$0xff]
        %v5830 = vld [vmem:[%s5747 + $0x290] sm:$0xff]
        %v5831 = vld [vmem:[%s5747 + $0x298] sm:$0xff]
        %v5832 = vld [vmem:[%s5747 + $0x2a0] sm:$0xff]
        %v5833 = vld [vmem:[%s5747 + $0x2a8] sm:$0xff]
        %v5834 = vld [vmem:[%s5747 + $0x2b0] sm:$0xff]
        %v5835 = vld [vmem:[%s5747 + $0x2b8] sm:$0xff]
        %v5836 = vld [vmem:[%s5747 + $0x2c0] sm:$0xff]
        %v5837 = vld [vmem:[%s5747 + $0x2c8] sm:$0xff]
        %v5838 = vld [vmem:[%s5747 + $0x2d0] sm:$0xff]
        %v5839 = vld [vmem:[%s5747 + $0x2d8] sm:$0xff]
        %v5840 = vld [vmem:[%s5747 + $0x2e0] sm:$0xff]
        %v5841 = vld [vmem:[%s5747 + $0x2e8] sm:$0xff]
        %v5842 = vld [vmem:[%s5747 + $0x2f0] sm:$0xff]
        %v5843 = vld [vmem:[%s5747 + $0x2f8] sm:$0xff]
        %v5844 = vld [vmem:[%s5747 + $0x300] sm:$0xff]
        %v5845 = vld [vmem:[%s5747 + $0x308] sm:$0xff]
        %v5846 = vld [vmem:[%s5747 + $0x310] sm:$0xff]
        %v5847 = vld [vmem:[%s5747 + $0x318] sm:$0xff]
        %v5848 = vld [vmem:[%s5747 + $0x320] sm:$0xff]
        %v5849 = vld [vmem:[%s5747 + $0x328] sm:$0xff]
        %v5850 = vld [vmem:[%s5747 + $0x330] sm:$0xff]
        %v5851 = vld [vmem:[%s5747 + $0x338] sm:$0xff]
        %v5852 = vld [vmem:[%s5747 + $0x340] sm:$0xff]
        %v5853 = vld [vmem:[%s5747 + $0x348] sm:$0xff]
        %v5854 = vld [vmem:[%s5747 + $0x350] sm:$0xff]
        %v5855 = vld [vmem:[%s5747 + $0x358] sm:$0xff]
        %v5856 = vld [vmem:[%s5747 + $0x360] sm:$0xff]
        %v5857 = vld [vmem:[%s5747 + $0x368] sm:$0xff]
        %v5858 = vld [vmem:[%s5747 + $0x370] sm:$0xff]
        %v5859 = vld [vmem:[%s5747 + $0x378] sm:$0xff]
        %v5860 = vld [vmem:[%s5747 + $0x380] sm:$0xff]
        %v5861 = vld [vmem:[%s5747 + $0x388] sm:$0xff]
        %v5862 = vld [vmem:[%s5747 + $0x390] sm:$0xff]
        %v5863 = vld [vmem:[%s5747 + $0x398] sm:$0xff]
        %v5864 = vld [vmem:[%s5747 + $0x3a0] sm:$0xff]
        %v5865 = vld [vmem:[%s5747 + $0x3a8] sm:$0xff]
        %v5866 = vld [vmem:[%s5747 + $0x3b0] sm:$0xff]
        %v5867 = vld [vmem:[%s5747 + $0x3b8] sm:$0xff]
        %v5868 = vld [vmem:[%s5747 + $0x3c0] sm:$0xff]
        %v5869 = vld [vmem:[%s5747 + $0x3c8] sm:$0xff]
        %v5870 = vld [vmem:[%s5747 + $0x3d0] sm:$0xff]
        %v5871 = vld [vmem:[%s5747 + $0x3d8] sm:$0xff]
        %v5872 = vld [vmem:[%s5747 + $0x3e0] sm:$0xff]
        %v5873 = vld [vmem:[%s5747 + $0x3e8] sm:$0xff]
        %v5874 = vld [vmem:[%s5747 + $0x3f0] sm:$0xff]
        %v5875 = vld [vmem:[%s5747 + $0x3f8] sm:$0xff]
        %v5876 = vld [vmem:[%s5747 + $0x400] sm:$0xff]
        %v5877 = vld [vmem:[%s5747 + $0x408] sm:$0xff]
        %v5878 = vld [vmem:[%s5747 + $0x410] sm:$0xff]
        %v5879 = vld [vmem:[%s5747 + $0x418] sm:$0xff]
        %v5880 = vld [vmem:[%s5747 + $0x420] sm:$0xff]
        %v5881 = vld [vmem:[%s5747 + $0x428] sm:$0xff]
        %v5882 = vld [vmem:[%s5747 + $0x430] sm:$0xff]
        %v5883 = vld [vmem:[%s5747 + $0x438] sm:$0xff]
        %v5884 = vld [vmem:[%s5747 + $0x440] sm:$0xff]
        %v5885 = vld [vmem:[%s5747 + $0x448] sm:$0xff]
        %v5886 = vld [vmem:[%s5747 + $0x450] sm:$0xff]
        %v5887 = vld [vmem:[%s5747 + $0x458] sm:$0xff]
        %v5888 = vld [vmem:[%s5747 + $0x460] sm:$0xff]
        %v5889 = vld [vmem:[%s5747 + $0x468] sm:$0xff]
        %v5890 = vld [vmem:[%s5747 + $0x470] sm:$0xff]
        %v5891 = vld [vmem:[%s5747 + $0x478] sm:$0xff]
        %v6036 = vunpack.c.l.b16 %v5748
        %v6037 = vunpack.c.h.b16 %v5748
        %v6038 = vunpack.c.l.b16 %v5749
        %v6039 = vunpack.c.h.b16 %v5749
        %v6040 = vunpack.c.l.b16 %v5750
        %v6041 = vunpack.c.h.b16 %v5750
        %v6042 = vunpack.c.l.b16 %v5751
        %v6043 = vunpack.c.h.b16 %v5751
        %v6044 = vunpack.c.l.b16 %v5752
        %v6045 = vunpack.c.h.b16 %v5752
        %v6046 = vunpack.c.l.b16 %v5753
        %v6047 = vunpack.c.h.b16 %v5753
        %v6048 = vunpack.c.l.b16 %v5754
        %v6049 = vunpack.c.h.b16 %v5754
        %v6050 = vunpack.c.l.b16 %v5755
        %v6051 = vunpack.c.h.b16 %v5755
        %v6052 = vunpack.c.l.b16 %v5756
        %v6053 = vunpack.c.h.b16 %v5756
        %v6054 = vunpack.c.l.b16 %v5757
        %v6055 = vunpack.c.h.b16 %v5757
        %v6056 = vunpack.c.l.b16 %v5758
        %v6057 = vunpack.c.h.b16 %v5758
        %v6058 = vunpack.c.l.b16 %v5759
        %v6059 = vunpack.c.h.b16 %v5759
        %v6060 = vunpack.c.l.b16 %v5760
        %v6061 = vunpack.c.h.b16 %v5760
        %v6062 = vunpack.c.l.b16 %v5761
        %v6063 = vunpack.c.h.b16 %v5761
        %v6064 = vunpack.c.l.b16 %v5762
        %v6065 = vunpack.c.h.b16 %v5762
        %v6066 = vunpack.c.l.b16 %v5763
        %v6067 = vunpack.c.h.b16 %v5763
        %v6068 = vunpack.c.l.b16 %v5764
        %v6069 = vunpack.c.h.b16 %v5764
        %v6070 = vunpack.c.l.b16 %v5765
        %v6071 = vunpack.c.h.b16 %v5765
        %v6072 = vunpack.c.l.b16 %v5766
        %v6073 = vunpack.c.h.b16 %v5766
        %v6074 = vunpack.c.l.b16 %v5767
        %v6075 = vunpack.c.h.b16 %v5767
        %v6076 = vunpack.c.l.b16 %v5768
        %v6077 = vunpack.c.h.b16 %v5768
        %v6078 = vunpack.c.l.b16 %v5769
        %v6079 = vunpack.c.h.b16 %v5769
        %v6080 = vunpack.c.l.b16 %v5770
        %v6081 = vunpack.c.h.b16 %v5770
        %v6082 = vunpack.c.l.b16 %v5771
        %v6083 = vunpack.c.h.b16 %v5771
        %v6084 = vunpack.c.l.b16 %v5772
        %v6085 = vunpack.c.h.b16 %v5772
        %v6086 = vunpack.c.l.b16 %v5773
        %v6087 = vunpack.c.h.b16 %v5773
        %v6088 = vunpack.c.l.b16 %v5774
        %v6089 = vunpack.c.h.b16 %v5774
        %v6090 = vunpack.c.l.b16 %v5775
        %v6091 = vunpack.c.h.b16 %v5775
        %v6092 = vunpack.c.l.b16 %v5776
        %v6093 = vunpack.c.h.b16 %v5776
        %v6094 = vunpack.c.l.b16 %v5777
        %v6095 = vunpack.c.h.b16 %v5777
        %v6096 = vunpack.c.l.b16 %v5778
        %v6097 = vunpack.c.h.b16 %v5778
        %v6098 = vunpack.c.l.b16 %v5779
        %v6099 = vunpack.c.h.b16 %v5779
        %v6100 = vunpack.c.l.b16 %v5780
        %v6101 = vunpack.c.h.b16 %v5780
        %v6102 = vunpack.c.l.b16 %v5781
        %v6103 = vunpack.c.h.b16 %v5781
        %v6104 = vunpack.c.l.b16 %v5782
        %v6105 = vunpack.c.h.b16 %v5782
        %v6106 = vunpack.c.l.b16 %v5783
        %v6107 = vunpack.c.h.b16 %v5783
        %v6108 = vunpack.c.l.b16 %v5784
        %v6109 = vunpack.c.h.b16 %v5784
        %v6110 = vunpack.c.l.b16 %v5785
        %v6111 = vunpack.c.h.b16 %v5785
        %v6112 = vunpack.c.l.b16 %v5786
        %v6113 = vunpack.c.h.b16 %v5786
        %v6114 = vunpack.c.l.b16 %v5787
        %v6115 = vunpack.c.h.b16 %v5787
        %v6116 = vunpack.c.l.b16 %v5788
        %v6117 = vunpack.c.h.b16 %v5788
        %v6118 = vunpack.c.l.b16 %v5789
        %v6119 = vunpack.c.h.b16 %v5789
        %v6120 = vunpack.c.l.b16 %v5790
        %v6121 = vunpack.c.h.b16 %v5790
        %v6122 = vunpack.c.l.b16 %v5791
        %v6123 = vunpack.c.h.b16 %v5791
        %v6124 = vunpack.c.l.b16 %v5792
        %v6125 = vunpack.c.h.b16 %v5792
        %v6126 = vunpack.c.l.b16 %v5793
        %v6127 = vunpack.c.h.b16 %v5793
        %v6128 = vunpack.c.l.b16 %v5794
        %v6129 = vunpack.c.h.b16 %v5794
        %v6130 = vunpack.c.l.b16 %v5795
        %v6131 = vunpack.c.h.b16 %v5795
        %v6132 = vunpack.c.l.b16 %v5796
        %v6133 = vunpack.c.h.b16 %v5796
        %v6134 = vunpack.c.l.b16 %v5797
        %v6135 = vunpack.c.h.b16 %v5797
        %v6136 = vunpack.c.l.b16 %v5798
        %v6137 = vunpack.c.h.b16 %v5798
        %v6138 = vunpack.c.l.b16 %v5799
        %v6139 = vunpack.c.h.b16 %v5799
        %v6140 = vunpack.c.l.b16 %v5800
        %v6141 = vunpack.c.h.b16 %v5800
        %v6142 = vunpack.c.l.b16 %v5801
        %v6143 = vunpack.c.h.b16 %v5801
        %v6144 = vunpack.c.l.b16 %v5802
        %v6145 = vunpack.c.h.b16 %v5802
        %v6146 = vunpack.c.l.b16 %v5803
        %v6147 = vunpack.c.h.b16 %v5803
        %v6148 = vunpack.c.l.b16 %v5804
        %v6149 = vunpack.c.h.b16 %v5804
        %v6150 = vunpack.c.l.b16 %v5805
        %v6151 = vunpack.c.h.b16 %v5805
        %v6152 = vunpack.c.l.b16 %v5806
        %v6153 = vunpack.c.h.b16 %v5806
        %v6154 = vunpack.c.l.b16 %v5807
        %v6155 = vunpack.c.h.b16 %v5807
        %v6156 = vunpack.c.l.b16 %v5808
        %v6157 = vunpack.c.h.b16 %v5808
        %v6158 = vunpack.c.l.b16 %v5809
        %v6159 = vunpack.c.h.b16 %v5809
        %v6160 = vunpack.c.l.b16 %v5810
        %v6161 = vunpack.c.h.b16 %v5810
        %v6162 = vunpack.c.l.b16 %v5811
        %v6163 = vunpack.c.h.b16 %v5811
        %v6164 = vunpack.c.l.b16 %v5812
        %v6165 = vunpack.c.h.b16 %v5812
        %v6166 = vunpack.c.l.b16 %v5813
        %v6167 = vunpack.c.h.b16 %v5813
        %v6168 = vunpack.c.l.b16 %v5814
        %v6169 = vunpack.c.h.b16 %v5814
        %v6170 = vunpack.c.l.b16 %v5815
        %v6171 = vunpack.c.h.b16 %v5815
        %v6172 = vunpack.c.l.b16 %v5816
        %v6173 = vunpack.c.h.b16 %v5816
        %v6174 = vunpack.c.l.b16 %v5817
        %v6175 = vunpack.c.h.b16 %v5817
        %v6176 = vunpack.c.l.b16 %v5818
        %v6177 = vunpack.c.h.b16 %v5818
        %v6178 = vunpack.c.l.b16 %v5819
        %v6179 = vunpack.c.h.b16 %v5819
        %v6180 = vunpack.c.l.b16 %v5820
        %v6181 = vunpack.c.h.b16 %v5820
        %v6182 = vunpack.c.l.b16 %v5821
        %v6183 = vunpack.c.h.b16 %v5821
        %v6184 = vunpack.c.l.b16 %v5822
        %v6185 = vunpack.c.h.b16 %v5822
        %v6186 = vunpack.c.l.b16 %v5823
        %v6187 = vunpack.c.h.b16 %v5823
        %v6188 = vunpack.c.l.b16 %v5824
        %v6189 = vunpack.c.h.b16 %v5824
        %v6190 = vunpack.c.l.b16 %v5825
        %v6191 = vunpack.c.h.b16 %v5825
        %v6192 = vunpack.c.l.b16 %v5826
        %v6193 = vunpack.c.h.b16 %v5826
        %v6194 = vunpack.c.l.b16 %v5827
        %v6195 = vunpack.c.h.b16 %v5827
        %v6196 = vunpack.c.l.b16 %v5828
        %v6197 = vunpack.c.h.b16 %v5828
        %v6198 = vunpack.c.l.b16 %v5829
        %v6199 = vunpack.c.h.b16 %v5829
        %v6200 = vunpack.c.l.b16 %v5830
        %v6201 = vunpack.c.h.b16 %v5830
        %v6202 = vunpack.c.l.b16 %v5831
        %v6203 = vunpack.c.h.b16 %v5831
        %v6204 = vunpack.c.l.b16 %v5832
        %v6205 = vunpack.c.h.b16 %v5832
        %v6206 = vunpack.c.l.b16 %v5833
        %v6207 = vunpack.c.h.b16 %v5833
        %v6208 = vunpack.c.l.b16 %v5834
        %v6209 = vunpack.c.h.b16 %v5834
        %v6210 = vunpack.c.l.b16 %v5835
        %v6211 = vunpack.c.h.b16 %v5835
        %v6212 = vunpack.c.l.b16 %v5836
        %v6213 = vunpack.c.h.b16 %v5836
        %v6214 = vunpack.c.l.b16 %v5837
        %v6215 = vunpack.c.h.b16 %v5837
        %v6216 = vunpack.c.l.b16 %v5838
        %v6217 = vunpack.c.h.b16 %v5838
        %v6218 = vunpack.c.l.b16 %v5839
        %v6219 = vunpack.c.h.b16 %v5839
        %v6220 = vunpack.c.l.b16 %v5840
        %v6221 = vunpack.c.h.b16 %v5840
        %v6222 = vunpack.c.l.b16 %v5841
        %v6223 = vunpack.c.h.b16 %v5841
        %v6224 = vunpack.c.l.b16 %v5842
        %v6225 = vunpack.c.h.b16 %v5842
        %v6226 = vunpack.c.l.b16 %v5843
        %v6227 = vunpack.c.h.b16 %v5843
        %v6228 = vunpack.c.l.b16 %v5844
        %v6229 = vunpack.c.h.b16 %v5844
        %v6230 = vunpack.c.l.b16 %v5845
        %v6231 = vunpack.c.h.b16 %v5845
        %v6232 = vunpack.c.l.b16 %v5846
        %v6233 = vunpack.c.h.b16 %v5846
        %v6234 = vunpack.c.l.b16 %v5847
        %v6235 = vunpack.c.h.b16 %v5847
        %v6236 = vunpack.c.l.b16 %v5848
        %v6237 = vunpack.c.h.b16 %v5848
        %v6238 = vunpack.c.l.b16 %v5849
        %v6239 = vunpack.c.h.b16 %v5849
        %v6240 = vunpack.c.l.b16 %v5850
        %v6241 = vunpack.c.h.b16 %v5850
        %v6242 = vunpack.c.l.b16 %v5851
        %v6243 = vunpack.c.h.b16 %v5851
        %v6244 = vunpack.c.l.b16 %v5852
        %v6245 = vunpack.c.h.b16 %v5852
        %v6246 = vunpack.c.l.b16 %v5853
        %v6247 = vunpack.c.h.b16 %v5853
        %v6248 = vunpack.c.l.b16 %v5854
        %v6249 = vunpack.c.h.b16 %v5854
        %v6250 = vunpack.c.l.b16 %v5855
        %v6251 = vunpack.c.h.b16 %v5855
        %v6252 = vunpack.c.l.b16 %v5856
        %v6253 = vunpack.c.h.b16 %v5856
        %v6254 = vunpack.c.l.b16 %v5857
        %v6255 = vunpack.c.h.b16 %v5857
        %v6256 = vunpack.c.l.b16 %v5858
        %v6257 = vunpack.c.h.b16 %v5858
        %v6258 = vunpack.c.l.b16 %v5859
        %v6259 = vunpack.c.h.b16 %v5859
        %v6260 = vunpack.c.l.b16 %v5860
        %v6261 = vunpack.c.h.b16 %v5860
        %v6262 = vunpack.c.l.b16 %v5861
        %v6263 = vunpack.c.h.b16 %v5861
        %v6264 = vunpack.c.l.b16 %v5862
        %v6265 = vunpack.c.h.b16 %v5862
        %v6266 = vunpack.c.l.b16 %v5863
        %v6267 = vunpack.c.h.b16 %v5863
        %v6268 = vunpack.c.l.b16 %v5864
        %v6269 = vunpack.c.h.b16 %v5864
        %v6270 = vunpack.c.l.b16 %v5865
        %v6271 = vunpack.c.h.b16 %v5865
        %v6272 = vunpack.c.l.b16 %v5866
        %v6273 = vunpack.c.h.b16 %v5866
        %v6274 = vunpack.c.l.b16 %v5867
        %v6275 = vunpack.c.h.b16 %v5867
        %v6276 = vunpack.c.l.b16 %v5868
        %v6277 = vunpack.c.h.b16 %v5868
        %v6278 = vunpack.c.l.b16 %v5869
        %v6279 = vunpack.c.h.b16 %v5869
        %v6280 = vunpack.c.l.b16 %v5870
        %v6281 = vunpack.c.h.b16 %v5870
        %v6282 = vunpack.c.l.b16 %v5871
        %v6283 = vunpack.c.h.b16 %v5871
        %v6284 = vunpack.c.l.b16 %v5872
        %v6285 = vunpack.c.h.b16 %v5872
        %v6286 = vunpack.c.l.b16 %v5873
        %v6287 = vunpack.c.h.b16 %v5873
        %v6288 = vunpack.c.l.b16 %v5874
        %v6289 = vunpack.c.h.b16 %v5874
        %v6290 = vunpack.c.l.b16 %v5875
        %v6291 = vunpack.c.h.b16 %v5875
        %v6292 = vunpack.c.l.b16 %v5876
        %v6293 = vunpack.c.h.b16 %v5876
        %v6294 = vunpack.c.l.b16 %v5877
        %v6295 = vunpack.c.h.b16 %v5877
        %v6296 = vunpack.c.l.b16 %v5878
        %v6297 = vunpack.c.h.b16 %v5878
        %v6298 = vunpack.c.l.b16 %v5879
        %v6299 = vunpack.c.h.b16 %v5879
        %v6300 = vunpack.c.l.b16 %v5880
        %v6301 = vunpack.c.h.b16 %v5880
        %v6302 = vunpack.c.l.b16 %v5881
        %v6303 = vunpack.c.h.b16 %v5881
        %v6304 = vunpack.c.l.b16 %v5882
        %v6305 = vunpack.c.h.b16 %v5882
        %v6306 = vunpack.c.l.b16 %v5883
        %v6307 = vunpack.c.h.b16 %v5883
        %v6308 = vunpack.c.l.b16 %v5884
        %v6309 = vunpack.c.h.b16 %v5884
        %v6310 = vunpack.c.l.b16 %v5885
        %v6311 = vunpack.c.h.b16 %v5885
        %v6312 = vunpack.c.l.b16 %v5886
        %v6313 = vunpack.c.h.b16 %v5886
        %v6314 = vunpack.c.l.b16 %v5887
        %v6315 = vunpack.c.h.b16 %v5887
        %v6316 = vunpack.c.l.b16 %v5888
        %v6317 = vunpack.c.h.b16 %v5888
        %v6318 = vunpack.c.l.b16 %v5889
        %v6319 = vunpack.c.h.b16 %v5889
        %v6320 = vunpack.c.l.b16 %v5890
        %v6321 = vunpack.c.h.b16 %v5890
        %v6322 = vunpack.c.l.b16 %v5891
        %v6323 = vunpack.c.h.b16 %v5891
        %v6324 = vpack.c.b16 %v6044, %v6036
        %v6325 = vpack.c.b16 %v6045, %v6037
        %v6326 = vpack.c.b16 %v6046, %v6038
        %v6327 = vpack.c.b16 %v6047, %v6039
        %v6328 = vpack.c.b16 %v6048, %v6040
        %v6329 = vpack.c.b16 %v6049, %v6041
        %v6330 = vpack.c.b16 %v6050, %v6042
        %v6331 = vpack.c.b16 %v6051, %v6043
        %v6332 = vpack.c.b16 %v6060, %v6052
        %v6333 = vpack.c.b16 %v6061, %v6053
        %v6334 = vpack.c.b16 %v6062, %v6054
        %v6335 = vpack.c.b16 %v6063, %v6055
        %v6336 = vpack.c.b16 %v6064, %v6056
        %v6337 = vpack.c.b16 %v6065, %v6057
        %v6338 = vpack.c.b16 %v6066, %v6058
        %v6339 = vpack.c.b16 %v6067, %v6059
        %v6340 = vpack.c.b16 %v6076, %v6068
        %v6341 = vpack.c.b16 %v6077, %v6069
        %v6342 = vpack.c.b16 %v6078, %v6070
        %v6343 = vpack.c.b16 %v6079, %v6071
        %v6344 = vpack.c.b16 %v6080, %v6072
        %v6345 = vpack.c.b16 %v6081, %v6073
        %v6346 = vpack.c.b16 %v6082, %v6074
        %v6347 = vpack.c.b16 %v6083, %v6075
        %v6348 = vpack.c.b16 %v6092, %v6084
        %v6349 = vpack.c.b16 %v6093, %v6085
        %v6350 = vpack.c.b16 %v6094, %v6086
        %v6351 = vpack.c.b16 %v6095, %v6087
        %v6352 = vpack.c.b16 %v6096, %v6088
        %v6353 = vpack.c.b16 %v6097, %v6089
        %v6354 = vpack.c.b16 %v6098, %v6090
        %v6355 = vpack.c.b16 %v6099, %v6091
        %v6356 = vpack.c.b16 %v6108, %v6100
        %v6357 = vpack.c.b16 %v6109, %v6101
        %v6358 = vpack.c.b16 %v6110, %v6102
        %v6359 = vpack.c.b16 %v6111, %v6103
        %v6360 = vpack.c.b16 %v6112, %v6104
        %v6361 = vpack.c.b16 %v6113, %v6105
        %v6362 = vpack.c.b16 %v6114, %v6106
        %v6363 = vpack.c.b16 %v6115, %v6107
        %v6364 = vpack.c.b16 %v6124, %v6116
        %v6365 = vpack.c.b16 %v6125, %v6117
        %v6366 = vpack.c.b16 %v6126, %v6118
        %v6367 = vpack.c.b16 %v6127, %v6119
        %v6368 = vpack.c.b16 %v6128, %v6120
        %v6369 = vpack.c.b16 %v6129, %v6121
        %v6370 = vpack.c.b16 %v6130, %v6122
        %v6371 = vpack.c.b16 %v6131, %v6123
        %v6372 = vpack.c.b16 %v6140, %v6132
        %v6373 = vpack.c.b16 %v6141, %v6133
        %v6374 = vpack.c.b16 %v6142, %v6134
        %v6375 = vpack.c.b16 %v6143, %v6135
        %v6376 = vpack.c.b16 %v6144, %v6136
        %v6377 = vpack.c.b16 %v6145, %v6137
        %v6378 = vpack.c.b16 %v6146, %v6138
        %v6379 = vpack.c.b16 %v6147, %v6139
        %v6380 = vpack.c.b16 %v6156, %v6148
        %v6381 = vpack.c.b16 %v6157, %v6149
        %v6382 = vpack.c.b16 %v6158, %v6150
        %v6383 = vpack.c.b16 %v6159, %v6151
        %v6384 = vpack.c.b16 %v6160, %v6152
        %v6385 = vpack.c.b16 %v6161, %v6153
        %v6386 = vpack.c.b16 %v6162, %v6154
        %v6387 = vpack.c.b16 %v6163, %v6155
        %v6388 = vpack.c.b16 %v6172, %v6164
        %v6389 = vpack.c.b16 %v6173, %v6165
        %v6390 = vpack.c.b16 %v6174, %v6166
        %v6391 = vpack.c.b16 %v6175, %v6167
        %v6392 = vpack.c.b16 %v6176, %v6168
        %v6393 = vpack.c.b16 %v6177, %v6169
        %v6394 = vpack.c.b16 %v6178, %v6170
        %v6395 = vpack.c.b16 %v6179, %v6171
        %v6396 = vpack.c.b16 %v6188, %v6180
        %v6397 = vpack.c.b16 %v6189, %v6181
        %v6398 = vpack.c.b16 %v6190, %v6182
        %v6399 = vpack.c.b16 %v6191, %v6183
        %v6400 = vpack.c.b16 %v6192, %v6184
        %v6401 = vpack.c.b16 %v6193, %v6185
        %v6402 = vpack.c.b16 %v6194, %v6186
        %v6403 = vpack.c.b16 %v6195, %v6187
        %v6404 = vpack.c.b16 %v6204, %v6196
        %v6405 = vpack.c.b16 %v6205, %v6197
        %v6406 = vpack.c.b16 %v6206, %v6198
        %v6407 = vpack.c.b16 %v6207, %v6199
        %v6408 = vpack.c.b16 %v6208, %v6200
        %v6409 = vpack.c.b16 %v6209, %v6201
        %v6410 = vpack.c.b16 %v6210, %v6202
        %v6411 = vpack.c.b16 %v6211, %v6203
        %v6412 = vpack.c.b16 %v6220, %v6212
        %v6413 = vpack.c.b16 %v6221, %v6213
        %v6414 = vpack.c.b16 %v6222, %v6214
        %v6415 = vpack.c.b16 %v6223, %v6215
        %v6416 = vpack.c.b16 %v6224, %v6216
        %v6417 = vpack.c.b16 %v6225, %v6217
        %v6418 = vpack.c.b16 %v6226, %v6218
        %v6419 = vpack.c.b16 %v6227, %v6219
        %v6420 = vpack.c.b16 %v6236, %v6228
        %v6421 = vpack.c.b16 %v6237, %v6229
        %v6422 = vpack.c.b16 %v6238, %v6230
        %v6423 = vpack.c.b16 %v6239, %v6231
        %v6424 = vpack.c.b16 %v6240, %v6232
        %v6425 = vpack.c.b16 %v6241, %v6233
        %v6426 = vpack.c.b16 %v6242, %v6234
        %v6427 = vpack.c.b16 %v6243, %v6235
        %v6428 = vpack.c.b16 %v6252, %v6244
        %v6429 = vpack.c.b16 %v6253, %v6245
        %v6430 = vpack.c.b16 %v6254, %v6246
        %v6431 = vpack.c.b16 %v6255, %v6247
        %v6432 = vpack.c.b16 %v6256, %v6248
        %v6433 = vpack.c.b16 %v6257, %v6249
        %v6434 = vpack.c.b16 %v6258, %v6250
        %v6435 = vpack.c.b16 %v6259, %v6251
        %v6436 = vpack.c.b16 %v6268, %v6260
        %v6437 = vpack.c.b16 %v6269, %v6261
        %v6438 = vpack.c.b16 %v6270, %v6262
        %v6439 = vpack.c.b16 %v6271, %v6263
        %v6440 = vpack.c.b16 %v6272, %v6264
        %v6441 = vpack.c.b16 %v6273, %v6265
        %v6442 = vpack.c.b16 %v6274, %v6266
        %v6443 = vpack.c.b16 %v6275, %v6267
        %v6444 = vpack.c.b16 %v6284, %v6276
        %v6445 = vpack.c.b16 %v6285, %v6277
        %v6446 = vpack.c.b16 %v6286, %v6278
        %v6447 = vpack.c.b16 %v6287, %v6279
        %v6448 = vpack.c.b16 %v6288, %v6280
        %v6449 = vpack.c.b16 %v6289, %v6281
        %v6450 = vpack.c.b16 %v6290, %v6282
        %v6451 = vpack.c.b16 %v6291, %v6283
        %v6452 = vpack.c.b16 %v6300, %v6292
        %v6453 = vpack.c.b16 %v6301, %v6293
        %v6454 = vpack.c.b16 %v6302, %v6294
        %v6455 = vpack.c.b16 %v6303, %v6295
        %v6456 = vpack.c.b16 %v6304, %v6296
        %v6457 = vpack.c.b16 %v6305, %v6297
        %v6458 = vpack.c.b16 %v6306, %v6298
        %v6459 = vpack.c.b16 %v6307, %v6299
        %v6460 = vpack.c.b16 %v6316, %v6308
        %v6461 = vpack.c.b16 %v6317, %v6309
        %v6462 = vpack.c.b16 %v6318, %v6310
        %v6463 = vpack.c.b16 %v6319, %v6311
        %v6464 = vpack.c.b16 %v6320, %v6312
        %v6465 = vpack.c.b16 %v6321, %v6313
        %v6466 = vpack.c.b16 %v6322, %v6314
        %v6467 = vpack.c.b16 %v6323, %v6315
        %v6613 = vsel %vm1838, %v5746, 0
        %6615 = vmatprep.subr.bf16.mxu0 %v6325
        %6616 = vmatpush1.bf16.msra.mxu0 %v6324
        %6617 = vmatprep.subr.bf16.mxu0 %v6333
        %6618 = vmatpush1.bf16.msra.mxu0 %v6332
        %6619 = vmatprep.subr.bf16.mxu0 %v6341
        %6620 = vmatpush1.bf16.msra.mxu0 %v6340
        %6621 = vmatprep.subr.bf16.mxu0 %v6349
        %6622 = vmatpush1.bf16.msra.mxu0 %v6348
        %6623 = vmatprep.subr.bf16.mxu0 %v6357
        %6624 = vmatpush1.bf16.msra.mxu0 %v6356
        %6625 = vmatprep.subr.bf16.mxu0 %v6365
        %6626 = vmatpush1.bf16.msra.mxu0 %v6364
        %6627 = vmatprep.subr.bf16.mxu0 %v6373
        %6628 = vmatpush1.bf16.msra.mxu0 %v6372
        %6629 = vmatprep.subr.bf16.mxu0 %v6381
        %6630 = vmatpush1.bf16.msra.mxu0 %v6380
        %6631 = vmatprep.subr.bf16.mxu0 %v6389
        %6632 = vmatpush1.bf16.msra.mxu0 %v6388
        %6633 = vmatprep.subr.bf16.mxu0 %v6397
        %6634 = vmatpush1.bf16.msra.mxu0 %v6396
        %6635 = vmatprep.subr.bf16.mxu0 %v6405
        %6636 = vmatpush1.bf16.msra.mxu0 %v6404
        %6637 = vmatprep.subr.bf16.mxu0 %v6413
        %6638 = vmatpush1.bf16.msra.mxu0 %v6412
        %6639 = vmatprep.subr.bf16.mxu0 %v6421
        %6640 = vmatpush1.bf16.msra.mxu0 %v6420
        %6641 = vmatprep.subr.bf16.mxu0 %v6429
        %6642 = vmatpush1.bf16.msra.mxu0 %v6428
        %6643 = vmatprep.subr.bf16.mxu0 %v6437
        %6644 = vmatpush1.bf16.msra.mxu0 %v6436
        %6645 = vmatprep.subr.bf16.mxu0 %v6445
        %6646 = vmatpush1.bf16.msra.mxu0 %v6444
        %6647 = vmatprep.mubr.bf16.mxu0 %v5745
        %6648 = vmatmul.mubr.bf16.gmra.mrb[0].mxu0 %v5744
        %v6649 = vpop.f32.mrb[0].mxu0
        %v6650 = vadd.f32 0.0, %v6649
        %v6651 = vpop.f32.mrb[0].mxu0
        %v6652 = vadd.f32 0.0, %v6651
        %v6653 = vpop.f32.mrb[0].mxu0
        %v6654 = vpop.f32.mrb[0].mxu0
        %6655 = vdwg.mxu0
        %6656 = vmatprep.subr.bf16.mxu0 %v6453
        %6657 = vmatpush1.bf16.msra.mxu0 %v6452
        %6658 = vmatprep.subr.bf16.mxu0 %v6461
        %6659 = vmatpush1.bf16.msra.mxu0 %v6460
        %6660 = vmatprep.subr.bf16.mxu0 0
        %6661 = vmatpush1.bf16.msra.mxu0 0
        %6662 = vmatprep.subr.bf16.mxu0 0
        %6663 = vmatpush1.bf16.msra.mxu0 0
        %6664 = vmatprep.subr.bf16.mxu0 0
        %6665 = vmatpush1.bf16.msra.mxu0 0
        %6666 = vmatprep.subr.bf16.mxu0 0
        %6667 = vmatpush1.bf16.msra.mxu0 0
        %6668 = vmatprep.subr.bf16.mxu0 0
        %6669 = vmatpush1.bf16.msra.mxu0 0
        %6670 = vmatprep.subr.bf16.mxu0 0
        %6671 = vmatpush1.bf16.msra.mxu0 0
        %6672 = vmatprep.subr.bf16.mxu0 0
        %6673 = vmatpush1.bf16.msra.mxu0 0
        %6674 = vmatprep.subr.bf16.mxu0 0
        %6675 = vmatpush1.bf16.msra.mxu0 0
        %6676 = vmatprep.subr.bf16.mxu0 0
        %6677 = vmatpush1.bf16.msra.mxu0 0
        %6678 = vmatprep.subr.bf16.mxu0 0
        %6679 = vmatpush1.bf16.msra.mxu0 0
        %6680 = vmatprep.subr.bf16.mxu0 0
        %6681 = vmatpush1.bf16.msra.mxu0 0
        %6682 = vmatprep.subr.bf16.mxu0 0
        %6683 = vmatpush1.bf16.msra.mxu0 0
        %6684 = vmatprep.subr.bf16.mxu0 0
        %6685 = vmatpush1.bf16.msra.mxu0 0
        %6686 = vmatprep.subr.bf16.mxu0 0
        %6687 = vmatpush1.bf16.msra.mxu0 0
        %6688 = vmatprep.mubr.bf16.mxu0 0
        %6689 = vmatmul.mubr.bf16.gmra.mrb[0].mxu0 %v6613
        %v6690 = vpop.f32.mrb[0].mxu0
        %v6691 = vadd.f32 %v6650, %v6690
        %v6692 = vpop.f32.mrb[0].mxu0
        %v6693 = vadd.f32 %v6652, %v6692
        %v6694 = vpop.f32.mrb[0].mxu0
        %v6695 = vpop.f32.mrb[0].mxu0
        %6696 = vdwg.mxu0
        %6697 = vmatprep.subr.bf16.mxu0 %v6327
        %6698 = vmatpush1.bf16.msra.mxu0 %v6326
        %6699 = vmatprep.subr.bf16.mxu0 %v6335
        %6700 = vmatpush1.bf16.msra.mxu0 %v6334
        %6701 = vmatprep.subr.bf16.mxu0 %v6343
        %6702 = vmatpush1.bf16.msra.mxu0 %v6342
        %6703 = vmatprep.subr.bf16.mxu0 %v6351
        %6704 = vmatpush1.bf16.msra.mxu0 %v6350
        %6705 = vmatprep.subr.bf16.mxu0 %v6359
        %6706 = vmatpush1.bf16.msra.mxu0 %v6358
        %6707 = vmatprep.subr.bf16.mxu0 %v6367
        %6708 = vmatpush1.bf16.msra.mxu0 %v6366
        %6709 = vmatprep.subr.bf16.mxu0 %v6375
        %6710 = vmatpush1.bf16.msra.mxu0 %v6374
        %6711 = vmatprep.subr.bf16.mxu0 %v6383
        %6712 = vmatpush1.bf16.msra.mxu0 %v6382
        %6713 = vmatprep.subr.bf16.mxu0 %v6391
        %6714 = vmatpush1.bf16.msra.mxu0 %v6390
        %6715 = vmatprep.subr.bf16.mxu0 %v6399
        %6716 = vmatpush1.bf16.msra.mxu0 %v6398
        %6717 = vmatprep.subr.bf16.mxu0 %v6407
        %6718 = vmatpush1.bf16.msra.mxu0 %v6406
        %6719 = vmatprep.subr.bf16.mxu0 %v6415
        %6720 = vmatpush1.bf16.msra.mxu0 %v6414
        %6721 = vmatprep.subr.bf16.mxu0 %v6423
        %6722 = vmatpush1.bf16.msra.mxu0 %v6422
        %6723 = vmatprep.subr.bf16.mxu0 %v6431
        %6724 = vmatpush1.bf16.msra.mxu0 %v6430
        %6725 = vmatprep.subr.bf16.mxu0 %v6439
        %6726 = vmatpush1.bf16.msra.mxu0 %v6438
        %6727 = vmatprep.subr.bf16.mxu0 %v6447
        %6728 = vmatpush1.bf16.msra.mxu0 %v6446
        %6729 = vmatprep.mubr.bf16.mxu0 %v5745
        %6730 = vmatmul.mubr.bf16.gmra.mrb[0].mxu0 %v5744
        %v6731 = vpop.f32.mrb[0].mxu0
        %v6732 = vadd.f32 0.0, %v6731
        %v6733 = vpop.f32.mrb[0].mxu0
        %v6734 = vadd.f32 0.0, %v6733
        %v6735 = vpop.f32.mrb[0].mxu0
        %v6736 = vpop.f32.mrb[0].mxu0
        %6737 = vdwg.mxu0
        %6738 = vmatprep.subr.bf16.mxu0 %v6455
        %6739 = vmatpush1.bf16.msra.mxu0 %v6454
        %6740 = vmatprep.subr.bf16.mxu0 %v6463
        %6741 = vmatpush1.bf16.msra.mxu0 %v6462
        %6742 = vmatprep.subr.bf16.mxu0 0
        %6743 = vmatpush1.bf16.msra.mxu0 0
        %6744 = vmatprep.subr.bf16.mxu0 0
        %6745 = vmatpush1.bf16.msra.mxu0 0
        %6746 = vmatprep.subr.bf16.mxu0 0
        %6747 = vmatpush1.bf16.msra.mxu0 0
        %6748 = vmatprep.subr.bf16.mxu0 0
        %6749 = vmatpush1.bf16.msra.mxu0 0
        %6750 = vmatprep.subr.bf16.mxu0 0
        %6751 = vmatpush1.bf16.msra.mxu0 0
        %6752 = vmatprep.subr.bf16.mxu0 0
        %6753 = vmatpush1.bf16.msra.mxu0 0
        %6754 = vmatprep.subr.bf16.mxu0 0
        %6755 = vmatpush1.bf16.msra.mxu0 0
        %6756 = vmatprep.subr.bf16.mxu0 0
        %6757 = vmatpush1.bf16.msra.mxu0 0
        %6758 = vmatprep.subr.bf16.mxu0 0
        %6759 = vmatpush1.bf16.msra.mxu0 0
        %6760 = vmatprep.subr.bf16.mxu0 0
        %6761 = vmatpush1.bf16.msra.mxu0 0
        %6762 = vmatprep.subr.bf16.mxu0 0
        %6763 = vmatpush1.bf16.msra.mxu0 0
        %6764 = vmatprep.subr.bf16.mxu0 0
        %6765 = vmatpush1.bf16.msra.mxu0 0
        %6766 = vmatprep.subr.bf16.mxu0 0
        %6767 = vmatpush1.bf16.msra.mxu0 0
        %6768 = vmatprep.subr.bf16.mxu0 0
        %6769 = vmatpush1.bf16.msra.mxu0 0
        %6770 = vmatprep.mubr.bf16.mxu0 0
        %6771 = vmatmul.mubr.bf16.gmra.mrb[0].mxu0 %v6613
        %v6772 = vpop.f32.mrb[0].mxu0
        %v6773 = vadd.f32 %v6732, %v6772
        %v6774 = vpop.f32.mrb[0].mxu0
        %v6775 = vadd.f32 %v6734, %v6774
        %v6776 = vpop.f32.mrb[0].mxu0
        %v6777 = vpop.f32.mrb[0].mxu0
        %6778 = vdwg.mxu0
        %6779 = vmatprep.subr.bf16.mxu0 %v6329
        %6780 = vmatpush1.bf16.msra.mxu0 %v6328
        %6781 = vmatprep.subr.bf16.mxu0 %v6337
        %6782 = vmatpush1.bf16.msra.mxu0 %v6336
        %6783 = vmatprep.subr.bf16.mxu0 %v6345
        %6784 = vmatpush1.bf16.msra.mxu0 %v6344
        %6785 = vmatprep.subr.bf16.mxu0 %v6353
        %6786 = vmatpush1.bf16.msra.mxu0 %v6352
        %6787 = vmatprep.subr.bf16.mxu0 %v6361
        %6788 = vmatpush1.bf16.msra.mxu0 %v6360
        %6789 = vmatprep.subr.bf16.mxu0 %v6369
        %6790 = vmatpush1.bf16.msra.mxu0 %v6368
        %6791 = vmatprep.subr.bf16.mxu0 %v6377
        %6792 = vmatpush1.bf16.msra.mxu0 %v6376
        %6793 = vmatprep.subr.bf16.mxu0 %v6385
        %6794 = vmatpush1.bf16.msra.mxu0 %v6384
        %6795 = vmatprep.subr.bf16.mxu0 %v6393
        %6796 = vmatpush1.bf16.msra.mxu0 %v6392
        %6797 = vmatprep.subr.bf16.mxu0 %v6401
        %6798 = vmatpush1.bf16.msra.mxu0 %v6400
        %6799 = vmatprep.subr.bf16.mxu0 %v6409
        %6800 = vmatpush1.bf16.msra.mxu0 %v6408
        %6801 = vmatprep.subr.bf16.mxu0 %v6417
        %6802 = vmatpush1.bf16.msra.mxu0 %v6416
        %6803 = vmatprep.subr.bf16.mxu0 %v6425
        %6804 = vmatpush1.bf16.msra.mxu0 %v6424
        %6805 = vmatprep.subr.bf16.mxu0 %v6433
        %6806 = vmatpush1.bf16.msra.mxu0 %v6432
        %6807 = vmatprep.subr.bf16.mxu0 %v6441
        %6808 = vmatpush1.bf16.msra.mxu0 %v6440
        %6809 = vmatprep.subr.bf16.mxu0 %v6449
        %6810 = vmatpush1.bf16.msra.mxu0 %v6448
        %6811 = vmatprep.mubr.bf16.mxu0 %v5745
        %6812 = vmatmul.mubr.bf16.gmra.mrb[0].mxu0 %v5744
        %v6813 = vpop.f32.mrb[0].mxu0
        %v6814 = vadd.f32 0.0, %v6813
        %v6815 = vpop.f32.mrb[0].mxu0
        %v6816 = vadd.f32 0.0, %v6815
        %v6817 = vpop.f32.mrb[0].mxu0
        %v6818 = vpop.f32.mrb[0].mxu0
        %6819 = vdwg.mxu0
        %6820 = vmatprep.subr.bf16.mxu0 %v6457
        %6821 = vmatpush1.bf16.msra.mxu0 %v6456
        %6822 = vmatprep.subr.bf16.mxu0 %v6465
        %6823 = vmatpush1.bf16.msra.mxu0 %v6464
        %6824 = vmatprep.subr.bf16.mxu0 0
        %6825 = vmatpush1.bf16.msra.mxu0 0
        %6826 = vmatprep.subr.bf16.mxu0 0
        %6827 = vmatpush1.bf16.msra.mxu0 0
        %6828 = vmatprep.subr.bf16.mxu0 0
        %6829 = vmatpush1.bf16.msra.mxu0 0
        %6830 = vmatprep.subr.bf16.mxu0 0
        %6831 = vmatpush1.bf16.msra.mxu0 0
        %6832 = vmatprep.subr.bf16.mxu0 0
        %6833 = vmatpush1.bf16.msra.mxu0 0
        %6834 = vmatprep.subr.bf16.mxu0 0
        %6835 = vmatpush1.bf16.msra.mxu0 0
        %6836 = vmatprep.subr.bf16.mxu0 0
        %6837 = vmatpush1.bf16.msra.mxu0 0
        %6838 = vmatprep.subr.bf16.mxu0 0
        %6839 = vmatpush1.bf16.msra.mxu0 0
        %6840 = vmatprep.subr.bf16.mxu0 0
        %6841 = vmatpush1.bf16.msra.mxu0 0
        %6842 = vmatprep.subr.bf16.mxu0 0
        %6843 = vmatpush1.bf16.msra.mxu0 0
        %6844 = vmatprep.subr.bf16.mxu0 0
        %6845 = vmatpush1.bf16.msra.mxu0 0
        %6846 = vmatprep.subr.bf16.mxu0 0
        %6847 = vmatpush1.bf16.msra.mxu0 0
        %6848 = vmatprep.subr.bf16.mxu0 0
        %6849 = vmatpush1.bf16.msra.mxu0 0
        %6850 = vmatprep.subr.bf16.mxu0 0
        %6851 = vmatpush1.bf16.msra.mxu0 0
        %6852 = vmatprep.mubr.bf16.mxu0 0
        %6853 = vmatmul.mubr.bf16.gmra.mrb[0].mxu0 %v6613
        %v6854 = vpop.f32.mrb[0].mxu0
        %v6855 = vadd.f32 %v6814, %v6854
        %v6856 = vpop.f32.mrb[0].mxu0
        %v6857 = vadd.f32 %v6816, %v6856
        %v6858 = vpop.f32.mrb[0].mxu0
        %v6859 = vpop.f32.mrb[0].mxu0
        %6860 = vdwg.mxu0
        %6861 = vmatprep.subr.bf16.mxu0 %v6331
        %6862 = vmatpush1.bf16.msra.mxu0 %v6330
        %6863 = vmatprep.subr.bf16.mxu0 %v6339
        %6864 = vmatpush1.bf16.msra.mxu0 %v6338
        %6865 = vmatprep.subr.bf16.mxu0 %v6347
        %6866 = vmatpush1.bf16.msra.mxu0 %v6346
        %6867 = vmatprep.subr.bf16.mxu0 %v6355
        %6868 = vmatpush1.bf16.msra.mxu0 %v6354
        %6869 = vmatprep.subr.bf16.mxu0 %v6363
        %6870 = vmatpush1.bf16.msra.mxu0 %v6362
        %6871 = vmatprep.subr.bf16.mxu0 %v6371
        %6872 = vmatpush1.bf16.msra.mxu0 %v6370
        %6873 = vmatprep.subr.bf16.mxu0 %v6379
        %6874 = vmatpush1.bf16.msra.mxu0 %v6378
        %6875 = vmatprep.subr.bf16.mxu0 %v6387
        %6876 = vmatpush1.bf16.msra.mxu0 %v6386
        %6877 = vmatprep.subr.bf16.mxu0 %v6395
        %6878 = vmatpush1.bf16.msra.mxu0 %v6394
        %6879 = vmatprep.subr.bf16.mxu0 %v6403
        %6880 = vmatpush1.bf16.msra.mxu0 %v6402
        %6881 = vmatprep.subr.bf16.mxu0 %v6411
        %6882 = vmatpush1.bf16.msra.mxu0 %v6410
        %6883 = vmatprep.subr.bf16.mxu0 %v6419
        %6884 = vmatpush1.bf16.msra.mxu0 %v6418
        %6885 = vmatprep.subr.bf16.mxu0 %v6427
        %6886 = vmatpush1.bf16.msra.mxu0 %v6426
        %6887 = vmatprep.subr.bf16.mxu0 %v6435
        %6888 = vmatpush1.bf16.msra.mxu0 %v6434
        %6889 = vmatprep.subr.bf16.mxu0 %v6443
        %6890 = vmatpush1.bf16.msra.mxu0 %v6442
        %6891 = vmatprep.subr.bf16.mxu0 %v6451
        %6892 = vmatpush1.bf16.msra.mxu0 %v6450
        %6893 = vmatprep.mubr.bf16.mxu0 %v5745
        %6894 = vmatmul.mubr.bf16.gmra.mrb[0].mxu0 %v5744
        %v6895 = vpop.f32.mrb[0].mxu0
        %v6896 = vadd.f32 0.0, %v6895
        %v6897 = vpop.f32.mrb[0].mxu0
        %v6898 = vadd.f32 0.0, %v6897
        %v6899 = vpop.f32.mrb[0].mxu0
        %v6900 = vpop.f32.mrb[0].mxu0
        %6901 = vdwg.mxu0
        %6902 = vmatprep.subr.bf16.mxu0 %v6459
        %6903 = vmatpush1.bf16.msra.mxu0 %v6458
        %6904 = vmatprep.subr.bf16.mxu0 %v6467
        %6905 = vmatpush1.bf16.msra.mxu0 %v6466
        %6906 = vmatprep.subr.bf16.mxu0 0
        %6907 = vmatpush1.bf16.msra.mxu0 0
        %6908 = vmatprep.subr.bf16.mxu0 0
        %6909 = vmatpush1.bf16.msra.mxu0 0
        %6910 = vmatprep.subr.bf16.mxu0 0
        %6911 = vmatpush1.bf16.msra.mxu0 0
        %6912 = vmatprep.subr.bf16.mxu0 0
        %6913 = vmatpush1.bf16.msra.mxu0 0
        %6914 = vmatprep.subr.bf16.mxu0 0
        %6915 = vmatpush1.bf16.msra.mxu0 0
        %6916 = vmatprep.subr.bf16.mxu0 0
        %6917 = vmatpush1.bf16.msra.mxu0 0
        %6918 = vmatprep.subr.bf16.mxu0 0
        %6919 = vmatpush1.bf16.msra.mxu0 0
        %6920 = vmatprep.subr.bf16.mxu0 0
        %6921 = vmatpush1.bf16.msra.mxu0 0
        %6922 = vmatprep.subr.bf16.mxu0 0
        %6923 = vmatpush1.bf16.msra.mxu0 0
        %6924 = vmatprep.subr.bf16.mxu0 0
        %6925 = vmatpush1.bf16.msra.mxu0 0
        %6926 = vmatprep.subr.bf16.mxu0 0
        %6927 = vmatpush1.bf16.msra.mxu0 0
        %6928 = vmatprep.subr.bf16.mxu0 0
        %6929 = vmatpush1.bf16.msra.mxu0 0
        %6930 = vmatprep.subr.bf16.mxu0 0
        %6931 = vmatpush1.bf16.msra.mxu0 0
        %6932 = vmatprep.subr.bf16.mxu0 0
        %6933 = vmatpush1.bf16.msra.mxu0 0
        %6934 = vmatprep.mubr.bf16.mxu0 0
        %6935 = vmatmul.mubr.bf16.gmra.mrb[0].mxu0 %v6613
        %v6936 = vpop.f32.mrb[0].mxu0
        %v6937 = vadd.f32 %v6896, %v6936
        %v6938 = vpop.f32.mrb[0].mxu0
        %v6939 = vadd.f32 %v6898, %v6938
        %v6940 = vpop.f32.mrb[0].mxu0
        %v6941 = vpop.f32.mrb[0].mxu0
        %6942 = vdwg.mxu0
        %v6943 = vadd.f32 %v5733, %v6691
        %v6944 = vadd.f32 %v5734, %v6693
        %v6945 = vadd.f32 %v5735, %v6773
        %v6946 = vadd.f32 %v5736, %v6775
        %v6947 = vadd.f32 %v5737, %v6855
        %v6948 = vadd.f32 %v5738, %v6857
        %v6949 = vadd.f32 %v5739, %v6937
        %v6950 = vadd.f32 %v5740, %v6939
        %v6951 = vld [vmem:[%s2060] sm:$0xfe]
        %v6952 = vld [vmem:[%s2060 + $0x8] sm:$0xfe]
        %v6953 = vld [vmem:[%s2060 + $0x10] sm:$0xfe]
        %v6954 = vpack.c.bf16 %v6951, %v6951
        %v6955 = vpack.c.bf16 %v6952, %v6952
        %v6956 = vpack.c.bf16 %v6953, %v6953
        %s6957 = scalar_lea.vmem [#allocation9], 4608
        %v6958 = vld [vmem:[%s6957] sm:$0xff]
        %v6959 = vld [vmem:[%s6957 + $0x8] sm:$0xff]
        %v6960 = vld [vmem:[%s6957 + $0x10] sm:$0xff]
        %v6961 = vld [vmem:[%s6957 + $0x18] sm:$0xff]
        %v6962 = vld [vmem:[%s6957 + $0x20] sm:$0xff]
        %v6963 = vld [vmem:[%s6957 + $0x28] sm:$0xff]
        %v6964 = vld [vmem:[%s6957 + $0x30] sm:$0xff]
        %v6965 = vld [vmem:[%s6957 + $0x38] sm:$0xff]
        %v6966 = vld [vmem:[%s6957 + $0x40] sm:$0xff]
        %v6967 = vld [vmem:[%s6957 + $0x48] sm:$0xff]
        %v6968 = vld [vmem:[%s6957 + $0x50] sm:$0xff]
        %v6969 = vld [vmem:[%s6957 + $0x58] sm:$0xff]
        %v6970 = vld [vmem:[%s6957 + $0x60] sm:$0xff]
        %v6971 = vld [vmem:[%s6957 + $0x68] sm:$0xff]
        %v6972 = vld [vmem:[%s6957 + $0x70] sm:$0xff]
        %v6973 = vld [vmem:[%s6957 + $0x78] sm:$0xff]
        %v6974 = vld [vmem:[%s6957 + $0x80] sm:$0xff]
        %v6975 = vld [vmem:[%s6957 + $0x88] sm:$0xff]
        %v6976 = vld [vmem:[%s6957 + $0x90] sm:$0xff]
        %v6977 = vld [vmem:[%s6957 + $0x98] sm:$0xff]
        %v6978 = vld [vmem:[%s6957 + $0xa0] sm:$0xff]
        %v6979 = vld [vmem:[%s6957 + $0xa8] sm:$0xff]
        %v6980 = vld [vmem:[%s6957 + $0xb0] sm:$0xff]
        %v6981 = vld [vmem:[%s6957 + $0xb8] sm:$0xff]
        %v6982 = vld [vmem:[%s6957 + $0xc0] sm:$0xff]
        %v6983 = vld [vmem:[%s6957 + $0xc8] sm:$0xff]
        %v6984 = vld [vmem:[%s6957 + $0xd0] sm:$0xff]
        %v6985 = vld [vmem:[%s6957 + $0xd8] sm:$0xff]
        %v6986 = vld [vmem:[%s6957 + $0xe0] sm:$0xff]
        %v6987 = vld [vmem:[%s6957 + $0xe8] sm:$0xff]
        %v6988 = vld [vmem:[%s6957 + $0xf0] sm:$0xff]
        %v6989 = vld [vmem:[%s6957 + $0xf8] sm:$0xff]
        %v6990 = vld [vmem:[%s6957 + $0x100] sm:$0xff]
        %v6991 = vld [vmem:[%s6957 + $0x108] sm:$0xff]
        %v6992 = vld [vmem:[%s6957 + $0x110] sm:$0xff]
        %v6993 = vld [vmem:[%s6957 + $0x118] sm:$0xff]
        %v6994 = vld [vmem:[%s6957 + $0x120] sm:$0xff]
        %v6995 = vld [vmem:[%s6957 + $0x128] sm:$0xff]
        %v6996 = vld [vmem:[%s6957 + $0x130] sm:$0xff]
        %v6997 = vld [vmem:[%s6957 + $0x138] sm:$0xff]
        %v6998 = vld [vmem:[%s6957 + $0x140] sm:$0xff]
        %v6999 = vld [vmem:[%s6957 + $0x148] sm:$0xff]
        %v7000 = vld [vmem:[%s6957 + $0x150] sm:$0xff]
        %v7001 = vld [vmem:[%s6957 + $0x158] sm:$0xff]
        %v7002 = vld [vmem:[%s6957 + $0x160] sm:$0xff]
        %v7003 = vld [vmem:[%s6957 + $0x168] sm:$0xff]
        %v7004 = vld [vmem:[%s6957 + $0x170] sm:$0xff]
        %v7005 = vld [vmem:[%s6957 + $0x178] sm:$0xff]
        %v7006 = vld [vmem:[%s6957 + $0x180] sm:$0xff]
        %v7007 = vld [vmem:[%s6957 + $0x188] sm:$0xff]
        %v7008 = vld [vmem:[%s6957 + $0x190] sm:$0xff]
        %v7009 = vld [vmem:[%s6957 + $0x198] sm:$0xff]
        %v7010 = vld [vmem:[%s6957 + $0x1a0] sm:$0xff]
        %v7011 = vld [vmem:[%s6957 + $0x1a8] sm:$0xff]
        %v7012 = vld [vmem:[%s6957 + $0x1b0] sm:$0xff]
        %v7013 = vld [vmem:[%s6957 + $0x1b8] sm:$0xff]
        %v7014 = vld [vmem:[%s6957 + $0x1c0] sm:$0xff]
        %v7015 = vld [vmem:[%s6957 + $0x1c8] sm:$0xff]
        %v7016 = vld [vmem:[%s6957 + $0x1d0] sm:$0xff]
        %v7017 = vld [vmem:[%s6957 + $0x1d8] sm:$0xff]
        %v7018 = vld [vmem:[%s6957 + $0x1e0] sm:$0xff]
        %v7019 = vld [vmem:[%s6957 + $0x1e8] sm:$0xff]
        %v7020 = vld [vmem:[%s6957 + $0x1f0] sm:$0xff]
        %v7021 = vld [vmem:[%s6957 + $0x1f8] sm:$0xff]
        %v7022 = vld [vmem:[%s6957 + $0x200] sm:$0xff]
        %v7023 = vld [vmem:[%s6957 + $0x208] sm:$0xff]
        %v7024 = vld [vmem:[%s6957 + $0x210] sm:$0xff]
        %v7025 = vld [vmem:[%s6957 + $0x218] sm:$0xff]
        %v7026 = vld [vmem:[%s6957 + $0x220] sm:$0xff]
        %v7027 = vld [vmem:[%s6957 + $0x228] sm:$0xff]
        %v7028 = vld [vmem:[%s6957 + $0x230] sm:$0xff]
        %v7029 = vld [vmem:[%s6957 + $0x238] sm:$0xff]
        %v7030 = vld [vmem:[%s6957 + $0x240] sm:$0xff]
        %v7031 = vld [vmem:[%s6957 + $0x248] sm:$0xff]
        %v7032 = vld [vmem:[%s6957 + $0x250] sm:$0xff]
        %v7033 = vld [vmem:[%s6957 + $0x258] sm:$0xff]
        %v7034 = vld [vmem:[%s6957 + $0x260] sm:$0xff]
        %v7035 = vld [vmem:[%s6957 + $0x268] sm:$0xff]
        %v7036 = vld [vmem:[%s6957 + $0x270] sm:$0xff]
        %v7037 = vld [vmem:[%s6957 + $0x278] sm:$0xff]
        %v7038 = vld [vmem:[%s6957 + $0x280] sm:$0xff]
        %v7039 = vld [vmem:[%s6957 + $0x288] sm:$0xff]
        %v7040 = vld [vmem:[%s6957 + $0x290] sm:$0xff]
        %v7041 = vld [vmem:[%s6957 + $0x298] sm:$0xff]
        %v7042 = vld [vmem:[%s6957 + $0x2a0] sm:$0xff]
        %v7043 = vld [vmem:[%s6957 + $0x2a8] sm:$0xff]
        %v7044 = vld [vmem:[%s6957 + $0x2b0] sm:$0xff]
        %v7045 = vld [vmem:[%s6957 + $0x2b8] sm:$0xff]
        %v7046 = vld [vmem:[%s6957 + $0x2c0] sm:$0xff]
        %v7047 = vld [vmem:[%s6957 + $0x2c8] sm:$0xff]
        %v7048 = vld [vmem:[%s6957 + $0x2d0] sm:$0xff]
        %v7049 = vld [vmem:[%s6957 + $0x2d8] sm:$0xff]
        %v7050 = vld [vmem:[%s6957 + $0x2e0] sm:$0xff]
        %v7051 = vld [vmem:[%s6957 + $0x2e8] sm:$0xff]
        %v7052 = vld [vmem:[%s6957 + $0x2f0] sm:$0xff]
        %v7053 = vld [vmem:[%s6957 + $0x2f8] sm:$0xff]
        %v7054 = vld [vmem:[%s6957 + $0x300] sm:$0xff]
        %v7055 = vld [vmem:[%s6957 + $0x308] sm:$0xff]
        %v7056 = vld [vmem:[%s6957 + $0x310] sm:$0xff]
        %v7057 = vld [vmem:[%s6957 + $0x318] sm:$0xff]
        %v7058 = vld [vmem:[%s6957 + $0x320] sm:$0xff]
        %v7059 = vld [vmem:[%s6957 + $0x328] sm:$0xff]
        %v7060 = vld [vmem:[%s6957 + $0x330] sm:$0xff]
        %v7061 = vld [vmem:[%s6957 + $0x338] sm:$0xff]
        %v7062 = vld [vmem:[%s6957 + $0x340] sm:$0xff]
        %v7063 = vld [vmem:[%s6957 + $0x348] sm:$0xff]
        %v7064 = vld [vmem:[%s6957 + $0x350] sm:$0xff]
        %v7065 = vld [vmem:[%s6957 + $0x358] sm:$0xff]
        %v7066 = vld [vmem:[%s6957 + $0x360] sm:$0xff]
        %v7067 = vld [vmem:[%s6957 + $0x368] sm:$0xff]
        %v7068 = vld [vmem:[%s6957 + $0x370] sm:$0xff]
        %v7069 = vld [vmem:[%s6957 + $0x378] sm:$0xff]
        %v7070 = vld [vmem:[%s6957 + $0x380] sm:$0xff]
        %v7071 = vld [vmem:[%s6957 + $0x388] sm:$0xff]
        %v7072 = vld [vmem:[%s6957 + $0x390] sm:$0xff]
        %v7073 = vld [vmem:[%s6957 + $0x398] sm:$0xff]
        %v7074 = vld [vmem:[%s6957 + $0x3a0] sm:$0xff]
        %v7075 = vld [vmem:[%s6957 + $0x3a8] sm:$0xff]
        %v7076 = vld [vmem:[%s6957 + $0x3b0] sm:$0xff]
        %v7077 = vld [vmem:[%s6957 + $0x3b8] sm:$0xff]
        %v7078 = vld [vmem:[%s6957 + $0x3c0] sm:$0xff]
        %v7079 = vld [vmem:[%s6957 + $0x3c8] sm:$0xff]
        %v7080 = vld [vmem:[%s6957 + $0x3d0] sm:$0xff]
        %v7081 = vld [vmem:[%s6957 + $0x3d8] sm:$0xff]
        %v7082 = vld [vmem:[%s6957 + $0x3e0] sm:$0xff]
        %v7083 = vld [vmem:[%s6957 + $0x3e8] sm:$0xff]
        %v7084 = vld [vmem:[%s6957 + $0x3f0] sm:$0xff]
        %v7085 = vld [vmem:[%s6957 + $0x3f8] sm:$0xff]
        %v7086 = vld [vmem:[%s6957 + $0x400] sm:$0xff]
        %v7087 = vld [vmem:[%s6957 + $0x408] sm:$0xff]
        %v7088 = vld [vmem:[%s6957 + $0x410] sm:$0xff]
        %v7089 = vld [vmem:[%s6957 + $0x418] sm:$0xff]
        %v7090 = vld [vmem:[%s6957 + $0x420] sm:$0xff]
        %v7091 = vld [vmem:[%s6957 + $0x428] sm:$0xff]
        %v7092 = vld [vmem:[%s6957 + $0x430] sm:$0xff]
        %v7093 = vld [vmem:[%s6957 + $0x438] sm:$0xff]
        %v7094 = vld [vmem:[%s6957 + $0x440] sm:$0xff]
        %v7095 = vld [vmem:[%s6957 + $0x448] sm:$0xff]
        %v7096 = vld [vmem:[%s6957 + $0x450] sm:$0xff]
        %v7097 = vld [vmem:[%s6957 + $0x458] sm:$0xff]
        %v7098 = vld [vmem:[%s6957 + $0x460] sm:$0xff]
        %v7099 = vld [vmem:[%s6957 + $0x468] sm:$0xff]
        %v7100 = vld [vmem:[%s6957 + $0x470] sm:$0xff]
        %v7101 = vld [vmem:[%s6957 + $0x478] sm:$0xff]
        %v7103 = vshrl.u32 %v6954, 16
        %v7105 = vshll.u32 %v6954, 16
        %v7107 = vrot.slane %v7105, 1
        %v7108 = vor.u32 %v7103, %v7107
        %v7110 = vshrl.u32 %v6955, 16
        %v7112 = vshll.u32 %v6955, 16
        %v7114 = vrot.slane %v7112, 1
        %v7115 = vor.u32 %v7110, %v7114
        %v7117 = vshrl.u32 %v6956, 16
        %v7119 = vshll.u32 %v6956, 16
        %v7121 = vrot.slane %v7119, 1
        %v7122 = vor.u32 %v7117, %v7121
        %v7269 = vunpack.c.l.b16 %v6958
        %v7270 = vunpack.c.h.b16 %v6958
        %v7271 = vunpack.c.l.b16 %v6959
        %v7272 = vunpack.c.h.b16 %v6959
        %v7273 = vunpack.c.l.b16 %v6960
        %v7274 = vunpack.c.h.b16 %v6960
        %v7275 = vunpack.c.l.b16 %v6961
        %v7276 = vunpack.c.h.b16 %v6961
        %v7277 = vunpack.c.l.b16 %v6962
        %v7278 = vunpack.c.h.b16 %v6962
        %v7279 = vunpack.c.l.b16 %v6963
        %v7280 = vunpack.c.h.b16 %v6963
        %v7281 = vunpack.c.l.b16 %v6964
        %v7282 = vunpack.c.h.b16 %v6964
        %v7283 = vunpack.c.l.b16 %v6965
        %v7284 = vunpack.c.h.b16 %v6965
        %v7285 = vunpack.c.l.b16 %v6966
        %v7286 = vunpack.c.h.b16 %v6966
        %v7287 = vunpack.c.l.b16 %v6967
        %v7288 = vunpack.c.h.b16 %v6967
        %v7289 = vunpack.c.l.b16 %v6968
        %v7290 = vunpack.c.h.b16 %v6968
        %v7291 = vunpack.c.l.b16 %v6969
        %v7292 = vunpack.c.h.b16 %v6969
        %v7293 = vunpack.c.l.b16 %v6970
        %v7294 = vunpack.c.h.b16 %v6970
        %v7295 = vunpack.c.l.b16 %v6971
        %v7296 = vunpack.c.h.b16 %v6971
        %v7297 = vunpack.c.l.b16 %v6972
        %v7298 = vunpack.c.h.b16 %v6972
        %v7299 = vunpack.c.l.b16 %v6973
        %v7300 = vunpack.c.h.b16 %v6973
        %v7301 = vunpack.c.l.b16 %v6974
        %v7302 = vunpack.c.h.b16 %v6974
        %v7303 = vunpack.c.l.b16 %v6975
        %v7304 = vunpack.c.h.b16 %v6975
        %v7305 = vunpack.c.l.b16 %v6976
        %v7306 = vunpack.c.h.b16 %v6976
        %v7307 = vunpack.c.l.b16 %v6977
        %v7308 = vunpack.c.h.b16 %v6977
        %v7309 = vunpack.c.l.b16 %v6978
        %v7310 = vunpack.c.h.b16 %v6978
        %v7311 = vunpack.c.l.b16 %v6979
        %v7312 = vunpack.c.h.b16 %v6979
        %v7313 = vunpack.c.l.b16 %v6980
        %v7314 = vunpack.c.h.b16 %v6980
        %v7315 = vunpack.c.l.b16 %v6981
        %v7316 = vunpack.c.h.b16 %v6981
        %v7317 = vunpack.c.l.b16 %v6982
        %v7318 = vunpack.c.h.b16 %v6982
        %v7319 = vunpack.c.l.b16 %v6983
        %v7320 = vunpack.c.h.b16 %v6983
        %v7321 = vunpack.c.l.b16 %v6984
        %v7322 = vunpack.c.h.b16 %v6984
        %v7323 = vunpack.c.l.b16 %v6985
        %v7324 = vunpack.c.h.b16 %v6985
        %v7325 = vunpack.c.l.b16 %v6986
        %v7326 = vunpack.c.h.b16 %v6986
        %v7327 = vunpack.c.l.b16 %v6987
        %v7328 = vunpack.c.h.b16 %v6987
        %v7329 = vunpack.c.l.b16 %v6988
        %v7330 = vunpack.c.h.b16 %v6988
        %v7331 = vunpack.c.l.b16 %v6989
        %v7332 = vunpack.c.h.b16 %v6989
        %v7333 = vunpack.c.l.b16 %v6990
        %v7334 = vunpack.c.h.b16 %v6990
        %v7335 = vunpack.c.l.b16 %v6991
        %v7336 = vunpack.c.h.b16 %v6991
        %v7337 = vunpack.c.l.b16 %v6992
        %v7338 = vunpack.c.h.b16 %v6992
        %v7339 = vunpack.c.l.b16 %v6993
        %v7340 = vunpack.c.h.b16 %v6993
        %v7341 = vunpack.c.l.b16 %v6994
        %v7342 = vunpack.c.h.b16 %v6994
        %v7343 = vunpack.c.l.b16 %v6995
        %v7344 = vunpack.c.h.b16 %v6995
        %v7345 = vunpack.c.l.b16 %v6996
        %v7346 = vunpack.c.h.b16 %v6996
        %v7347 = vunpack.c.l.b16 %v6997
        %v7348 = vunpack.c.h.b16 %v6997
        %v7349 = vunpack.c.l.b16 %v6998
        %v7350 = vunpack.c.h.b16 %v6998
        %v7351 = vunpack.c.l.b16 %v6999
        %v7352 = vunpack.c.h.b16 %v6999
        %v7353 = vunpack.c.l.b16 %v7000
        %v7354 = vunpack.c.h.b16 %v7000
        %v7355 = vunpack.c.l.b16 %v7001
        %v7356 = vunpack.c.h.b16 %v7001
        %v7357 = vunpack.c.l.b16 %v7002
        %v7358 = vunpack.c.h.b16 %v7002
        %v7359 = vunpack.c.l.b16 %v7003
        %v7360 = vunpack.c.h.b16 %v7003
        %v7361 = vunpack.c.l.b16 %v7004
        %v7362 = vunpack.c.h.b16 %v7004
        %v7363 = vunpack.c.l.b16 %v7005
        %v7364 = vunpack.c.h.b16 %v7005
        %v7365 = vunpack.c.l.b16 %v7006
        %v7366 = vunpack.c.h.b16 %v7006
        %v7367 = vunpack.c.l.b16 %v7007
        %v7368 = vunpack.c.h.b16 %v7007
        %v7369 = vunpack.c.l.b16 %v7008
        %v7370 = vunpack.c.h.b16 %v7008
        %v7371 = vunpack.c.l.b16 %v7009
        %v7372 = vunpack.c.h.b16 %v7009
        %v7373 = vunpack.c.l.b16 %v7010
        %v7374 = vunpack.c.h.b16 %v7010
        %v7375 = vunpack.c.l.b16 %v7011
        %v7376 = vunpack.c.h.b16 %v7011
        %v7377 = vunpack.c.l.b16 %v7012
        %v7378 = vunpack.c.h.b16 %v7012
        %v7379 = vunpack.c.l.b16 %v7013
        %v7380 = vunpack.c.h.b16 %v7013
        %v7381 = vunpack.c.l.b16 %v7014
        %v7382 = vunpack.c.h.b16 %v7014
        %v7383 = vunpack.c.l.b16 %v7015
        %v7384 = vunpack.c.h.b16 %v7015
        %v7385 = vunpack.c.l.b16 %v7016
        %v7386 = vunpack.c.h.b16 %v7016
        %v7387 = vunpack.c.l.b16 %v7017
        %v7388 = vunpack.c.h.b16 %v7017
        %v7389 = vunpack.c.l.b16 %v7018
        %v7390 = vunpack.c.h.b16 %v7018
        %v7391 = vunpack.c.l.b16 %v7019
        %v7392 = vunpack.c.h.b16 %v7019
        %v7393 = vunpack.c.l.b16 %v7020
        %v7394 = vunpack.c.h.b16 %v7020
        %v7395 = vunpack.c.l.b16 %v7021
        %v7396 = vunpack.c.h.b16 %v7021
        %v7397 = vunpack.c.l.b16 %v7022
        %v7398 = vunpack.c.h.b16 %v7022
        %v7399 = vunpack.c.l.b16 %v7023
        %v7400 = vunpack.c.h.b16 %v7023
        %v7401 = vunpack.c.l.b16 %v7024
        %v7402 = vunpack.c.h.b16 %v7024
        %v7403 = vunpack.c.l.b16 %v7025
        %v7404 = vunpack.c.h.b16 %v7025
        %v7405 = vunpack.c.l.b16 %v7026
        %v7406 = vunpack.c.h.b16 %v7026
        %v7407 = vunpack.c.l.b16 %v7027
        %v7408 = vunpack.c.h.b16 %v7027
        %v7409 = vunpack.c.l.b16 %v7028
        %v7410 = vunpack.c.h.b16 %v7028
        %v7411 = vunpack.c.l.b16 %v7029
        %v7412 = vunpack.c.h.b16 %v7029
        %v7413 = vunpack.c.l.b16 %v7030
        %v7414 = vunpack.c.h.b16 %v7030
        %v7415 = vunpack.c.l.b16 %v7031
        %v7416 = vunpack.c.h.b16 %v7031
        %v7417 = vunpack.c.l.b16 %v7032
        %v7418 = vunpack.c.h.b16 %v7032
        %v7419 = vunpack.c.l.b16 %v7033
        %v7420 = vunpack.c.h.b16 %v7033
        %v7421 = vunpack.c.l.b16 %v7034
        %v7422 = vunpack.c.h.b16 %v7034
        %v7423 = vunpack.c.l.b16 %v7035
        %v7424 = vunpack.c.h.b16 %v7035
        %v7425 = vunpack.c.l.b16 %v7036
        %v7426 = vunpack.c.h.b16 %v7036
        %v7427 = vunpack.c.l.b16 %v7037
        %v7428 = vunpack.c.h.b16 %v7037
        %v7429 = vunpack.c.l.b16 %v7038
        %v7430 = vunpack.c.h.b16 %v7038
        %v7431 = vunpack.c.l.b16 %v7039
        %v7432 = vunpack.c.h.b16 %v7039
        %v7433 = vunpack.c.l.b16 %v7040
        %v7434 = vunpack.c.h.b16 %v7040
        %v7435 = vunpack.c.l.b16 %v7041
        %v7436 = vunpack.c.h.b16 %v7041
        %v7437 = vunpack.c.l.b16 %v7042
        %v7438 = vunpack.c.h.b16 %v7042
        %v7439 = vunpack.c.l.b16 %v7043
        %v7440 = vunpack.c.h.b16 %v7043
        %v7441 = vunpack.c.l.b16 %v7044
        %v7442 = vunpack.c.h.b16 %v7044
        %v7443 = vunpack.c.l.b16 %v7045
        %v7444 = vunpack.c.h.b16 %v7045
        %v7445 = vunpack.c.l.b16 %v7046
        %v7446 = vunpack.c.h.b16 %v7046
        %v7447 = vunpack.c.l.b16 %v7047
        %v7448 = vunpack.c.h.b16 %v7047
        %v7449 = vunpack.c.l.b16 %v7048
        %v7450 = vunpack.c.h.b16 %v7048
        %v7451 = vunpack.c.l.b16 %v7049
        %v7452 = vunpack.c.h.b16 %v7049
        %v7453 = vunpack.c.l.b16 %v7050
        %v7454 = vunpack.c.h.b16 %v7050
        %v7455 = vunpack.c.l.b16 %v7051
        %v7456 = vunpack.c.h.b16 %v7051
        %v7457 = vunpack.c.l.b16 %v7052
        %v7458 = vunpack.c.h.b16 %v7052
        %v7459 = vunpack.c.l.b16 %v7053
        %v7460 = vunpack.c.h.b16 %v7053
        %v7461 = vunpack.c.l.b16 %v7054
        %v7462 = vunpack.c.h.b16 %v7054
        %v7463 = vunpack.c.l.b16 %v7055
        %v7464 = vunpack.c.h.b16 %v7055
        %v7465 = vunpack.c.l.b16 %v7056
        %v7466 = vunpack.c.h.b16 %v7056
        %v7467 = vunpack.c.l.b16 %v7057
        %v7468 = vunpack.c.h.b16 %v7057
        %v7469 = vunpack.c.l.b16 %v7058
        %v7470 = vunpack.c.h.b16 %v7058
        %v7471 = vunpack.c.l.b16 %v7059
        %v7472 = vunpack.c.h.b16 %v7059
        %v7473 = vunpack.c.l.b16 %v7060
        %v7474 = vunpack.c.h.b16 %v7060
        %v7475 = vunpack.c.l.b16 %v7061
        %v7476 = vunpack.c.h.b16 %v7061
        %v7477 = vunpack.c.l.b16 %v7062
        %v7478 = vunpack.c.h.b16 %v7062
        %v7479 = vunpack.c.l.b16 %v7063
        %v7480 = vunpack.c.h.b16 %v7063
        %v7481 = vunpack.c.l.b16 %v7064
        %v7482 = vunpack.c.h.b16 %v7064
        %v7483 = vunpack.c.l.b16 %v7065
        %v7484 = vunpack.c.h.b16 %v7065
        %v7485 = vunpack.c.l.b16 %v7066
        %v7486 = vunpack.c.h.b16 %v7066
        %v7487 = vunpack.c.l.b16 %v7067
        %v7488 = vunpack.c.h.b16 %v7067
        %v7489 = vunpack.c.l.b16 %v7068
        %v7490 = vunpack.c.h.b16 %v7068
        %v7491 = vunpack.c.l.b16 %v7069
        %v7492 = vunpack.c.h.b16 %v7069
        %v7493 = vunpack.c.l.b16 %v7070
        %v7494 = vunpack.c.h.b16 %v7070
        %v7495 = vunpack.c.l.b16 %v7071
        %v7496 = vunpack.c.h.b16 %v7071
        %v7497 = vunpack.c.l.b16 %v7072
        %v7498 = vunpack.c.h.b16 %v7072
        %v7499 = vunpack.c.l.b16 %v7073
        %v7500 = vunpack.c.h.b16 %v7073
        %v7501 = vunpack.c.l.b16 %v7074
        %v7502 = vunpack.c.h.b16 %v7074
        %v7503 = vunpack.c.l.b16 %v7075
        %v7504 = vunpack.c.h.b16 %v7075
        %v7505 = vunpack.c.l.b16 %v7076
        %v7506 = vunpack.c.h.b16 %v7076
        %v7507 = vunpack.c.l.b16 %v7077
        %v7508 = vunpack.c.h.b16 %v7077
        %v7509 = vunpack.c.l.b16 %v7078
        %v7510 = vunpack.c.h.b16 %v7078
        %v7511 = vunpack.c.l.b16 %v7079
        %v7512 = vunpack.c.h.b16 %v7079
        %v7513 = vunpack.c.l.b16 %v7080
        %v7514 = vunpack.c.h.b16 %v7080
        %v7515 = vunpack.c.l.b16 %v7081
        %v7516 = vunpack.c.h.b16 %v7081
        %v7517 = vunpack.c.l.b16 %v7082
        %v7518 = vunpack.c.h.b16 %v7082
        %v7519 = vunpack.c.l.b16 %v7083
        %v7520 = vunpack.c.h.b16 %v7083
        %v7521 = vunpack.c.l.b16 %v7084
        %v7522 = vunpack.c.h.b16 %v7084
        %v7523 = vunpack.c.l.b16 %v7085
        %v7524 = vunpack.c.h.b16 %v7085
        %v7525 = vunpack.c.l.b16 %v7086
        %v7526 = vunpack.c.h.b16 %v7086
        %v7527 = vunpack.c.l.b16 %v7087
        %v7528 = vunpack.c.h.b16 %v7087
        %v7529 = vunpack.c.l.b16 %v7088
        %v7530 = vunpack.c.h.b16 %v7088
        %v7531 = vunpack.c.l.b16 %v7089
        %v7532 = vunpack.c.h.b16 %v7089
        %v7533 = vunpack.c.l.b16 %v7090
        %v7534 = vunpack.c.h.b16 %v7090
        %v7535 = vunpack.c.l.b16 %v7091
        %v7536 = vunpack.c.h.b16 %v7091
        %v7537 = vunpack.c.l.b16 %v7092
        %v7538 = vunpack.c.h.b16 %v7092
        %v7539 = vunpack.c.l.b16 %v7093
        %v7540 = vunpack.c.h.b16 %v7093
        %v7541 = vunpack.c.l.b16 %v7094
        %v7542 = vunpack.c.h.b16 %v7094
        %v7543 = vunpack.c.l.b16 %v7095
        %v7544 = vunpack.c.h.b16 %v7095
        %v7545 = vunpack.c.l.b16 %v7096
        %v7546 = vunpack.c.h.b16 %v7096
        %v7547 = vunpack.c.l.b16 %v7097
        %v7548 = vunpack.c.h.b16 %v7097
        %v7549 = vunpack.c.l.b16 %v7098
        %v7550 = vunpack.c.h.b16 %v7098
        %v7551 = vunpack.c.l.b16 %v7099
        %v7552 = vunpack.c.h.b16 %v7099
        %v7553 = vunpack.c.l.b16 %v7100
        %v7554 = vunpack.c.h.b16 %v7100
        %v7555 = vunpack.c.l.b16 %v7101
        %v7556 = vunpack.c.h.b16 %v7101
        %v7557 = vpack.c.b16 %v7277, %v7269
        %v7558 = vpack.c.b16 %v7278, %v7270
        %v7559 = vpack.c.b16 %v7279, %v7271
        %v7560 = vpack.c.b16 %v7280, %v7272
        %v7561 = vpack.c.b16 %v7281, %v7273
        %v7562 = vpack.c.b16 %v7282, %v7274
        %v7563 = vpack.c.b16 %v7283, %v7275
        %v7564 = vpack.c.b16 %v7284, %v7276
        %v7565 = vpack.c.b16 %v7293, %v7285
        %v7566 = vpack.c.b16 %v7294, %v7286
        %v7567 = vpack.c.b16 %v7295, %v7287
        %v7568 = vpack.c.b16 %v7296, %v7288
        %v7569 = vpack.c.b16 %v7297, %v7289
        %v7570 = vpack.c.b16 %v7298, %v7290
        %v7571 = vpack.c.b16 %v7299, %v7291
        %v7572 = vpack.c.b16 %v7300, %v7292
        %v7573 = vpack.c.b16 %v7309, %v7301
        %v7574 = vpack.c.b16 %v7310, %v7302
        %v7575 = vpack.c.b16 %v7311, %v7303
        %v7576 = vpack.c.b16 %v7312, %v7304
        %v7577 = vpack.c.b16 %v7313, %v7305
        %v7578 = vpack.c.b16 %v7314, %v7306
        %v7579 = vpack.c.b16 %v7315, %v7307
        %v7580 = vpack.c.b16 %v7316, %v7308
        %v7581 = vpack.c.b16 %v7325, %v7317
        %v7582 = vpack.c.b16 %v7326, %v7318
        %v7583 = vpack.c.b16 %v7327, %v7319
        %v7584 = vpack.c.b16 %v7328, %v7320
        %v7585 = vpack.c.b16 %v7329, %v7321
        %v7586 = vpack.c.b16 %v7330, %v7322
        %v7587 = vpack.c.b16 %v7331, %v7323
        %v7588 = vpack.c.b16 %v7332, %v7324
        %v7589 = vpack.c.b16 %v7341, %v7333
        %v7590 = vpack.c.b16 %v7342, %v7334
        %v7591 = vpack.c.b16 %v7343, %v7335
        %v7592 = vpack.c.b16 %v7344, %v7336
        %v7593 = vpack.c.b16 %v7345, %v7337
        %v7594 = vpack.c.b16 %v7346, %v7338
        %v7595 = vpack.c.b16 %v7347, %v7339
        %v7596 = vpack.c.b16 %v7348, %v7340
        %v7597 = vpack.c.b16 %v7357, %v7349
        %v7598 = vpack.c.b16 %v7358, %v7350
        %v7599 = vpack.c.b16 %v7359, %v7351
        %v7600 = vpack.c.b16 %v7360, %v7352
        %v7601 = vpack.c.b16 %v7361, %v7353
        %v7602 = vpack.c.b16 %v7362, %v7354
        %v7603 = vpack.c.b16 %v7363, %v7355
        %v7604 = vpack.c.b16 %v7364, %v7356
        %v7605 = vpack.c.b16 %v7373, %v7365
        %v7606 = vpack.c.b16 %v7374, %v7366
        %v7607 = vpack.c.b16 %v7375, %v7367
        %v7608 = vpack.c.b16 %v7376, %v7368
        %v7609 = vpack.c.b16 %v7377, %v7369
        %v7610 = vpack.c.b16 %v7378, %v7370
        %v7611 = vpack.c.b16 %v7379, %v7371
        %v7612 = vpack.c.b16 %v7380, %v7372
        %v7613 = vpack.c.b16 %v7389, %v7381
        %v7614 = vpack.c.b16 %v7390, %v7382
        %v7615 = vpack.c.b16 %v7391, %v7383
        %v7616 = vpack.c.b16 %v7392, %v7384
        %v7617 = vpack.c.b16 %v7393, %v7385
        %v7618 = vpack.c.b16 %v7394, %v7386
        %v7619 = vpack.c.b16 %v7395, %v7387
        %v7620 = vpack.c.b16 %v7396, %v7388
        %v7621 = vpack.c.b16 %v7405, %v7397
        %v7622 = vpack.c.b16 %v7406, %v7398
        %v7623 = vpack.c.b16 %v7407, %v7399
        %v7624 = vpack.c.b16 %v7408, %v7400
        %v7625 = vpack.c.b16 %v7409, %v7401
        %v7626 = vpack.c.b16 %v7410, %v7402
        %v7627 = vpack.c.b16 %v7411, %v7403
        %v7628 = vpack.c.b16 %v7412, %v7404
        %v7629 = vpack.c.b16 %v7421, %v7413
        %v7630 = vpack.c.b16 %v7422, %v7414
        %v7631 = vpack.c.b16 %v7423, %v7415
        %v7632 = vpack.c.b16 %v7424, %v7416
        %v7633 = vpack.c.b16 %v7425, %v7417
        %v7634 = vpack.c.b16 %v7426, %v7418
        %v7635 = vpack.c.b16 %v7427, %v7419
        %v7636 = vpack.c.b16 %v7428, %v7420
        %v7637 = vpack.c.b16 %v7437, %v7429
        %v7638 = vpack.c.b16 %v7438, %v7430
        %v7639 = vpack.c.b16 %v7439, %v7431
        %v7640 = vpack.c.b16 %v7440, %v7432
        %v7641 = vpack.c.b16 %v7441, %v7433
        %v7642 = vpack.c.b16 %v7442, %v7434
        %v7643 = vpack.c.b16 %v7443, %v7435
        %v7644 = vpack.c.b16 %v7444, %v7436
        %v7645 = vpack.c.b16 %v7453, %v7445
        %v7646 = vpack.c.b16 %v7454, %v7446
        %v7647 = vpack.c.b16 %v7455, %v7447
        %v7648 = vpack.c.b16 %v7456, %v7448
        %v7649 = vpack.c.b16 %v7457, %v7449
        %v7650 = vpack.c.b16 %v7458, %v7450
        %v7651 = vpack.c.b16 %v7459, %v7451
        %v7652 = vpack.c.b16 %v7460, %v7452
        %v7653 = vpack.c.b16 %v7469, %v7461
        %v7654 = vpack.c.b16 %v7470, %v7462
        %v7655 = vpack.c.b16 %v7471, %v7463
        %v7656 = vpack.c.b16 %v7472, %v7464
        %v7657 = vpack.c.b16 %v7473, %v7465
        %v7658 = vpack.c.b16 %v7474, %v7466
        %v7659 = vpack.c.b16 %v7475, %v7467
        %v7660 = vpack.c.b16 %v7476, %v7468
        %v7661 = vpack.c.b16 %v7485, %v7477
        %v7662 = vpack.c.b16 %v7486, %v7478
        %v7663 = vpack.c.b16 %v7487, %v7479
        %v7664 = vpack.c.b16 %v7488, %v7480
        %v7665 = vpack.c.b16 %v7489, %v7481
        %v7666 = vpack.c.b16 %v7490, %v7482
        %v7667 = vpack.c.b16 %v7491, %v7483
        %v7668 = vpack.c.b16 %v7492, %v7484
        %v7669 = vpack.c.b16 %v7501, %v7493
        %v7670 = vpack.c.b16 %v7502, %v7494
        %v7671 = vpack.c.b16 %v7503, %v7495
        %v7672 = vpack.c.b16 %v7504, %v7496
        %v7673 = vpack.c.b16 %v7505, %v7497
        %v7674 = vpack.c.b16 %v7506, %v7498
        %v7675 = vpack.c.b16 %v7507, %v7499
        %v7676 = vpack.c.b16 %v7508, %v7500
        %v7677 = vpack.c.b16 %v7517, %v7509
        %v7678 = vpack.c.b16 %v7518, %v7510
        %v7679 = vpack.c.b16 %v7519, %v7511
        %v7680 = vpack.c.b16 %v7520, %v7512
        %v7681 = vpack.c.b16 %v7521, %v7513
        %v7682 = vpack.c.b16 %v7522, %v7514
        %v7683 = vpack.c.b16 %v7523, %v7515
        %v7684 = vpack.c.b16 %v7524, %v7516
        %v7685 = vpack.c.b16 %v7533, %v7525
        %v7686 = vpack.c.b16 %v7534, %v7526
        %v7687 = vpack.c.b16 %v7535, %v7527
        %v7688 = vpack.c.b16 %v7536, %v7528
        %v7689 = vpack.c.b16 %v7537, %v7529
        %v7690 = vpack.c.b16 %v7538, %v7530
        %v7691 = vpack.c.b16 %v7539, %v7531
        %v7692 = vpack.c.b16 %v7540, %v7532
        %v7693 = vpack.c.b16 %v7549, %v7541
        %v7694 = vpack.c.b16 %v7550, %v7542
        %v7695 = vpack.c.b16 %v7551, %v7543
        %v7696 = vpack.c.b16 %v7552, %v7544
        %v7697 = vpack.c.b16 %v7553, %v7545
        %v7698 = vpack.c.b16 %v7554, %v7546
        %v7699 = vpack.c.b16 %v7555, %v7547
        %v7700 = vpack.c.b16 %v7556, %v7548
        %v7846 = vsel %vm1838, %v7122, 0
        %7848 = vmatprep.subr.bf16.mxu0 %v7558
        %7849 = vmatpush1.bf16.msra.mxu0 %v7557
        %7850 = vmatprep.subr.bf16.mxu0 %v7566
        %7851 = vmatpush1.bf16.msra.mxu0 %v7565
        %7852 = vmatprep.subr.bf16.mxu0 %v7574
        %7853 = vmatpush1.bf16.msra.mxu0 %v7573
        %7854 = vmatprep.subr.bf16.mxu0 %v7582
        %7855 = vmatpush1.bf16.msra.mxu0 %v7581
        %7856 = vmatprep.subr.bf16.mxu0 %v7590
        %7857 = vmatpush1.bf16.msra.mxu0 %v7589
        %7858 = vmatprep.subr.bf16.mxu0 %v7598
        %7859 = vmatpush1.bf16.msra.mxu0 %v7597
        %7860 = vmatprep.subr.bf16.mxu0 %v7606
        %7861 = vmatpush1.bf16.msra.mxu0 %v7605
        %7862 = vmatprep.subr.bf16.mxu0 %v7614
        %7863 = vmatpush1.bf16.msra.mxu0 %v7613
        %7864 = vmatprep.subr.bf16.mxu0 %v7622
        %7865 = vmatpush1.bf16.msra.mxu0 %v7621
        %7866 = vmatprep.subr.bf16.mxu0 %v7630
        %7867 = vmatpush1.bf16.msra.mxu0 %v7629
        %7868 = vmatprep.subr.bf16.mxu0 %v7638
        %7869 = vmatpush1.bf16.msra.mxu0 %v7637
        %7870 = vmatprep.subr.bf16.mxu0 %v7646
        %7871 = vmatpush1.bf16.msra.mxu0 %v7645
        %7872 = vmatprep.subr.bf16.mxu0 %v7654
        %7873 = vmatpush1.bf16.msra.mxu0 %v7653
        %7874 = vmatprep.subr.bf16.mxu0 %v7662
        %7875 = vmatpush1.bf16.msra.mxu0 %v7661
        %7876 = vmatprep.subr.bf16.mxu0 %v7670
        %7877 = vmatpush1.bf16.msra.mxu0 %v7669
        %7878 = vmatprep.subr.bf16.mxu0 %v7678
        %7879 = vmatpush1.bf16.msra.mxu0 %v7677
        %7880 = vmatprep.mubr.bf16.mxu0 %v7115
        %7881 = vmatmul.mubr.bf16.gmra.mrb[0].mxu0 %v7108
        %v7882 = vpop.f32.mrb[0].mxu0
        %v7883 = vadd.f32 0.0, %v7882
        %v7884 = vpop.f32.mrb[0].mxu0
        %v7885 = vadd.f32 0.0, %v7884
        %v7886 = vpop.f32.mrb[0].mxu0
        %v7887 = vpop.f32.mrb[0].mxu0
        %7888 = vdwg.mxu0
        %7889 = vmatprep.subr.bf16.mxu0 %v7686
        %7890 = vmatpush1.bf16.msra.mxu0 %v7685
        %7891 = vmatprep.subr.bf16.mxu0 %v7694
        %7892 = vmatpush1.bf16.msra.mxu0 %v7693
        %7893 = vmatprep.subr.bf16.mxu0 0
        %7894 = vmatpush1.bf16.msra.mxu0 0
        %7895 = vmatprep.subr.bf16.mxu0 0
        %7896 = vmatpush1.bf16.msra.mxu0 0
        %7897 = vmatprep.subr.bf16.mxu0 0
        %7898 = vmatpush1.bf16.msra.mxu0 0
        %7899 = vmatprep.subr.bf16.mxu0 0
        %7900 = vmatpush1.bf16.msra.mxu0 0
        %7901 = vmatprep.subr.bf16.mxu0 0
        %7902 = vmatpush1.bf16.msra.mxu0 0
        %7903 = vmatprep.subr.bf16.mxu0 0
        %7904 = vmatpush1.bf16.msra.mxu0 0
        %7905 = vmatprep.subr.bf16.mxu0 0
        %7906 = vmatpush1.bf16.msra.mxu0 0
        %7907 = vmatprep.subr.bf16.mxu0 0
        %7908 = vmatpush1.bf16.msra.mxu0 0
        %7909 = vmatprep.subr.bf16.mxu0 0
        %7910 = vmatpush1.bf16.msra.mxu0 0
        %7911 = vmatprep.subr.bf16.mxu0 0
        %7912 = vmatpush1.bf16.msra.mxu0 0
        %7913 = vmatprep.subr.bf16.mxu0 0
        %7914 = vmatpush1.bf16.msra.mxu0 0
        %7915 = vmatprep.subr.bf16.mxu0 0
        %7916 = vmatpush1.bf16.msra.mxu0 0
        %7917 = vmatprep.subr.bf16.mxu0 0
        %7918 = vmatpush1.bf16.msra.mxu0 0
        %7919 = vmatprep.subr.bf16.mxu0 0
        %7920 = vmatpush1.bf16.msra.mxu0 0
        %7921 = vmatprep.mubr.bf16.mxu0 0
        %7922 = vmatmul.mubr.bf16.gmra.mrb[0].mxu0 %v7846
        %v7923 = vpop.f32.mrb[0].mxu0
        %v7924 = vadd.f32 %v7883, %v7923
        %v7925 = vpop.f32.mrb[0].mxu0
        %v7926 = vadd.f32 %v7885, %v7925
        %v7927 = vpop.f32.mrb[0].mxu0
        %v7928 = vpop.f32.mrb[0].mxu0
        %7929 = vdwg.mxu0
        %7930 = vmatprep.subr.bf16.mxu0 %v7560
        %7931 = vmatpush1.bf16.msra.mxu0 %v7559
        %7932 = vmatprep.subr.bf16.mxu0 %v7568
        %7933 = vmatpush1.bf16.msra.mxu0 %v7567
        %7934 = vmatprep.subr.bf16.mxu0 %v7576
        %7935 = vmatpush1.bf16.msra.mxu0 %v7575
        %7936 = vmatprep.subr.bf16.mxu0 %v7584
        %7937 = vmatpush1.bf16.msra.mxu0 %v7583
        %7938 = vmatprep.subr.bf16.mxu0 %v7592
        %7939 = vmatpush1.bf16.msra.mxu0 %v7591
        %7940 = vmatprep.subr.bf16.mxu0 %v7600
        %7941 = vmatpush1.bf16.msra.mxu0 %v7599
        %7942 = vmatprep.subr.bf16.mxu0 %v7608
        %7943 = vmatpush1.bf16.msra.mxu0 %v7607
        %7944 = vmatprep.subr.bf16.mxu0 %v7616
        %7945 = vmatpush1.bf16.msra.mxu0 %v7615
        %7946 = vmatprep.subr.bf16.mxu0 %v7624
        %7947 = vmatpush1.bf16.msra.mxu0 %v7623
        %7948 = vmatprep.subr.bf16.mxu0 %v7632
        %7949 = vmatpush1.bf16.msra.mxu0 %v7631
        %7950 = vmatprep.subr.bf16.mxu0 %v7640
        %7951 = vmatpush1.bf16.msra.mxu0 %v7639
        %7952 = vmatprep.subr.bf16.mxu0 %v7648
        %7953 = vmatpush1.bf16.msra.mxu0 %v7647
        %7954 = vmatprep.subr.bf16.mxu0 %v7656
        %7955 = vmatpush1.bf16.msra.mxu0 %v7655
        %7956 = vmatprep.subr.bf16.mxu0 %v7664
        %7957 = vmatpush1.bf16.msra.mxu0 %v7663
        %7958 = vmatprep.subr.bf16.mxu0 %v7672
        %7959 = vmatpush1.bf16.msra.mxu0 %v7671
        %7960 = vmatprep.subr.bf16.mxu0 %v7680
        %7961 = vmatpush1.bf16.msra.mxu0 %v7679
        %7962 = vmatprep.mubr.bf16.mxu0 %v7115
        %7963 = vmatmul.mubr.bf16.gmra.mrb[0].mxu0 %v7108
        %v7964 = vpop.f32.mrb[0].mxu0
        %v7965 = vadd.f32 0.0, %v7964
        %v7966 = vpop.f32.mrb[0].mxu0
        %v7967 = vadd.f32 0.0, %v7966
        %v7968 = vpop.f32.mrb[0].mxu0
        %v7969 = vpop.f32.mrb[0].mxu0
        %7970 = vdwg.mxu0
        %7971 = vmatprep.subr.bf16.mxu0 %v7688
        %7972 = vmatpush1.bf16.msra.mxu0 %v7687
        %7973 = vmatprep.subr.bf16.mxu0 %v7696
        %7974 = vmatpush1.bf16.msra.mxu0 %v7695
        %7975 = vmatprep.subr.bf16.mxu0 0
        %7976 = vmatpush1.bf16.msra.mxu0 0
        %7977 = vmatprep.subr.bf16.mxu0 0
        %7978 = vmatpush1.bf16.msra.mxu0 0
        %7979 = vmatprep.subr.bf16.mxu0 0
        %7980 = vmatpush1.bf16.msra.mxu0 0
        %7981 = vmatprep.subr.bf16.mxu0 0
        %7982 = vmatpush1.bf16.msra.mxu0 0
        %7983 = vmatprep.subr.bf16.mxu0 0
        %7984 = vmatpush1.bf16.msra.mxu0 0
        %7985 = vmatprep.subr.bf16.mxu0 0
        %7986 = vmatpush1.bf16.msra.mxu0 0
        %7987 = vmatprep.subr.bf16.mxu0 0
        %7988 = vmatpush1.bf16.msra.mxu0 0
        %7989 = vmatprep.subr.bf16.mxu0 0
        %7990 = vmatpush1.bf16.msra.mxu0 0
        %7991 = vmatprep.subr.bf16.mxu0 0
        %7992 = vmatpush1.bf16.msra.mxu0 0
        %7993 = vmatprep.subr.bf16.mxu0 0
        %7994 = vmatpush1.bf16.msra.mxu0 0
        %7995 = vmatprep.subr.bf16.mxu0 0
        %7996 = vmatpush1.bf16.msra.mxu0 0
        %7997 = vmatprep.subr.bf16.mxu0 0
        %7998 = vmatpush1.bf16.msra.mxu0 0
        %7999 = vmatprep.subr.bf16.mxu0 0
        %8000 = vmatpush1.bf16.msra.mxu0 0
        %8001 = vmatprep.subr.bf16.mxu0 0
        %8002 = vmatpush1.bf16.msra.mxu0 0
        %8003 = vmatprep.mubr.bf16.mxu0 0
        %8004 = vmatmul.mubr.bf16.gmra.mrb[0].mxu0 %v7846
        %v8005 = vpop.f32.mrb[0].mxu0
        %v8006 = vadd.f32 %v7965, %v8005
        %v8007 = vpop.f32.mrb[0].mxu0
        %v8008 = vadd.f32 %v7967, %v8007
        %v8009 = vpop.f32.mrb[0].mxu0
        %v8010 = vpop.f32.mrb[0].mxu0
        %8011 = vdwg.mxu0
        %8012 = vmatprep.subr.bf16.mxu0 %v7562
        %8013 = vmatpush1.bf16.msra.mxu0 %v7561
        %8014 = vmatprep.subr.bf16.mxu0 %v7570
        %8015 = vmatpush1.bf16.msra.mxu0 %v7569
        %8016 = vmatprep.subr.bf16.mxu0 %v7578
        %8017 = vmatpush1.bf16.msra.mxu0 %v7577
        %8018 = vmatprep.subr.bf16.mxu0 %v7586
        %8019 = vmatpush1.bf16.msra.mxu0 %v7585
        %8020 = vmatprep.subr.bf16.mxu0 %v7594
        %8021 = vmatpush1.bf16.msra.mxu0 %v7593
        %8022 = vmatprep.subr.bf16.mxu0 %v7602
        %8023 = vmatpush1.bf16.msra.mxu0 %v7601
        %8024 = vmatprep.subr.bf16.mxu0 %v7610
        %8025 = vmatpush1.bf16.msra.mxu0 %v7609
        %8026 = vmatprep.subr.bf16.mxu0 %v7618
        %8027 = vmatpush1.bf16.msra.mxu0 %v7617
        %8028 = vmatprep.subr.bf16.mxu0 %v7626
        %8029 = vmatpush1.bf16.msra.mxu0 %v7625
        %8030 = vmatprep.subr.bf16.mxu0 %v7634
        %8031 = vmatpush1.bf16.msra.mxu0 %v7633
        %8032 = vmatprep.subr.bf16.mxu0 %v7642
        %8033 = vmatpush1.bf16.msra.mxu0 %v7641
        %8034 = vmatprep.subr.bf16.mxu0 %v7650
        %8035 = vmatpush1.bf16.msra.mxu0 %v7649
        %8036 = vmatprep.subr.bf16.mxu0 %v7658
        %8037 = vmatpush1.bf16.msra.mxu0 %v7657
        %8038 = vmatprep.subr.bf16.mxu0 %v7666
        %8039 = vmatpush1.bf16.msra.mxu0 %v7665
        %8040 = vmatprep.subr.bf16.mxu0 %v7674
        %8041 = vmatpush1.bf16.msra.mxu0 %v7673
        %8042 = vmatprep.subr.bf16.mxu0 %v7682
        %8043 = vmatpush1.bf16.msra.mxu0 %v7681
        %8044 = vmatprep.mubr.bf16.mxu0 %v7115
        %8045 = vmatmul.mubr.bf16.gmra.mrb[0].mxu0 %v7108
        %v8046 = vpop.f32.mrb[0].mxu0
        %v8047 = vadd.f32 0.0, %v8046
        %v8048 = vpop.f32.mrb[0].mxu0
        %v8049 = vadd.f32 0.0, %v8048
        %v8050 = vpop.f32.mrb[0].mxu0
        %v8051 = vpop.f32.mrb[0].mxu0
        %8052 = vdwg.mxu0
        %8053 = vmatprep.subr.bf16.mxu0 %v7690
        %8054 = vmatpush1.bf16.msra.mxu0 %v7689
        %8055 = vmatprep.subr.bf16.mxu0 %v7698
        %8056 = vmatpush1.bf16.msra.mxu0 %v7697
        %8057 = vmatprep.subr.bf16.mxu0 0
        %8058 = vmatpush1.bf16.msra.mxu0 0
        %8059 = vmatprep.subr.bf16.mxu0 0
        %8060 = vmatpush1.bf16.msra.mxu0 0
        %8061 = vmatprep.subr.bf16.mxu0 0
        %8062 = vmatpush1.bf16.msra.mxu0 0
        %8063 = vmatprep.subr.bf16.mxu0 0
        %8064 = vmatpush1.bf16.msra.mxu0 0
        %8065 = vmatprep.subr.bf16.mxu0 0
        %8066 = vmatpush1.bf16.msra.mxu0 0
        %8067 = vmatprep.subr.bf16.mxu0 0
        %8068 = vmatpush1.bf16.msra.mxu0 0
        %8069 = vmatprep.subr.bf16.mxu0 0
        %8070 = vmatpush1.bf16.msra.mxu0 0
        %8071 = vmatprep.subr.bf16.mxu0 0
        %8072 = vmatpush1.bf16.msra.mxu0 0
        %8073 = vmatprep.subr.bf16.mxu0 0
        %8074 = vmatpush1.bf16.msra.mxu0 0
        %8075 = vmatprep.subr.bf16.mxu0 0
        %8076 = vmatpush1.bf16.msra.mxu0 0
        %8077 = vmatprep.subr.bf16.mxu0 0
        %8078 = vmatpush1.bf16.msra.mxu0 0
        %8079 = vmatprep.subr.bf16.mxu0 0
        %8080 = vmatpush1.bf16.msra.mxu0 0
        %8081 = vmatprep.subr.bf16.mxu0 0
        %8082 = vmatpush1.bf16.msra.mxu0 0
        %8083 = vmatprep.subr.bf16.mxu0 0
        %8084 = vmatpush1.bf16.msra.mxu0 0
        %8085 = vmatprep.mubr.bf16.mxu0 0
        %8086 = vmatmul.mubr.bf16.gmra.mrb[0].mxu0 %v7846
        %v8087 = vpop.f32.mrb[0].mxu0
        %v8088 = vadd.f32 %v8047, %v8087
        %v8089 = vpop.f32.mrb[0].mxu0
        %v8090 = vadd.f32 %v8049, %v8089
        %v8091 = vpop.f32.mrb[0].mxu0
        %v8092 = vpop.f32.mrb[0].mxu0
        %8093 = vdwg.mxu0
        %8094 = vmatprep.subr.bf16.mxu0 %v7564
        %8095 = vmatpush1.bf16.msra.mxu0 %v7563
        %8096 = vmatprep.subr.bf16.mxu0 %v7572
        %8097 = vmatpush1.bf16.msra.mxu0 %v7571
        %8098 = vmatprep.subr.bf16.mxu0 %v7580
        %8099 = vmatpush1.bf16.msra.mxu0 %v7579
        %8100 = vmatprep.subr.bf16.mxu0 %v7588
        %8101 = vmatpush1.bf16.msra.mxu0 %v7587
        %8102 = vmatprep.subr.bf16.mxu0 %v7596
        %8103 = vmatpush1.bf16.msra.mxu0 %v7595
        %8104 = vmatprep.subr.bf16.mxu0 %v7604
        %8105 = vmatpush1.bf16.msra.mxu0 %v7603
        %8106 = vmatprep.subr.bf16.mxu0 %v7612
        %8107 = vmatpush1.bf16.msra.mxu0 %v7611
        %8108 = vmatprep.subr.bf16.mxu0 %v7620
        %8109 = vmatpush1.bf16.msra.mxu0 %v7619
        %8110 = vmatprep.subr.bf16.mxu0 %v7628
        %8111 = vmatpush1.bf16.msra.mxu0 %v7627
        %8112 = vmatprep.subr.bf16.mxu0 %v7636
        %8113 = vmatpush1.bf16.msra.mxu0 %v7635
        %8114 = vmatprep.subr.bf16.mxu0 %v7644
        %8115 = vmatpush1.bf16.msra.mxu0 %v7643
        %8116 = vmatprep.subr.bf16.mxu0 %v7652
        %8117 = vmatpush1.bf16.msra.mxu0 %v7651
        %8118 = vmatprep.subr.bf16.mxu0 %v7660
        %8119 = vmatpush1.bf16.msra.mxu0 %v7659
        %8120 = vmatprep.subr.bf16.mxu0 %v7668
        %8121 = vmatpush1.bf16.msra.mxu0 %v7667
        %8122 = vmatprep.subr.bf16.mxu0 %v7676
        %8123 = vmatpush1.bf16.msra.mxu0 %v7675
        %8124 = vmatprep.subr.bf16.mxu0 %v7684
        %8125 = vmatpush1.bf16.msra.mxu0 %v7683
        %8126 = vmatprep.mubr.bf16.mxu0 %v7115
        %8127 = vmatmul.mubr.bf16.gmra.mrb[0].mxu0 %v7108
        %v8128 = vpop.f32.mrb[0].mxu0
        %v8129 = vadd.f32 0.0, %v8128
        %v8130 = vpop.f32.mrb[0].mxu0
        %v8131 = vadd.f32 0.0, %v8130
        %v8132 = vpop.f32.mrb[0].mxu0
        %v8133 = vpop.f32.mrb[0].mxu0
        %8134 = vdwg.mxu0
        %8135 = vmatprep.subr.bf16.mxu0 %v7692
        %8136 = vmatpush1.bf16.msra.mxu0 %v7691
        %8137 = vmatprep.subr.bf16.mxu0 %v7700
        %8138 = vmatpush1.bf16.msra.mxu0 %v7699
        %8139 = vmatprep.subr.bf16.mxu0 0
        %8140 = vmatpush1.bf16.msra.mxu0 0
        %8141 = vmatprep.subr.bf16.mxu0 0
        %8142 = vmatpush1.bf16.msra.mxu0 0
        %8143 = vmatprep.subr.bf16.mxu0 0
        %8144 = vmatpush1.bf16.msra.mxu0 0
        %8145 = vmatprep.subr.bf16.mxu0 0
        %8146 = vmatpush1.bf16.msra.mxu0 0
        %8147 = vmatprep.subr.bf16.mxu0 0
        %8148 = vmatpush1.bf16.msra.mxu0 0
        %8149 = vmatprep.subr.bf16.mxu0 0
        %8150 = vmatpush1.bf16.msra.mxu0 0
        %8151 = vmatprep.subr.bf16.mxu0 0
        %8152 = vmatpush1.bf16.msra.mxu0 0
        %8153 = vmatprep.subr.bf16.mxu0 0
        %8154 = vmatpush1.bf16.msra.mxu0 0
        %8155 = vmatprep.subr.bf16.mxu0 0
        %8156 = vmatpush1.bf16.msra.mxu0 0
        %8157 = vmatprep.subr.bf16.mxu0 0
        %8158 = vmatpush1.bf16.msra.mxu0 0
        %8159 = vmatprep.subr.bf16.mxu0 0
        %8160 = vmatpush1.bf16.msra.mxu0 0
        %8161 = vmatprep.subr.bf16.mxu0 0
        %8162 = vmatpush1.bf16.msra.mxu0 0
        %8163 = vmatprep.subr.bf16.mxu0 0
        %8164 = vmatpush1.bf16.msra.mxu0 0
        %8165 = vmatprep.subr.bf16.mxu0 0
        %8166 = vmatpush1.bf16.msra.mxu0 0
        %8167 = vmatprep.mubr.bf16.mxu0 0
        %8168 = vmatmul.mubr.bf16.gmra.mrb[0].mxu0 %v7846
        %v8169 = vpop.f32.mrb[0].mxu0
        %v8170 = vadd.f32 %v8129, %v8169
        %v8171 = vpop.f32.mrb[0].mxu0
        %v8172 = vadd.f32 %v8131, %v8171
        %v8173 = vpop.f32.mrb[0].mxu0
        %v8174 = vpop.f32.mrb[0].mxu0
        %8175 = vdwg.mxu0
        %v8176 = vadd.f32 %v6943, %v7924
        %v8177 = vadd.f32 %v6944, %v7926
        %v8178 = vadd.f32 %v6945, %v8006
        %v8179 = vadd.f32 %v6946, %v8008
        %v8180 = vadd.f32 %v6947, %v8088
        %v8181 = vadd.f32 %v6948, %v8090
        %v8182 = vadd.f32 %v6949, %v8170
        %v8183 = vadd.f32 %v6950, %v8172
        %v8184 = vld [vmem:[%s2060] sm:$0xfc]
        %v8185 = vld [vmem:[%s2060 + $0x8] sm:$0xfc]
        %v8186 = vld [vmem:[%s2060 + $0x10] sm:$0xfc]
        %v8187 = vld [vmem:[%s2060 + $0x18] sm:$0x1]
        %v8188 = vld [vmem:[%s2060 + $0x20] sm:$0x1]
        %v8189 = vld [vmem:[%s2060 + $0x28] sm:$0x1]
        %v8190 = vpack.c.bf16 %v8187, %v8184
        %v8191 = vpack.c.bf16 %v8188, %v8185
        %v8192 = vpack.c.bf16 %v8189, %v8186
        %s8193 = scalar_lea.vmem [#allocation9], 5760
        %v8194 = vld [vmem:[%s8193] sm:$0xff]
        %v8195 = vld [vmem:[%s8193 + $0x8] sm:$0xff]
        %v8196 = vld [vmem:[%s8193 + $0x10] sm:$0xff]
        %v8197 = vld [vmem:[%s8193 + $0x18] sm:$0xff]
        %v8198 = vld [vmem:[%s8193 + $0x20] sm:$0xff]
        %v8199 = vld [vmem:[%s8193 + $0x28] sm:$0xff]
        %v8200 = vld [vmem:[%s8193 + $0x30] sm:$0xff]
        %v8201 = vld [vmem:[%s8193 + $0x38] sm:$0xff]
        %v8202 = vld [vmem:[%s8193 + $0x40] sm:$0xff]
        %v8203 = vld [vmem:[%s8193 + $0x48] sm:$0xff]
        %v8204 = vld [vmem:[%s8193 + $0x50] sm:$0xff]
        %v8205 = vld [vmem:[%s8193 + $0x58] sm:$0xff]
        %v8206 = vld [vmem:[%s8193 + $0x60] sm:$0xff]
        %v8207 = vld [vmem:[%s8193 + $0x68] sm:$0xff]
        %v8208 = vld [vmem:[%s8193 + $0x70] sm:$0xff]
        %v8209 = vld [vmem:[%s8193 + $0x78] sm:$0xff]
        %v8210 = vld [vmem:[%s8193 + $0x80] sm:$0xff]
        %v8211 = vld [vmem:[%s8193 + $0x88] sm:$0xff]
        %v8212 = vld [vmem:[%s8193 + $0x90] sm:$0xff]
        %v8213 = vld [vmem:[%s8193 + $0x98] sm:$0xff]
        %v8214 = vld [vmem:[%s8193 + $0xa0] sm:$0xff]
        %v8215 = vld [vmem:[%s8193 + $0xa8] sm:$0xff]
        %v8216 = vld [vmem:[%s8193 + $0xb0] sm:$0xff]
        %v8217 = vld [vmem:[%s8193 + $0xb8] sm:$0xff]
        %v8218 = vld [vmem:[%s8193 + $0xc0] sm:$0xff]
        %v8219 = vld [vmem:[%s8193 + $0xc8] sm:$0xff]
        %v8220 = vld [vmem:[%s8193 + $0xd0] sm:$0xff]
        %v8221 = vld [vmem:[%s8193 + $0xd8] sm:$0xff]
        %v8222 = vld [vmem:[%s8193 + $0xe0] sm:$0xff]
        %v8223 = vld [vmem:[%s8193 + $0xe8] sm:$0xff]
        %v8224 = vld [vmem:[%s8193 + $0xf0] sm:$0xff]
        %v8225 = vld [vmem:[%s8193 + $0xf8] sm:$0xff]
        %v8226 = vld [vmem:[%s8193 + $0x100] sm:$0xff]
        %v8227 = vld [vmem:[%s8193 + $0x108] sm:$0xff]
        %v8228 = vld [vmem:[%s8193 + $0x110] sm:$0xff]
        %v8229 = vld [vmem:[%s8193 + $0x118] sm:$0xff]
        %v8230 = vld [vmem:[%s8193 + $0x120] sm:$0xff]
        %v8231 = vld [vmem:[%s8193 + $0x128] sm:$0xff]
        %v8232 = vld [vmem:[%s8193 + $0x130] sm:$0xff]
        %v8233 = vld [vmem:[%s8193 + $0x138] sm:$0xff]
        %v8234 = vld [vmem:[%s8193 + $0x140] sm:$0xff]
        %v8235 = vld [vmem:[%s8193 + $0x148] sm:$0xff]
        %v8236 = vld [vmem:[%s8193 + $0x150] sm:$0xff]
        %v8237 = vld [vmem:[%s8193 + $0x158] sm:$0xff]
        %v8238 = vld [vmem:[%s8193 + $0x160] sm:$0xff]
        %v8239 = vld [vmem:[%s8193 + $0x168] sm:$0xff]
        %v8240 = vld [vmem:[%s8193 + $0x170] sm:$0xff]
        %v8241 = vld [vmem:[%s8193 + $0x178] sm:$0xff]
        %v8242 = vld [vmem:[%s8193 + $0x180] sm:$0xff]
        %v8243 = vld [vmem:[%s8193 + $0x188] sm:$0xff]
        %v8244 = vld [vmem:[%s8193 + $0x190] sm:$0xff]
        %v8245 = vld [vmem:[%s8193 + $0x198] sm:$0xff]
        %v8246 = vld [vmem:[%s8193 + $0x1a0] sm:$0xff]
        %v8247 = vld [vmem:[%s8193 + $0x1a8] sm:$0xff]
        %v8248 = vld [vmem:[%s8193 + $0x1b0] sm:$0xff]
        %v8249 = vld [vmem:[%s8193 + $0x1b8] sm:$0xff]
        %v8250 = vld [vmem:[%s8193 + $0x1c0] sm:$0xff]
        %v8251 = vld [vmem:[%s8193 + $0x1c8] sm:$0xff]
        %v8252 = vld [vmem:[%s8193 + $0x1d0] sm:$0xff]
        %v8253 = vld [vmem:[%s8193 + $0x1d8] sm:$0xff]
        %v8254 = vld [vmem:[%s8193 + $0x1e0] sm:$0xff]
        %v8255 = vld [vmem:[%s8193 + $0x1e8] sm:$0xff]
        %v8256 = vld [vmem:[%s8193 + $0x1f0] sm:$0xff]
        %v8257 = vld [vmem:[%s8193 + $0x1f8] sm:$0xff]
        %v8258 = vld [vmem:[%s8193 + $0x200] sm:$0xff]
        %v8259 = vld [vmem:[%s8193 + $0x208] sm:$0xff]
        %v8260 = vld [vmem:[%s8193 + $0x210] sm:$0xff]
        %v8261 = vld [vmem:[%s8193 + $0x218] sm:$0xff]
        %v8262 = vld [vmem:[%s8193 + $0x220] sm:$0xff]
        %v8263 = vld [vmem:[%s8193 + $0x228] sm:$0xff]
        %v8264 = vld [vmem:[%s8193 + $0x230] sm:$0xff]
        %v8265 = vld [vmem:[%s8193 + $0x238] sm:$0xff]
        %v8266 = vld [vmem:[%s8193 + $0x240] sm:$0xff]
        %v8267 = vld [vmem:[%s8193 + $0x248] sm:$0xff]
        %v8268 = vld [vmem:[%s8193 + $0x250] sm:$0xff]
        %v8269 = vld [vmem:[%s8193 + $0x258] sm:$0xff]
        %v8270 = vld [vmem:[%s8193 + $0x260] sm:$0xff]
        %v8271 = vld [vmem:[%s8193 + $0x268] sm:$0xff]
        %v8272 = vld [vmem:[%s8193 + $0x270] sm:$0xff]
        %v8273 = vld [vmem:[%s8193 + $0x278] sm:$0xff]
        %v8274 = vld [vmem:[%s8193 + $0x280] sm:$0xff]
        %v8275 = vld [vmem:[%s8193 + $0x288] sm:$0xff]
        %v8276 = vld [vmem:[%s8193 + $0x290] sm:$0xff]
        %v8277 = vld [vmem:[%s8193 + $0x298] sm:$0xff]
        %v8278 = vld [vmem:[%s8193 + $0x2a0] sm:$0xff]
        %v8279 = vld [vmem:[%s8193 + $0x2a8] sm:$0xff]
        %v8280 = vld [vmem:[%s8193 + $0x2b0] sm:$0xff]
        %v8281 = vld [vmem:[%s8193 + $0x2b8] sm:$0xff]
        %v8282 = vld [vmem:[%s8193 + $0x2c0] sm:$0xff]
        %v8283 = vld [vmem:[%s8193 + $0x2c8] sm:$0xff]
        %v8284 = vld [vmem:[%s8193 + $0x2d0] sm:$0xff]
        %v8285 = vld [vmem:[%s8193 + $0x2d8] sm:$0xff]
        %v8286 = vld [vmem:[%s8193 + $0x2e0] sm:$0xff]
        %v8287 = vld [vmem:[%s8193 + $0x2e8] sm:$0xff]
        %v8288 = vld [vmem:[%s8193 + $0x2f0] sm:$0xff]
        %v8289 = vld [vmem:[%s8193 + $0x2f8] sm:$0xff]
        %v8290 = vld [vmem:[%s8193 + $0x300] sm:$0xff]
        %v8291 = vld [vmem:[%s8193 + $0x308] sm:$0xff]
        %v8292 = vld [vmem:[%s8193 + $0x310] sm:$0xff]
        %v8293 = vld [vmem:[%s8193 + $0x318] sm:$0xff]
        %v8294 = vld [vmem:[%s8193 + $0x320] sm:$0xff]
        %v8295 = vld [vmem:[%s8193 + $0x328] sm:$0xff]
        %v8296 = vld [vmem:[%s8193 + $0x330] sm:$0xff]
        %v8297 = vld [vmem:[%s8193 + $0x338] sm:$0xff]
        %v8298 = vld [vmem:[%s8193 + $0x340] sm:$0xff]
        %v8299 = vld [vmem:[%s8193 + $0x348] sm:$0xff]
        %v8300 = vld [vmem:[%s8193 + $0x350] sm:$0xff]
        %v8301 = vld [vmem:[%s8193 + $0x358] sm:$0xff]
        %v8302 = vld [vmem:[%s8193 + $0x360] sm:$0xff]
        %v8303 = vld [vmem:[%s8193 + $0x368] sm:$0xff]
        %v8304 = vld [vmem:[%s8193 + $0x370] sm:$0xff]
        %v8305 = vld [vmem:[%s8193 + $0x378] sm:$0xff]
        %v8306 = vld [vmem:[%s8193 + $0x380] sm:$0xff]
        %v8307 = vld [vmem:[%s8193 + $0x388] sm:$0xff]
        %v8308 = vld [vmem:[%s8193 + $0x390] sm:$0xff]
        %v8309 = vld [vmem:[%s8193 + $0x398] sm:$0xff]
        %v8310 = vld [vmem:[%s8193 + $0x3a0] sm:$0xff]
        %v8311 = vld [vmem:[%s8193 + $0x3a8] sm:$0xff]
        %v8312 = vld [vmem:[%s8193 + $0x3b0] sm:$0xff]
        %v8313 = vld [vmem:[%s8193 + $0x3b8] sm:$0xff]
        %v8314 = vld [vmem:[%s8193 + $0x3c0] sm:$0xff]
        %v8315 = vld [vmem:[%s8193 + $0x3c8] sm:$0xff]
        %v8316 = vld [vmem:[%s8193 + $0x3d0] sm:$0xff]
        %v8317 = vld [vmem:[%s8193 + $0x3d8] sm:$0xff]
        %v8318 = vld [vmem:[%s8193 + $0x3e0] sm:$0xff]
        %v8319 = vld [vmem:[%s8193 + $0x3e8] sm:$0xff]
        %v8320 = vld [vmem:[%s8193 + $0x3f0] sm:$0xff]
        %v8321 = vld [vmem:[%s8193 + $0x3f8] sm:$0xff]
        %v8322 = vld [vmem:[%s8193 + $0x400] sm:$0xff]
        %v8323 = vld [vmem:[%s8193 + $0x408] sm:$0xff]
        %v8324 = vld [vmem:[%s8193 + $0x410] sm:$0xff]
        %v8325 = vld [vmem:[%s8193 + $0x418] sm:$0xff]
        %v8326 = vld [vmem:[%s8193 + $0x420] sm:$0xff]
        %v8327 = vld [vmem:[%s8193 + $0x428] sm:$0xff]
        %v8328 = vld [vmem:[%s8193 + $0x430] sm:$0xff]
        %v8329 = vld [vmem:[%s8193 + $0x438] sm:$0xff]
        %v8330 = vld [vmem:[%s8193 + $0x440] sm:$0xff]
        %v8331 = vld [vmem:[%s8193 + $0x448] sm:$0xff]
        %v8332 = vld [vmem:[%s8193 + $0x450] sm:$0xff]
        %v8333 = vld [vmem:[%s8193 + $0x458] sm:$0xff]
        %v8334 = vld [vmem:[%s8193 + $0x460] sm:$0xff]
        %v8335 = vld [vmem:[%s8193 + $0x468] sm:$0xff]
        %v8336 = vld [vmem:[%s8193 + $0x470] sm:$0xff]
        %v8337 = vld [vmem:[%s8193 + $0x478] sm:$0xff]
        %v8341 = vrot.slane %v8190, 1
        %v8342 = vrot.slane %v8191, 1
        %v8343 = vrot.slane %v8192, 1
        %v8490 = vunpack.c.l.b16 %v8194
        %v8491 = vunpack.c.h.b16 %v8194
        %v8492 = vunpack.c.l.b16 %v8195
        %v8493 = vunpack.c.h.b16 %v8195
        %v8494 = vunpack.c.l.b16 %v8196
        %v8495 = vunpack.c.h.b16 %v8196
        %v8496 = vunpack.c.l.b16 %v8197
        %v8497 = vunpack.c.h.b16 %v8197
        %v8498 = vunpack.c.l.b16 %v8198
        %v8499 = vunpack.c.h.b16 %v8198
        %v8500 = vunpack.c.l.b16 %v8199
        %v8501 = vunpack.c.h.b16 %v8199
        %v8502 = vunpack.c.l.b16 %v8200
        %v8503 = vunpack.c.h.b16 %v8200
        %v8504 = vunpack.c.l.b16 %v8201
        %v8505 = vunpack.c.h.b16 %v8201
        %v8506 = vunpack.c.l.b16 %v8202
        %v8507 = vunpack.c.h.b16 %v8202
        %v8508 = vunpack.c.l.b16 %v8203
        %v8509 = vunpack.c.h.b16 %v8203
        %v8510 = vunpack.c.l.b16 %v8204
        %v8511 = vunpack.c.h.b16 %v8204
        %v8512 = vunpack.c.l.b16 %v8205
        %v8513 = vunpack.c.h.b16 %v8205
        %v8514 = vunpack.c.l.b16 %v8206
        %v8515 = vunpack.c.h.b16 %v8206
        %v8516 = vunpack.c.l.b16 %v8207
        %v8517 = vunpack.c.h.b16 %v8207
        %v8518 = vunpack.c.l.b16 %v8208
        %v8519 = vunpack.c.h.b16 %v8208
        %v8520 = vunpack.c.l.b16 %v8209
        %v8521 = vunpack.c.h.b16 %v8209
        %v8522 = vunpack.c.l.b16 %v8210
        %v8523 = vunpack.c.h.b16 %v8210
        %v8524 = vunpack.c.l.b16 %v8211
        %v8525 = vunpack.c.h.b16 %v8211
        %v8526 = vunpack.c.l.b16 %v8212
        %v8527 = vunpack.c.h.b16 %v8212
        %v8528 = vunpack.c.l.b16 %v8213
        %v8529 = vunpack.c.h.b16 %v8213
        %v8530 = vunpack.c.l.b16 %v8214
        %v8531 = vunpack.c.h.b16 %v8214
        %v8532 = vunpack.c.l.b16 %v8215
        %v8533 = vunpack.c.h.b16 %v8215
        %v8534 = vunpack.c.l.b16 %v8216
        %v8535 = vunpack.c.h.b16 %v8216
        %v8536 = vunpack.c.l.b16 %v8217
        %v8537 = vunpack.c.h.b16 %v8217
        %v8538 = vunpack.c.l.b16 %v8218
        %v8539 = vunpack.c.h.b16 %v8218
        %v8540 = vunpack.c.l.b16 %v8219
        %v8541 = vunpack.c.h.b16 %v8219
        %v8542 = vunpack.c.l.b16 %v8220
        %v8543 = vunpack.c.h.b16 %v8220
        %v8544 = vunpack.c.l.b16 %v8221
        %v8545 = vunpack.c.h.b16 %v8221
        %v8546 = vunpack.c.l.b16 %v8222
        %v8547 = vunpack.c.h.b16 %v8222
        %v8548 = vunpack.c.l.b16 %v8223
        %v8549 = vunpack.c.h.b16 %v8223
        %v8550 = vunpack.c.l.b16 %v8224
        %v8551 = vunpack.c.h.b16 %v8224
        %v8552 = vunpack.c.l.b16 %v8225
        %v8553 = vunpack.c.h.b16 %v8225
        %v8554 = vunpack.c.l.b16 %v8226
        %v8555 = vunpack.c.h.b16 %v8226
        %v8556 = vunpack.c.l.b16 %v8227
        %v8557 = vunpack.c.h.b16 %v8227
        %v8558 = vunpack.c.l.b16 %v8228
        %v8559 = vunpack.c.h.b16 %v8228
        %v8560 = vunpack.c.l.b16 %v8229
        %v8561 = vunpack.c.h.b16 %v8229
        %v8562 = vunpack.c.l.b16 %v8230
        %v8563 = vunpack.c.h.b16 %v8230
        %v8564 = vunpack.c.l.b16 %v8231
        %v8565 = vunpack.c.h.b16 %v8231
        %v8566 = vunpack.c.l.b16 %v8232
        %v8567 = vunpack.c.h.b16 %v8232
        %v8568 = vunpack.c.l.b16 %v8233
        %v8569 = vunpack.c.h.b16 %v8233
        %v8570 = vunpack.c.l.b16 %v8234
        %v8571 = vunpack.c.h.b16 %v8234
        %v8572 = vunpack.c.l.b16 %v8235
        %v8573 = vunpack.c.h.b16 %v8235
        %v8574 = vunpack.c.l.b16 %v8236
        %v8575 = vunpack.c.h.b16 %v8236
        %v8576 = vunpack.c.l.b16 %v8237
        %v8577 = vunpack.c.h.b16 %v8237
        %v8578 = vunpack.c.l.b16 %v8238
        %v8579 = vunpack.c.h.b16 %v8238
        %v8580 = vunpack.c.l.b16 %v8239
        %v8581 = vunpack.c.h.b16 %v8239
        %v8582 = vunpack.c.l.b16 %v8240
        %v8583 = vunpack.c.h.b16 %v8240
        %v8584 = vunpack.c.l.b16 %v8241
        %v8585 = vunpack.c.h.b16 %v8241
        %v8586 = vunpack.c.l.b16 %v8242
        %v8587 = vunpack.c.h.b16 %v8242
        %v8588 = vunpack.c.l.b16 %v8243
        %v8589 = vunpack.c.h.b16 %v8243
        %v8590 = vunpack.c.l.b16 %v8244
        %v8591 = vunpack.c.h.b16 %v8244
        %v8592 = vunpack.c.l.b16 %v8245
        %v8593 = vunpack.c.h.b16 %v8245
        %v8594 = vunpack.c.l.b16 %v8246
        %v8595 = vunpack.c.h.b16 %v8246
        %v8596 = vunpack.c.l.b16 %v8247
        %v8597 = vunpack.c.h.b16 %v8247
        %v8598 = vunpack.c.l.b16 %v8248
        %v8599 = vunpack.c.h.b16 %v8248
        %v8600 = vunpack.c.l.b16 %v8249
        %v8601 = vunpack.c.h.b16 %v8249
        %v8602 = vunpack.c.l.b16 %v8250
        %v8603 = vunpack.c.h.b16 %v8250
        %v8604 = vunpack.c.l.b16 %v8251
        %v8605 = vunpack.c.h.b16 %v8251
        %v8606 = vunpack.c.l.b16 %v8252
        %v8607 = vunpack.c.h.b16 %v8252
        %v8608 = vunpack.c.l.b16 %v8253
        %v8609 = vunpack.c.h.b16 %v8253
        %v8610 = vunpack.c.l.b16 %v8254
        %v8611 = vunpack.c.h.b16 %v8254
        %v8612 = vunpack.c.l.b16 %v8255
        %v8613 = vunpack.c.h.b16 %v8255
        %v8614 = vunpack.c.l.b16 %v8256
        %v8615 = vunpack.c.h.b16 %v8256
        %v8616 = vunpack.c.l.b16 %v8257
        %v8617 = vunpack.c.h.b16 %v8257
        %v8618 = vunpack.c.l.b16 %v8258
        %v8619 = vunpack.c.h.b16 %v8258
        %v8620 = vunpack.c.l.b16 %v8259
        %v8621 = vunpack.c.h.b16 %v8259
        %v8622 = vunpack.c.l.b16 %v8260
        %v8623 = vunpack.c.h.b16 %v8260
        %v8624 = vunpack.c.l.b16 %v8261
        %v8625 = vunpack.c.h.b16 %v8261
        %v8626 = vunpack.c.l.b16 %v8262
        %v8627 = vunpack.c.h.b16 %v8262
        %v8628 = vunpack.c.l.b16 %v8263
        %v8629 = vunpack.c.h.b16 %v8263
        %v8630 = vunpack.c.l.b16 %v8264
        %v8631 = vunpack.c.h.b16 %v8264
        %v8632 = vunpack.c.l.b16 %v8265
        %v8633 = vunpack.c.h.b16 %v8265
        %v8634 = vunpack.c.l.b16 %v8266
        %v8635 = vunpack.c.h.b16 %v8266
        %v8636 = vunpack.c.l.b16 %v8267
        %v8637 = vunpack.c.h.b16 %v8267
        %v8638 = vunpack.c.l.b16 %v8268
        %v8639 = vunpack.c.h.b16 %v8268
        %v8640 = vunpack.c.l.b16 %v8269
        %v8641 = vunpack.c.h.b16 %v8269
        %v8642 = vunpack.c.l.b16 %v8270
        %v8643 = vunpack.c.h.b16 %v8270
        %v8644 = vunpack.c.l.b16 %v8271
        %v8645 = vunpack.c.h.b16 %v8271
        %v8646 = vunpack.c.l.b16 %v8272
        %v8647 = vunpack.c.h.b16 %v8272
        %v8648 = vunpack.c.l.b16 %v8273
        %v8649 = vunpack.c.h.b16 %v8273
        %v8650 = vunpack.c.l.b16 %v8274
        %v8651 = vunpack.c.h.b16 %v8274
        %v8652 = vunpack.c.l.b16 %v8275
        %v8653 = vunpack.c.h.b16 %v8275
        %v8654 = vunpack.c.l.b16 %v8276
        %v8655 = vunpack.c.h.b16 %v8276
        %v8656 = vunpack.c.l.b16 %v8277
        %v8657 = vunpack.c.h.b16 %v8277
        %v8658 = vunpack.c.l.b16 %v8278
        %v8659 = vunpack.c.h.b16 %v8278
        %v8660 = vunpack.c.l.b16 %v8279
        %v8661 = vunpack.c.h.b16 %v8279
        %v8662 = vunpack.c.l.b16 %v8280
        %v8663 = vunpack.c.h.b16 %v8280
        %v8664 = vunpack.c.l.b16 %v8281
        %v8665 = vunpack.c.h.b16 %v8281
        %v8666 = vunpack.c.l.b16 %v8282
        %v8667 = vunpack.c.h.b16 %v8282
        %v8668 = vunpack.c.l.b16 %v8283
        %v8669 = vunpack.c.h.b16 %v8283
        %v8670 = vunpack.c.l.b16 %v8284
        %v8671 = vunpack.c.h.b16 %v8284
        %v8672 = vunpack.c.l.b16 %v8285
        %v8673 = vunpack.c.h.b16 %v8285
        %v8674 = vunpack.c.l.b16 %v8286
        %v8675 = vunpack.c.h.b16 %v8286
        %v8676 = vunpack.c.l.b16 %v8287
        %v8677 = vunpack.c.h.b16 %v8287
        %v8678 = vunpack.c.l.b16 %v8288
        %v8679 = vunpack.c.h.b16 %v8288
        %v8680 = vunpack.c.l.b16 %v8289
        %v8681 = vunpack.c.h.b16 %v8289
        %v8682 = vunpack.c.l.b16 %v8290
        %v8683 = vunpack.c.h.b16 %v8290
        %v8684 = vunpack.c.l.b16 %v8291
        %v8685 = vunpack.c.h.b16 %v8291
        %v8686 = vunpack.c.l.b16 %v8292
        %v8687 = vunpack.c.h.b16 %v8292
        %v8688 = vunpack.c.l.b16 %v8293
        %v8689 = vunpack.c.h.b16 %v8293
        %v8690 = vunpack.c.l.b16 %v8294
        %v8691 = vunpack.c.h.b16 %v8294
        %v8692 = vunpack.c.l.b16 %v8295
        %v8693 = vunpack.c.h.b16 %v8295
        %v8694 = vunpack.c.l.b16 %v8296
        %v8695 = vunpack.c.h.b16 %v8296
        %v8696 = vunpack.c.l.b16 %v8297
        %v8697 = vunpack.c.h.b16 %v8297
        %v8698 = vunpack.c.l.b16 %v8298
        %v8699 = vunpack.c.h.b16 %v8298
        %v8700 = vunpack.c.l.b16 %v8299
        %v8701 = vunpack.c.h.b16 %v8299
        %v8702 = vunpack.c.l.b16 %v8300
        %v8703 = vunpack.c.h.b16 %v8300
        %v8704 = vunpack.c.l.b16 %v8301
        %v8705 = vunpack.c.h.b16 %v8301
        %v8706 = vunpack.c.l.b16 %v8302
        %v8707 = vunpack.c.h.b16 %v8302
        %v8708 = vunpack.c.l.b16 %v8303
        %v8709 = vunpack.c.h.b16 %v8303
        %v8710 = vunpack.c.l.b16 %v8304
        %v8711 = vunpack.c.h.b16 %v8304
        %v8712 = vunpack.c.l.b16 %v8305
        %v8713 = vunpack.c.h.b16 %v8305
        %v8714 = vunpack.c.l.b16 %v8306
        %v8715 = vunpack.c.h.b16 %v8306
        %v8716 = vunpack.c.l.b16 %v8307
        %v8717 = vunpack.c.h.b16 %v8307
        %v8718 = vunpack.c.l.b16 %v8308
        %v8719 = vunpack.c.h.b16 %v8308
        %v8720 = vunpack.c.l.b16 %v8309
        %v8721 = vunpack.c.h.b16 %v8309
        %v8722 = vunpack.c.l.b16 %v8310
        %v8723 = vunpack.c.h.b16 %v8310
        %v8724 = vunpack.c.l.b16 %v8311
        %v8725 = vunpack.c.h.b16 %v8311
        %v8726 = vunpack.c.l.b16 %v8312
        %v8727 = vunpack.c.h.b16 %v8312
        %v8728 = vunpack.c.l.b16 %v8313
        %v8729 = vunpack.c.h.b16 %v8313
        %v8730 = vunpack.c.l.b16 %v8314
        %v8731 = vunpack.c.h.b16 %v8314
        %v8732 = vunpack.c.l.b16 %v8315
        %v8733 = vunpack.c.h.b16 %v8315
        %v8734 = vunpack.c.l.b16 %v8316
        %v8735 = vunpack.c.h.b16 %v8316
        %v8736 = vunpack.c.l.b16 %v8317
        %v8737 = vunpack.c.h.b16 %v8317
        %v8738 = vunpack.c.l.b16 %v8318
        %v8739 = vunpack.c.h.b16 %v8318
        %v8740 = vunpack.c.l.b16 %v8319
        %v8741 = vunpack.c.h.b16 %v8319
        %v8742 = vunpack.c.l.b16 %v8320
        %v8743 = vunpack.c.h.b16 %v8320
        %v8744 = vunpack.c.l.b16 %v8321
        %v8745 = vunpack.c.h.b16 %v8321
        %v8746 = vunpack.c.l.b16 %v8322
        %v8747 = vunpack.c.h.b16 %v8322
        %v8748 = vunpack.c.l.b16 %v8323
        %v8749 = vunpack.c.h.b16 %v8323
        %v8750 = vunpack.c.l.b16 %v8324
        %v8751 = vunpack.c.h.b16 %v8324
        %v8752 = vunpack.c.l.b16 %v8325
        %v8753 = vunpack.c.h.b16 %v8325
        %v8754 = vunpack.c.l.b16 %v8326
        %v8755 = vunpack.c.h.b16 %v8326
        %v8756 = vunpack.c.l.b16 %v8327
        %v8757 = vunpack.c.h.b16 %v8327
        %v8758 = vunpack.c.l.b16 %v8328
        %v8759 = vunpack.c.h.b16 %v8328
        %v8760 = vunpack.c.l.b16 %v8329
        %v8761 = vunpack.c.h.b16 %v8329
        %v8762 = vunpack.c.l.b16 %v8330
        %v8763 = vunpack.c.h.b16 %v8330
        %v8764 = vunpack.c.l.b16 %v8331
        %v8765 = vunpack.c.h.b16 %v8331
        %v8766 = vunpack.c.l.b16 %v8332
        %v8767 = vunpack.c.h.b16 %v8332
        %v8768 = vunpack.c.l.b16 %v8333
        %v8769 = vunpack.c.h.b16 %v8333
        %v8770 = vunpack.c.l.b16 %v8334
        %v8771 = vunpack.c.h.b16 %v8334
        %v8772 = vunpack.c.l.b16 %v8335
        %v8773 = vunpack.c.h.b16 %v8335
        %v8774 = vunpack.c.l.b16 %v8336
        %v8775 = vunpack.c.h.b16 %v8336
        %v8776 = vunpack.c.l.b16 %v8337
        %v8777 = vunpack.c.h.b16 %v8337
        %v8778 = vpack.c.b16 %v8498, %v8490
        %v8779 = vpack.c.b16 %v8499, %v8491
        %v8780 = vpack.c.b16 %v8500, %v8492
        %v8781 = vpack.c.b16 %v8501, %v8493
        %v8782 = vpack.c.b16 %v8502, %v8494
        %v8783 = vpack.c.b16 %v8503, %v8495
        %v8784 = vpack.c.b16 %v8504, %v8496
        %v8785 = vpack.c.b16 %v8505, %v8497
        %v8786 = vpack.c.b16 %v8514, %v8506
        %v8787 = vpack.c.b16 %v8515, %v8507
        %v8788 = vpack.c.b16 %v8516, %v8508
        %v8789 = vpack.c.b16 %v8517, %v8509
        %v8790 = vpack.c.b16 %v8518, %v8510
        %v8791 = vpack.c.b16 %v8519, %v8511
        %v8792 = vpack.c.b16 %v8520, %v8512
        %v8793 = vpack.c.b16 %v8521, %v8513
        %v8794 = vpack.c.b16 %v8530, %v8522
        %v8795 = vpack.c.b16 %v8531, %v8523
        %v8796 = vpack.c.b16 %v8532, %v8524
        %v8797 = vpack.c.b16 %v8533, %v8525
        %v8798 = vpack.c.b16 %v8534, %v8526
        %v8799 = vpack.c.b16 %v8535, %v8527
        %v8800 = vpack.c.b16 %v8536, %v8528
        %v8801 = vpack.c.b16 %v8537, %v8529
        %v8802 = vpack.c.b16 %v8546, %v8538
        %v8803 = vpack.c.b16 %v8547, %v8539
        %v8804 = vpack.c.b16 %v8548, %v8540
        %v8805 = vpack.c.b16 %v8549, %v8541
        %v8806 = vpack.c.b16 %v8550, %v8542
        %v8807 = vpack.c.b16 %v8551, %v8543
        %v8808 = vpack.c.b16 %v8552, %v8544
        %v8809 = vpack.c.b16 %v8553, %v8545
        %v8810 = vpack.c.b16 %v8562, %v8554
        %v8811 = vpack.c.b16 %v8563, %v8555
        %v8812 = vpack.c.b16 %v8564, %v8556
        %v8813 = vpack.c.b16 %v8565, %v8557
        %v8814 = vpack.c.b16 %v8566, %v8558
        %v8815 = vpack.c.b16 %v8567, %v8559
        %v8816 = vpack.c.b16 %v8568, %v8560
        %v8817 = vpack.c.b16 %v8569, %v8561
        %v8818 = vpack.c.b16 %v8578, %v8570
        %v8819 = vpack.c.b16 %v8579, %v8571
        %v8820 = vpack.c.b16 %v8580, %v8572
        %v8821 = vpack.c.b16 %v8581, %v8573
        %v8822 = vpack.c.b16 %v8582, %v8574
        %v8823 = vpack.c.b16 %v8583, %v8575
        %v8824 = vpack.c.b16 %v8584, %v8576
        %v8825 = vpack.c.b16 %v8585, %v8577
        %v8826 = vpack.c.b16 %v8594, %v8586
        %v8827 = vpack.c.b16 %v8595, %v8587
        %v8828 = vpack.c.b16 %v8596, %v8588
        %v8829 = vpack.c.b16 %v8597, %v8589
        %v8830 = vpack.c.b16 %v8598, %v8590
        %v8831 = vpack.c.b16 %v8599, %v8591
        %v8832 = vpack.c.b16 %v8600, %v8592
        %v8833 = vpack.c.b16 %v8601, %v8593
        %v8834 = vpack.c.b16 %v8610, %v8602
        %v8835 = vpack.c.b16 %v8611, %v8603
        %v8836 = vpack.c.b16 %v8612, %v8604
        %v8837 = vpack.c.b16 %v8613, %v8605
        %v8838 = vpack.c.b16 %v8614, %v8606
        %v8839 = vpack.c.b16 %v8615, %v8607
        %v8840 = vpack.c.b16 %v8616, %v8608
        %v8841 = vpack.c.b16 %v8617, %v8609
        %v8842 = vpack.c.b16 %v8626, %v8618
        %v8843 = vpack.c.b16 %v8627, %v8619
        %v8844 = vpack.c.b16 %v8628, %v8620
        %v8845 = vpack.c.b16 %v8629, %v8621
        %v8846 = vpack.c.b16 %v8630, %v8622
        %v8847 = vpack.c.b16 %v8631, %v8623
        %v8848 = vpack.c.b16 %v8632, %v8624
        %v8849 = vpack.c.b16 %v8633, %v8625
        %v8850 = vpack.c.b16 %v8642, %v8634
        %v8851 = vpack.c.b16 %v8643, %v8635
        %v8852 = vpack.c.b16 %v8644, %v8636
        %v8853 = vpack.c.b16 %v8645, %v8637
        %v8854 = vpack.c.b16 %v8646, %v8638
        %v8855 = vpack.c.b16 %v8647, %v8639
        %v8856 = vpack.c.b16 %v8648, %v8640
        %v8857 = vpack.c.b16 %v8649, %v8641
        %v8858 = vpack.c.b16 %v8658, %v8650
        %v8859 = vpack.c.b16 %v8659, %v8651
        %v8860 = vpack.c.b16 %v8660, %v8652
        %v8861 = vpack.c.b16 %v8661, %v8653
        %v8862 = vpack.c.b16 %v8662, %v8654
        %v8863 = vpack.c.b16 %v8663, %v8655
        %v8864 = vpack.c.b16 %v8664, %v8656
        %v8865 = vpack.c.b16 %v8665, %v8657
        %v8866 = vpack.c.b16 %v8674, %v8666
        %v8867 = vpack.c.b16 %v8675, %v8667
        %v8868 = vpack.c.b16 %v8676, %v8668
        %v8869 = vpack.c.b16 %v8677, %v8669
        %v8870 = vpack.c.b16 %v8678, %v8670
        %v8871 = vpack.c.b16 %v8679, %v8671
        %v8872 = vpack.c.b16 %v8680, %v8672
        %v8873 = vpack.c.b16 %v8681, %v8673
        %v8874 = vpack.c.b16 %v8690, %v8682
        %v8875 = vpack.c.b16 %v8691, %v8683
        %v8876 = vpack.c.b16 %v8692, %v8684
        %v8877 = vpack.c.b16 %v8693, %v8685
        %v8878 = vpack.c.b16 %v8694, %v8686
        %v8879 = vpack.c.b16 %v8695, %v8687
        %v8880 = vpack.c.b16 %v8696, %v8688
        %v8881 = vpack.c.b16 %v8697, %v8689
        %v8882 = vpack.c.b16 %v8706, %v8698
        %v8883 = vpack.c.b16 %v8707, %v8699
        %v8884 = vpack.c.b16 %v8708, %v8700
        %v8885 = vpack.c.b16 %v8709, %v8701
        %v8886 = vpack.c.b16 %v8710, %v8702
        %v8887 = vpack.c.b16 %v8711, %v8703
        %v8888 = vpack.c.b16 %v8712, %v8704
        %v8889 = vpack.c.b16 %v8713, %v8705
        %v8890 = vpack.c.b16 %v8722, %v8714
        %v8891 = vpack.c.b16 %v8723, %v8715
        %v8892 = vpack.c.b16 %v8724, %v8716
        %v8893 = vpack.c.b16 %v8725, %v8717
        %v8894 = vpack.c.b16 %v8726, %v8718
        %v8895 = vpack.c.b16 %v8727, %v8719
        %v8896 = vpack.c.b16 %v8728, %v8720
        %v8897 = vpack.c.b16 %v8729, %v8721
        %v8898 = vpack.c.b16 %v8738, %v8730
        %v8899 = vpack.c.b16 %v8739, %v8731
        %v8900 = vpack.c.b16 %v8740, %v8732
        %v8901 = vpack.c.b16 %v8741, %v8733
        %v8902 = vpack.c.b16 %v8742, %v8734
        %v8903 = vpack.c.b16 %v8743, %v8735
        %v8904 = vpack.c.b16 %v8744, %v8736
        %v8905 = vpack.c.b16 %v8745, %v8737
        %v8906 = vpack.c.b16 %v8754, %v8746
        %v8907 = vpack.c.b16 %v8755, %v8747
        %v8908 = vpack.c.b16 %v8756, %v8748
        %v8909 = vpack.c.b16 %v8757, %v8749
        %v8910 = vpack.c.b16 %v8758, %v8750
        %v8911 = vpack.c.b16 %v8759, %v8751
        %v8912 = vpack.c.b16 %v8760, %v8752
        %v8913 = vpack.c.b16 %v8761, %v8753
        %v8914 = vpack.c.b16 %v8770, %v8762
        %v8915 = vpack.c.b16 %v8771, %v8763
        %v8916 = vpack.c.b16 %v8772, %v8764
        %v8917 = vpack.c.b16 %v8773, %v8765
        %v8918 = vpack.c.b16 %v8774, %v8766
        %v8919 = vpack.c.b16 %v8775, %v8767
        %v8920 = vpack.c.b16 %v8776, %v8768
        %v8921 = vpack.c.b16 %v8777, %v8769
        %v9067 = vsel %vm1838, %v8343, 0
        %9069 = vmatprep.subr.bf16.mxu0 %v8779
        %9070 = vmatpush1.bf16.msra.mxu0 %v8778
        %9071 = vmatprep.subr.bf16.mxu0 %v8787
        %9072 = vmatpush1.bf16.msra.mxu0 %v8786
        %9073 = vmatprep.subr.bf16.mxu0 %v8795
        %9074 = vmatpush1.bf16.msra.mxu0 %v8794
        %9075 = vmatprep.subr.bf16.mxu0 %v8803
        %9076 = vmatpush1.bf16.msra.mxu0 %v8802
        %9077 = vmatprep.subr.bf16.mxu0 %v8811
        %9078 = vmatpush1.bf16.msra.mxu0 %v8810
        %9079 = vmatprep.subr.bf16.mxu0 %v8819
        %9080 = vmatpush1.bf16.msra.mxu0 %v8818
        %9081 = vmatprep.subr.bf16.mxu0 %v8827
        %9082 = vmatpush1.bf16.msra.mxu0 %v8826
        %9083 = vmatprep.subr.bf16.mxu0 %v8835
        %9084 = vmatpush1.bf16.msra.mxu0 %v8834
        %9085 = vmatprep.subr.bf16.mxu0 %v8843
        %9086 = vmatpush1.bf16.msra.mxu0 %v8842
        %9087 = vmatprep.subr.bf16.mxu0 %v8851
        %9088 = vmatpush1.bf16.msra.mxu0 %v8850
        %9089 = vmatprep.subr.bf16.mxu0 %v8859
        %9090 = vmatpush1.bf16.msra.mxu0 %v8858
        %9091 = vmatprep.subr.bf16.mxu0 %v8867
        %9092 = vmatpush1.bf16.msra.mxu0 %v8866
        %9093 = vmatprep.subr.bf16.mxu0 %v8875
        %9094 = vmatpush1.bf16.msra.mxu0 %v8874
        %9095 = vmatprep.subr.bf16.mxu0 %v8883
        %9096 = vmatpush1.bf16.msra.mxu0 %v8882
        %9097 = vmatprep.subr.bf16.mxu0 %v8891
        %9098 = vmatpush1.bf16.msra.mxu0 %v8890
        %9099 = vmatprep.subr.bf16.mxu0 %v8899
        %9100 = vmatpush1.bf16.msra.mxu0 %v8898
        %9101 = vmatprep.mubr.bf16.mxu0 %v8342
        %9102 = vmatmul.mubr.bf16.gmra.mrb[0].mxu0 %v8341
        %v9103 = vpop.f32.mrb[0].mxu0
        %v9104 = vadd.f32 0.0, %v9103
        %v9105 = vpop.f32.mrb[0].mxu0
        %v9106 = vadd.f32 0.0, %v9105
        %v9107 = vpop.f32.mrb[0].mxu0
        %v9108 = vpop.f32.mrb[0].mxu0
        %9109 = vdwg.mxu0
        %9110 = vmatprep.subr.bf16.mxu0 %v8907
        %9111 = vmatpush1.bf16.msra.mxu0 %v8906
        %9112 = vmatprep.subr.bf16.mxu0 %v8915
        %9113 = vmatpush1.bf16.msra.mxu0 %v8914
        %9114 = vmatprep.subr.bf16.mxu0 0
        %9115 = vmatpush1.bf16.msra.mxu0 0
        %9116 = vmatprep.subr.bf16.mxu0 0
        %9117 = vmatpush1.bf16.msra.mxu0 0
        %9118 = vmatprep.subr.bf16.mxu0 0
        %9119 = vmatpush1.bf16.msra.mxu0 0
        %9120 = vmatprep.subr.bf16.mxu0 0
        %9121 = vmatpush1.bf16.msra.mxu0 0
        %9122 = vmatprep.subr.bf16.mxu0 0
        %9123 = vmatpush1.bf16.msra.mxu0 0
        %9124 = vmatprep.subr.bf16.mxu0 0
        %9125 = vmatpush1.bf16.msra.mxu0 0
        %9126 = vmatprep.subr.bf16.mxu0 0
        %9127 = vmatpush1.bf16.msra.mxu0 0
        %9128 = vmatprep.subr.bf16.mxu0 0
        %9129 = vmatpush1.bf16.msra.mxu0 0
        %9130 = vmatprep.subr.bf16.mxu0 0
        %9131 = vmatpush1.bf16.msra.mxu0 0
        %9132 = vmatprep.subr.bf16.mxu0 0
        %9133 = vmatpush1.bf16.msra.mxu0 0
        %9134 = vmatprep.subr.bf16.mxu0 0
        %9135 = vmatpush1.bf16.msra.mxu0 0
        %9136 = vmatprep.subr.bf16.mxu0 0
        %9137 = vmatpush1.bf16.msra.mxu0 0
        %9138 = vmatprep.subr.bf16.mxu0 0
        %9139 = vmatpush1.bf16.msra.mxu0 0
        %9140 = vmatprep.subr.bf16.mxu0 0
        %9141 = vmatpush1.bf16.msra.mxu0 0
        %9142 = vmatprep.mubr.bf16.mxu0 0
        %9143 = vmatmul.mubr.bf16.gmra.mrb[0].mxu0 %v9067
        %v9144 = vpop.f32.mrb[0].mxu0
        %v9145 = vadd.f32 %v9104, %v9144
        %v9146 = vpop.f32.mrb[0].mxu0
        %v9147 = vadd.f32 %v9106, %v9146
        %v9148 = vpop.f32.mrb[0].mxu0
        %v9149 = vpop.f32.mrb[0].mxu0
        %9150 = vdwg.mxu0
        %9151 = vmatprep.subr.bf16.mxu0 %v8781
        %9152 = vmatpush1.bf16.msra.mxu0 %v8780
        %9153 = vmatprep.subr.bf16.mxu0 %v8789
        %9154 = vmatpush1.bf16.msra.mxu0 %v8788
        %9155 = vmatprep.subr.bf16.mxu0 %v8797
        %9156 = vmatpush1.bf16.msra.mxu0 %v8796
        %9157 = vmatprep.subr.bf16.mxu0 %v8805
        %9158 = vmatpush1.bf16.msra.mxu0 %v8804
        %9159 = vmatprep.subr.bf16.mxu0 %v8813
        %9160 = vmatpush1.bf16.msra.mxu0 %v8812
        %9161 = vmatprep.subr.bf16.mxu0 %v8821
        %9162 = vmatpush1.bf16.msra.mxu0 %v8820
        %9163 = vmatprep.subr.bf16.mxu0 %v8829
        %9164 = vmatpush1.bf16.msra.mxu0 %v8828
        %9165 = vmatprep.subr.bf16.mxu0 %v8837
        %9166 = vmatpush1.bf16.msra.mxu0 %v8836
        %9167 = vmatprep.subr.bf16.mxu0 %v8845
        %9168 = vmatpush1.bf16.msra.mxu0 %v8844
        %9169 = vmatprep.subr.bf16.mxu0 %v8853
        %9170 = vmatpush1.bf16.msra.mxu0 %v8852
        %9171 = vmatprep.subr.bf16.mxu0 %v8861
        %9172 = vmatpush1.bf16.msra.mxu0 %v8860
        %9173 = vmatprep.subr.bf16.mxu0 %v8869
        %9174 = vmatpush1.bf16.msra.mxu0 %v8868
        %9175 = vmatprep.subr.bf16.mxu0 %v8877
        %9176 = vmatpush1.bf16.msra.mxu0 %v8876
        %9177 = vmatprep.subr.bf16.mxu0 %v8885
        %9178 = vmatpush1.bf16.msra.mxu0 %v8884
        %9179 = vmatprep.subr.bf16.mxu0 %v8893
        %9180 = vmatpush1.bf16.msra.mxu0 %v8892
        %9181 = vmatprep.subr.bf16.mxu0 %v8901
        %9182 = vmatpush1.bf16.msra.mxu0 %v8900
        %9183 = vmatprep.mubr.bf16.mxu0 %v8342
        %9184 = vmatmul.mubr.bf16.gmra.mrb[0].mxu0 %v8341
        %v9185 = vpop.f32.mrb[0].mxu0
        %v9186 = vadd.f32 0.0, %v9185
        %v9187 = vpop.f32.mrb[0].mxu0
        %v9188 = vadd.f32 0.0, %v9187
        %v9189 = vpop.f32.mrb[0].mxu0
        %v9190 = vpop.f32.mrb[0].mxu0
        %9191 = vdwg.mxu0
        %9192 = vmatprep.subr.bf16.mxu0 %v8909
        %9193 = vmatpush1.bf16.msra.mxu0 %v8908
        %9194 = vmatprep.subr.bf16.mxu0 %v8917
        %9195 = vmatpush1.bf16.msra.mxu0 %v8916
        %9196 = vmatprep.subr.bf16.mxu0 0
        %9197 = vmatpush1.bf16.msra.mxu0 0
        %9198 = vmatprep.subr.bf16.mxu0 0
        %9199 = vmatpush1.bf16.msra.mxu0 0
        %9200 = vmatprep.subr.bf16.mxu0 0
        %9201 = vmatpush1.bf16.msra.mxu0 0
        %9202 = vmatprep.subr.bf16.mxu0 0
        %9203 = vmatpush1.bf16.msra.mxu0 0
        %9204 = vmatprep.subr.bf16.mxu0 0
        %9205 = vmatpush1.bf16.msra.mxu0 0
        %9206 = vmatprep.subr.bf16.mxu0 0
        %9207 = vmatpush1.bf16.msra.mxu0 0
        %9208 = vmatprep.subr.bf16.mxu0 0
        %9209 = vmatpush1.bf16.msra.mxu0 0
        %9210 = vmatprep.subr.bf16.mxu0 0
        %9211 = vmatpush1.bf16.msra.mxu0 0
        %9212 = vmatprep.subr.bf16.mxu0 0
        %9213 = vmatpush1.bf16.msra.mxu0 0
        %9214 = vmatprep.subr.bf16.mxu0 0
        %9215 = vmatpush1.bf16.msra.mxu0 0
        %9216 = vmatprep.subr.bf16.mxu0 0
        %9217 = vmatpush1.bf16.msra.mxu0 0
        %9218 = vmatprep.subr.bf16.mxu0 0
        %9219 = vmatpush1.bf16.msra.mxu0 0
        %9220 = vmatprep.subr.bf16.mxu0 0
        %9221 = vmatpush1.bf16.msra.mxu0 0
        %9222 = vmatprep.subr.bf16.mxu0 0
        %9223 = vmatpush1.bf16.msra.mxu0 0
        %9224 = vmatprep.mubr.bf16.mxu0 0
        %9225 = vmatmul.mubr.bf16.gmra.mrb[0].mxu0 %v9067
        %v9226 = vpop.f32.mrb[0].mxu0
        %v9227 = vadd.f32 %v9186, %v9226
        %v9228 = vpop.f32.mrb[0].mxu0
        %v9229 = vadd.f32 %v9188, %v9228
        %v9230 = vpop.f32.mrb[0].mxu0
        %v9231 = vpop.f32.mrb[0].mxu0
        %9232 = vdwg.mxu0
        %9233 = vmatprep.subr.bf16.mxu0 %v8783
        %9234 = vmatpush1.bf16.msra.mxu0 %v8782
        %9235 = vmatprep.subr.bf16.mxu0 %v8791
        %9236 = vmatpush1.bf16.msra.mxu0 %v8790
        %9237 = vmatprep.subr.bf16.mxu0 %v8799
        %9238 = vmatpush1.bf16.msra.mxu0 %v8798
        %9239 = vmatprep.subr.bf16.mxu0 %v8807
        %9240 = vmatpush1.bf16.msra.mxu0 %v8806
        %9241 = vmatprep.subr.bf16.mxu0 %v8815
        %9242 = vmatpush1.bf16.msra.mxu0 %v8814
        %9243 = vmatprep.subr.bf16.mxu0 %v8823
        %9244 = vmatpush1.bf16.msra.mxu0 %v8822
        %9245 = vmatprep.subr.bf16.mxu0 %v8831
        %9246 = vmatpush1.bf16.msra.mxu0 %v8830
        %9247 = vmatprep.subr.bf16.mxu0 %v8839
        %9248 = vmatpush1.bf16.msra.mxu0 %v8838
        %9249 = vmatprep.subr.bf16.mxu0 %v8847
        %9250 = vmatpush1.bf16.msra.mxu0 %v8846
        %9251 = vmatprep.subr.bf16.mxu0 %v8855
        %9252 = vmatpush1.bf16.msra.mxu0 %v8854
        %9253 = vmatprep.subr.bf16.mxu0 %v8863
        %9254 = vmatpush1.bf16.msra.mxu0 %v8862
        %9255 = vmatprep.subr.bf16.mxu0 %v8871
        %9256 = vmatpush1.bf16.msra.mxu0 %v8870
        %9257 = vmatprep.subr.bf16.mxu0 %v8879
        %9258 = vmatpush1.bf16.msra.mxu0 %v8878
        %9259 = vmatprep.subr.bf16.mxu0 %v8887
        %9260 = vmatpush1.bf16.msra.mxu0 %v8886
        %9261 = vmatprep.subr.bf16.mxu0 %v8895
        %9262 = vmatpush1.bf16.msra.mxu0 %v8894
        %9263 = vmatprep.subr.bf16.mxu0 %v8903
        %9264 = vmatpush1.bf16.msra.mxu0 %v8902
        %9265 = vmatprep.mubr.bf16.mxu0 %v8342
        %9266 = vmatmul.mubr.bf16.gmra.mrb[0].mxu0 %v8341
        %v9267 = vpop.f32.mrb[0].mxu0
        %v9268 = vadd.f32 0.0, %v9267
        %v9269 = vpop.f32.mrb[0].mxu0
        %v9270 = vadd.f32 0.0, %v9269
        %v9271 = vpop.f32.mrb[0].mxu0
        %v9272 = vpop.f32.mrb[0].mxu0
        %9273 = vdwg.mxu0
        %9274 = vmatprep.subr.bf16.mxu0 %v8911
        %9275 = vmatpush1.bf16.msra.mxu0 %v8910
        %9276 = vmatprep.subr.bf16.mxu0 %v8919
        %9277 = vmatpush1.bf16.msra.mxu0 %v8918
        %9278 = vmatprep.subr.bf16.mxu0 0
        %9279 = vmatpush1.bf16.msra.mxu0 0
        %9280 = vmatprep.subr.bf16.mxu0 0
        %9281 = vmatpush1.bf16.msra.mxu0 0
        %9282 = vmatprep.subr.bf16.mxu0 0
        %9283 = vmatpush1.bf16.msra.mxu0 0
        %9284 = vmatprep.subr.bf16.mxu0 0
        %9285 = vmatpush1.bf16.msra.mxu0 0
        %9286 = vmatprep.subr.bf16.mxu0 0
        %9287 = vmatpush1.bf16.msra.mxu0 0
        %9288 = vmatprep.subr.bf16.mxu0 0
        %9289 = vmatpush1.bf16.msra.mxu0 0
        %9290 = vmatprep.subr.bf16.mxu0 0
        %9291 = vmatpush1.bf16.msra.mxu0 0
        %9292 = vmatprep.subr.bf16.mxu0 0
        %9293 = vmatpush1.bf16.msra.mxu0 0
        %9294 = vmatprep.subr.bf16.mxu0 0
        %9295 = vmatpush1.bf16.msra.mxu0 0
        %9296 = vmatprep.subr.bf16.mxu0 0
        %9297 = vmatpush1.bf16.msra.mxu0 0
        %9298 = vmatprep.subr.bf16.mxu0 0
        %9299 = vmatpush1.bf16.msra.mxu0 0
        %9300 = vmatprep.subr.bf16.mxu0 0
        %9301 = vmatpush1.bf16.msra.mxu0 0
        %9302 = vmatprep.subr.bf16.mxu0 0
        %9303 = vmatpush1.bf16.msra.mxu0 0
        %9304 = vmatprep.subr.bf16.mxu0 0
        %9305 = vmatpush1.bf16.msra.mxu0 0
        %9306 = vmatprep.mubr.bf16.mxu0 0
        %9307 = vmatmul.mubr.bf16.gmra.mrb[0].mxu0 %v9067
        %v9308 = vpop.f32.mrb[0].mxu0
        %v9309 = vadd.f32 %v9268, %v9308
        %v9310 = vpop.f32.mrb[0].mxu0
        %v9311 = vadd.f32 %v9270, %v9310
        %v9312 = vpop.f32.mrb[0].mxu0
        %v9313 = vpop.f32.mrb[0].mxu0
        %9314 = vdwg.mxu0
        %9315 = vmatprep.subr.bf16.mxu0 %v8785
        %9316 = vmatpush1.bf16.msra.mxu0 %v8784
        %9317 = vmatprep.subr.bf16.mxu0 %v8793
        %9318 = vmatpush1.bf16.msra.mxu0 %v8792
        %9319 = vmatprep.subr.bf16.mxu0 %v8801
        %9320 = vmatpush1.bf16.msra.mxu0 %v8800
        %9321 = vmatprep.subr.bf16.mxu0 %v8809
        %9322 = vmatpush1.bf16.msra.mxu0 %v8808
        %9323 = vmatprep.subr.bf16.mxu0 %v8817
        %9324 = vmatpush1.bf16.msra.mxu0 %v8816
        %9325 = vmatprep.subr.bf16.mxu0 %v8825
        %9326 = vmatpush1.bf16.msra.mxu0 %v8824
        %9327 = vmatprep.subr.bf16.mxu0 %v8833
        %9328 = vmatpush1.bf16.msra.mxu0 %v8832
        %9329 = vmatprep.subr.bf16.mxu0 %v8841
        %9330 = vmatpush1.bf16.msra.mxu0 %v8840
        %9331 = vmatprep.subr.bf16.mxu0 %v8849
        %9332 = vmatpush1.bf16.msra.mxu0 %v8848
        %9333 = vmatprep.subr.bf16.mxu0 %v8857
        %9334 = vmatpush1.bf16.msra.mxu0 %v8856
        %9335 = vmatprep.subr.bf16.mxu0 %v8865
        %9336 = vmatpush1.bf16.msra.mxu0 %v8864
        %9337 = vmatprep.subr.bf16.mxu0 %v8873
        %9338 = vmatpush1.bf16.msra.mxu0 %v8872
        %9339 = vmatprep.subr.bf16.mxu0 %v8881
        %9340 = vmatpush1.bf16.msra.mxu0 %v8880
        %9341 = vmatprep.subr.bf16.mxu0 %v8889
        %9342 = vmatpush1.bf16.msra.mxu0 %v8888
        %9343 = vmatprep.subr.bf16.mxu0 %v8897
        %9344 = vmatpush1.bf16.msra.mxu0 %v8896
        %9345 = vmatprep.subr.bf16.mxu0 %v8905
        %9346 = vmatpush1.bf16.msra.mxu0 %v8904
        %9347 = vmatprep.mubr.bf16.mxu0 %v8342
        %9348 = vmatmul.mubr.bf16.gmra.mrb[0].mxu0 %v8341
        %v9349 = vpop.f32.mrb[0].mxu0
        %v9350 = vadd.f32 0.0, %v9349
        %v9351 = vpop.f32.mrb[0].mxu0
        %v9352 = vadd.f32 0.0, %v9351
        %v9353 = vpop.f32.mrb[0].mxu0
        %v9354 = vpop.f32.mrb[0].mxu0
        %9355 = vdwg.mxu0
        %9356 = vmatprep.subr.bf16.mxu0 %v8913
        %9357 = vmatpush1.bf16.msra.mxu0 %v8912
        %9358 = vmatprep.subr.bf16.mxu0 %v8921
        %9359 = vmatpush1.bf16.msra.mxu0 %v8920
        %9360 = vmatprep.subr.bf16.mxu0 0
        %9361 = vmatpush1.bf16.msra.mxu0 0
        %9362 = vmatprep.subr.bf16.mxu0 0
        %9363 = vmatpush1.bf16.msra.mxu0 0
        %9364 = vmatprep.subr.bf16.mxu0 0
        %9365 = vmatpush1.bf16.msra.mxu0 0
        %9366 = vmatprep.subr.bf16.mxu0 0
        %9367 = vmatpush1.bf16.msra.mxu0 0
        %9368 = vmatprep.subr.bf16.mxu0 0
        %9369 = vmatpush1.bf16.msra.mxu0 0
        %9370 = vmatprep.subr.bf16.mxu0 0
        %9371 = vmatpush1.bf16.msra.mxu0 0
        %9372 = vmatprep.subr.bf16.mxu0 0
        %9373 = vmatpush1.bf16.msra.mxu0 0
        %9374 = vmatprep.subr.bf16.mxu0 0
        %9375 = vmatpush1.bf16.msra.mxu0 0
        %9376 = vmatprep.subr.bf16.mxu0 0
        %9377 = vmatpush1.bf16.msra.mxu0 0
        %9378 = vmatprep.subr.bf16.mxu0 0
        %9379 = vmatpush1.bf16.msra.mxu0 0
        %9380 = vmatprep.subr.bf16.mxu0 0
        %9381 = vmatpush1.bf16.msra.mxu0 0
        %9382 = vmatprep.subr.bf16.mxu0 0
        %9383 = vmatpush1.bf16.msra.mxu0 0
        %9384 = vmatprep.subr.bf16.mxu0 0
        %9385 = vmatpush1.bf16.msra.mxu0 0
        %9386 = vmatprep.subr.bf16.mxu0 0
        %9387 = vmatpush1.bf16.msra.mxu0 0
        %9388 = vmatprep.mubr.bf16.mxu0 0
        %9389 = vmatmul.mubr.bf16.gmra.mrb[0].mxu0 %v9067
        %v9390 = vpop.f32.mrb[0].mxu0
        %v9391 = vadd.f32 %v9350, %v9390
        %v9392 = vpop.f32.mrb[0].mxu0
        %v9393 = vadd.f32 %v9352, %v9392
        %v9394 = vpop.f32.mrb[0].mxu0
        %v9395 = vpop.f32.mrb[0].mxu0
        %9396 = vdwg.mxu0
        %v9397 = vadd.f32 %v8176, %v9145
        %v9398 = vadd.f32 %v8177, %v9147
        %v9399 = vadd.f32 %v8178, %v9227
        %v9400 = vadd.f32 %v8179, %v9229
        %v9401 = vadd.f32 %v8180, %v9309
        %v9402 = vadd.f32 %v8181, %v9311
        %v9403 = vadd.f32 %v8182, %v9391
        %v9404 = vadd.f32 %v8183, %v9393
        %v9405 = vmax.f32 %v9397, %v9401
        %v9406 = vmax.f32 %v9398, %v9402
        %v9407 = vmax.f32 %v9399, %v9403
        %v9408 = vmax.f32 %v9400, %v9404
        %v9409 = vmax.f32 %v9405, %v9407
        %v9410 = vmax.f32 %v9406, %v9408
        %v9411 = vld [vmem:[#allocation10] sm:$0x3]
        %v9413 = vlaneseq
        %v9414 = vshrl.u32 %v9413, 7
        %v9415 = vsub.s32 0, %v9414
        %v9416 = vrot.slane %v9411, %v9415
        %v9417 = vlaneseq
        %v9418 = vshrl.u32 %v9417, 7
        %v9419 = vsub.s32 1, %v9418
        %v9420 = vrot.slane %v9411, %v9419
        %v9423 = vadd.f32 %v9409, %v9416
        %v9424 = vadd.f32 %v9410, %v9420
        %v9425 = vmax.f32 %v9423, 0.0
        %v9426 = vmax.f32 %v9424, 0.0
        %v9427 = vpack.c.bf16 %v9425, %v9425
        %v9428 = vpack.c.bf16 %v9426, %v9426
        %v9429 = vld [vmem:[#allocation13] sm:$0x1]
        %v9430 = vld [vmem:[#allocation12] sm:$0xf]
        %v9431 = vld [vmem:[#allocation12 + $0x4] sm:$0xf]
        %v9432 = vld [vmem:[#allocation12 + $0x8] sm:$0xf]
        %v9433 = vld [vmem:[#allocation12 + $0xc] sm:$0xf]
        %v9434 = vld [vmem:[#allocation12 + $0x10] sm:$0xf]
        %v9435 = vld [vmem:[#allocation12 + $0x14] sm:$0xf]
        %v9436 = vld [vmem:[#allocation12 + $0x18] sm:$0xf]
        %v9437 = vld [vmem:[#allocation12 + $0x1c] sm:$0xf]
        %v9438 = vld [vmem:[#allocation12 + $0x20] sm:$0xf]
        %v9439 = vld [vmem:[#allocation12 + $0x24] sm:$0xf]
        %v9440 = vld [vmem:[#allocation12 + $0x28] sm:$0xf]
        %v9441 = vld [vmem:[#allocation12 + $0x2c] sm:$0xf]
        %v9442 = vld [vmem:[#allocation12 + $0x30] sm:$0xf]
        %v9443 = vld [vmem:[#allocation12 + $0x34] sm:$0xf]
        %v9444 = vld [vmem:[#allocation12 + $0x38] sm:$0xf]
        %v9445 = vld [vmem:[#allocation12 + $0x3c] sm:$0xf]
        %v9446 = vld [vmem:[#allocation12 + $0x40] sm:$0xf]
        %v9447 = vld [vmem:[#allocation12 + $0x44] sm:$0xf]
        %v9448 = vld [vmem:[#allocation12 + $0x48] sm:$0xf]
        %v9449 = vld [vmem:[#allocation12 + $0x4c] sm:$0xf]
        %v9450 = vld [vmem:[#allocation12 + $0x50] sm:$0xf]
        %v9451 = vld [vmem:[#allocation12 + $0x54] sm:$0xf]
        %v9452 = vld [vmem:[#allocation12 + $0x58] sm:$0xf]
        %v9453 = vld [vmem:[#allocation12 + $0x5c] sm:$0xf]
        %v9454 = vld [vmem:[#allocation12 + $0x60] sm:$0xf]
        %v9455 = vld [vmem:[#allocation12 + $0x64] sm:$0xf]
        %v9456 = vld [vmem:[#allocation12 + $0x68] sm:$0xf]
        %v9457 = vld [vmem:[#allocation12 + $0x6c] sm:$0xf]
        %v9486 = vunpack.c.l.b16 %v9430
        %v9487 = vunpack.c.l.b16 %v9431
        %v9488 = vunpack.c.l.b16 %v9432
        %v9489 = vunpack.c.l.b16 %v9433
        %v9490 = vunpack.c.l.b16 %v9434
        %v9491 = vunpack.c.l.b16 %v9435
        %v9492 = vunpack.c.l.b16 %v9436
        %v9493 = vunpack.c.l.b16 %v9437
        %v9494 = vunpack.c.l.b16 %v9438
        %v9495 = vunpack.c.l.b16 %v9439
        %v9496 = vunpack.c.l.b16 %v9440
        %v9497 = vunpack.c.l.b16 %v9441
        %v9498 = vunpack.c.l.b16 %v9442
        %v9499 = vunpack.c.l.b16 %v9443
        %v9500 = vunpack.c.l.b16 %v9444
        %v9501 = vunpack.c.l.b16 %v9445
        %v9502 = vunpack.c.l.b16 %v9446
        %v9503 = vunpack.c.l.b16 %v9447
        %v9504 = vunpack.c.l.b16 %v9448
        %v9505 = vunpack.c.l.b16 %v9449
        %v9506 = vunpack.c.l.b16 %v9450
        %v9507 = vunpack.c.l.b16 %v9451
        %v9508 = vunpack.c.l.b16 %v9452
        %v9509 = vunpack.c.l.b16 %v9453
        %v9510 = vunpack.c.l.b16 %v9454
        %v9511 = vunpack.c.l.b16 %v9455
        %v9512 = vunpack.c.l.b16 %v9456
        %v9513 = vunpack.c.l.b16 %v9457
        %v9514 = vpack.c.b16 %v9487, %v9486
        %v9515 = vpack.c.b16 %v9489, %v9488
        %v9516 = vpack.c.b16 %v9491, %v9490
        %v9517 = vpack.c.b16 %v9493, %v9492
        %v9518 = vpack.c.b16 %v9495, %v9494
        %v9519 = vpack.c.b16 %v9497, %v9496
        %v9520 = vpack.c.b16 %v9499, %v9498
        %v9521 = vpack.c.b16 %v9501, %v9500
        %v9522 = vpack.c.b16 %v9503, %v9502
        %v9523 = vpack.c.b16 %v9505, %v9504
        %v9524 = vpack.c.b16 %v9507, %v9506
        %v9525 = vpack.c.b16 %v9509, %v9508
        %v9526 = vpack.c.b16 %v9511, %v9510
        %v9527 = vpack.c.b16 %v9513, %v9512
        %vm9542 = vcmask 785408
        %v9544 = vsel %vm9542, %v9428, 0
        %9546 = vmatprep.subr.bf16.mxu0 0
        %9547 = vmatpush1.bf16.msra.mxu0 %v9514
        %9548 = vmatprep.subr.bf16.mxu0 0
        %9549 = vmatpush1.bf16.msra.mxu0 %v9515
        %9550 = vmatprep.subr.bf16.mxu0 0
        %9551 = vmatpush1.bf16.msra.mxu0 %v9516
        %9552 = vmatprep.subr.bf16.mxu0 0
        %9553 = vmatpush1.bf16.msra.mxu0 %v9517
        %9554 = vmatprep.subr.bf16.mxu0 0
        %9555 = vmatpush1.bf16.msra.mxu0 %v9518
        %9556 = vmatprep.subr.bf16.mxu0 0
        %9557 = vmatpush1.bf16.msra.mxu0 %v9519
        %9558 = vmatprep.subr.bf16.mxu0 0
        %9559 = vmatpush1.bf16.msra.mxu0 %v9520
        %9560 = vmatprep.subr.bf16.mxu0 0
        %9561 = vmatpush1.bf16.msra.mxu0 %v9521
        %9562 = vmatprep.subr.bf16.mxu0 0
        %9563 = vmatpush1.bf16.msra.mxu0 %v9522
        %9564 = vmatprep.subr.bf16.mxu0 0
        %9565 = vmatpush1.bf16.msra.mxu0 %v9523
        %9566 = vmatprep.subr.bf16.mxu0 0
        %9567 = vmatpush1.bf16.msra.mxu0 %v9524
        %9568 = vmatprep.subr.bf16.mxu0 0
        %9569 = vmatpush1.bf16.msra.mxu0 %v9525
        %9570 = vmatprep.subr.bf16.mxu0 0
        %9571 = vmatpush1.bf16.msra.mxu0 %v9526
        %9572 = vmatprep.subr.bf16.mxu0 0
        %9573 = vmatpush1.bf16.msra.mxu0 %v9527
        %9574 = vmatprep.subr.bf16.mxu0 0
        %9575 = vmatpush1.bf16.msra.mxu0 0
        %9576 = vmatprep.subr.bf16.mxu0 0
        %9577 = vmatpush1.bf16.msra.mxu0 0
        %9578 = vmatprep.mubr.bf16.mxu0 %v9544
        %9579 = vmatmul.mubr.bf16.gmra.mrb[0].mxu0 %v9427
        %v9580 = vpop.f32.mrb[0].mxu0
        %v9581 = vadd.f32 0.0, %v9580
        %v9582 = vpop.f32.mrb[0].mxu0
        %v9583 = vpop.f32.mrb[0].mxu0
        %v9584 = vpop.f32.mrb[0].mxu0
        %9585 = vdwg.mxu0
        %v9586 = vadd.f32 %v9429, %v9581
        %s9587 = scalar_lea.vmem [#allocation12], 112
        %v9588 = vld [vmem:[%s9587] sm:$0xf]
        %v9589 = vld [vmem:[%s9587 + $0x4] sm:$0xf]
        %v9590 = vld [vmem:[%s9587 + $0x8] sm:$0xf]
        %v9591 = vld [vmem:[%s9587 + $0xc] sm:$0xf]
        %v9592 = vld [vmem:[%s9587 + $0x10] sm:$0xf]
        %v9593 = vld [vmem:[%s9587 + $0x14] sm:$0xf]
        %v9594 = vld [vmem:[%s9587 + $0x18] sm:$0xf]
        %v9595 = vld [vmem:[%s9587 + $0x1c] sm:$0xf]
        %v9596 = vld [vmem:[%s9587 + $0x20] sm:$0xf]
        %v9597 = vld [vmem:[%s9587 + $0x24] sm:$0xf]
        %v9598 = vld [vmem:[%s9587 + $0x28] sm:$0xf]
        %v9599 = vld [vmem:[%s9587 + $0x2c] sm:$0xf]
        %v9600 = vld [vmem:[%s9587 + $0x30] sm:$0xf]
        %v9601 = vld [vmem:[%s9587 + $0x34] sm:$0xf]
        %v9602 = vld [vmem:[%s9587 + $0x38] sm:$0xf]
        %v9603 = vld [vmem:[%s9587 + $0x3c] sm:$0xf]
        %v9604 = vld [vmem:[%s9587 + $0x40] sm:$0xf]
        %v9605 = vld [vmem:[%s9587 + $0x44] sm:$0xf]
        %v9606 = vld [vmem:[%s9587 + $0x48] sm:$0xf]
        %v9607 = vld [vmem:[%s9587 + $0x4c] sm:$0xf]
        %v9608 = vld [vmem:[%s9587 + $0x50] sm:$0xf]
        %v9609 = vld [vmem:[%s9587 + $0x54] sm:$0xf]
        %v9610 = vld [vmem:[%s9587 + $0x58] sm:$0xf]
        %v9611 = vld [vmem:[%s9587 + $0x5c] sm:$0xf]
        %v9612 = vld [vmem:[%s9587 + $0x60] sm:$0xf]
        %v9613 = vld [vmem:[%s9587 + $0x64] sm:$0xf]
        %v9614 = vld [vmem:[%s9587 + $0x68] sm:$0xf]
        %v9615 = vld [vmem:[%s9587 + $0x6c] sm:$0xf]
        %v9617 = vshrl.u32 %v9427, 16
        %v9619 = vshrl.u32 %v9428, 16
        %v9650 = vunpack.c.l.b16 %v9588
        %v9651 = vunpack.c.l.b16 %v9589
        %v9652 = vunpack.c.l.b16 %v9590
        %v9653 = vunpack.c.l.b16 %v9591
        %v9654 = vunpack.c.l.b16 %v9592
        %v9655 = vunpack.c.l.b16 %v9593
        %v9656 = vunpack.c.l.b16 %v9594
        %v9657 = vunpack.c.l.b16 %v9595
        %v9658 = vunpack.c.l.b16 %v9596
        %v9659 = vunpack.c.l.b16 %v9597
        %v9660 = vunpack.c.l.b16 %v9598
        %v9661 = vunpack.c.l.b16 %v9599
        %v9662 = vunpack.c.l.b16 %v9600
        %v9663 = vunpack.c.l.b16 %v9601
        %v9664 = vunpack.c.l.b16 %v9602
        %v9665 = vunpack.c.l.b16 %v9603
        %v9666 = vunpack.c.l.b16 %v9604
        %v9667 = vunpack.c.l.b16 %v9605
        %v9668 = vunpack.c.l.b16 %v9606
        %v9669 = vunpack.c.l.b16 %v9607
        %v9670 = vunpack.c.l.b16 %v9608
        %v9671 = vunpack.c.l.b16 %v9609
        %v9672 = vunpack.c.l.b16 %v9610
        %v9673 = vunpack.c.l.b16 %v9611
        %v9674 = vunpack.c.l.b16 %v9612
        %v9675 = vunpack.c.l.b16 %v9613
        %v9676 = vunpack.c.l.b16 %v9614
        %v9677 = vunpack.c.l.b16 %v9615
        %v9678 = vpack.c.b16 %v9651, %v9650
        %v9679 = vpack.c.b16 %v9653, %v9652
        %v9680 = vpack.c.b16 %v9655, %v9654
        %v9681 = vpack.c.b16 %v9657, %v9656
        %v9682 = vpack.c.b16 %v9659, %v9658
        %v9683 = vpack.c.b16 %v9661, %v9660
        %v9684 = vpack.c.b16 %v9663, %v9662
        %v9685 = vpack.c.b16 %v9665, %v9664
        %v9686 = vpack.c.b16 %v9667, %v9666
        %v9687 = vpack.c.b16 %v9669, %v9668
        %v9688 = vpack.c.b16 %v9671, %v9670
        %v9689 = vpack.c.b16 %v9673, %v9672
        %v9690 = vpack.c.b16 %v9675, %v9674
        %v9691 = vpack.c.b16 %v9677, %v9676
        %v9707 = vsel %vm9542, %v9619, 0
        %9709 = vmatprep.subr.bf16.mxu0 0
        %9710 = vmatpush1.bf16.msra.mxu0 %v9678
        %9711 = vmatprep.subr.bf16.mxu0 0
        %9712 = vmatpush1.bf16.msra.mxu0 %v9679
        %9713 = vmatprep.subr.bf16.mxu0 0
        %9714 = vmatpush1.bf16.msra.mxu0 %v9680
        %9715 = vmatprep.subr.bf16.mxu0 0
        %9716 = vmatpush1.bf16.msra.mxu0 %v9681
        %9717 = vmatprep.subr.bf16.mxu0 0
        %9718 = vmatpush1.bf16.msra.mxu0 %v9682
        %9719 = vmatprep.subr.bf16.mxu0 0
        %9720 = vmatpush1.bf16.msra.mxu0 %v9683
        %9721 = vmatprep.subr.bf16.mxu0 0
        %9722 = vmatpush1.bf16.msra.mxu0 %v9684
        %9723 = vmatprep.subr.bf16.mxu0 0
        %9724 = vmatpush1.bf16.msra.mxu0 %v9685
        %9725 = vmatprep.subr.bf16.mxu0 0
        %9726 = vmatpush1.bf16.msra.mxu0 %v9686
        %9727 = vmatprep.subr.bf16.mxu0 0
        %9728 = vmatpush1.bf16.msra.mxu0 %v9687
        %9729 = vmatprep.subr.bf16.mxu0 0
        %9730 = vmatpush1.bf16.msra.mxu0 %v9688
        %9731 = vmatprep.subr.bf16.mxu0 0
        %9732 = vmatpush1.bf16.msra.mxu0 %v9689
        %9733 = vmatprep.subr.bf16.mxu0 0
        %9734 = vmatpush1.bf16.msra.mxu0 %v9690
        %9735 = vmatprep.subr.bf16.mxu0 0
        %9736 = vmatpush1.bf16.msra.mxu0 %v9691
        %9737 = vmatprep.subr.bf16.mxu0 0
        %9738 = vmatpush1.bf16.msra.mxu0 0
        %9739 = vmatprep.subr.bf16.mxu0 0
        %9740 = vmatpush1.bf16.msra.mxu0 0
        %9741 = vmatprep.mubr.bf16.mxu0 %v9707
        %9742 = vmatmul.mubr.bf16.gmra.mrb[0].mxu0 %v9617
        %v9743 = vpop.f32.mrb[0].mxu0
        %v9744 = vadd.f32 0.0, %v9743
        %v9745 = vpop.f32.mrb[0].mxu0
        %v9746 = vpop.f32.mrb[0].mxu0
        %v9747 = vpop.f32.mrb[0].mxu0
        %9748 = vdwg.mxu0
        %v9749 = vadd.f32 %v9586, %v9744
        %s9750 = scalar_lea.vmem [#allocation12], 224
        %v9751 = vld [vmem:[%s9750] sm:$0xf]
        %v9752 = vld [vmem:[%s9750 + $0x4] sm:$0xf]
        %v9753 = vld [vmem:[%s9750 + $0x8] sm:$0xf]
        %v9754 = vld [vmem:[%s9750 + $0xc] sm:$0xf]
        %v9755 = vld [vmem:[%s9750 + $0x10] sm:$0xf]
        %v9756 = vld [vmem:[%s9750 + $0x14] sm:$0xf]
        %v9757 = vld [vmem:[%s9750 + $0x18] sm:$0xf]
        %v9758 = vld [vmem:[%s9750 + $0x1c] sm:$0xf]
        %v9759 = vld [vmem:[%s9750 + $0x20] sm:$0xf]
        %v9760 = vld [vmem:[%s9750 + $0x24] sm:$0xf]
        %v9761 = vld [vmem:[%s9750 + $0x28] sm:$0xf]
        %v9762 = vld [vmem:[%s9750 + $0x2c] sm:$0xf]
        %v9763 = vld [vmem:[%s9750 + $0x30] sm:$0xf]
        %v9764 = vld [vmem:[%s9750 + $0x34] sm:$0xf]
        %v9765 = vld [vmem:[%s9750 + $0x38] sm:$0xf]
        %v9766 = vld [vmem:[%s9750 + $0x3c] sm:$0xf]
        %v9767 = vld [vmem:[%s9750 + $0x40] sm:$0xf]
        %v9768 = vld [vmem:[%s9750 + $0x44] sm:$0xf]
        %v9769 = vld [vmem:[%s9750 + $0x48] sm:$0xf]
        %v9770 = vld [vmem:[%s9750 + $0x4c] sm:$0xf]
        %v9771 = vld [vmem:[%s9750 + $0x50] sm:$0xf]
        %v9772 = vld [vmem:[%s9750 + $0x54] sm:$0xf]
        %v9773 = vld [vmem:[%s9750 + $0x58] sm:$0xf]
        %v9774 = vld [vmem:[%s9750 + $0x5c] sm:$0xf]
        %v9775 = vld [vmem:[%s9750 + $0x60] sm:$0xf]
        %v9776 = vld [vmem:[%s9750 + $0x64] sm:$0xf]
        %v9777 = vld [vmem:[%s9750 + $0x68] sm:$0xf]
        %v9778 = vld [vmem:[%s9750 + $0x6c] sm:$0xf]
        %v9781 = vrot.slane %v9427, 1
        %v9782 = vrot.slane %v9428, 1
        %v9812 = vunpack.c.l.b16 %v9751
        %v9813 = vunpack.c.l.b16 %v9752
        %v9814 = vunpack.c.l.b16 %v9753
        %v9815 = vunpack.c.l.b16 %v9754
        %v9816 = vunpack.c.l.b16 %v9755
        %v9817 = vunpack.c.l.b16 %v9756
        %v9818 = vunpack.c.l.b16 %v9757
        %v9819 = vunpack.c.l.b16 %v9758
        %v9820 = vunpack.c.l.b16 %v9759
        %v9821 = vunpack.c.l.b16 %v9760
        %v9822 = vunpack.c.l.b16 %v9761
        %v9823 = vunpack.c.l.b16 %v9762
        %v9824 = vunpack.c.l.b16 %v9763
        %v9825 = vunpack.c.l.b16 %v9764
        %v9826 = vunpack.c.l.b16 %v9765
        %v9827 = vunpack.c.l.b16 %v9766
        %v9828 = vunpack.c.l.b16 %v9767
        %v9829 = vunpack.c.l.b16 %v9768
        %v9830 = vunpack.c.l.b16 %v9769
        %v9831 = vunpack.c.l.b16 %v9770
        %v9832 = vunpack.c.l.b16 %v9771
        %v9833 = vunpack.c.l.b16 %v9772
        %v9834 = vunpack.c.l.b16 %v9773
        %v9835 = vunpack.c.l.b16 %v9774
        %v9836 = vunpack.c.l.b16 %v9775
        %v9837 = vunpack.c.l.b16 %v9776
        %v9838 = vunpack.c.l.b16 %v9777
        %v9839 = vunpack.c.l.b16 %v9778
        %v9840 = vpack.c.b16 %v9813, %v9812
        %v9841 = vpack.c.b16 %v9815, %v9814
        %v9842 = vpack.c.b16 %v9817, %v9816
        %v9843 = vpack.c.b16 %v9819, %v9818
        %v9844 = vpack.c.b16 %v9821, %v9820
        %v9845 = vpack.c.b16 %v9823, %v9822
        %v9846 = vpack.c.b16 %v9825, %v9824
        %v9847 = vpack.c.b16 %v9827, %v9826
        %v9848 = vpack.c.b16 %v9829, %v9828
        %v9849 = vpack.c.b16 %v9831, %v9830
        %v9850 = vpack.c.b16 %v9833, %v9832
        %v9851 = vpack.c.b16 %v9835, %v9834
        %v9852 = vpack.c.b16 %v9837, %v9836
        %v9853 = vpack.c.b16 %v9839, %v9838
        %v9869 = vsel %vm9542, %v9782, 0
        %9871 = vmatprep.subr.bf16.mxu0 0
        %9872 = vmatpush1.bf16.msra.mxu0 %v9840
        %9873 = vmatprep.subr.bf16.mxu0 0
        %9874 = vmatpush1.bf16.msra.mxu0 %v9841
        %9875 = vmatprep.subr.bf16.mxu0 0
        %9876 = vmatpush1.bf16.msra.mxu0 %v9842
        %9877 = vmatprep.subr.bf16.mxu0 0
        %9878 = vmatpush1.bf16.msra.mxu0 %v9843
        %9879 = vmatprep.subr.bf16.mxu0 0
        %9880 = vmatpush1.bf16.msra.mxu0 %v9844
        %9881 = vmatprep.subr.bf16.mxu0 0
        %9882 = vmatpush1.bf16.msra.mxu0 %v9845
        %9883 = vmatprep.subr.bf16.mxu0 0
        %9884 = vmatpush1.bf16.msra.mxu0 %v9846
        %9885 = vmatprep.subr.bf16.mxu0 0
        %9886 = vmatpush1.bf16.msra.mxu0 %v9847
        %9887 = vmatprep.subr.bf16.mxu0 0
        %9888 = vmatpush1.bf16.msra.mxu0 %v9848
        %9889 = vmatprep.subr.bf16.mxu0 0
        %9890 = vmatpush1.bf16.msra.mxu0 %v9849
        %9891 = vmatprep.subr.bf16.mxu0 0
        %9892 = vmatpush1.bf16.msra.mxu0 %v9850
        %9893 = vmatprep.subr.bf16.mxu0 0
        %9894 = vmatpush1.bf16.msra.mxu0 %v9851
        %9895 = vmatprep.subr.bf16.mxu0 0
        %9896 = vmatpush1.bf16.msra.mxu0 %v9852
        %9897 = vmatprep.subr.bf16.mxu0 0
        %9898 = vmatpush1.bf16.msra.mxu0 %v9853
        %9899 = vmatprep.subr.bf16.mxu0 0
        %9900 = vmatpush1.bf16.msra.mxu0 0
        %9901 = vmatprep.subr.bf16.mxu0 0
        %9902 = vmatpush1.bf16.msra.mxu0 0
        %9903 = vmatprep.mubr.bf16.mxu0 %v9869
        %9904 = vmatmul.mubr.bf16.gmra.mrb[0].mxu0 %v9781
        %v9905 = vpop.f32.mrb[0].mxu0
        %v9906 = vadd.f32 0.0, %v9905
        %v9907 = vpop.f32.mrb[0].mxu0
        %v9908 = vpop.f32.mrb[0].mxu0
        %v9909 = vpop.f32.mrb[0].mxu0
        %9910 = vdwg.mxu0
        %v9911 = vadd.f32 %v9749, %v9906
        %s9912 = scalar_lea.vmem [#allocation12], 336
        %v9913 = vld [vmem:[%s9912] sm:$0xf]
        %v9914 = vld [vmem:[%s9912 + $0x4] sm:$0xf]
        %v9915 = vld [vmem:[%s9912 + $0x8] sm:$0xf]
        %v9916 = vld [vmem:[%s9912 + $0xc] sm:$0xf]
        %v9917 = vld [vmem:[%s9912 + $0x10] sm:$0xf]
        %v9918 = vld [vmem:[%s9912 + $0x14] sm:$0xf]
        %v9919 = vld [vmem:[%s9912 + $0x18] sm:$0xf]
        %v9920 = vld [vmem:[%s9912 + $0x1c] sm:$0xf]
        %v9921 = vld [vmem:[%s9912 + $0x20] sm:$0xf]
        %v9922 = vld [vmem:[%s9912 + $0x24] sm:$0xf]
        %v9923 = vld [vmem:[%s9912 + $0x28] sm:$0xf]
        %v9924 = vld [vmem:[%s9912 + $0x2c] sm:$0xf]
        %v9925 = vld [vmem:[%s9912 + $0x30] sm:$0xf]
        %v9926 = vld [vmem:[%s9912 + $0x34] sm:$0xf]
        %v9927 = vld [vmem:[%s9912 + $0x38] sm:$0xf]
        %v9928 = vld [vmem:[%s9912 + $0x3c] sm:$0xf]
        %v9929 = vld [vmem:[%s9912 + $0x40] sm:$0xf]
        %v9930 = vld [vmem:[%s9912 + $0x44] sm:$0xf]
        %v9931 = vld [vmem:[%s9912 + $0x48] sm:$0xf]
        %v9932 = vld [vmem:[%s9912 + $0x4c] sm:$0xf]
        %v9933 = vld [vmem:[%s9912 + $0x50] sm:$0xf]
        %v9934 = vld [vmem:[%s9912 + $0x54] sm:$0xf]
        %v9935 = vld [vmem:[%s9912 + $0x58] sm:$0xf]
        %v9936 = vld [vmem:[%s9912 + $0x5c] sm:$0xf]
        %v9937 = vld [vmem:[%s9912 + $0x60] sm:$0xf]
        %v9938 = vld [vmem:[%s9912 + $0x64] sm:$0xf]
        %v9939 = vld [vmem:[%s9912 + $0x68] sm:$0xf]
        %v9940 = vld [vmem:[%s9912 + $0x6c] sm:$0xf]
        %v9941 = vrot.slane %v9617, 1
        %v9942 = vrot.slane %v9619, 1
        %v9972 = vunpack.c.l.b16 %v9913
        %v9973 = vunpack.c.l.b16 %v9914
        %v9974 = vunpack.c.l.b16 %v9915
        %v9975 = vunpack.c.l.b16 %v9916
        %v9976 = vunpack.c.l.b16 %v9917
        %v9977 = vunpack.c.l.b16 %v9918
        %v9978 = vunpack.c.l.b16 %v9919
        %v9979 = vunpack.c.l.b16 %v9920
        %v9980 = vunpack.c.l.b16 %v9921
        %v9981 = vunpack.c.l.b16 %v9922
        %v9982 = vunpack.c.l.b16 %v9923
        %v9983 = vunpack.c.l.b16 %v9924
        %v9984 = vunpack.c.l.b16 %v9925
        %v9985 = vunpack.c.l.b16 %v9926
        %v9986 = vunpack.c.l.b16 %v9927
        %v9987 = vunpack.c.l.b16 %v9928
        %v9988 = vunpack.c.l.b16 %v9929
        %v9989 = vunpack.c.l.b16 %v9930
        %v9990 = vunpack.c.l.b16 %v9931
        %v9991 = vunpack.c.l.b16 %v9932
        %v9992 = vunpack.c.l.b16 %v9933
        %v9993 = vunpack.c.l.b16 %v9934
        %v9994 = vunpack.c.l.b16 %v9935
        %v9995 = vunpack.c.l.b16 %v9936
        %v9996 = vunpack.c.l.b16 %v9937
        %v9997 = vunpack.c.l.b16 %v9938
        %v9998 = vunpack.c.l.b16 %v9939
        %v9999 = vunpack.c.l.b16 %v9940
        %v10000 = vpack.c.b16 %v9973, %v9972
        %v10001 = vpack.c.b16 %v9975, %v9974
        %v10002 = vpack.c.b16 %v9977, %v9976
        %v10003 = vpack.c.b16 %v9979, %v9978
        %v10004 = vpack.c.b16 %v9981, %v9980
        %v10005 = vpack.c.b16 %v9983, %v9982
        %v10006 = vpack.c.b16 %v9985, %v9984
        %v10007 = vpack.c.b16 %v9987, %v9986
        %v10008 = vpack.c.b16 %v9989, %v9988
        %v10009 = vpack.c.b16 %v9991, %v9990
        %v10010 = vpack.c.b16 %v9993, %v9992
        %v10011 = vpack.c.b16 %v9995, %v9994
        %v10012 = vpack.c.b16 %v9997, %v9996
        %v10013 = vpack.c.b16 %v9999, %v9998
        %v10029 = vsel %vm9542, %v9942, 0
        %10031 = vmatprep.subr.bf16.mxu0 0
        %10032 = vmatpush1.bf16.msra.mxu0 %v10000
        %10033 = vmatprep.subr.bf16.mxu0 0
        %10034 = vmatpush1.bf16.msra.mxu0 %v10001
        %10035 = vmatprep.subr.bf16.mxu0 0
        %10036 = vmatpush1.bf16.msra.mxu0 %v10002
        %10037 = vmatprep.subr.bf16.mxu0 0
        %10038 = vmatpush1.bf16.msra.mxu0 %v10003
        %10039 = vmatprep.subr.bf16.mxu0 0
        %10040 = vmatpush1.bf16.msra.mxu0 %v10004
        %10041 = vmatprep.subr.bf16.mxu0 0
        %10042 = vmatpush1.bf16.msra.mxu0 %v10005
        %10043 = vmatprep.subr.bf16.mxu0 0
        %10044 = vmatpush1.bf16.msra.mxu0 %v10006
        %10045 = vmatprep.subr.bf16.mxu0 0
        %10046 = vmatpush1.bf16.msra.mxu0 %v10007
        %10047 = vmatprep.subr.bf16.mxu0 0
        %10048 = vmatpush1.bf16.msra.mxu0 %v10008
        %10049 = vmatprep.subr.bf16.mxu0 0
        %10050 = vmatpush1.bf16.msra.mxu0 %v10009
        %10051 = vmatprep.subr.bf16.mxu0 0
        %10052 = vmatpush1.bf16.msra.mxu0 %v10010
        %10053 = vmatprep.subr.bf16.mxu0 0
        %10054 = vmatpush1.bf16.msra.mxu0 %v10011
        %10055 = vmatprep.subr.bf16.mxu0 0
        %10056 = vmatpush1.bf16.msra.mxu0 %v10012
        %10057 = vmatprep.subr.bf16.mxu0 0
        %10058 = vmatpush1.bf16.msra.mxu0 %v10013
        %10059 = vmatprep.subr.bf16.mxu0 0
        %10060 = vmatpush1.bf16.msra.mxu0 0
        %10061 = vmatprep.subr.bf16.mxu0 0
        %10062 = vmatpush1.bf16.msra.mxu0 0
        %10063 = vmatprep.mubr.bf16.mxu0 %v10029
        %10064 = vmatmul.mubr.bf16.gmra.mrb[0].mxu0 %v9941
        %v10065 = vpop.f32.mrb[0].mxu0
        %v10066 = vadd.f32 0.0, %v10065
        %v10067 = vpop.f32.mrb[0].mxu0
        %v10068 = vpop.f32.mrb[0].mxu0
        %v10069 = vpop.f32.mrb[0].mxu0
        %10070 = vdwg.mxu0
        %v10071 = vadd.f32 %v9911, %v10066
        %s10072 = scalar_lea.vmem [#allocation12], 448
        %v10073 = vld [vmem:[%s10072] sm:$0xf]
        %v10074 = vld [vmem:[%s10072 + $0x4] sm:$0xf]
        %v10075 = vld [vmem:[%s10072 + $0x8] sm:$0xf]
        %v10076 = vld [vmem:[%s10072 + $0xc] sm:$0xf]
        %v10077 = vld [vmem:[%s10072 + $0x10] sm:$0xf]
        %v10078 = vld [vmem:[%s10072 + $0x14] sm:$0xf]
        %v10079 = vld [vmem:[%s10072 + $0x18] sm:$0xf]
        %v10080 = vld [vmem:[%s10072 + $0x1c] sm:$0xf]
        %v10081 = vld [vmem:[%s10072 + $0x20] sm:$0xf]
        %v10082 = vld [vmem:[%s10072 + $0x24] sm:$0xf]
        %v10083 = vld [vmem:[%s10072 + $0x28] sm:$0xf]
        %v10084 = vld [vmem:[%s10072 + $0x2c] sm:$0xf]
        %v10085 = vld [vmem:[%s10072 + $0x30] sm:$0xf]
        %v10086 = vld [vmem:[%s10072 + $0x34] sm:$0xf]
        %v10087 = vld [vmem:[%s10072 + $0x38] sm:$0xf]
        %v10088 = vld [vmem:[%s10072 + $0x3c] sm:$0xf]
        %v10089 = vld [vmem:[%s10072 + $0x40] sm:$0xf]
        %v10090 = vld [vmem:[%s10072 + $0x44] sm:$0xf]
        %v10091 = vld [vmem:[%s10072 + $0x48] sm:$0xf]
        %v10092 = vld [vmem:[%s10072 + $0x4c] sm:$0xf]
        %v10093 = vld [vmem:[%s10072 + $0x50] sm:$0xf]
        %v10094 = vld [vmem:[%s10072 + $0x54] sm:$0xf]
        %v10095 = vld [vmem:[%s10072 + $0x58] sm:$0xf]
        %v10096 = vld [vmem:[%s10072 + $0x5c] sm:$0xf]
        %v10097 = vld [vmem:[%s10072 + $0x60] sm:$0xf]
        %v10098 = vld [vmem:[%s10072 + $0x64] sm:$0xf]
        %v10099 = vld [vmem:[%s10072 + $0x68] sm:$0xf]
        %v10100 = vld [vmem:[%s10072 + $0x6c] sm:$0xf]
        %v10101 = vrot.slane %v9427, 2
        %v10102 = vrot.slane %v9428, 2
        %v10132 = vunpack.c.l.b16 %v10073
        %v10133 = vunpack.c.l.b16 %v10074
        %v10134 = vunpack.c.l.b16 %v10075
        %v10135 = vunpack.c.l.b16 %v10076
        %v10136 = vunpack.c.l.b16 %v10077
        %v10137 = vunpack.c.l.b16 %v10078
        %v10138 = vunpack.c.l.b16 %v10079
        %v10139 = vunpack.c.l.b16 %v10080
        %v10140 = vunpack.c.l.b16 %v10081
        %v10141 = vunpack.c.l.b16 %v10082
        %v10142 = vunpack.c.l.b16 %v10083
        %v10143 = vunpack.c.l.b16 %v10084
        %v10144 = vunpack.c.l.b16 %v10085
        %v10145 = vunpack.c.l.b16 %v10086
        %v10146 = vunpack.c.l.b16 %v10087
        %v10147 = vunpack.c.l.b16 %v10088
        %v10148 = vunpack.c.l.b16 %v10089
        %v10149 = vunpack.c.l.b16 %v10090
        %v10150 = vunpack.c.l.b16 %v10091
        %v10151 = vunpack.c.l.b16 %v10092
        %v10152 = vunpack.c.l.b16 %v10093
        %v10153 = vunpack.c.l.b16 %v10094
        %v10154 = vunpack.c.l.b16 %v10095
        %v10155 = vunpack.c.l.b16 %v10096
        %v10156 = vunpack.c.l.b16 %v10097
        %v10157 = vunpack.c.l.b16 %v10098
        %v10158 = vunpack.c.l.b16 %v10099
        %v10159 = vunpack.c.l.b16 %v10100
        %v10160 = vpack.c.b16 %v10133, %v10132
        %v10161 = vpack.c.b16 %v10135, %v10134
        %v10162 = vpack.c.b16 %v10137, %v10136
        %v10163 = vpack.c.b16 %v10139, %v10138
        %v10164 = vpack.c.b16 %v10141, %v10140
        %v10165 = vpack.c.b16 %v10143, %v10142
        %v10166 = vpack.c.b16 %v10145, %v10144
        %v10167 = vpack.c.b16 %v10147, %v10146
        %v10168 = vpack.c.b16 %v10149, %v10148
        %v10169 = vpack.c.b16 %v10151, %v10150
        %v10170 = vpack.c.b16 %v10153, %v10152
        %v10171 = vpack.c.b16 %v10155, %v10154
        %v10172 = vpack.c.b16 %v10157, %v10156
        %v10173 = vpack.c.b16 %v10159, %v10158
        %v10189 = vsel %vm9542, %v10102, 0
        %10191 = vmatprep.subr.bf16.mxu0 0
        %10192 = vmatpush1.bf16.msra.mxu0 %v10160
        %10193 = vmatprep.subr.bf16.mxu0 0
        %10194 = vmatpush1.bf16.msra.mxu0 %v10161
        %10195 = vmatprep.subr.bf16.mxu0 0
        %10196 = vmatpush1.bf16.msra.mxu0 %v10162
        %10197 = vmatprep.subr.bf16.mxu0 0
        %10198 = vmatpush1.bf16.msra.mxu0 %v10163
        %10199 = vmatprep.subr.bf16.mxu0 0
        %10200 = vmatpush1.bf16.msra.mxu0 %v10164
        %10201 = vmatprep.subr.bf16.mxu0 0
        %10202 = vmatpush1.bf16.msra.mxu0 %v10165
        %10203 = vmatprep.subr.bf16.mxu0 0
        %10204 = vmatpush1.bf16.msra.mxu0 %v10166
        %10205 = vmatprep.subr.bf16.mxu0 0
        %10206 = vmatpush1.bf16.msra.mxu0 %v10167
        %10207 = vmatprep.subr.bf16.mxu0 0
        %10208 = vmatpush1.bf16.msra.mxu0 %v10168
        %10209 = vmatprep.subr.bf16.mxu0 0
        %10210 = vmatpush1.bf16.msra.mxu0 %v10169
        %10211 = vmatprep.subr.bf16.mxu0 0
        %10212 = vmatpush1.bf16.msra.mxu0 %v10170
        %10213 = vmatprep.subr.bf16.mxu0 0
        %10214 = vmatpush1.bf16.msra.mxu0 %v10171
        %10215 = vmatprep.subr.bf16.mxu0 0
        %10216 = vmatpush1.bf16.msra.mxu0 %v10172
        %10217 = vmatprep.subr.bf16.mxu0 0
        %10218 = vmatpush1.bf16.msra.mxu0 %v10173
        %10219 = vmatprep.subr.bf16.mxu0 0
        %10220 = vmatpush1.bf16.msra.mxu0 0
        %10221 = vmatprep.subr.bf16.mxu0 0
        %10222 = vmatpush1.bf16.msra.mxu0 0
        %10223 = vmatprep.mubr.bf16.mxu0 %v10189
        %10224 = vmatmul.mubr.bf16.gmra.mrb[0].mxu0 %v10101
        %v10225 = vpop.f32.mrb[0].mxu0
        %v10226 = vadd.f32 0.0, %v10225
        %v10227 = vpop.f32.mrb[0].mxu0
        %v10228 = vpop.f32.mrb[0].mxu0
        %v10229 = vpop.f32.mrb[0].mxu0
        %10230 = vdwg.mxu0
        %v10231 = vadd.f32 %v10071, %v10226
        %s10232 = scalar_lea.vmem [#allocation12], 560
        %v10233 = vld [vmem:[%s10232] sm:$0xf]
        %v10234 = vld [vmem:[%s10232 + $0x4] sm:$0xf]
        %v10235 = vld [vmem:[%s10232 + $0x8] sm:$0xf]
        %v10236 = vld [vmem:[%s10232 + $0xc] sm:$0xf]
        %v10237 = vld [vmem:[%s10232 + $0x10] sm:$0xf]
        %v10238 = vld [vmem:[%s10232 + $0x14] sm:$0xf]
        %v10239 = vld [vmem:[%s10232 + $0x18] sm:$0xf]
        %v10240 = vld [vmem:[%s10232 + $0x1c] sm:$0xf]
        %v10241 = vld [vmem:[%s10232 + $0x20] sm:$0xf]
        %v10242 = vld [vmem:[%s10232 + $0x24] sm:$0xf]
        %v10243 = vld [vmem:[%s10232 + $0x28] sm:$0xf]
        %v10244 = vld [vmem:[%s10232 + $0x2c] sm:$0xf]
        %v10245 = vld [vmem:[%s10232 + $0x30] sm:$0xf]
        %v10246 = vld [vmem:[%s10232 + $0x34] sm:$0xf]
        %v10247 = vld [vmem:[%s10232 + $0x38] sm:$0xf]
        %v10248 = vld [vmem:[%s10232 + $0x3c] sm:$0xf]
        %v10249 = vld [vmem:[%s10232 + $0x40] sm:$0xf]
        %v10250 = vld [vmem:[%s10232 + $0x44] sm:$0xf]
        %v10251 = vld [vmem:[%s10232 + $0x48] sm:$0xf]
        %v10252 = vld [vmem:[%s10232 + $0x4c] sm:$0xf]
        %v10253 = vld [vmem:[%s10232 + $0x50] sm:$0xf]
        %v10254 = vld [vmem:[%s10232 + $0x54] sm:$0xf]
        %v10255 = vld [vmem:[%s10232 + $0x58] sm:$0xf]
        %v10256 = vld [vmem:[%s10232 + $0x5c] sm:$0xf]
        %v10257 = vld [vmem:[%s10232 + $0x60] sm:$0xf]
        %v10258 = vld [vmem:[%s10232 + $0x64] sm:$0xf]
        %v10259 = vld [vmem:[%s10232 + $0x68] sm:$0xf]
        %v10260 = vld [vmem:[%s10232 + $0x6c] sm:$0xf]
        %v10261 = vrot.slane %v9617, 2
        %v10262 = vrot.slane %v9619, 2
        %v10292 = vunpack.c.l.b16 %v10233
        %v10293 = vunpack.c.l.b16 %v10234
        %v10294 = vunpack.c.l.b16 %v10235
        %v10295 = vunpack.c.l.b16 %v10236
        %v10296 = vunpack.c.l.b16 %v10237
        %v10297 = vunpack.c.l.b16 %v10238
        %v10298 = vunpack.c.l.b16 %v10239
        %v10299 = vunpack.c.l.b16 %v10240
        %v10300 = vunpack.c.l.b16 %v10241
        %v10301 = vunpack.c.l.b16 %v10242
        %v10302 = vunpack.c.l.b16 %v10243
        %v10303 = vunpack.c.l.b16 %v10244
        %v10304 = vunpack.c.l.b16 %v10245
        %v10305 = vunpack.c.l.b16 %v10246
        %v10306 = vunpack.c.l.b16 %v10247
        %v10307 = vunpack.c.l.b16 %v10248
        %v10308 = vunpack.c.l.b16 %v10249
        %v10309 = vunpack.c.l.b16 %v10250
        %v10310 = vunpack.c.l.b16 %v10251
        %v10311 = vunpack.c.l.b16 %v10252
        %v10312 = vunpack.c.l.b16 %v10253
        %v10313 = vunpack.c.l.b16 %v10254
        %v10314 = vunpack.c.l.b16 %v10255
        %v10315 = vunpack.c.l.b16 %v10256
        %v10316 = vunpack.c.l.b16 %v10257
        %v10317 = vunpack.c.l.b16 %v10258
        %v10318 = vunpack.c.l.b16 %v10259
        %v10319 = vunpack.c.l.b16 %v10260
        %v10320 = vpack.c.b16 %v10293, %v10292
        %v10321 = vpack.c.b16 %v10295, %v10294
        %v10322 = vpack.c.b16 %v10297, %v10296
        %v10323 = vpack.c.b16 %v10299, %v10298
        %v10324 = vpack.c.b16 %v10301, %v10300
        %v10325 = vpack.c.b16 %v10303, %v10302
        %v10326 = vpack.c.b16 %v10305, %v10304
        %v10327 = vpack.c.b16 %v10307, %v10306
        %v10328 = vpack.c.b16 %v10309, %v10308
        %v10329 = vpack.c.b16 %v10311, %v10310
        %v10330 = vpack.c.b16 %v10313, %v10312
        %v10331 = vpack.c.b16 %v10315, %v10314
        %v10332 = vpack.c.b16 %v10317, %v10316
        %v10333 = vpack.c.b16 %v10319, %v10318
        %v10349 = vsel %vm9542, %v10262, 0
        %10351 = vmatprep.subr.bf16.mxu0 0
        %10352 = vmatpush1.bf16.msra.mxu0 %v10320
        %10353 = vmatprep.subr.bf16.mxu0 0
        %10354 = vmatpush1.bf16.msra.mxu0 %v10321
        %10355 = vmatprep.subr.bf16.mxu0 0
        %10356 = vmatpush1.bf16.msra.mxu0 %v10322
        %10357 = vmatprep.subr.bf16.mxu0 0
        %10358 = vmatpush1.bf16.msra.mxu0 %v10323
        %10359 = vmatprep.subr.bf16.mxu0 0
        %10360 = vmatpush1.bf16.msra.mxu0 %v10324
        %10361 = vmatprep.subr.bf16.mxu0 0
        %10362 = vmatpush1.bf16.msra.mxu0 %v10325
        %10363 = vmatprep.subr.bf16.mxu0 0
        %10364 = vmatpush1.bf16.msra.mxu0 %v10326
        %10365 = vmatprep.subr.bf16.mxu0 0
        %10366 = vmatpush1.bf16.msra.mxu0 %v10327
        %10367 = vmatprep.subr.bf16.mxu0 0
        %10368 = vmatpush1.bf16.msra.mxu0 %v10328
        %10369 = vmatprep.subr.bf16.mxu0 0
        %10370 = vmatpush1.bf16.msra.mxu0 %v10329
        %10371 = vmatprep.subr.bf16.mxu0 0
        %10372 = vmatpush1.bf16.msra.mxu0 %v10330
        %10373 = vmatprep.subr.bf16.mxu0 0
        %10374 = vmatpush1.bf16.msra.mxu0 %v10331
        %10375 = vmatprep.subr.bf16.mxu0 0
        %10376 = vmatpush1.bf16.msra.mxu0 %v10332
        %10377 = vmatprep.subr.bf16.mxu0 0
        %10378 = vmatpush1.bf16.msra.mxu0 %v10333
        %10379 = vmatprep.subr.bf16.mxu0 0
        %10380 = vmatpush1.bf16.msra.mxu0 0
        %10381 = vmatprep.subr.bf16.mxu0 0
        %10382 = vmatpush1.bf16.msra.mxu0 0
        %10383 = vmatprep.mubr.bf16.mxu0 %v10349
        %10384 = vmatmul.mubr.bf16.gmra.mrb[0].mxu0 %v10261
        %v10385 = vpop.f32.mrb[0].mxu0
        %v10386 = vadd.f32 0.0, %v10385
        %v10387 = vpop.f32.mrb[0].mxu0
        %v10388 = vpop.f32.mrb[0].mxu0
        %v10389 = vpop.f32.mrb[0].mxu0
        %10390 = vdwg.mxu0
        %v10391 = vadd.f32 %v10231, %v10386
        %s10392 = scalar_lea.vmem [#allocation12], 672
        %v10393 = vld [vmem:[%s10392] sm:$0xf]
        %v10394 = vld [vmem:[%s10392 + $0x4] sm:$0xf]
        %v10395 = vld [vmem:[%s10392 + $0x8] sm:$0xf]
        %v10396 = vld [vmem:[%s10392 + $0xc] sm:$0xf]
        %v10397 = vld [vmem:[%s10392 + $0x10] sm:$0xf]
        %v10398 = vld [vmem:[%s10392 + $0x14] sm:$0xf]
        %v10399 = vld [vmem:[%s10392 + $0x18] sm:$0xf]
        %v10400 = vld [vmem:[%s10392 + $0x1c] sm:$0xf]
        %v10401 = vld [vmem:[%s10392 + $0x20] sm:$0xf]
        %v10402 = vld [vmem:[%s10392 + $0x24] sm:$0xf]
        %v10403 = vld [vmem:[%s10392 + $0x28] sm:$0xf]
        %v10404 = vld [vmem:[%s10392 + $0x2c] sm:$0xf]
        %v10405 = vld [vmem:[%s10392 + $0x30] sm:$0xf]
        %v10406 = vld [vmem:[%s10392 + $0x34] sm:$0xf]
        %v10407 = vld [vmem:[%s10392 + $0x38] sm:$0xf]
        %v10408 = vld [vmem:[%s10392 + $0x3c] sm:$0xf]
        %v10409 = vld [vmem:[%s10392 + $0x40] sm:$0xf]
        %v10410 = vld [vmem:[%s10392 + $0x44] sm:$0xf]
        %v10411 = vld [vmem:[%s10392 + $0x48] sm:$0xf]
        %v10412 = vld [vmem:[%s10392 + $0x4c] sm:$0xf]
        %v10413 = vld [vmem:[%s10392 + $0x50] sm:$0xf]
        %v10414 = vld [vmem:[%s10392 + $0x54] sm:$0xf]
        %v10415 = vld [vmem:[%s10392 + $0x58] sm:$0xf]
        %v10416 = vld [vmem:[%s10392 + $0x5c] sm:$0xf]
        %v10417 = vld [vmem:[%s10392 + $0x60] sm:$0xf]
        %v10418 = vld [vmem:[%s10392 + $0x64] sm:$0xf]
        %v10419 = vld [vmem:[%s10392 + $0x68] sm:$0xf]
        %v10420 = vld [vmem:[%s10392 + $0x6c] sm:$0xf]
        %v10421 = vrot.slane %v9427, 3
        %v10422 = vrot.slane %v9428, 3
        %v10452 = vunpack.c.l.b16 %v10393
        %v10453 = vunpack.c.l.b16 %v10394
        %v10454 = vunpack.c.l.b16 %v10395
        %v10455 = vunpack.c.l.b16 %v10396
        %v10456 = vunpack.c.l.b16 %v10397
        %v10457 = vunpack.c.l.b16 %v10398
        %v10458 = vunpack.c.l.b16 %v10399
        %v10459 = vunpack.c.l.b16 %v10400
        %v10460 = vunpack.c.l.b16 %v10401
        %v10461 = vunpack.c.l.b16 %v10402
        %v10462 = vunpack.c.l.b16 %v10403
        %v10463 = vunpack.c.l.b16 %v10404
        %v10464 = vunpack.c.l.b16 %v10405
        %v10465 = vunpack.c.l.b16 %v10406
        %v10466 = vunpack.c.l.b16 %v10407
        %v10467 = vunpack.c.l.b16 %v10408
        %v10468 = vunpack.c.l.b16 %v10409
        %v10469 = vunpack.c.l.b16 %v10410
        %v10470 = vunpack.c.l.b16 %v10411
        %v10471 = vunpack.c.l.b16 %v10412
        %v10472 = vunpack.c.l.b16 %v10413
        %v10473 = vunpack.c.l.b16 %v10414
        %v10474 = vunpack.c.l.b16 %v10415
        %v10475 = vunpack.c.l.b16 %v10416
        %v10476 = vunpack.c.l.b16 %v10417
        %v10477 = vunpack.c.l.b16 %v10418
        %v10478 = vunpack.c.l.b16 %v10419
        %v10479 = vunpack.c.l.b16 %v10420
        %v10480 = vpack.c.b16 %v10453, %v10452
        %v10481 = vpack.c.b16 %v10455, %v10454
        %v10482 = vpack.c.b16 %v10457, %v10456
        %v10483 = vpack.c.b16 %v10459, %v10458
        %v10484 = vpack.c.b16 %v10461, %v10460
        %v10485 = vpack.c.b16 %v10463, %v10462
        %v10486 = vpack.c.b16 %v10465, %v10464
        %v10487 = vpack.c.b16 %v10467, %v10466
        %v10488 = vpack.c.b16 %v10469, %v10468
        %v10489 = vpack.c.b16 %v10471, %v10470
        %v10490 = vpack.c.b16 %v10473, %v10472
        %v10491 = vpack.c.b16 %v10475, %v10474
        %v10492 = vpack.c.b16 %v10477, %v10476
        %v10493 = vpack.c.b16 %v10479, %v10478
        %v10509 = vsel %vm9542, %v10422, 0
        %10511 = vmatprep.subr.bf16.mxu0 0
        %10512 = vmatpush1.bf16.msra.mxu0 %v10480
        %10513 = vmatprep.subr.bf16.mxu0 0
        %10514 = vmatpush1.bf16.msra.mxu0 %v10481
        %10515 = vmatprep.subr.bf16.mxu0 0
        %10516 = vmatpush1.bf16.msra.mxu0 %v10482
        %10517 = vmatprep.subr.bf16.mxu0 0
        %10518 = vmatpush1.bf16.msra.mxu0 %v10483
        %10519 = vmatprep.subr.bf16.mxu0 0
        %10520 = vmatpush1.bf16.msra.mxu0 %v10484
        %10521 = vmatprep.subr.bf16.mxu0 0
        %10522 = vmatpush1.bf16.msra.mxu0 %v10485
        %10523 = vmatprep.subr.bf16.mxu0 0
        %10524 = vmatpush1.bf16.msra.mxu0 %v10486
        %10525 = vmatprep.subr.bf16.mxu0 0
        %10526 = vmatpush1.bf16.msra.mxu0 %v10487
        %10527 = vmatprep.subr.bf16.mxu0 0
        %10528 = vmatpush1.bf16.msra.mxu0 %v10488
        %10529 = vmatprep.subr.bf16.mxu0 0
        %10530 = vmatpush1.bf16.msra.mxu0 %v10489
        %10531 = vmatprep.subr.bf16.mxu0 0
        %10532 = vmatpush1.bf16.msra.mxu0 %v10490
        %10533 = vmatprep.subr.bf16.mxu0 0
        %10534 = vmatpush1.bf16.msra.mxu0 %v10491
        %10535 = vmatprep.subr.bf16.mxu0 0
        %10536 = vmatpush1.bf16.msra.mxu0 %v10492
        %10537 = vmatprep.subr.bf16.mxu0 0
        %10538 = vmatpush1.bf16.msra.mxu0 %v10493
        %10539 = vmatprep.subr.bf16.mxu0 0
        %10540 = vmatpush1.bf16.msra.mxu0 0
        %10541 = vmatprep.subr.bf16.mxu0 0
        %10542 = vmatpush1.bf16.msra.mxu0 0
        %10543 = vmatprep.mubr.bf16.mxu0 %v10509
        %10544 = vmatmul.mubr.bf16.gmra.mrb[0].mxu0 %v10421
        %v10545 = vpop.f32.mrb[0].mxu0
        %v10546 = vadd.f32 0.0, %v10545
        %v10547 = vpop.f32.mrb[0].mxu0
        %v10548 = vpop.f32.mrb[0].mxu0
        %v10549 = vpop.f32.mrb[0].mxu0
        %10550 = vdwg.mxu0
        %v10551 = vadd.f32 %v10391, %v10546
        %10552 = vst [vmem:[%s352] sm:$0x1] %v10551
        %s10553 = sand.u32 %s185, 1
        %s10554 = scalar_lea.sflag [#allocation6], %s10553
        %s10555 = sand.u32 %s185, 1
        %s10556 = scalar_lea.vmem [#allocation15], %s10555
        // Predicated region
        $region73: #{cnn_forward.1} parent=47 // pred_check
          %p10557 = pneg %p195
        $region74: #{cnn_forward.1} parent=47 // pred_check_branch
          %10559 = sbr.rel (%p10557) target = $region76
        $region75: #{cnn_forward.1} parent=47 // pred_region
          %s10561 = ssub.s32 16, 16
          %10562 = vsyncadd %s10554, %s10561
          %s10563 = smul.addr %s25, 16
          %s10564 = scalar_lea.hbm %s7, %s10563
          %s10566 = sshll.u32 %s10556, 4
          %s10567 = int_to_ptr.vmem [resolvable:$true] %s10566
          %10569 = dma.vmem_to_hbm [thread:$0]  %s10567, 16, %s10564, %s10554
        $region76: #{cnn_forward.1} parent=47 // pred_fallthru
          _
      $region48: #{cnn_forward.1} parent=5 // pred_fallthru
        _
      %p10570 = scmp.le.s32.totalorder 2, %s20
      // Predicated region
      $region77: #{cnn_forward.1} parent=5 // pred_check
        %p10571 = pneg %p10570
      $region78: #{cnn_forward.1} parent=5 // pred_check_branch
        %10573 = sbr.rel (%p10571) target = $region80
      $region79: #{cnn_forward.1} parent=5 // pred_region
        %s10574 = ssub.s32 %s20, 2
        // Predicated region
        $region81: #{cnn_forward.1} parent=79 // pred_check
          %p10575 = pneg %p201
        $region82: #{cnn_forward.1} parent=79 // pred_check_branch
          %10577 = sbr.rel (%p10575) target = $region84
        $region83: #{cnn_forward.1} parent=79 // pred_region
          %s10578 = sand.u32 %s186, 1
          %s10579 = scalar_lea.sflag [#allocation6], %s10578
          %s10580 = sand.u32 %s186, 1
          %s10581 = scalar_lea.vmem [#allocation15], %s10580
          %10582 = dma.done %s10579, 16
        $region84: #{cnn_forward.1} parent=79 // pred_fallthru
          _
      $region80: #{cnn_forward.1} parent=5 // pred_fallthru
        _
    $region6: #{cnn_forward.1} parent=1 // loop_footer
      %s24 = sadd.s32 1, %s20
    $region7: #{cnn_forward.1} parent=1 // loop_footer_branch
      %19 = sbr.rel target = $region3
    $region8: #{cnn_forward.1} parent=1 // loop_exit
      _
    %10583 = vsyncpa [#allocation5], 1
    %s10584 = scalar_lea.sflag [#allocation5], 1
    %10585 = vsyncpa %s10584, 1
    %10586 = vsyncpa [#allocation8], 1
    %10587 = vsyncpa [#allocation11], 1
    %10588 = vsyncpa [#allocation14], 1
    %10589 = vsyncpa [#allocation6], 1
    %s10590 = scalar_lea.sflag [#allocation6], 1
    %10591 = vsyncpa %s10590, 1

</llo_original>
